<compile_context>
chip_gen: v7x
topology: tpu7x:2x2x1
jax: 0.10.0
libtpu: 0.0.40
codegen_flags: <defaults>
</compile_context>

<pallas_src>
import functools

import jax
import jax.numpy as jnp
from jax import lax
from jax.experimental import pallas as pl
from jax.experimental.pallas import tpu as pltpu

_EPS = 1e-5
_LANE = 128
_VMEM_LIMIT = 48 * 1024 * 1024      # explicit scoped-VMEM budget (safe on v5e/v6e/v7x)


def _rup(n, m=_LANE):
    return ((n + m - 1) // m) * m


def _row_tile(rows, cap=512):
    """Largest multiple of 8 that divides `rows` and is <= cap (fallback: rows)."""
    t = min(cap, rows)
    t -= t % 8
    while t >= 8 and rows % t != 0:
        t -= 8
    return t if (t >= 8 and rows % t == 0) else rows


def _pad_last(a, to):
    pad = to - a.shape[-1]
    if pad == 0:
        return a
    widths = [(0, 0)] * a.ndim
    widths[-1] = (0, pad)
    return jnp.pad(a, widths)


def _pad_axis(a, axis, to):
    pad = to - a.shape[axis]
    if pad == 0:
        return a
    widths = [(0, 0)] * a.ndim
    widths[axis] = (0, pad)
    return jnp.pad(a, widths)


# ----------------------------- Pallas kernels -----------------------------

def _bn_stats_kernel(x_ref, mean_ref, rstd_ref, *, total_rows):
    # Row-tiled reduction: accumulate per-channel sum / sum-of-squares into the
    # resident (1, C) outputs; convert to (mean, rstd) on the last grid step.
    @pl.when(pl.program_id(0) == 0)
    def _init():
        mean_ref[...] = jnp.zeros_like(mean_ref)
        rstd_ref[...] = jnp.zeros_like(rstd_ref)

    x = x_ref[...]
    mean_ref[...] += jnp.sum(x, axis=0, keepdims=True)
    rstd_ref[...] += jnp.sum(x * x, axis=0, keepdims=True)

    @pl.when(pl.program_id(0) == pl.num_programs(0) - 1)
    def _finalize():
        inv = 1.0 / total_rows
        m = mean_ref[...] * inv
        var = jnp.maximum(rstd_ref[...] * inv - m * m, 0.0)
        mean_ref[...] = m
        rstd_ref[...] = lax.rsqrt(var + _EPS)


def _bn_relu_kernel(x_ref, mean_ref, rstd_ref, g_ref, b_ref, o_ref):
    # Normalize + per-sample affine + ReLU on one (tm, C) row tile (f32 VPU math).
    y = (x_ref[...] - mean_ref[...]) * rstd_ref[...] * g_ref[0] + b_ref[0]
    o_ref[...] = jnp.maximum(y, 0.0)


def _bn_relu_mm_kernel(x_ref, mean_ref, rstd_ref, g_ref, b_ref, w_ref, bias_ref, o_ref):
    # Fused CBN+ReLU epilogue on the A tile, then 1x1 conv as a bf16 MXU matmul.
    a = jnp.maximum((x_ref[...] - mean_ref[...]) * rstd_ref[...] * g_ref[0] + b_ref[0], 0.0)
    acc = jnp.dot(a.astype(jnp.bfloat16), w_ref[...], preferred_element_type=jnp.float32)
    o_ref[...] = acc + bias_ref[...]


def _bn_relu_mm_skip_kernel(x_ref, mean_ref, rstd_ref, g_ref, b_ref, w_ref,
                            bias_ref, s_ref, o_ref):
    a = jnp.maximum((x_ref[...] - mean_ref[...]) * rstd_ref[...] * g_ref[0] + b_ref[0], 0.0)
    acc = jnp.dot(a.astype(jnp.bfloat16), w_ref[...], preferred_element_type=jnp.float32)
    o_ref[...] = acc + bias_ref[...] + s_ref[...]


def _conv3x3_kernel(x_ref, w_ref, b_ref, o_ref, *, H, W):
    # x_ref: (1, H+2, W+2, C) zero-padded activations for one sample.
    # 9-tap accumulation against resident (C, Co) weight slices — no im2col.
    xp = x_ref[0]
    C = xp.shape[-1]
    Co = o_ref.shape[-1]
    acc = jnp.zeros((H * W, Co), jnp.float32)
    for dy in range(3):
        for dx in range(3):
            patch = xp[dy:dy + H, dx:dx + W, :].reshape(H * W, C).astype(jnp.bfloat16)
            acc = acc + jnp.dot(patch, w_ref[dy * 3 + dx],
                                preferred_element_type=jnp.float32)
    o_ref[...] = acc + b_ref[...]


# ----------------------------- kernel wrappers -----------------------------

def bn_stats(x2d):
    M, C = x2d.shape
    tm = _row_tile(M)
    return pl.pallas_call(
        functools.partial(_bn_stats_kernel, total_rows=float(M)),
        out_shape=(jax.ShapeDtypeStruct((1, C), jnp.float32),
                   jax.ShapeDtypeStruct((1, C), jnp.float32)),
        grid=(M // tm,),
        in_specs=[pl.BlockSpec((tm, C), lambda i: (i, 0))],
        out_specs=(pl.BlockSpec((1, C), lambda i: (0, 0)),
                   pl.BlockSpec((1, C), lambda i: (0, 0))),
        compiler_params=pltpu.CompilerParams(
            dimension_semantics=("arbitrary",), vmem_limit_bytes=_VMEM_LIMIT),
    )(x2d)


def bn_relu(x2d, mean, rstd, gamma, beta, *, N, HW):
    M, C = x2d.shape
    tm = _row_tile(HW)
    jt = HW // tm
    row = lambda n, j: (n * jt + j, 0)
    return pl.pallas_call(
        _bn_relu_kernel,
        out_shape=jax.ShapeDtypeStruct((M, C), jnp.float32),
        grid=(N, jt),
        in_specs=[pl.BlockSpec((tm, C), row),
                  pl.BlockSpec((1, C), lambda n, j: (0, 0)),
                  pl.BlockSpec((1, C), lambda n, j: (0, 0)),
                  pl.BlockSpec((1, 1, C), lambda n, j: (n, 0, 0)),
                  pl.BlockSpec((1, 1, C), lambda n, j: (n, 0, 0))],
        out_specs=pl.BlockSpec((tm, C), row),
        compiler_params=pltpu.CompilerParams(
            dimension_semantics=("parallel", "parallel"),
            vmem_limit_bytes=_VMEM_LIMIT),
    )(x2d, mean, rstd, gamma, beta)


def bn_relu_matmul(x2d, mean, rstd, gamma, beta, w, b, *, N, HW, skip=None):
    M, K = x2d.shape
    Nc = w.shape[-1]
    tm = _row_tile(HW)
    jt = HW // tm
    row = lambda n, j: (n * jt + j, 0)
    in_specs = [pl.BlockSpec((tm, K), row),
                pl.BlockSpec((1, K), lambda n, j: (0, 0)),
                pl.BlockSpec((1, K), lambda n, j: (0, 0)),
                pl.BlockSpec((1, 1, K), lambda n, j: (n, 0, 0)),
                pl.BlockSpec((1, 1, K), lambda n, j: (n, 0, 0)),
                pl.BlockSpec((K, Nc), lambda n, j: (0, 0)),
                pl.BlockSpec((1, Nc), lambda n, j: (0, 0))]
    args = [x2d, mean, rstd, gamma, beta, w, b]
    kernel = _bn_relu_mm_kernel
    io_alias = {}
    if skip is not None:
        in_specs.append(pl.BlockSpec((tm, Nc), row))
        args.append(skip)
        kernel = _bn_relu_mm_skip_kernel
        io_alias = {7: 0}          # write the result over the skip buffer
    return pl.pallas_call(
        kernel,
        out_shape=jax.ShapeDtypeStruct((M, Nc), jnp.float32),
        grid=(N, jt),
        in_specs=in_specs,
        out_specs=pl.BlockSpec((tm, Nc), row),
        input_output_aliases=io_alias,
        compiler_params=pltpu.CompilerParams(
            dimension_semantics=("parallel", "parallel"),
            vmem_limit_bytes=_VMEM_LIMIT),
    )(*args)


def conv3x3_bias(x_pad, w9, b, *, H, W):
    N, Hp, Wp, C = x_pad.shape
    Co = w9.shape[-1]
    return pl.pallas_call(
        functools.partial(_conv3x3_kernel, H=H, W=W),
        out_shape=jax.ShapeDtypeStruct((N * H * W, Co), jnp.float32),
        grid=(N,),
        in_specs=[pl.BlockSpec((1, Hp, Wp, C), lambda n: (n, 0, 0, 0)),
                  pl.BlockSpec((9, C, Co), lambda n: (0, 0, 0)),
                  pl.BlockSpec((1, Co), lambda n: (0, 0))],
        out_specs=pl.BlockSpec((H * W, Co), lambda n: (n, 0)),
        compiler_params=pltpu.CompilerParams(
            dimension_semantics=("parallel",), vmem_limit_bytes=_VMEM_LIMIT),
    )(x_pad, w9, b)


# ------------------------------- JAX glue ---------------------------------

def _nearest_upsample(x_nhwc, s):
    return jnp.repeat(jnp.repeat(x_nhwc, s, axis=1), s, axis=2)


def gblock_forward(params, x_nchw, emb, upsample):
    x = jnp.transpose(x_nchw, (0, 2, 3, 1)).astype(jnp.float32)        # NCHW -> NHWC
    N, H, W, in_ch = x.shape
    hidden = params["w1"].shape[-1]
    out_ch = params["w4"].shape[-1]
    Ci, Ch, Co = _rup(in_ch), _rup(hidden), _rup(out_ch)               # lane-dense channels

    # Lane-padded, bf16 weights (zero padding keeps semantics exact).
    w1 = _pad_axis(_pad_last(params["w1"], Ch), 0, Ci).astype(jnp.bfloat16)
    w4 = _pad_axis(_pad_last(params["w4"], Co), 0, Ch).astype(jnp.bfloat16)
    w2 = _pad_axis(_pad_last(params["w2"], Ch), 2, Ch).reshape(9, Ch, Ch).astype(jnp.bfloat16)
    w3 = _pad_axis(_pad_last(params["w3"], Ch), 2, Ch).reshape(9, Ch, Ch).astype(jnp.bfloat16)
    b1, b2 = _pad_last(params["b1"], Ch), _pad_last(params["b2"], Ch)
    b3, b4 = _pad_last(params["b3"], Ch), _pad_last(params["b4"], Co)

    # Per-sample conditional-BN gains/biases: tiny (N, C) projections (XLA glue),
    # kept as (N, 1, C) so kernels index them per sample — no (M, C) repeat.
    g1 = _pad_last(1.0 + emb @ params["bn1_wg"], Ci)[:, None, :]
    be1 = _pad_last(emb @ params["bn1_wb"], Ci)[:, None, :]
    g2 = _pad_last(1.0 + emb @ params["bn2_wg"], Ch)[:, None, :]
    be2 = _pad_last(emb @ params["bn2_wb"], Ch)[:, None, :]
    g3 = _pad_last(1.0 + emb @ params["bn3_wg"], Ch)[:, None, :]
    be3 = _pad_last(emb @ params["bn3_wb"], Ch)[:, None, :]
    g4 = _pad_last(1.0 + emb @ params["bn4_wg"], Ch)[:, None, :]
    be4 = _pad_last(emb @ params["bn4_wb"], Ch)[:, None, :]

    skip = _pad_last(x[..., :out_ch], Co)                              # (N, H, W, Co)
    xp = _pad_last(x, Ci).reshape(N * H * W, Ci)

    # relu(bn1(x)) fused into conv1 (1x1).
    mean1, rstd1 = bn_stats(xp)
    h = bn_relu_matmul(xp, mean1, rstd1, g1, be1, w1, b1, N=N, HW=H * W)

    # relu(bn2(.)).
    mean2, rstd2 = bn_stats(h)
    h = bn_relu(h, mean2, rstd2, g2, be2, N=N, HW=H * W).reshape(N, H, W, Ch)

    if upsample > 1:
        # TODO(synk): fold the nearest-neighbour upsample into the conv2 / skip DMA
        #             (index_map row gather) instead of materializing it in HBM.
        h = _nearest_upsample(h, upsample)
        skip = _nearest_upsample(skip, upsample)
        H, W = H * upsample, W * upsample

    # conv2 (3x3, pad=1) — per-sample 9-tap kernel, no im2col.
    h = conv3x3_bias(jnp.pad(h, ((0, 0), (1, 1), (1, 1), (0, 0))), w2, b2, H=H, W=W)

    # relu(bn3(.)) + conv3 (3x3).
    mean3, rstd3 = bn_stats(h)
    h = bn_relu(h, mean3, rstd3, g3, be3, N=N, HW=H * W).reshape(N, H, W, Ch)
    h = conv3x3_bias(jnp.pad(h, ((0, 0), (1, 1), (1, 1), (0, 0))), w3, b3, H=H, W=W)

    # relu(bn4(.)) fused into conv4 (1x1) + residual add (skip aliased to output).
    mean4, rstd4 = bn_stats(h)
    out = bn_relu_matmul(h, mean4, rstd4, g4, be4, w4, b4, N=N, HW=H * W,
                         skip=skip.reshape(N * H * W, Co))

    out = out.reshape(N, H, W, Co)[..., :out_ch]
    return jnp.transpose(out, (0, 3, 1, 2))                            # back to NCHW


# --------------------------- pure-JAX reference ----------------------------

def _ref_cbn_relu(x, emb, wg, wb):
    mean = jnp.mean(x, axis=(0, 1, 2), keepdims=True)
    var = jnp.mean(jnp.square(x - mean), axis=(0, 1, 2), keepdims=True)
    xhat = (x - mean) / jnp.sqrt(var + _EPS)
    gamma = (1.0 + emb @ wg)[:, None, None, :]
    beta = (emb @ wb)[:, None, None, :]
    return jax.nn.relu(xhat * gamma + beta)


def gblock_ref(params, x_nchw, emb, upsample):
    x = jnp.transpose(x_nchw, (0, 2, 3, 1)).astype(jnp.float32)
    hidden = params["w1"].shape[-1]
    out_ch = params["w4"].shape[-1]
    dn = ("NHWC", "HWIO", "NHWC")

    def conv(x, w, b, pad):
        return lax.conv_general_dilated(x, w, (1, 1), pad,
                                        dimension_numbers=dn) + b.reshape(1, 1, 1, -1)

    skip = x[..., :out_ch]
    h = _ref_cbn_relu(x, emb, params["bn1_wg"], params["bn1_wb"])
    h = conv(h, params["w1"].reshape(1, 1, -1, hidden), params["b1"], "VALID")
    h = _ref_cbn_relu(h, emb, params["bn2_wg"], params["bn2_wb"])
    if upsample > 1:
        h = _nearest_upsample(h, upsample)
        skip = _nearest_upsample(skip, upsample)
    h = conv(h, params["w2"], params["b2"], "SAME")
    h = _ref_cbn_relu(h, emb, params["bn3_wg"], params["bn3_wb"])
    h = conv(h, params["w3"], params["b3"], "SAME")
    h = _ref_cbn_relu(h, emb, params["bn4_wg"], params["bn4_wb"])
    h = conv(h, params["w4"].reshape(1, 1, hidden, out_ch), params["b4"], "VALID")
    return jnp.transpose(h + skip, (0, 3, 1, 2))


# ------------------------------- parameters --------------------------------

def init_params(key, in_ch, out_ch, emb_dims, bottleneck_ratio=4):
    hidden = out_ch // bottleneck_ratio
    ks = jax.random.split(key, 16)

    def nrm(k, shape, scale=0.05):
        return scale * jax.random.normal(k, shape, dtype=jnp.float32)

    return dict(
        # 1x1 convs stored as (Cin, Cout) matrices; 3x3 convs stored HWIO.
        w1=nrm(ks[0], (in_ch, hidden)),        b1=nrm(ks[1], (1, hidden)),
        w2=nrm(ks[2], (3, 3, hidden, hidden)), b2=nrm(ks[3], (1, hidden)),
        w3=nrm(ks[4], (3, 3, hidden, hidden)), b3=nrm(ks[5], (1, hidden)),
        w4=nrm(ks[6], (hidden, out_ch)),       b4=nrm(ks[7], (1, out_ch)),
        bn1_wg=nrm(ks[8],  (emb_dims, in_ch)),  bn1_wb=nrm(ks[9],  (emb_dims, in_ch)),
        bn2_wg=nrm(ks[10], (emb_dims, hidden)), bn2_wb=nrm(ks[11], (emb_dims, hidden)),
        bn3_wg=nrm(ks[12], (emb_dims, hidden)), bn3_wb=nrm(ks[13], (emb_dims, hidden)),
        bn4_wg=nrm(ks[14], (emb_dims, hidden)), bn4_wb=nrm(ks[15], (emb_dims, hidden)),
    )


# ---------------------------------- main ------------------------------------

if __name__ == "__main__":
    in_ch, out_ch, upsample, emb_dims = 32, 16, 2, 32     # hidden_ch = out_ch // 4 = 4
    N, H, W = 2, 8, 8

    key = jax.random.PRNGKey(0)
    kx, ke, kp = jax.random.split(key, 3)
    x = jax.random.normal(kx, (N, in_ch, H, W), dtype=jnp.float32)      # NCHW, like PyTorch
    emb = jax.random.normal(ke, (N, emb_dims), dtype=jnp.float32)
    params = init_params(kp, in_ch, out_ch, emb_dims)

    fwd = jax.jit(functools.partial(gblock_forward, upsample=upsample))
    out = jax.block_until_ready(fwd(params, x, emb))

    assert out.shape == (N, out_ch, H * upsample, W * upsample), out.shape

    ref = gblock_ref(params, x, emb, upsample)
    err = float(jnp.max(jnp.abs(out - ref)))
    # Tolerance accounts for bf16 MXU operands (f32 accumulation) vs the f32 reference.
    if err > 5e-2:
        raise AssertionError(f"Pallas output mismatch vs reference, max abs err = {err}")

    print("KERNEL_OK")
</pallas_src>

<mosaic_0001>
module attributes {stable_mosaic.version = 11 : i64} {
  func.func @_bn_stats_kernel(%arg0: i32, %arg1: memref<128x128xf32, #tpu.memory_space<vmem>>, %arg2: memref<1x128xf32, #tpu.memory_space<vmem>>, %arg3: memref<1x128xf32, #tpu.memory_space<vmem>>) attributes {dimension_semantics = [#tpu.dimension_semantics<arbitrary>], iteration_bounds = array<i64: 1>, scalar_prefetch = 0 : i64, scratch_operands = 0 : i64, tpu.core_type = #tpu.core_type<tc>, window_params = [{transform_indices = @transform_0, window_bounds = array<i64: 128, 128>}, {pipeline_mode = #tpu.pipeline_mode<synchronous>, transform_indices = @transform_1, window_bounds = array<i64: 1, 128>}, {pipeline_mode = #tpu.pipeline_mode<synchronous>, transform_indices = @transform_2, window_bounds = array<i64: 1, 128>}]} {
    %c0_i32 = arith.constant 0 : i32
    %0 = arith.cmpi eq, %arg0, %c0_i32 : i32
    %1 = arith.extui %0 : i1 to i32
    %c0_i32_0 = arith.constant 0 : i32
    %2 = arith.cmpi ne, %1, %c0_i32_0 : i32
    scf.if %2 {
      %cst_13 = arith.constant 0.000000e+00 : f32
      %18 = vector.broadcast %cst_13 : f32 to vector<1x128xf32>
      %c0_14 = arith.constant 0 : index
      %c0_15 = arith.constant 0 : index
      %19 = vector.load %arg2[%c0_14, %c0_15] : memref<1x128xf32, #tpu.memory_space<vmem>>, vector<1x128xf32>
      tpu.vector_store %arg2[%c0_14, %c0_15], %18 {strides = array<i32>} : memref<1x128xf32, #tpu.memory_space<vmem>>, vector<1x128xf32>,
      %cst_16 = arith.constant 0.000000e+00 : f32
      %20 = vector.broadcast %cst_16 : f32 to vector<1x128xf32>
      %c0_17 = arith.constant 0 : index
      %c0_18 = arith.constant 0 : index
      %21 = vector.load %arg3[%c0_17, %c0_18] : memref<1x128xf32, #tpu.memory_space<vmem>>, vector<1x128xf32>
      tpu.vector_store %arg3[%c0_17, %c0_18], %20 {strides = array<i32>} : memref<1x128xf32, #tpu.memory_space<vmem>>, vector<1x128xf32>,
    } else {
    }
    %c0 = arith.constant 0 : index
    %c0_1 = arith.constant 0 : index
    %3 = vector.load %arg1[%c0, %c0_1] : memref<128x128xf32, #tpu.memory_space<vmem>>, vector<128x128xf32>
    %c0_2 = arith.constant 0 : index
    %c0_3 = arith.constant 0 : index
    %4 = vector.load %arg2[%c0_2, %c0_3] : memref<1x128xf32, #tpu.memory_space<vmem>>, vector<1x128xf32>
    %cst = arith.constant dense<0.000000e+00> : vector<128xf32>
    %5 = vector.multi_reduction <add>, %3, %cst [0] : vector<128x128xf32> to vector<128xf32>
    %6 = vector.shape_cast %5 : vector<128xf32> to vector<1x128xf32>
    %7 = arith.addf %4, %6 : vector<1x128xf32>
    %c0_4 = arith.constant 0 : index
    %c0_5 = arith.constant 0 : index
    %8 = vector.load %arg2[%c0_4, %c0_5] : memref<1x128xf32, #tpu.memory_space<vmem>>, vector<1x128xf32>
    tpu.vector_store %arg2[%c0_4, %c0_5], %7 {strides = array<i32>} : memref<1x128xf32, #tpu.memory_space<vmem>>, vector<1x128xf32>,
    %c0_6 = arith.constant 0 : index
    %c0_7 = arith.constant 0 : index
    %9 = vector.load %arg3[%c0_6, %c0_7] : memref<1x128xf32, #tpu.memory_space<vmem>>, vector<1x128xf32>
    %10 = arith.mulf %3, %3 : vector<128x128xf32>
    %cst_8 = arith.constant dense<0.000000e+00> : vector<128xf32>
    %11 = vector.multi_reduction <add>, %10, %cst_8 [0] : vector<128x128xf32> to vector<128xf32>
    %12 = vector.shape_cast %11 : vector<128xf32> to vector<1x128xf32>
    %13 = arith.addf %9, %12 : vector<1x128xf32>
    %c0_9 = arith.constant 0 : index
    %c0_10 = arith.constant 0 : index
    %14 = vector.load %arg3[%c0_9, %c0_10] : memref<1x128xf32, #tpu.memory_space<vmem>>, vector<1x128xf32>
    tpu.vector_store %arg3[%c0_9, %c0_10], %13 {strides = array<i32>} : memref<1x128xf32, #tpu.memory_space<vmem>>, vector<1x128xf32>,
    %c0_i32_11 = arith.constant 0 : i32
    %15 = arith.cmpi eq, %arg0, %c0_i32_11 : i32
    %16 = arith.extui %15 : i1 to i32
    %c0_i32_12 = arith.constant 0 : i32
    %17 = arith.cmpi ne, %16, %c0_i32_12 : i32
    scf.if %17 {
      %c0_13 = arith.constant 0 : index
      %c0_14 = arith.constant 0 : index
      %18 = vector.load %arg2[%c0_13, %c0_14] : memref<1x128xf32, #tpu.memory_space<vmem>>, vector<1x128xf32>
      %cst_15 = arith.constant 7.812500e-03 : f32
      %19 = vector.broadcast %cst_15 : f32 to vector<1x128xf32>
      %20 = arith.mulf %18, %19 : vector<1x128xf32>
      %c0_16 = arith.constant 0 : index
      %c0_17 = arith.constant 0 : index
      %21 = vector.load %arg3[%c0_16, %c0_17] : memref<1x128xf32, #tpu.memory_space<vmem>>, vector<1x128xf32>
      %cst_18 = arith.constant 7.812500e-03 : f32
      %22 = vector.broadcast %cst_18 : f32 to vector<1x128xf32>
      %23 = arith.mulf %21, %22 : vector<1x128xf32>
      %24 = arith.mulf %20, %20 : vector<1x128xf32>
      %25 = arith.subf %23, %24 : vector<1x128xf32>
      %cst_19 = arith.constant 0.000000e+00 : f32
      %26 = vector.broadcast %cst_19 : f32 to vector<1x128xf32>
      %27 = arith.maximumf %25, %26 : vector<1x128xf32>
      %c0_20 = arith.constant 0 : index
      %c0_21 = arith.constant 0 : index
      %28 = vector.load %arg2[%c0_20, %c0_21] : memref<1x128xf32, #tpu.memory_space<vmem>>, vector<1x128xf32>
      tpu.vector_store %arg2[%c0_20, %c0_21], %20 {strides = array<i32>} : memref<1x128xf32, #tpu.memory_space<vmem>>, vector<1x128xf32>,
      %cst_22 = arith.constant 9.99999974E-6 : f32
      %29 = vector.broadcast %cst_22 : f32 to vector<1x128xf32>
      %30 = arith.addf %27, %29 : vector<1x128xf32>
      %31 = math.rsqrt %30 : vector<1x128xf32>
      %c0_23 = arith.constant 0 : index
      %c0_24 = arith.constant 0 : index
      %32 = vector.load %arg3[%c0_23, %c0_24] : memref<1x128xf32, #tpu.memory_space<vmem>>, vector<1x128xf32>
      tpu.vector_store %arg3[%c0_23, %c0_24], %31 {strides = array<i32>} : memref<1x128xf32, #tpu.memory_space<vmem>>, vector<1x128xf32>,
    } else {
    }
    return
  }
  func.func @transform_0(%arg0: i32) -> (i32, i32) {
    %c0_i32 = arith.constant 0 : i32
    %c0_i32_0 = arith.constant 0 : i32
    return %arg0, %c0_i32 : i32, i32
  }
  func.func @transform_1(%arg0: i32) -> (i32, i32) {
    %c0_i32 = arith.constant 0 : i32
    %c0_i32_0 = arith.constant 0 : i32
    %c0_i32_1 = arith.constant 0 : i32
    return %c0_i32, %c0_i32_0 : i32, i32
  }
  func.func @transform_2(%arg0: i32) -> (i32, i32) {
    %c0_i32 = arith.constant 0 : i32
    %c0_i32_0 = arith.constant 0 : i32
    %c0_i32_1 = arith.constant 0 : i32
    return %c0_i32, %c0_i32_0 : i32, i32
  }
}

module attributes {stable_mosaic.version = 11 : i64} {
  func.func @_bn_relu_mm_kernel(%arg0: i32, %arg1: i32, %arg2: memref<64x128xf32, #tpu.memory_space<vmem>>, %arg3: memref<1x128xf32, #tpu.memory_space<vmem>>, %arg4: memref<1x128xf32, #tpu.memory_space<vmem>>, %arg5: memref<1x1x128xf32, #tpu.memory_space<vmem>>, %arg6: memref<1x1x128xf32, #tpu.memory_space<vmem>>, %arg7: memref<128x128xbf16, #tpu.memory_space<vmem>>, %arg8: memref<1x128xf32, #tpu.memory_space<vmem>>, %arg9: memref<64x128xf32, #tpu.memory_space<vmem>>) attributes {dimension_semantics = [#tpu.dimension_semantics<parallel>, #tpu.dimension_semantics<parallel>], iteration_bounds = array<i64: 2, 1>, scalar_prefetch = 0 : i64, scratch_operands = 0 : i64, tpu.core_type = #tpu.core_type<tc>, window_params = [{transform_indices = @transform_0, window_bounds = array<i64: 64, 128>}, {pipeline_mode = #tpu.pipeline_mode<synchronous>, transform_indices = @transform_1, window_bounds = array<i64: 1, 128>}, {pipeline_mode = #tpu.pipeline_mode<synchronous>, transform_indices = @transform_2, window_bounds = array<i64: 1, 128>}, {transform_indices = @transform_3, window_bounds = array<i64: 1, 1, 128>}, {transform_indices = @transform_4, window_bounds = array<i64: 1, 1, 128>}, {pipeline_mode = #tpu.pipeline_mode<synchronous>, transform_indices = @transform_5, window_bounds = array<i64: 128, 128>}, {pipeline_mode = #tpu.pipeline_mode<synchronous>, transform_indices = @transform_6, window_bounds = array<i64: 1, 128>}, {transform_indices = @transform_7, window_bounds = array<i64: 64, 128>}]} {
    %c0 = arith.constant 0 : index
    %c0_0 = arith.constant 0 : index
    %0 = vector.load %arg2[%c0, %c0_0] : memref<64x128xf32, #tpu.memory_space<vmem>>, vector<64x128xf32>
    %c0_1 = arith.constant 0 : index
    %c0_2 = arith.constant 0 : index
    %1 = vector.load %arg3[%c0_1, %c0_2] : memref<1x128xf32, #tpu.memory_space<vmem>>, vector<1x128xf32>
    %2 = vector.broadcast %1 : vector<1x128xf32> to vector<64x128xf32>
    %3 = arith.subf %0, %2 : vector<64x128xf32>
    %c0_3 = arith.constant 0 : index
    %c0_4 = arith.constant 0 : index
    %4 = vector.load %arg4[%c0_3, %c0_4] : memref<1x128xf32, #tpu.memory_space<vmem>>, vector<1x128xf32>
    %5 = vector.broadcast %4 : vector<1x128xf32> to vector<64x128xf32>
    %6 = arith.mulf %3, %5 : vector<64x128xf32>
    %c0_5 = arith.constant 0 : index
    %c0_6 = arith.constant 0 : index
    %c0_7 = arith.constant 0 : index
    %7 = vector.load %arg5[%c0_5, %c0_6, %c0_7] : memref<1x1x128xf32, #tpu.memory_space<vmem>>, vector<1x1x128xf32>
    %8 = vector.shape_cast %7 : vector<1x1x128xf32> to vector<1x128xf32>
    %9 = vector.broadcast %8 : vector<1x128xf32> to vector<64x128xf32>
    %10 = arith.mulf %6, %9 : vector<64x128xf32>
    %c0_8 = arith.constant 0 : index
    %c0_9 = arith.constant 0 : index
    %c0_10 = arith.constant 0 : index
    %11 = vector.load %arg6[%c0_8, %c0_9, %c0_10] : memref<1x1x128xf32, #tpu.memory_space<vmem>>, vector<1x1x128xf32>
    %12 = vector.shape_cast %11 : vector<1x1x128xf32> to vector<1x128xf32>
    %13 = vector.broadcast %12 : vector<1x128xf32> to vector<64x128xf32>
    %14 = arith.addf %10, %13 : vector<64x128xf32>
    %cst = arith.constant 0.000000e+00 : f32
    %15 = vector.broadcast %cst : f32 to vector<64x128xf32>
    %16 = arith.maximumf %14, %15 : vector<64x128xf32>
    %17 = arith.truncf %16 : vector<64x128xf32> to vector<64x128xbf16>
    %c0_11 = arith.constant 0 : index
    %c0_12 = arith.constant 0 : index
    %18 = vector.load %arg7[%c0_11, %c0_12] : memref<128x128xbf16, #tpu.memory_space<vmem>>, vector<128x128xbf16>
    %cst_13 = arith.constant dense<0.000000e+00> : vector<64x128xf32>
    %19 = tpu.matmul %17, %18, %cst_13 {dimension_numbers = #tpu.dot_dimension_numbers<[1], [0], [0], [1], [0, 0, 1, 1], [], []>} : vector<64x128xbf16>, vector<128x128xbf16>, vector<64x128xf32> -> vector<64x128xf32>
    %c0_14 = arith.constant 0 : index
    %c0_15 = arith.constant 0 : index
    %20 = vector.load %arg8[%c0_14, %c0_15] : memref<1x128xf32, #tpu.memory_space<vmem>>, vector<1x128xf32>
    %21 = vector.broadcast %20 : vector<1x128xf32> to vector<64x128xf32>
    %22 = arith.addf %19, %21 : vector<64x128xf32>
    %c0_16 = arith.constant 0 : index
    %c0_17 = arith.constant 0 : index
    %23 = vector.load %arg9[%c0_16, %c0_17] : memref<64x128xf32, #tpu.memory_space<vmem>>, vector<64x128xf32>
    tpu.vector_store %arg9[%c0_16, %c0_17], %22 {strides = array<i32>} : memref<64x128xf32, #tpu.memory_space<vmem>>, vector<64x128xf32>,
    return
  }
  func.func @transform_0(%arg0: i32, %arg1: i32) -> (i32, i32) {
    %c1_i32 = arith.constant 1 : i32
    %0 = arith.muli %arg0, %c1_i32 : i32
    %1 = arith.addi %0, %arg1 : i32
    %c0_i32 = arith.constant 0 : i32
    %c0_i32_0 = arith.constant 0 : i32
    return %1, %c0_i32 : i32, i32
  }
  func.func @transform_1(%arg0: i32, %arg1: i32) -> (i32, i32) {
    %c0_i32 = arith.constant 0 : i32
    %c0_i32_0 = arith.constant 0 : i32
    %c0_i32_1 = arith.constant 0 : i32
    return %c0_i32, %c0_i32_0 : i32, i32
  }
  func.func @transform_2(%arg0: i32, %arg1: i32) -> (i32, i32) {
    %c0_i32 = arith.constant 0 : i32
    %c0_i32_0 = arith.constant 0 : i32
    %c0_i32_1 = arith.constant 0 : i32
    return %c0_i32, %c0_i32_0 : i32, i32
  }
  func.func @transform_3(%arg0: i32, %arg1: i32) -> (i32, i32, i32) {
    %c0_i32 = arith.constant 0 : i32
    %c0_i32_0 = arith.constant 0 : i32
    %c0_i32_1 = arith.constant 0 : i32
    return %arg0, %c0_i32, %c0_i32_0 : i32, i32, i32
  }
  func.func @transform_4(%arg0: i32, %arg1: i32) -> (i32, i32, i32) {
    %c0_i32 = arith.constant 0 : i32
    %c0_i32_0 = arith.constant 0 : i32
    %c0_i32_1 = arith.constant 0 : i32
    return %arg0, %c0_i32, %c0_i32_0 : i32, i32, i32
  }
  func.func @transform_5(%arg0: i32, %arg1: i32) -> (i32, i32) {
    %c0_i32 = arith.constant 0 : i32
    %c0_i32_0 = arith.constant 0 : i32
    %c0_i32_1 = arith.constant 0 : i32
    return %c0_i32, %c0_i32_0 : i32, i32
  }
  func.func @transform_6(%arg0: i32, %arg1: i32) -> (i32, i32) {
    %c0_i32 = arith.constant 0 : i32
    %c0_i32_0 = arith.constant 0 : i32
    %c0_i32_1 = arith.constant 0 : i32
    return %c0_i32, %c0_i32_0 : i32, i32
  }
  func.func @transform_7(%arg0: i32, %arg1: i32) -> (i32, i32) {
    %c1_i32 = arith.constant 1 : i32
    %0 = arith.muli %arg0, %c1_i32 : i32
    %1 = arith.addi %0, %arg1 : i32
    %c0_i32 = arith.constant 0 : i32
    %c0_i32_0 = arith.constant 0 : i32
    return %1, %c0_i32 : i32, i32
  }
}

module attributes {stable_mosaic.version = 11 : i64} {
  func.func @_bn_relu_kernel(%arg0: i32, %arg1: i32, %arg2: memref<64x128xf32, #tpu.memory_space<vmem>>, %arg3: memref<1x128xf32, #tpu.memory_space<vmem>>, %arg4: memref<1x128xf32, #tpu.memory_space<vmem>>, %arg5: memref<1x1x128xf32, #tpu.memory_space<vmem>>, %arg6: memref<1x1x128xf32, #tpu.memory_space<vmem>>, %arg7: memref<64x128xf32, #tpu.memory_space<vmem>>) attributes {dimension_semantics = [#tpu.dimension_semantics<parallel>, #tpu.dimension_semantics<parallel>], iteration_bounds = array<i64: 2, 1>, scalar_prefetch = 0 : i64, scratch_operands = 0 : i64, tpu.core_type = #tpu.core_type<tc>, window_params = [{transform_indices = @transform_0, window_bounds = array<i64: 64, 128>}, {pipeline_mode = #tpu.pipeline_mode<synchronous>, transform_indices = @transform_1, window_bounds = array<i64: 1, 128>}, {pipeline_mode = #tpu.pipeline_mode<synchronous>, transform_indices = @transform_2, window_bounds = array<i64: 1, 128>}, {transform_indices = @transform_3, window_bounds = array<i64: 1, 1, 128>}, {transform_indices = @transform_4, window_bounds = array<i64: 1, 1, 128>}, {transform_indices = @transform_5, window_bounds = array<i64: 64, 128>}]} {
    %c0 = arith.constant 0 : index
    %c0_0 = arith.constant 0 : index
    %0 = vector.load %arg2[%c0, %c0_0] : memref<64x128xf32, #tpu.memory_space<vmem>>, vector<64x128xf32>
    %c0_1 = arith.constant 0 : index
    %c0_2 = arith.constant 0 : index
    %1 = vector.load %arg3[%c0_1, %c0_2] : memref<1x128xf32, #tpu.memory_space<vmem>>, vector<1x128xf32>
    %2 = vector.broadcast %1 : vector<1x128xf32> to vector<64x128xf32>
    %3 = arith.subf %0, %2 : vector<64x128xf32>
    %c0_3 = arith.constant 0 : index
    %c0_4 = arith.constant 0 : index
    %4 = vector.load %arg4[%c0_3, %c0_4] : memref<1x128xf32, #tpu.memory_space<vmem>>, vector<1x128xf32>
    %5 = vector.broadcast %4 : vector<1x128xf32> to vector<64x128xf32>
    %6 = arith.mulf %3, %5 : vector<64x128xf32>
    %c0_5 = arith.constant 0 : index
    %c0_6 = arith.constant 0 : index
    %c0_7 = arith.constant 0 : index
    %7 = vector.load %arg5[%c0_5, %c0_6, %c0_7] : memref<1x1x128xf32, #tpu.memory_space<vmem>>, vector<1x1x128xf32>
    %8 = vector.shape_cast %7 : vector<1x1x128xf32> to vector<1x128xf32>
    %9 = vector.broadcast %8 : vector<1x128xf32> to vector<64x128xf32>
    %10 = arith.mulf %6, %9 : vector<64x128xf32>
    %c0_8 = arith.constant 0 : index
    %c0_9 = arith.constant 0 : index
    %c0_10 = arith.constant 0 : index
    %11 = vector.load %arg6[%c0_8, %c0_9, %c0_10] : memref<1x1x128xf32, #tpu.memory_space<vmem>>, vector<1x1x128xf32>
    %12 = vector.shape_cast %11 : vector<1x1x128xf32> to vector<1x128xf32>
    %13 = vector.broadcast %12 : vector<1x128xf32> to vector<64x128xf32>
    %14 = arith.addf %10, %13 : vector<64x128xf32>
    %cst = arith.constant 0.000000e+00 : f32
    %15 = vector.broadcast %cst : f32 to vector<64x128xf32>
    %16 = arith.maximumf %14, %15 : vector<64x128xf32>
    %c0_11 = arith.constant 0 : index
    %c0_12 = arith.constant 0 : index
    %17 = vector.load %arg7[%c0_11, %c0_12] : memref<64x128xf32, #tpu.memory_space<vmem>>, vector<64x128xf32>
    tpu.vector_store %arg7[%c0_11, %c0_12], %16 {strides = array<i32>} : memref<64x128xf32, #tpu.memory_space<vmem>>, vector<64x128xf32>,
    return
  }
  func.func @transform_0(%arg0: i32, %arg1: i32) -> (i32, i32) {
    %c1_i32 = arith.constant 1 : i32
    %0 = arith.muli %arg0, %c1_i32 : i32
    %1 = arith.addi %0, %arg1 : i32
    %c0_i32 = arith.constant 0 : i32
    %c0_i32_0 = arith.constant 0 : i32
    return %1, %c0_i32 : i32, i32
  }
  func.func @transform_1(%arg0: i32, %arg1: i32) -> (i32, i32) {
    %c0_i32 = arith.constant 0 : i32
    %c0_i32_0 = arith.constant 0 : i32
    %c0_i32_1 = arith.constant 0 : i32
    return %c0_i32, %c0_i32_0 : i32, i32
  }
  func.func @transform_2(%arg0: i32, %arg1: i32) -> (i32, i32) {
    %c0_i32 = arith.constant 0 : i32
    %c0_i32_0 = arith.constant 0 : i32
    %c0_i32_1 = arith.constant 0 : i32
    return %c0_i32, %c0_i32_0 : i32, i32
  }
  func.func @transform_3(%arg0: i32, %arg1: i32) -> (i32, i32, i32) {
    %c0_i32 = arith.constant 0 : i32
    %c0_i32_0 = arith.constant 0 : i32
    %c0_i32_1 = arith.constant 0 : i32
    return %arg0, %c0_i32, %c0_i32_0 : i32, i32, i32
  }
  func.func @transform_4(%arg0: i32, %arg1: i32) -> (i32, i32, i32) {
    %c0_i32 = arith.constant 0 : i32
    %c0_i32_0 = arith.constant 0 : i32
    %c0_i32_1 = arith.constant 0 : i32
    return %arg0, %c0_i32, %c0_i32_0 : i32, i32, i32
  }
  func.func @transform_5(%arg0: i32, %arg1: i32) -> (i32, i32) {
    %c1_i32 = arith.constant 1 : i32
    %0 = arith.muli %arg0, %c1_i32 : i32
    %1 = arith.addi %0, %arg1 : i32
    %c0_i32 = arith.constant 0 : i32
    %c0_i32_0 = arith.constant 0 : i32
    return %1, %c0_i32 : i32, i32
  }
}

module attributes {stable_mosaic.version = 11 : i64} {
  func.func @_conv3x3_kernel(%arg0: i32, %arg1: memref<1x18x18x128xf32, #tpu.memory_space<vmem>>, %arg2: memref<9x128x128xbf16, #tpu.memory_space<vmem>>, %arg3: memref<1x128xf32, #tpu.memory_space<vmem>>, %arg4: memref<256x128xf32, #tpu.memory_space<vmem>>) attributes {dimension_semantics = [#tpu.dimension_semantics<parallel>], iteration_bounds = array<i64: 2>, scalar_prefetch = 0 : i64, scratch_operands = 0 : i64, tpu.core_type = #tpu.core_type<tc>, window_params = [{transform_indices = @transform_0, window_bounds = array<i64: 1, 18, 18, 128>}, {pipeline_mode = #tpu.pipeline_mode<synchronous>, transform_indices = @transform_1, window_bounds = array<i64: 9, 128, 128>}, {pipeline_mode = #tpu.pipeline_mode<synchronous>, transform_indices = @transform_2, window_bounds = array<i64: 1, 128>}, {transform_indices = @transform_3, window_bounds = array<i64: 256, 128>}]} {
    %c0 = arith.constant 0 : index
    %c0_0 = arith.constant 0 : index
    %c0_1 = arith.constant 0 : index
    %c0_2 = arith.constant 0 : index
    %0 = vector.load %arg1[%c0, %c0_0, %c0_1, %c0_2] : memref<1x18x18x128xf32, #tpu.memory_space<vmem>>, vector<1x18x18x128xf32>
    %1 = vector.shape_cast %0 : vector<1x18x18x128xf32> to vector<18x18x128xf32>
    %cst = arith.constant 0.000000e+00 : f32
    %2 = vector.broadcast %cst : f32 to vector<256x128xf32>
    %3 = vector.extract_strided_slice %1 {offsets = [0, 0, 0], sizes = [16, 16, 128], strides = [1, 1, 1]} : vector<18x18x128xf32> to vector<16x16x128xf32>
    %4 = vector.shape_cast %3 : vector<16x16x128xf32> to vector<256x128xf32>
    %5 = arith.truncf %4 : vector<256x128xf32> to vector<256x128xbf16>
    %c0_3 = arith.constant 0 : index
    %c0_4 = arith.constant 0 : index
    %c0_5 = arith.constant 0 : index
    %6 = vector.load %arg2[%c0_3, %c0_4, %c0_5] : memref<9x128x128xbf16, #tpu.memory_space<vmem>>, vector<1x128x128xbf16>
    %7 = vector.shape_cast %6 : vector<1x128x128xbf16> to vector<128x128xbf16>
    %cst_6 = arith.constant dense<0.000000e+00> : vector<256x128xf32>
    %8 = tpu.matmul %5, %7, %cst_6 {dimension_numbers = #tpu.dot_dimension_numbers<[1], [0], [0], [1], [0, 0, 1, 1], [], []>} : vector<256x128xbf16>, vector<128x128xbf16>, vector<256x128xf32> -> vector<256x128xf32>
    %9 = arith.addf %2, %8 : vector<256x128xf32>
    %10 = vector.extract_strided_slice %1 {offsets = [0, 1, 0], sizes = [16, 16, 128], strides = [1, 1, 1]} : vector<18x18x128xf32> to vector<16x16x128xf32>
    %11 = vector.shape_cast %10 : vector<16x16x128xf32> to vector<256x128xf32>
    %12 = arith.truncf %11 : vector<256x128xf32> to vector<256x128xbf16>
    %c1 = arith.constant 1 : index
    %c0_7 = arith.constant 0 : index
    %c0_8 = arith.constant 0 : index
    %13 = vector.load %arg2[%c1, %c0_7, %c0_8] : memref<9x128x128xbf16, #tpu.memory_space<vmem>>, vector<1x128x128xbf16>
    %14 = vector.shape_cast %13 : vector<1x128x128xbf16> to vector<128x128xbf16>
    %cst_9 = arith.constant dense<0.000000e+00> : vector<256x128xf32>
    %15 = tpu.matmul %12, %14, %cst_9 {dimension_numbers = #tpu.dot_dimension_numbers<[1], [0], [0], [1], [0, 0, 1, 1], [], []>} : vector<256x128xbf16>, vector<128x128xbf16>, vector<256x128xf32> -> vector<256x128xf32>
    %16 = arith.addf %9, %15 : vector<256x128xf32>
    %17 = vector.extract_strided_slice %1 {offsets = [0, 2, 0], sizes = [16, 16, 128], strides = [1, 1, 1]} : vector<18x18x128xf32> to vector<16x16x128xf32>
    %18 = vector.shape_cast %17 : vector<16x16x128xf32> to vector<256x128xf32>
    %19 = arith.truncf %18 : vector<256x128xf32> to vector<256x128xbf16>
    %c2 = arith.constant 2 : index
    %c0_10 = arith.constant 0 : index
    %c0_11 = arith.constant 0 : index
    %20 = vector.load %arg2[%c2, %c0_10, %c0_11] : memref<9x128x128xbf16, #tpu.memory_space<vmem>>, vector<1x128x128xbf16>
    %21 = vector.shape_cast %20 : vector<1x128x128xbf16> to vector<128x128xbf16>
    %cst_12 = arith.constant dense<0.000000e+00> : vector<256x128xf32>
    %22 = tpu.matmul %19, %21, %cst_12 {dimension_numbers = #tpu.dot_dimension_numbers<[1], [0], [0], [1], [0, 0, 1, 1], [], []>} : vector<256x128xbf16>, vector<128x128xbf16>, vector<256x128xf32> -> vector<256x128xf32>
    %23 = arith.addf %16, %22 : vector<256x128xf32>
    %24 = vector.extract_strided_slice %1 {offsets = [1, 0, 0], sizes = [16, 16, 128], strides = [1, 1, 1]} : vector<18x18x128xf32> to vector<16x16x128xf32>
    %25 = vector.shape_cast %24 : vector<16x16x128xf32> to vector<256x128xf32>
    %26 = arith.truncf %25 : vector<256x128xf32> to vector<256x128xbf16>
    %c3 = arith.constant 3 : index
    %c0_13 = arith.constant 0 : index
    %c0_14 = arith.constant 0 : index
    %27 = vector.load %arg2[%c3, %c0_13, %c0_14] : memref<9x128x128xbf16, #tpu.memory_space<vmem>>, vector<1x128x128xbf16>
    %28 = vector.shape_cast %27 : vector<1x128x128xbf16> to vector<128x128xbf16>
    %cst_15 = arith.constant dense<0.000000e+00> : vector<256x128xf32>
    %29 = tpu.matmul %26, %28, %cst_15 {dimension_numbers = #tpu.dot_dimension_numbers<[1], [0], [0], [1], [0, 0, 1, 1], [], []>} : vector<256x128xbf16>, vector<128x128xbf16>, vector<256x128xf32> -> vector<256x128xf32>
    %30 = arith.addf %23, %29 : vector<256x128xf32>
    %31 = vector.extract_strided_slice %1 {offsets = [1, 1, 0], sizes = [16, 16, 128], strides = [1, 1, 1]} : vector<18x18x128xf32> to vector<16x16x128xf32>
    %32 = vector.shape_cast %31 : vector<16x16x128xf32> to vector<256x128xf32>
    %33 = arith.truncf %32 : vector<256x128xf32> to vector<256x128xbf16>
    %c4 = arith.constant 4 : index
    %c0_16 = arith.constant 0 : index
    %c0_17 = arith.constant 0 : index
    %34 = vector.load %arg2[%c4, %c0_16, %c0_17] : memref<9x128x128xbf16, #tpu.memory_space<vmem>>, vector<1x128x128xbf16>
    %35 = vector.shape_cast %34 : vector<1x128x128xbf16> to vector<128x128xbf16>
    %cst_18 = arith.constant dense<0.000000e+00> : vector<256x128xf32>
    %36 = tpu.matmul %33, %35, %cst_18 {dimension_numbers = #tpu.dot_dimension_numbers<[1], [0], [0], [1], [0, 0, 1, 1], [], []>} : vector<256x128xbf16>, vector<128x128xbf16>, vector<256x128xf32> -> vector<256x128xf32>
    %37 = arith.addf %30, %36 : vector<256x128xf32>
    %38 = vector.extract_strided_slice %1 {offsets = [1, 2, 0], sizes = [16, 16, 128], strides = [1, 1, 1]} : vector<18x18x128xf32> to vector<16x16x128xf32>
    %39 = vector.shape_cast %38 : vector<16x16x128xf32> to vector<256x128xf32>
    %40 = arith.truncf %39 : vector<256x128xf32> to vector<256x128xbf16>
    %c5 = arith.constant 5 : index
    %c0_19 = arith.constant 0 : index
    %c0_20 = arith.constant 0 : index
    %41 = vector.load %arg2[%c5, %c0_19, %c0_20] : memref<9x128x128xbf16, #tpu.memory_space<vmem>>, vector<1x128x128xbf16>
    %42 = vector.shape_cast %41 : vector<1x128x128xbf16> to vector<128x128xbf16>
    %cst_21 = arith.constant dense<0.000000e+00> : vector<256x128xf32>
    %43 = tpu.matmul %40, %42, %cst_21 {dimension_numbers = #tpu.dot_dimension_numbers<[1], [0], [0], [1], [0, 0, 1, 1], [], []>} : vector<256x128xbf16>, vector<128x128xbf16>, vector<256x128xf32> -> vector<256x128xf32>
    %44 = arith.addf %37, %43 : vector<256x128xf32>
    %45 = vector.extract_strided_slice %1 {offsets = [2, 0, 0], sizes = [16, 16, 128], strides = [1, 1, 1]} : vector<18x18x128xf32> to vector<16x16x128xf32>
    %46 = vector.shape_cast %45 : vector<16x16x128xf32> to vector<256x128xf32>
    %47 = arith.truncf %46 : vector<256x128xf32> to vector<256x128xbf16>
    %c6 = arith.constant 6 : index
    %c0_22 = arith.constant 0 : index
    %c0_23 = arith.constant 0 : index
    %48 = vector.load %arg2[%c6, %c0_22, %c0_23] : memref<9x128x128xbf16, #tpu.memory_space<vmem>>, vector<1x128x128xbf16>
    %49 = vector.shape_cast %48 : vector<1x128x128xbf16> to vector<128x128xbf16>
    %cst_24 = arith.constant dense<0.000000e+00> : vector<256x128xf32>
    %50 = tpu.matmul %47, %49, %cst_24 {dimension_numbers = #tpu.dot_dimension_numbers<[1], [0], [0], [1], [0, 0, 1, 1], [], []>} : vector<256x128xbf16>, vector<128x128xbf16>, vector<256x128xf32> -> vector<256x128xf32>
    %51 = arith.addf %44, %50 : vector<256x128xf32>
    %52 = vector.extract_strided_slice %1 {offsets = [2, 1, 0], sizes = [16, 16, 128], strides = [1, 1, 1]} : vector<18x18x128xf32> to vector<16x16x128xf32>
    %53 = vector.shape_cast %52 : vector<16x16x128xf32> to vector<256x128xf32>
    %54 = arith.truncf %53 : vector<256x128xf32> to vector<256x128xbf16>
    %c7 = arith.constant 7 : index
    %c0_25 = arith.constant 0 : index
    %c0_26 = arith.constant 0 : index
    %55 = vector.load %arg2[%c7, %c0_25, %c0_26] : memref<9x128x128xbf16, #tpu.memory_space<vmem>>, vector<1x128x128xbf16>
    %56 = vector.shape_cast %55 : vector<1x128x128xbf16> to vector<128x128xbf16>
    %cst_27 = arith.constant dense<0.000000e+00> : vector<256x128xf32>
    %57 = tpu.matmul %54, %56, %cst_27 {dimension_numbers = #tpu.dot_dimension_numbers<[1], [0], [0], [1], [0, 0, 1, 1], [], []>} : vector<256x128xbf16>, vector<128x128xbf16>, vector<256x128xf32> -> vector<256x128xf32>
    %58 = arith.addf %51, %57 : vector<256x128xf32>
    %59 = vector.extract_strided_slice %1 {offsets = [2, 2, 0], sizes = [16, 16, 128], strides = [1, 1, 1]} : vector<18x18x128xf32> to vector<16x16x128xf32>
    %60 = vector.shape_cast %59 : vector<16x16x128xf32> to vector<256x128xf32>
    %61 = arith.truncf %60 : vector<256x128xf32> to vector<256x128xbf16>
    %c8 = arith.constant 8 : index
    %c0_28 = arith.constant 0 : index
    %c0_29 = arith.constant 0 : index
    %62 = vector.load %arg2[%c8, %c0_28, %c0_29] : memref<9x128x128xbf16, #tpu.memory_space<vmem>>, vector<1x128x128xbf16>
    %63 = vector.shape_cast %62 : vector<1x128x128xbf16> to vector<128x128xbf16>
    %cst_30 = arith.constant dense<0.000000e+00> : vector<256x128xf32>
    %64 = tpu.matmul %61, %63, %cst_30 {dimension_numbers = #tpu.dot_dimension_numbers<[1], [0], [0], [1], [0, 0, 1, 1], [], []>} : vector<256x128xbf16>, vector<128x128xbf16>, vector<256x128xf32> -> vector<256x128xf32>
    %65 = arith.addf %58, %64 : vector<256x128xf32>
    %c0_31 = arith.constant 0 : index
    %c0_32 = arith.constant 0 : index
    %66 = vector.load %arg3[%c0_31, %c0_32] : memref<1x128xf32, #tpu.memory_space<vmem>>, vector<1x128xf32>
    %67 = vector.broadcast %66 : vector<1x128xf32> to vector<256x128xf32>
    %68 = arith.addf %65, %67 : vector<256x128xf32>
    %c0_33 = arith.constant 0 : index
    %c0_34 = arith.constant 0 : index
    %69 = vector.load %arg4[%c0_33, %c0_34] : memref<256x128xf32, #tpu.memory_space<vmem>>, vector<256x128xf32>
    tpu.vector_store %arg4[%c0_33, %c0_34], %68 {strides = array<i32>} : memref<256x128xf32, #tpu.memory_space<vmem>>, vector<256x128xf32>,
    return
  }
  func.func @transform_0(%arg0: i32) -> (i32, i32, i32, i32) {
    %c0_i32 = arith.constant 0 : i32
    %c0_i32_0 = arith.constant 0 : i32
    %c0_i32_1 = arith.constant 0 : i32
    %c0_i32_2 = arith.constant 0 : i32
    return %arg0, %c0_i32, %c0_i32_0, %c0_i32_1 : i32, i32, i32, i32
  }
  func.func @transform_1(%arg0: i32) -> (i32, i32, i32) {
    %c0_i32 = arith.constant 0 : i32
    %c0_i32_0 = arith.constant 0 : i32
    %c0_i32_1 = arith.constant 0 : i32
    %c0_i32_2 = arith.constant 0 : i32
    return %c0_i32, %c0_i32_0, %c0_i32_1 : i32, i32, i32
  }
  func.func @transform_2(%arg0: i32) -> (i32, i32) {
    %c0_i32 = arith.constant 0 : i32
    %c0_i32_0 = arith.constant 0 : i32
    %c0_i32_1 = arith.constant 0 : i32
    return %c0_i32, %c0_i32_0 : i32, i32
  }
  func.func @transform_3(%arg0: i32) -> (i32, i32) {
    %c0_i32 = arith.constant 0 : i32
    %c0_i32_0 = arith.constant 0 : i32
    return %arg0, %c0_i32 : i32, i32
  }
}

module attributes {stable_mosaic.version = 11 : i64} {
  func.func @_bn_relu_kernel(%arg0: i32, %arg1: i32, %arg2: memref<256x128xf32, #tpu.memory_space<vmem>>, %arg3: memref<1x128xf32, #tpu.memory_space<vmem>>, %arg4: memref<1x128xf32, #tpu.memory_space<vmem>>, %arg5: memref<1x1x128xf32, #tpu.memory_space<vmem>>, %arg6: memref<1x1x128xf32, #tpu.memory_space<vmem>>, %arg7: memref<256x128xf32, #tpu.memory_space<vmem>>) attributes {dimension_semantics = [#tpu.dimension_semantics<parallel>, #tpu.dimension_semantics<parallel>], iteration_bounds = array<i64: 2, 1>, scalar_prefetch = 0 : i64, scratch_operands = 0 : i64, tpu.core_type = #tpu.core_type<tc>, window_params = [{transform_indices = @transform_0, window_bounds = array<i64: 256, 128>}, {pipeline_mode = #tpu.pipeline_mode<synchronous>, transform_indices = @transform_1, window_bounds = array<i64: 1, 128>}, {pipeline_mode = #tpu.pipeline_mode<synchronous>, transform_indices = @transform_2, window_bounds = array<i64: 1, 128>}, {transform_indices = @transform_3, window_bounds = array<i64: 1, 1, 128>}, {transform_indices = @transform_4, window_bounds = array<i64: 1, 1, 128>}, {transform_indices = @transform_5, window_bounds = array<i64: 256, 128>}]} {
    %c0 = arith.constant 0 : index
    %c0_0 = arith.constant 0 : index
    %0 = vector.load %arg2[%c0, %c0_0] : memref<256x128xf32, #tpu.memory_space<vmem>>, vector<256x128xf32>
    %c0_1 = arith.constant 0 : index
    %c0_2 = arith.constant 0 : index
    %1 = vector.load %arg3[%c0_1, %c0_2] : memref<1x128xf32, #tpu.memory_space<vmem>>, vector<1x128xf32>
    %2 = vector.broadcast %1 : vector<1x128xf32> to vector<256x128xf32>
    %3 = arith.subf %0, %2 : vector<256x128xf32>
    %c0_3 = arith.constant 0 : index
    %c0_4 = arith.constant 0 : index
    %4 = vector.load %arg4[%c0_3, %c0_4] : memref<1x128xf32, #tpu.memory_space<vmem>>, vector<1x128xf32>
    %5 = vector.broadcast %4 : vector<1x128xf32> to vector<256x128xf32>
    %6 = arith.mulf %3, %5 : vector<256x128xf32>
    %c0_5 = arith.constant 0 : index
    %c0_6 = arith.constant 0 : index
    %c0_7 = arith.constant 0 : index
    %7 = vector.load %arg5[%c0_5, %c0_6, %c0_7] : memref<1x1x128xf32, #tpu.memory_space<vmem>>, vector<1x1x128xf32>
    %8 = vector.shape_cast %7 : vector<1x1x128xf32> to vector<1x128xf32>
    %9 = vector.broadcast %8 : vector<1x128xf32> to vector<256x128xf32>
    %10 = arith.mulf %6, %9 : vector<256x128xf32>
    %c0_8 = arith.constant 0 : index
    %c0_9 = arith.constant 0 : index
    %c0_10 = arith.constant 0 : index
    %11 = vector.load %arg6[%c0_8, %c0_9, %c0_10] : memref<1x1x128xf32, #tpu.memory_space<vmem>>, vector<1x1x128xf32>
    %12 = vector.shape_cast %11 : vector<1x1x128xf32> to vector<1x128xf32>
    %13 = vector.broadcast %12 : vector<1x128xf32> to vector<256x128xf32>
    %14 = arith.addf %10, %13 : vector<256x128xf32>
    %cst = arith.constant 0.000000e+00 : f32
    %15 = vector.broadcast %cst : f32 to vector<256x128xf32>
    %16 = arith.maximumf %14, %15 : vector<256x128xf32>
    %c0_11 = arith.constant 0 : index
    %c0_12 = arith.constant 0 : index
    %17 = vector.load %arg7[%c0_11, %c0_12] : memref<256x128xf32, #tpu.memory_space<vmem>>, vector<256x128xf32>
    tpu.vector_store %arg7[%c0_11, %c0_12], %16 {strides = array<i32>} : memref<256x128xf32, #tpu.memory_space<vmem>>, vector<256x128xf32>,
    return
  }
  func.func @transform_0(%arg0: i32, %arg1: i32) -> (i32, i32) {
    %c1_i32 = arith.constant 1 : i32
    %0 = arith.muli %arg0, %c1_i32 : i32
    %1 = arith.addi %0, %arg1 : i32
    %c0_i32 = arith.constant 0 : i32
    %c0_i32_0 = arith.constant 0 : i32
    return %1, %c0_i32 : i32, i32
  }
  func.func @transform_1(%arg0: i32, %arg1: i32) -> (i32, i32) {
    %c0_i32 = arith.constant 0 : i32
    %c0_i32_0 = arith.constant 0 : i32
    %c0_i32_1 = arith.constant 0 : i32
    return %c0_i32, %c0_i32_0 : i32, i32
  }
  func.func @transform_2(%arg0: i32, %arg1: i32) -> (i32, i32) {
    %c0_i32 = arith.constant 0 : i32
    %c0_i32_0 = arith.constant 0 : i32
    %c0_i32_1 = arith.constant 0 : i32
    return %c0_i32, %c0_i32_0 : i32, i32
  }
  func.func @transform_3(%arg0: i32, %arg1: i32) -> (i32, i32, i32) {
    %c0_i32 = arith.constant 0 : i32
    %c0_i32_0 = arith.constant 0 : i32
    %c0_i32_1 = arith.constant 0 : i32
    return %arg0, %c0_i32, %c0_i32_0 : i32, i32, i32
  }
  func.func @transform_4(%arg0: i32, %arg1: i32) -> (i32, i32, i32) {
    %c0_i32 = arith.constant 0 : i32
    %c0_i32_0 = arith.constant 0 : i32
    %c0_i32_1 = arith.constant 0 : i32
    return %arg0, %c0_i32, %c0_i32_0 : i32, i32, i32
  }
  func.func @transform_5(%arg0: i32, %arg1: i32) -> (i32, i32) {
    %c1_i32 = arith.constant 1 : i32
    %0 = arith.muli %arg0, %c1_i32 : i32
    %1 = arith.addi %0, %arg1 : i32
    %c0_i32 = arith.constant 0 : i32
    %c0_i32_0 = arith.constant 0 : i32
    return %1, %c0_i32 : i32, i32
  }
}

module attributes {stable_mosaic.version = 11 : i64} {
  func.func @_bn_stats_kernel(%arg0: i32, %arg1: memref<512x128xf32, #tpu.memory_space<vmem>>, %arg2: memref<1x128xf32, #tpu.memory_space<vmem>>, %arg3: memref<1x128xf32, #tpu.memory_space<vmem>>) attributes {dimension_semantics = [#tpu.dimension_semantics<arbitrary>], iteration_bounds = array<i64: 1>, scalar_prefetch = 0 : i64, scratch_operands = 0 : i64, tpu.core_type = #tpu.core_type<tc>, window_params = [{transform_indices = @transform_0, window_bounds = array<i64: 512, 128>}, {pipeline_mode = #tpu.pipeline_mode<synchronous>, transform_indices = @transform_1, window_bounds = array<i64: 1, 128>}, {pipeline_mode = #tpu.pipeline_mode<synchronous>, transform_indices = @transform_2, window_bounds = array<i64: 1, 128>}]} {
    %c0_i32 = arith.constant 0 : i32
    %0 = arith.cmpi eq, %arg0, %c0_i32 : i32
    %1 = arith.extui %0 : i1 to i32
    %c0_i32_0 = arith.constant 0 : i32
    %2 = arith.cmpi ne, %1, %c0_i32_0 : i32
    scf.if %2 {
      %cst_13 = arith.constant 0.000000e+00 : f32
      %18 = vector.broadcast %cst_13 : f32 to vector<1x128xf32>
      %c0_14 = arith.constant 0 : index
      %c0_15 = arith.constant 0 : index
      %19 = vector.load %arg2[%c0_14, %c0_15] : memref<1x128xf32, #tpu.memory_space<vmem>>, vector<1x128xf32>
      tpu.vector_store %arg2[%c0_14, %c0_15], %18 {strides = array<i32>} : memref<1x128xf32, #tpu.memory_space<vmem>>, vector<1x128xf32>,
      %cst_16 = arith.constant 0.000000e+00 : f32
      %20 = vector.broadcast %cst_16 : f32 to vector<1x128xf32>
      %c0_17 = arith.constant 0 : index
      %c0_18 = arith.constant 0 : index
      %21 = vector.load %arg3[%c0_17, %c0_18] : memref<1x128xf32, #tpu.memory_space<vmem>>, vector<1x128xf32>
      tpu.vector_store %arg3[%c0_17, %c0_18], %20 {strides = array<i32>} : memref<1x128xf32, #tpu.memory_space<vmem>>, vector<1x128xf32>,
    } else {
    }
    %c0 = arith.constant 0 : index
    %c0_1 = arith.constant 0 : index
    %3 = vector.load %arg1[%c0, %c0_1] : memref<512x128xf32, #tpu.memory_space<vmem>>, vector<512x128xf32>
    %c0_2 = arith.constant 0 : index
    %c0_3 = arith.constant 0 : index
    %4 = vector.load %arg2[%c0_2, %c0_3] : memref<1x128xf32, #tpu.memory_space<vmem>>, vector<1x128xf32>
    %cst = arith.constant dense<0.000000e+00> : vector<128xf32>
    %5 = vector.multi_reduction <add>, %3, %cst [0] : vector<512x128xf32> to vector<128xf32>
    %6 = vector.shape_cast %5 : vector<128xf32> to vector<1x128xf32>
    %7 = arith.addf %4, %6 : vector<1x128xf32>
    %c0_4 = arith.constant 0 : index
    %c0_5 = arith.constant 0 : index
    %8 = vector.load %arg2[%c0_4, %c0_5] : memref<1x128xf32, #tpu.memory_space<vmem>>, vector<1x128xf32>
    tpu.vector_store %arg2[%c0_4, %c0_5], %7 {strides = array<i32>} : memref<1x128xf32, #tpu.memory_space<vmem>>, vector<1x128xf32>,
    %c0_6 = arith.constant 0 : index
    %c0_7 = arith.constant 0 : index
    %9 = vector.load %arg3[%c0_6, %c0_7] : memref<1x128xf32, #tpu.memory_space<vmem>>, vector<1x128xf32>
    %10 = arith.mulf %3, %3 : vector<512x128xf32>
    %cst_8 = arith.constant dense<0.000000e+00> : vector<128xf32>
    %11 = vector.multi_reduction <add>, %10, %cst_8 [0] : vector<512x128xf32> to vector<128xf32>
    %12 = vector.shape_cast %11 : vector<128xf32> to vector<1x128xf32>
    %13 = arith.addf %9, %12 : vector<1x128xf32>
    %c0_9 = arith.constant 0 : index
    %c0_10 = arith.constant 0 : index
    %14 = vector.load %arg3[%c0_9, %c0_10] : memref<1x128xf32, #tpu.memory_space<vmem>>, vector<1x128xf32>
    tpu.vector_store %arg3[%c0_9, %c0_10], %13 {strides = array<i32>} : memref<1x128xf32, #tpu.memory_space<vmem>>, vector<1x128xf32>,
    %c0_i32_11 = arith.constant 0 : i32
    %15 = arith.cmpi eq, %arg0, %c0_i32_11 : i32
    %16 = arith.extui %15 : i1 to i32
    %c0_i32_12 = arith.constant 0 : i32
    %17 = arith.cmpi ne, %16, %c0_i32_12 : i32
    scf.if %17 {
      %c0_13 = arith.constant 0 : index
      %c0_14 = arith.constant 0 : index
      %18 = vector.load %arg2[%c0_13, %c0_14] : memref<1x128xf32, #tpu.memory_space<vmem>>, vector<1x128xf32>
      %cst_15 = arith.constant 0.001953125 : f32
      %19 = vector.broadcast %cst_15 : f32 to vector<1x128xf32>
      %20 = arith.mulf %18, %19 : vector<1x128xf32>
      %c0_16 = arith.constant 0 : index
      %c0_17 = arith.constant 0 : index
      %21 = vector.load %arg3[%c0_16, %c0_17] : memref<1x128xf32, #tpu.memory_space<vmem>>, vector<1x128xf32>
      %cst_18 = arith.constant 0.001953125 : f32
      %22 = vector.broadcast %cst_18 : f32 to vector<1x128xf32>
      %23 = arith.mulf %21, %22 : vector<1x128xf32>
      %24 = arith.mulf %20, %20 : vector<1x128xf32>
      %25 = arith.subf %23, %24 : vector<1x128xf32>
      %cst_19 = arith.constant 0.000000e+00 : f32
      %26 = vector.broadcast %cst_19 : f32 to vector<1x128xf32>
      %27 = arith.maximumf %25, %26 : vector<1x128xf32>
      %c0_20 = arith.constant 0 : index
      %c0_21 = arith.constant 0 : index
      %28 = vector.load %arg2[%c0_20, %c0_21] : memref<1x128xf32, #tpu.memory_space<vmem>>, vector<1x128xf32>
      tpu.vector_store %arg2[%c0_20, %c0_21], %20 {strides = array<i32>} : memref<1x128xf32, #tpu.memory_space<vmem>>, vector<1x128xf32>,
      %cst_22 = arith.constant 9.99999974E-6 : f32
      %29 = vector.broadcast %cst_22 : f32 to vector<1x128xf32>
      %30 = arith.addf %27, %29 : vector<1x128xf32>
      %31 = math.rsqrt %30 : vector<1x128xf32>
      %c0_23 = arith.constant 0 : index
      %c0_24 = arith.constant 0 : index
      %32 = vector.load %arg3[%c0_23, %c0_24] : memref<1x128xf32, #tpu.memory_space<vmem>>, vector<1x128xf32>
      tpu.vector_store %arg3[%c0_23, %c0_24], %31 {strides = array<i32>} : memref<1x128xf32, #tpu.memory_space<vmem>>, vector<1x128xf32>,
    } else {
    }
    return
  }
  func.func @transform_0(%arg0: i32) -> (i32, i32) {
    %c0_i32 = arith.constant 0 : i32
    %c0_i32_0 = arith.constant 0 : i32
    return %arg0, %c0_i32 : i32, i32
  }
  func.func @transform_1(%arg0: i32) -> (i32, i32) {
    %c0_i32 = arith.constant 0 : i32
    %c0_i32_0 = arith.constant 0 : i32
    %c0_i32_1 = arith.constant 0 : i32
    return %c0_i32, %c0_i32_0 : i32, i32
  }
  func.func @transform_2(%arg0: i32) -> (i32, i32) {
    %c0_i32 = arith.constant 0 : i32
    %c0_i32_0 = arith.constant 0 : i32
    %c0_i32_1 = arith.constant 0 : i32
    return %c0_i32, %c0_i32_0 : i32, i32
  }
}

module attributes {stable_mosaic.version = 11 : i64} {
  func.func @_bn_relu_mm_skip_kernel(%arg0: i32, %arg1: i32, %arg2: memref<256x128xf32, #tpu.memory_space<vmem>>, %arg3: memref<1x128xf32, #tpu.memory_space<vmem>>, %arg4: memref<1x128xf32, #tpu.memory_space<vmem>>, %arg5: memref<1x1x128xf32, #tpu.memory_space<vmem>>, %arg6: memref<1x1x128xf32, #tpu.memory_space<vmem>>, %arg7: memref<128x128xbf16, #tpu.memory_space<vmem>>, %arg8: memref<1x128xf32, #tpu.memory_space<vmem>>, %arg9: memref<256x128xf32, #tpu.memory_space<vmem>>, %arg10: memref<256x128xf32, #tpu.memory_space<vmem>>) attributes {dimension_semantics = [#tpu.dimension_semantics<parallel>, #tpu.dimension_semantics<parallel>], iteration_bounds = array<i64: 2, 1>, scalar_prefetch = 0 : i64, scratch_operands = 0 : i64, tpu.core_type = #tpu.core_type<tc>, window_params = [{transform_indices = @transform_0, window_bounds = array<i64: 256, 128>}, {pipeline_mode = #tpu.pipeline_mode<synchronous>, transform_indices = @transform_1, window_bounds = array<i64: 1, 128>}, {pipeline_mode = #tpu.pipeline_mode<synchronous>, transform_indices = @transform_2, window_bounds = array<i64: 1, 128>}, {transform_indices = @transform_3, window_bounds = array<i64: 1, 1, 128>}, {transform_indices = @transform_4, window_bounds = array<i64: 1, 1, 128>}, {pipeline_mode = #tpu.pipeline_mode<synchronous>, transform_indices = @transform_5, window_bounds = array<i64: 128, 128>}, {pipeline_mode = #tpu.pipeline_mode<synchronous>, transform_indices = @transform_6, window_bounds = array<i64: 1, 128>}, {transform_indices = @transform_7, window_bounds = array<i64: 256, 128>}, {transform_indices = @transform_8, window_bounds = array<i64: 256, 128>}]} {
    %c0 = arith.constant 0 : index
    %c0_0 = arith.constant 0 : index
    %0 = vector.load %arg2[%c0, %c0_0] : memref<256x128xf32, #tpu.memory_space<vmem>>, vector<256x128xf32>
    %c0_1 = arith.constant 0 : index
    %c0_2 = arith.constant 0 : index
    %1 = vector.load %arg3[%c0_1, %c0_2] : memref<1x128xf32, #tpu.memory_space<vmem>>, vector<1x128xf32>
    %2 = vector.broadcast %1 : vector<1x128xf32> to vector<256x128xf32>
    %3 = arith.subf %0, %2 : vector<256x128xf32>
    %c0_3 = arith.constant 0 : index
    %c0_4 = arith.constant 0 : index
    %4 = vector.load %arg4[%c0_3, %c0_4] : memref<1x128xf32, #tpu.memory_space<vmem>>, vector<1x128xf32>
    %5 = vector.broadcast %4 : vector<1x128xf32> to vector<256x128xf32>
    %6 = arith.mulf %3, %5 : vector<256x128xf32>
    %c0_5 = arith.constant 0 : index
    %c0_6 = arith.constant 0 : index
    %c0_7 = arith.constant 0 : index
    %7 = vector.load %arg5[%c0_5, %c0_6, %c0_7] : memref<1x1x128xf32, #tpu.memory_space<vmem>>, vector<1x1x128xf32>
    %8 = vector.shape_cast %7 : vector<1x1x128xf32> to vector<1x128xf32>
    %9 = vector.broadcast %8 : vector<1x128xf32> to vector<256x128xf32>
    %10 = arith.mulf %6, %9 : vector<256x128xf32>
    %c0_8 = arith.constant 0 : index
    %c0_9 = arith.constant 0 : index
    %c0_10 = arith.constant 0 : index
    %11 = vector.load %arg6[%c0_8, %c0_9, %c0_10] : memref<1x1x128xf32, #tpu.memory_space<vmem>>, vector<1x1x128xf32>
    %12 = vector.shape_cast %11 : vector<1x1x128xf32> to vector<1x128xf32>
    %13 = vector.broadcast %12 : vector<1x128xf32> to vector<256x128xf32>
    %14 = arith.addf %10, %13 : vector<256x128xf32>
    %cst = arith.constant 0.000000e+00 : f32
    %15 = vector.broadcast %cst : f32 to vector<256x128xf32>
    %16 = arith.maximumf %14, %15 : vector<256x128xf32>
    %17 = arith.truncf %16 : vector<256x128xf32> to vector<256x128xbf16>
    %c0_11 = arith.constant 0 : index
    %c0_12 = arith.constant 0 : index
    %18 = vector.load %arg7[%c0_11, %c0_12] : memref<128x128xbf16, #tpu.memory_space<vmem>>, vector<128x128xbf16>
    %cst_13 = arith.constant dense<0.000000e+00> : vector<256x128xf32>
    %19 = tpu.matmul %17, %18, %cst_13 {dimension_numbers = #tpu.dot_dimension_numbers<[1], [0], [0], [1], [0, 0, 1, 1], [], []>} : vector<256x128xbf16>, vector<128x128xbf16>, vector<256x128xf32> -> vector<256x128xf32>
    %c0_14 = arith.constant 0 : index
    %c0_15 = arith.constant 0 : index
    %20 = vector.load %arg8[%c0_14, %c0_15] : memref<1x128xf32, #tpu.memory_space<vmem>>, vector<1x128xf32>
    %21 = vector.broadcast %20 : vector<1x128xf32> to vector<256x128xf32>
    %22 = arith.addf %19, %21 : vector<256x128xf32>
    %c0_16 = arith.constant 0 : index
    %c0_17 = arith.constant 0 : index
    %23 = vector.load %arg9[%c0_16, %c0_17] : memref<256x128xf32, #tpu.memory_space<vmem>>, vector<256x128xf32>
    %24 = arith.addf %22, %23 : vector<256x128xf32>
    %c0_18 = arith.constant 0 : index
    %c0_19 = arith.constant 0 : index
    %25 = vector.load %arg10[%c0_18, %c0_19] : memref<256x128xf32, #tpu.memory_space<vmem>>, vector<256x128xf32>
    tpu.vector_store %arg10[%c0_18, %c0_19], %24 {strides = array<i32>} : memref<256x128xf32, #tpu.memory_space<vmem>>, vector<256x128xf32>,
    return
  }
  func.func @transform_0(%arg0: i32, %arg1: i32) -> (i32, i32) {
    %c1_i32 = arith.constant 1 : i32
    %0 = arith.muli %arg0, %c1_i32 : i32
    %1 = arith.addi %0, %arg1 : i32
    %c0_i32 = arith.constant 0 : i32
    %c0_i32_0 = arith.constant 0 : i32
    return %1, %c0_i32 : i32, i32
  }
  func.func @transform_1(%arg0: i32, %arg1: i32) -> (i32, i32) {
    %c0_i32 = arith.constant 0 : i32
    %c0_i32_0 = arith.constant 0 : i32
    %c0_i32_1 = arith.constant 0 : i32
    return %c0_i32, %c0_i32_0 : i32, i32
  }
  func.func @transform_2(%arg0: i32, %arg1: i32) -> (i32, i32) {
    %c0_i32 = arith.constant 0 : i32
    %c0_i32_0 = arith.constant 0 : i32
    %c0_i32_1 = arith.constant 0 : i32
    return %c0_i32, %c0_i32_0 : i32, i32
  }
  func.func @transform_3(%arg0: i32, %arg1: i32) -> (i32, i32, i32) {
    %c0_i32 = arith.constant 0 : i32
    %c0_i32_0 = arith.constant 0 : i32
    %c0_i32_1 = arith.constant 0 : i32
    return %arg0, %c0_i32, %c0_i32_0 : i32, i32, i32
  }
  func.func @transform_4(%arg0: i32, %arg1: i32) -> (i32, i32, i32) {
    %c0_i32 = arith.constant 0 : i32
    %c0_i32_0 = arith.constant 0 : i32
    %c0_i32_1 = arith.constant 0 : i32
    return %arg0, %c0_i32, %c0_i32_0 : i32, i32, i32
  }
  func.func @transform_5(%arg0: i32, %arg1: i32) -> (i32, i32) {
    %c0_i32 = arith.constant 0 : i32
    %c0_i32_0 = arith.constant 0 : i32
    %c0_i32_1 = arith.constant 0 : i32
    return %c0_i32, %c0_i32_0 : i32, i32
  }
  func.func @transform_6(%arg0: i32, %arg1: i32) -> (i32, i32) {
    %c0_i32 = arith.constant 0 : i32
    %c0_i32_0 = arith.constant 0 : i32
    %c0_i32_1 = arith.constant 0 : i32
    return %c0_i32, %c0_i32_0 : i32, i32
  }
  func.func @transform_7(%arg0: i32, %arg1: i32) -> (i32, i32) {
    %c1_i32 = arith.constant 1 : i32
    %0 = arith.muli %arg0, %c1_i32 : i32
    %1 = arith.addi %0, %arg1 : i32
    %c0_i32 = arith.constant 0 : i32
    %c0_i32_0 = arith.constant 0 : i32
    return %1, %c0_i32 : i32, i32
  }
  func.func @transform_8(%arg0: i32, %arg1: i32) -> (i32, i32) {
    %c1_i32 = arith.constant 1 : i32
    %0 = arith.muli %arg0, %c1_i32 : i32
    %1 = arith.addi %0, %arg1 : i32
    %c0_i32 = arith.constant 0 : i32
    %c0_i32_0 = arith.constant 0 : i32
    return %1, %c0_i32 : i32, i32
  }
}

</mosaic_0001>

<llo_original>
// kernel: gblock_forward.10
$region0: #{gblock_forward.10}
  #allocation0 [shape = 'u32[]', space=smem, size = 0x4, offset = 0x4, fixed_abs, tag = 'smem constant byte address 0x4 - core index']
  #allocation1 [shape = 'u32[144,128]{1,0:T(1,128)}', space=vmem, size = 0x12000, scoped, tag = 'internal scratch']
  %s0 = inlined_call_operand.vmem [shape: f32[128,128], index: 0, kind: input, shape index: {}]
  %s1 = inlined_call_operand.vmem [shape: f32[1,128], index: 1, kind: output, shape index: {0}]
  %s2 = inlined_call_operand.vmem [shape: f32[1,128], index: 2, kind: output, shape index: {1}]
  %3 = xla_tuple %s1, %s2
  %s4 = sld [smem:[#allocation0]]
  $region30: #{gblock_forward.10} parent=0
    _
  %s6 = ssub.s32 1, %s4
  %s7 = scalar_select 0, %s6, %s4
  // Predicated region
  $region2: #{gblock_forward.10} parent=0 // pred_check
    _
  $region3: #{gblock_forward.10} parent=0 // pred_check_branch
    %9 = sbr.rel (0) target = $region5
  $region4: #{gblock_forward.10} parent=0 // pred_region
    _
  $region5: #{gblock_forward.10} parent=0 // pred_fallthru
    _
  %p10 = scmp.eq.s32.totalorder 0, 0
  // Predicated region
  $region6: #{gblock_forward.10} parent=0 // pred_check
    %p11 = pneg %p10
  $region7: #{gblock_forward.10} parent=0 // pred_check_branch
    %13 = sbr.rel (%p11) target = $region9
  $region8: #{gblock_forward.10} parent=0 // pred_region
    %14 = vst [vmem:[%s1] sm:$0x1] 0.0
    %15 = vst [vmem:[%s2] sm:$0x1] 0.0
  $region9: #{gblock_forward.10} parent=0 // pred_fallthru
    _
  %v16 = vld [vmem:[%s0] sm:$0xff]
  %v17 = vld [vmem:[%s0 + $0x8] sm:$0xff]
  %v18 = vld [vmem:[%s0 + $0x10] sm:$0xff]
  %v19 = vld [vmem:[%s0 + $0x18] sm:$0xff]
  %v20 = vld [vmem:[%s0 + $0x20] sm:$0xff]
  %v21 = vld [vmem:[%s0 + $0x28] sm:$0xff]
  %v22 = vld [vmem:[%s0 + $0x30] sm:$0xff]
  %v23 = vld [vmem:[%s0 + $0x38] sm:$0xff]
  %v24 = vld [vmem:[%s0 + $0x40] sm:$0xff]
  %v25 = vld [vmem:[%s0 + $0x48] sm:$0xff]
  %v26 = vld [vmem:[%s0 + $0x50] sm:$0xff]
  %v27 = vld [vmem:[%s0 + $0x58] sm:$0xff]
  %v28 = vld [vmem:[%s0 + $0x60] sm:$0xff]
  %v29 = vld [vmem:[%s0 + $0x68] sm:$0xff]
  %v30 = vld [vmem:[%s0 + $0x70] sm:$0xff]
  %v31 = vld [vmem:[%s0 + $0x78] sm:$0xff]
  %v32 = vld [vmem:[%s1] sm:$0x1]
  %v33 = vadd.f32 %v16, %v17
  %v34 = vadd.f32 %v33, %v18
  %v35 = vadd.f32 %v34, %v19
  %v36 = vadd.f32 %v35, %v20
  %v37 = vadd.f32 %v36, %v21
  %v38 = vadd.f32 %v37, %v22
  %v39 = vadd.f32 %v38, %v23
  %v40 = vadd.f32 %v39, %v24
  %v41 = vadd.f32 %v40, %v25
  %v42 = vadd.f32 %v41, %v26
  %v43 = vadd.f32 %v42, %v27
  %v44 = vadd.f32 %v43, %v28
  %v45 = vadd.f32 %v44, %v29
  %v46 = vadd.f32 %v45, %v30
  %v47 = vadd.f32 %v46, %v31
  %v48 = vrot.slane %v47, 4
  %v49 = vadd.f32 %v47, %v48
  %v50 = vrot.slane %v49, 2
  %v51 = vadd.f32 %v49, %v50
  %v52 = vrot.slane %v51, 1
  %v53 = vadd.f32 %v51, %v52
  %v54 = vadd.f32 %v32, %v53
  %55 = vst [vmem:[%s1] sm:$0x1] %v54
  %v56 = vld [vmem:[%s2] sm:$0x1]
  %v57 = vmul.f32 %v16, %v16
  %v58 = vmul.f32 %v17, %v17
  %v59 = vmul.f32 %v18, %v18
  %v60 = vmul.f32 %v19, %v19
  %v61 = vmul.f32 %v20, %v20
  %v62 = vmul.f32 %v21, %v21
  %v63 = vmul.f32 %v22, %v22
  %v64 = vmul.f32 %v23, %v23
  %v65 = vmul.f32 %v24, %v24
  %v66 = vmul.f32 %v25, %v25
  %v67 = vmul.f32 %v26, %v26
  %v68 = vmul.f32 %v27, %v27
  %v69 = vmul.f32 %v28, %v28
  %v70 = vmul.f32 %v29, %v29
  %v71 = vmul.f32 %v30, %v30
  %v72 = vmul.f32 %v31, %v31
  %v73 = vadd.f32 %v57, %v58
  %v74 = vadd.f32 %v73, %v59
  %v75 = vadd.f32 %v74, %v60
  %v76 = vadd.f32 %v75, %v61
  %v77 = vadd.f32 %v76, %v62
  %v78 = vadd.f32 %v77, %v63
  %v79 = vadd.f32 %v78, %v64
  %v80 = vadd.f32 %v79, %v65
  %v81 = vadd.f32 %v80, %v66
  %v82 = vadd.f32 %v81, %v67
  %v83 = vadd.f32 %v82, %v68
  %v84 = vadd.f32 %v83, %v69
  %v85 = vadd.f32 %v84, %v70
  %v86 = vadd.f32 %v85, %v71
  %v87 = vadd.f32 %v86, %v72
  %v88 = vrot.slane %v87, 4
  %v89 = vadd.f32 %v87, %v88
  %v90 = vrot.slane %v89, 2
  %v91 = vadd.f32 %v89, %v90
  %v92 = vrot.slane %v91, 1
  %v93 = vadd.f32 %v91, %v92
  %v94 = vadd.f32 %v56, %v93
  %95 = vst [vmem:[%s2] sm:$0x1] %v94
  // Predicated region
  $region10: #{gblock_forward.10} parent=0 // pred_check
    %p96 = pneg %p10
  $region11: #{gblock_forward.10} parent=0 // pred_check_branch
    %98 = sbr.rel (%p96) target = $region13
  $region12: #{gblock_forward.10} parent=0 // pred_region
    %v99 = vld [vmem:[%s1] sm:$0x1]
    %v100 = vmul.f32 %v99, 0.0078125
    %v101 = vld [vmem:[%s2] sm:$0x1]
    %v102 = vmul.f32 %v101, 0.0078125
    %v103 = vmul.f32 %v100, %v100
    %v104 = vsub.f32 %v102, %v103
    %v105 = vmax.f32 %v104, 0.0
    %106 = vst [vmem:[%s1] sm:$0x1] %v100
    %v107 = vadd.f32 %v105, 1e-05
    %v108 = vrsqrt.pop %v107
    %109 = vst [vmem:[%s2] sm:$0x1] %v108
  $region13: #{gblock_forward.10} parent=0 // pred_fallthru
    _
  // Predicated region
  $region14: #{gblock_forward.10} parent=0 // pred_check
    _
  $region15: #{gblock_forward.10} parent=0 // pred_check_branch
    %111 = sbr.rel (0) target = $region17
  $region16: #{gblock_forward.10} parent=0 // pred_region
    _
  $region17: #{gblock_forward.10} parent=0 // pred_fallthru
    _
  // Predicated region
  $region18: #{gblock_forward.10} parent=0 // pred_check
    _
  $region19: #{gblock_forward.10} parent=0 // pred_check_branch
    %113 = sbr.rel (0) target = $region21
  $region20: #{gblock_forward.10} parent=0 // pred_region
    _
  $region21: #{gblock_forward.10} parent=0 // pred_fallthru
    _
  // Predicated region
  $region22: #{gblock_forward.10} parent=0 // pred_check
    _
  $region23: #{gblock_forward.10} parent=0 // pred_check_branch
    %115 = sbr.rel (0) target = $region25
  $region24: #{gblock_forward.10} parent=0 // pred_region
    _
  $region25: #{gblock_forward.10} parent=0 // pred_fallthru
    _
  // Predicated region
  $region26: #{gblock_forward.10} parent=0 // pred_check
    _
  $region27: #{gblock_forward.10} parent=0 // pred_check_branch
    %117 = sbr.rel (0) target = $region29
  $region28: #{gblock_forward.10} parent=0 // pred_region
    _
  $region29: #{gblock_forward.10} parent=0 // pred_fallthru
    _

// kernel: gblock_forward.13
$region0: #{gblock_forward.13}
  #allocation0 [shape = 'u32[]', space=smem, size = 0x4, offset = 0x4, fixed_abs, tag = 'smem constant byte address 0x4 - core index']
  #allocation1 [shape = 'u32[144,128]{1,0:T(1,128)}', space=vmem, size = 0x12000, scoped, tag = 'internal scratch']
  %s0 = inlined_call_operand.vmem [shape: f32[128,128], index: 0, kind: input, shape index: {}]
  %s1 = inlined_call_operand.vmem [shape: f32[1,128], index: 1, kind: input, shape index: {}]
  %s2 = inlined_call_operand.vmem [shape: f32[1,128], index: 2, kind: input, shape index: {}]
  %s3 = inlined_call_operand.vmem [shape: f32[2,1,128], index: 3, kind: input, shape index: {}]
  %s4 = inlined_call_operand.vmem [shape: f32[2,1,128], index: 4, kind: input, shape index: {}]
  %s5 = inlined_call_operand.vmem [shape: f32[128,128], index: 5, kind: output, shape index: {}]
  %s6 = sld [smem:[#allocation0]]
  $region53: #{gblock_forward.13} parent=0
    _
  %s8 = ssub.s32 1, %s6
  %s9 = scalar_select 0, %s8, %s6
  loop: start=0, step=1, limit=4
  $region2: #{gblock_forward.13} parent=0 // loop_pre_header
    _
  $region3: #{gblock_forward.13} parent=0 // loop_header
    %s11 = sphi 0, %s15
    %p12 = scmp.ge.s32.totalorder %s11, 4
    %s18 = sphi 0, %s30
    %s19 = sphi 0, %s26
    %s20 = sphi 0, %s18
    %s21 = sphi 0, %s19
    %s22 = sphi 0, %s20
    %s23 = sphi 0, %s21
    %s35 = sphi 0, %s37
    %s38 = sphi 0, %s35
    %s39 = sphi 0, %s38
    %s55 = sphi 0, %s39
    %s59 = sphi 0, %s59
    %s61 = sphi 0, %s59
    %s62 = sphi 0, %s61
    %s76 = sphi 0, %s62
    %s80 = sphi 0, %s80
    %s82 = sphi 0, %s80
    %s83 = sphi 0, %s82
    %s97 = sphi 0, %s83
    %s103 = sphi 0, %s105
    %s106 = sphi 0, %s103
    %s107 = sphi 0, %s106
    %s123 = sphi 0, %s107
    %s129 = sphi 0, %s131
    %s132 = sphi 0, %s129
    %s133 = sphi 0, %s132
    %s149 = sphi 0, %s133
    %s157 = sphi 0, %s159
    %s160 = sphi 0, %s157
    %s161 = sphi 0, %s160
    %s177 = sphi 0, %s161
  $region4: #{gblock_forward.13} parent=0 // loop_header_branch
    %14 = sbr.rel (%p12) target = $region8
  $region5: #{gblock_forward.13} parent=0 // loop_body
    %s16 = ssub.s32 %s11, 1
    %s17 = ssub.s32 %s11, 2
    %s24 = sadd.s32 1, %s19
    %p25 = scmp.ge.s32.totalorder %s24, 1
    %s26 = scalar_select %p25, 0, %s24
    %s27 = sadd.s32 1, %s18
    %s28 = scalar_select %p25, %s27, %s18
    %p29 = scmp.ge.s32.totalorder %s28, 2
    %s30 = scalar_select %p29, 0, %s28
    %s31 = sadd.s32 %s18, %s19
    %s32 = sadd.s32 %s30, %s26
    %s33 = ssub.s32 %s31, %s32
    %p34 = scmp.eq.s32.totalorder %s33, 0
    %s36 = sadd.s32 %s35, 1
    %s37 = scalar_select %p34, %s35, %s36
    %p40 = pneg %p34
    %p41 = scmp.eq.s32.totalorder %s11, 1
    %p42 = por %p40, %p41
    %p43 = scmp.ne.s32.totalorder %s35, %s38
    %p44 = scmp.eq.s32.totalorder %s11, 0
    %p45 = por %p43, %p44
    %p46 = scmp.ne.s32.totalorder %s35, %s38
    %p47 = scmp.eq.s32.totalorder %s16, 1
    %p48 = por %p46, %p47
    %p49 = scmp.ne.s32.totalorder %s38, %s39
    %p50 = scmp.eq.s32.totalorder %s16, 0
    %p51 = por %p49, %p50
    %p52 = scmp.ne.s32.totalorder %s38, %s39
    %p53 = scmp.eq.s32.totalorder %s17, 1
    %p54 = por %p52, %p53
    %p56 = scmp.ne.s32.totalorder %s39, %s55
    %p57 = scmp.eq.s32.totalorder %s17, 0
    %p58 = por %p56, %p57
    %s60 = sadd.s32 %s59, 1
    %p63 = scmp.eq.s32.totalorder %s11, 1
    %p64 = scmp.ne.s32.totalorder %s59, %s61
    %p65 = scmp.eq.s32.totalorder %s11, 0
    %p66 = por %p64, %p65
    %p67 = scmp.ne.s32.totalorder %s59, %s61
    %p68 = scmp.eq.s32.totalorder %s16, 1
    %p69 = por %p67, %p68
    %p70 = scmp.ne.s32.totalorder %s61, %s62
    %p71 = scmp.eq.s32.totalorder %s16, 0
    %p72 = por %p70, %p71
    %p73 = scmp.ne.s32.totalorder %s61, %s62
    %p74 = scmp.eq.s32.totalorder %s17, 1
    %p75 = por %p73, %p74
    %p77 = scmp.ne.s32.totalorder %s62, %s76
    %p78 = scmp.eq.s32.totalorder %s17, 0
    %p79 = por %p77, %p78
    %s81 = sadd.s32 %s80, 1
    %p84 = scmp.eq.s32.totalorder %s11, 1
    %p85 = scmp.ne.s32.totalorder %s80, %s82
    %p86 = scmp.eq.s32.totalorder %s11, 0
    %p87 = por %p85, %p86
    %p88 = scmp.ne.s32.totalorder %s80, %s82
    %p89 = scmp.eq.s32.totalorder %s16, 1
    %p90 = por %p88, %p89
    %p91 = scmp.ne.s32.totalorder %s82, %s83
    %p92 = scmp.eq.s32.totalorder %s16, 0
    %p93 = por %p91, %p92
    %p94 = scmp.ne.s32.totalorder %s82, %s83
    %p95 = scmp.eq.s32.totalorder %s17, 1
    %p96 = por %p94, %p95
    %p98 = scmp.ne.s32.totalorder %s83, %s97
    %p99 = scmp.eq.s32.totalorder %s17, 0
    %p100 = por %p98, %p99
    %s101 = ssub.s32 %s18, %s30
    %p102 = scmp.eq.s32.totalorder %s101, 0
    %s104 = sadd.s32 %s103, 1
    %s105 = scalar_select %p102, %s103, %s104
    %p108 = pneg %p102
    %p109 = scmp.eq.s32.totalorder %s11, 1
    %p110 = por %p108, %p109
    %p111 = scmp.ne.s32.totalorder %s103, %s106
    %p112 = scmp.eq.s32.totalorder %s11, 0
    %p113 = por %p111, %p112
    %p114 = scmp.ne.s32.totalorder %s103, %s106
    %p115 = scmp.eq.s32.totalorder %s16, 1
    %p116 = por %p114, %p115
    %p117 = scmp.ne.s32.totalorder %s106, %s107
    %p118 = scmp.eq.s32.totalorder %s16, 0
    %p119 = por %p117, %p118
    %p120 = scmp.ne.s32.totalorder %s106, %s107
    %p121 = scmp.eq.s32.totalorder %s17, 1
    %p122 = por %p120, %p121
    %p124 = scmp.ne.s32.totalorder %s107, %s123
    %p125 = scmp.eq.s32.totalorder %s17, 0
    %p126 = por %p124, %p125
    %s127 = ssub.s32 %s18, %s30
    %p128 = scmp.eq.s32.totalorder %s127, 0
    %s130 = sadd.s32 %s129, 1
    %s131 = scalar_select %p128, %s129, %s130
    %p134 = pneg %p128
    %p135 = scmp.eq.s32.totalorder %s11, 1
    %p136 = por %p134, %p135
    %p137 = scmp.ne.s32.totalorder %s129, %s132
    %p138 = scmp.eq.s32.totalorder %s11, 0
    %p139 = por %p137, %p138
    %p140 = scmp.ne.s32.totalorder %s129, %s132
    %p141 = scmp.eq.s32.totalorder %s16, 1
    %p142 = por %p140, %p141
    %p143 = scmp.ne.s32.totalorder %s132, %s133
    %p144 = scmp.eq.s32.totalorder %s16, 0
    %p145 = por %p143, %p144
    %p146 = scmp.ne.s32.totalorder %s132, %s133
    %p147 = scmp.eq.s32.totalorder %s17, 1
    %p148 = por %p146, %p147
    %p150 = scmp.ne.s32.totalorder %s133, %s149
    %p151 = scmp.eq.s32.totalorder %s17, 0
    %p152 = por %p150, %p151
    %s153 = sadd.s32 %s18, %s19
    %s154 = sadd.s32 %s30, %s26
    %s155 = ssub.s32 %s153, %s154
    %p156 = scmp.eq.s32.totalorder %s155, 0
    %s158 = sadd.s32 %s157, 1
    %s159 = scalar_select %p156, %s157, %s158
    %p162 = pneg %p156
    %p163 = scmp.eq.s32.totalorder %s11, 1
    %p164 = por %p162, %p163
    %p165 = scmp.ne.s32.totalorder %s157, %s160
    %p166 = scmp.eq.s32.totalorder %s11, 0
    %p167 = por %p165, %p166
    %p168 = scmp.ne.s32.totalorder %s157, %s160
    %p169 = scmp.eq.s32.totalorder %s16, 1
    %p170 = por %p168, %p169
    %p171 = scmp.ne.s32.totalorder %s160, %s161
    %p172 = scmp.eq.s32.totalorder %s16, 0
    %p173 = por %p171, %p172
    %p174 = scmp.ne.s32.totalorder %s160, %s161
    %p175 = scmp.eq.s32.totalorder %s17, 1
    %p176 = por %p174, %p175
    %p178 = scmp.ne.s32.totalorder %s161, %s177
    %p179 = scmp.eq.s32.totalorder %s17, 0
    %p180 = por %p178, %p179
    %p181 = scmp.le.s32.totalorder 1, %s11
    %p182 = scmp.lt.s32.totalorder %s11, 3
    %p183 = pnand %p181, %p182
    %p184 = pneg %p183
    // Predicated region
    $region9: #{gblock_forward.13} parent=5 // pred_check
      _
    $region10: #{gblock_forward.13} parent=5 // pred_check_branch
      %186 = sbr.rel (%p183) target = $region12
    $region11: #{gblock_forward.13} parent=5 // pred_region
      %s187 = ssub.s32 %s11, 1
      // Predicated region
      $region13: #{gblock_forward.13} parent=11 // pred_check
        %p188 = pneg %p72
      $region14: #{gblock_forward.13} parent=11 // pred_check_branch
        %190 = sbr.rel (%p188) target = $region16
      $region15: #{gblock_forward.13} parent=11 // pred_region
        _
      $region16: #{gblock_forward.13} parent=11 // pred_fallthru
        _
      // Predicated region
      $region17: #{gblock_forward.13} parent=11 // pred_check
        %p191 = pneg %p93
      $region18: #{gblock_forward.13} parent=11 // pred_check_branch
        %193 = sbr.rel (%p191) target = $region20
      $region19: #{gblock_forward.13} parent=11 // pred_region
        _
      $region20: #{gblock_forward.13} parent=11 // pred_fallthru
        _
    $region12: #{gblock_forward.13} parent=5 // pred_fallthru
      _
    %p194 = scmp.lt.s32.totalorder %s11, 2
    // Predicated region
    $region21: #{gblock_forward.13} parent=5 // pred_check
      %p195 = pneg %p194
    $region22: #{gblock_forward.13} parent=5 // pred_check_branch
      %197 = sbr.rel (%p195) target = $region24
    $region23: #{gblock_forward.13} parent=5 // pred_region
      // Predicated region
      $region25: #{gblock_forward.13} parent=23 // pred_check
        %p198 = pneg %p45
      $region26: #{gblock_forward.13} parent=23 // pred_check_branch
        %200 = sbr.rel (%p198) target = $region28
      $region27: #{gblock_forward.13} parent=23 // pred_region
        %s201 = sadd.s32 %s18, %s19
        %s202 = smul.u32 8, %s201
        %p203 = scmp.lt.s32.totalorder %s202, 15
        %s204 = scalar_select %p203, %s202, 15
        %s205 = smul.addr %s204, 8
        %s206 = scalar_lea.vmem %s0, %s205
        %s207 = sadd.s32 %s18, %s19
        %s208 = smul.u32 8, %s207
      $region28: #{gblock_forward.13} parent=23 // pred_fallthru
        _
      // Predicated region
      $region29: #{gblock_forward.13} parent=23 // pred_check
        %p209 = pneg %p113
      $region30: #{gblock_forward.13} parent=23 // pred_check_branch
        %211 = sbr.rel (%p209) target = $region32
      $region31: #{gblock_forward.13} parent=23 // pred_region
        %p212 = scmp.lt.s32.totalorder %s18, 1
        %s213 = scalar_select %p212, %s18, 1
        %s214 = scalar_lea.vmem %s3, %s213
      $region32: #{gblock_forward.13} parent=23 // pred_fallthru
        _
      // Predicated region
      $region33: #{gblock_forward.13} parent=23 // pred_check
        %p215 = pneg %p139
      $region34: #{gblock_forward.13} parent=23 // pred_check_branch
        %217 = sbr.rel (%p215) target = $region36
      $region35: #{gblock_forward.13} parent=23 // pred_region
        %p218 = scmp.lt.s32.totalorder %s18, 1
        %s219 = scalar_select %p218, %s18, 1
        %s220 = scalar_lea.vmem %s4, %s219
      $region36: #{gblock_forward.13} parent=23 // pred_fallthru
        _
    $region24: #{gblock_forward.13} parent=5 // pred_fallthru
      _
    %p221 = scmp.le.s32.totalorder 1, %s11
    %p222 = scmp.lt.s32.totalorder %s11, 3
    %p223 = pnand %p221, %p222
    %p224 = pneg %p223
    // Predicated region
    $region37: #{gblock_forward.13} parent=5 // pred_check
      _
    $region38: #{gblock_forward.13} parent=5 // pred_check_branch
      %226 = sbr.rel (%p223) target = $region40
    $region39: #{gblock_forward.13} parent=5 // pred_region
      %s227 = ssub.s32 %s11, 1
      %s228 = sadd.s32 %s20, %s21
      %s229 = smul.u32 8, %s228
      %p230 = scmp.lt.s32.totalorder %s229, 15
      %s231 = scalar_select %p230, %s229, 15
      %s232 = smul.addr %s231, 8
      %s233 = scalar_lea.vmem %s0, %s232
      %p234 = pneg %p51
      %p235 = pneg %p48
      %p236 = pneg %p72
      %p237 = pneg %p69
      %p238 = pneg %p93
      %p239 = pneg %p90
      %p240 = scmp.lt.s32.totalorder %s20, 1
      %s241 = scalar_select %p240, %s20, 1
      %s242 = scalar_lea.vmem %s3, %s241
      %p243 = pneg %p119
      %p244 = pneg %p116
      %p245 = scmp.lt.s32.totalorder %s20, 1
      %s246 = scalar_select %p245, %s20, 1
      %s247 = scalar_lea.vmem %s4, %s246
      %p248 = pneg %p145
      %p249 = pneg %p142
      %p250 = pneg %p173
      %p251 = pneg %p170
      %s252 = sadd.s32 %s20, %s21
      %s253 = smul.u32 8, %s252
      %p254 = scmp.lt.s32.totalorder %s253, 15
      %s255 = scalar_select %p254, %s253, 15
      %s256 = smul.addr %s255, 8
      %s257 = scalar_lea.vmem %s5, %s256
      %s258 = sadd.s32 %s20, %s21
      %s259 = smul.u32 8, %s258
      %p260 = scmp.lt.s32.totalorder %s259, 15
      %s261 = scalar_select %p260, %s259, 15
      %s262 = smul.addr %s261, 8
      %s263 = scalar_lea.vmem %s0, %s262
      %s264 = sadd.s32 %s20, %s21
      %s265 = smul.u32 8, %s264
      %p266 = scmp.lt.s32.totalorder %s20, 1
      %s267 = scalar_select %p266, %s20, 1
      %s268 = scalar_lea.vmem %s3, %s267
      %p269 = scmp.lt.s32.totalorder %s20, 1
      %s270 = scalar_select %p269, %s20, 1
      %s271 = scalar_lea.vmem %s4, %s270
      %s272 = sadd.s32 %s20, %s21
      %s273 = smul.u32 8, %s272
      %p274 = scmp.lt.s32.totalorder %s273, 15
      %s275 = scalar_select %p274, %s273, 15
      %s276 = smul.addr %s275, 8
      %s277 = scalar_lea.vmem %s5, %s276
      %s278 = sadd.s32 %s20, %s21
      %s279 = smul.u32 8, %s278
      %v280 = vld [vmem:[%s263] sm:$0xff]
      %v281 = vld [vmem:[%s263 + $0x8] sm:$0xff]
      %v282 = vld [vmem:[%s263 + $0x10] sm:$0xff]
      %v283 = vld [vmem:[%s263 + $0x18] sm:$0xff]
      %v284 = vld [vmem:[%s263 + $0x20] sm:$0xff]
      %v285 = vld [vmem:[%s263 + $0x28] sm:$0xff]
      %v286 = vld [vmem:[%s263 + $0x30] sm:$0xff]
      %v287 = vld [vmem:[%s263 + $0x38] sm:$0xff]
      %v288 = vld [vmem:[%s1] sm:$0x1]
      %v290 = vlaneseq
      %v291 = vshrl.u32 %v290, 7
      %v292 = vsub.s32 0, %v291
      %v293 = vrot.slane %v288, %v292
      %v295 = vsub.f32 %v280, %v293
      %v296 = vsub.f32 %v281, %v293
      %v297 = vsub.f32 %v282, %v293
      %v298 = vsub.f32 %v283, %v293
      %v299 = vsub.f32 %v284, %v293
      %v300 = vsub.f32 %v285, %v293
      %v301 = vsub.f32 %v286, %v293
      %v302 = vsub.f32 %v287, %v293
      %v303 = vld [vmem:[%s2] sm:$0x1]
      %v305 = vlaneseq
      %v306 = vshrl.u32 %v305, 7
      %v307 = vsub.s32 0, %v306
      %v308 = vrot.slane %v303, %v307
      %v310 = vmul.f32 %v295, %v308
      %v311 = vmul.f32 %v296, %v308
      %v312 = vmul.f32 %v297, %v308
      %v313 = vmul.f32 %v298, %v308
      %v314 = vmul.f32 %v299, %v308
      %v315 = vmul.f32 %v300, %v308
      %v316 = vmul.f32 %v301, %v308
      %v317 = vmul.f32 %v302, %v308
      %v318 = vld [vmem:[%s268] sm:$0x1]
      %v320 = vlaneseq
      %v321 = vshrl.u32 %v320, 7
      %v322 = vsub.s32 0, %v321
      %v323 = vrot.slane %v318, %v322
      %v325 = vmul.f32 %v310, %v323
      %v326 = vmul.f32 %v311, %v323
      %v327 = vmul.f32 %v312, %v323
      %v328 = vmul.f32 %v313, %v323
      %v329 = vmul.f32 %v314, %v323
      %v330 = vmul.f32 %v315, %v323
      %v331 = vmul.f32 %v316, %v323
      %v332 = vmul.f32 %v317, %v323
      %v333 = vld [vmem:[%s271] sm:$0x1]
      %v335 = vlaneseq
      %v336 = vshrl.u32 %v335, 7
      %v337 = vsub.s32 0, %v336
      %v338 = vrot.slane %v333, %v337
      %v340 = vadd.f32 %v325, %v338
      %v341 = vadd.f32 %v326, %v338
      %v342 = vadd.f32 %v327, %v338
      %v343 = vadd.f32 %v328, %v338
      %v344 = vadd.f32 %v329, %v338
      %v345 = vadd.f32 %v330, %v338
      %v346 = vadd.f32 %v331, %v338
      %v347 = vadd.f32 %v332, %v338
      %v348 = vmax.f32 %v340, 0.0
      %v349 = vmax.f32 %v341, 0.0
      %v350 = vmax.f32 %v342, 0.0
      %v351 = vmax.f32 %v343, 0.0
      %v352 = vmax.f32 %v344, 0.0
      %v353 = vmax.f32 %v345, 0.0
      %v354 = vmax.f32 %v346, 0.0
      %v355 = vmax.f32 %v347, 0.0
      %356 = vst [vmem:[%s277] sm:$0xff] %v348
      %357 = vst [vmem:[%s277 + $0x8] sm:$0xff] %v349
      %358 = vst [vmem:[%s277 + $0x10] sm:$0xff] %v350
      %359 = vst [vmem:[%s277 + $0x18] sm:$0xff] %v351
      %360 = vst [vmem:[%s277 + $0x20] sm:$0xff] %v352
      %361 = vst [vmem:[%s277 + $0x28] sm:$0xff] %v353
      %362 = vst [vmem:[%s277 + $0x30] sm:$0xff] %v354
      %363 = vst [vmem:[%s277 + $0x38] sm:$0xff] %v355
      %s364 = sadd.s32 %s20, %s21
      %s365 = smul.u32 8, %s364
      %p366 = scmp.lt.s32.totalorder %s365, 15
      %s367 = scalar_select %p366, %s365, 15
      %s368 = smul.addr %s367, 8
      %s369 = scalar_lea.vmem %s5, %s368
      // Predicated region
      $region41: #{gblock_forward.13} parent=39 // pred_check
        %p370 = pneg %p170
      $region42: #{gblock_forward.13} parent=39 // pred_check_branch
        %372 = sbr.rel (%p370) target = $region44
      $region43: #{gblock_forward.13} parent=39 // pred_region
        %s373 = sadd.s32 %s20, %s21
        %s374 = smul.u32 8, %s373
      $region44: #{gblock_forward.13} parent=39 // pred_fallthru
        _
    $region40: #{gblock_forward.13} parent=5 // pred_fallthru
      _
    %p375 = scmp.le.s32.totalorder 2, %s11
    // Predicated region
    $region45: #{gblock_forward.13} parent=5 // pred_check
      %p376 = pneg %p375
    $region46: #{gblock_forward.13} parent=5 // pred_check_branch
      %378 = sbr.rel (%p376) target = $region48
    $region47: #{gblock_forward.13} parent=5 // pred_region
      %s379 = ssub.s32 %s11, 2
      // Predicated region
      $region49: #{gblock_forward.13} parent=47 // pred_check
        %p380 = pneg %p176
      $region50: #{gblock_forward.13} parent=47 // pred_check_branch
        %382 = sbr.rel (%p380) target = $region52
      $region51: #{gblock_forward.13} parent=47 // pred_region
        %s383 = sadd.s32 %s22, %s23
        %s384 = smul.u32 8, %s383
        %p385 = scmp.lt.s32.totalorder %s384, 15
        %s386 = scalar_select %p385, %s384, 15
        %s387 = smul.addr %s386, 8
        %s388 = scalar_lea.vmem %s5, %s387
      $region52: #{gblock_forward.13} parent=47 // pred_fallthru
        _
    $region48: #{gblock_forward.13} parent=5 // pred_fallthru
      _
  $region6: #{gblock_forward.13} parent=0 // loop_footer
    %s15 = sadd.s32 1, %s11
  $region7: #{gblock_forward.13} parent=0 // loop_footer_branch
    %10 = sbr.rel target = $region3
  $region8: #{gblock_forward.13} parent=0 // loop_exit
    _

// kernel: gblock_forward.11
$region0: #{gblock_forward.11}
  #allocation0 [shape = 'u32[]', space=smem, size = 0x4, offset = 0x4, fixed_abs, tag = 'smem constant byte address 0x4 - core index']
  #allocation1 [shape = 'u32[144,128]{1,0:T(1,128)}', space=vmem, size = 0x12000, scoped, tag = 'internal scratch']
  %s0 = inlined_call_operand.vmem [shape: f32[128,128], index: 0, kind: input, shape index: {}]
  %s1 = inlined_call_operand.vmem [shape: f32[1,128], index: 1, kind: input, shape index: {}]
  %s2 = inlined_call_operand.vmem [shape: f32[1,128], index: 2, kind: input, shape index: {}]
  %s3 = inlined_call_operand.vmem [shape: f32[2,1,128], index: 3, kind: input, shape index: {}]
  %s4 = inlined_call_operand.vmem [shape: f32[2,1,128], index: 4, kind: input, shape index: {}]
  %s5 = inlined_call_operand.vmem [shape: bf16[128,128], index: 5, kind: input, shape index: {}]
  %s6 = inlined_call_operand.vmem [shape: f32[1,128], index: 6, kind: input, shape index: {}]
  %s7 = inlined_call_operand.vmem [shape: f32[128,128], index: 7, kind: output, shape index: {}]
  %s8 = sld [smem:[#allocation0]]
  $region61: #{gblock_forward.11} parent=0
    _
  %s10 = ssub.s32 1, %s8
  %s11 = scalar_select 0, %s10, %s8
  loop: start=0, step=1, limit=4
  $region2: #{gblock_forward.11} parent=0 // loop_pre_header
    _
  $region3: #{gblock_forward.11} parent=0 // loop_header
    %s13 = sphi 0, %s17
    %p14 = scmp.ge.s32.totalorder %s13, 4
    %s20 = sphi 0, %s32
    %s21 = sphi 0, %s28
    %s22 = sphi 0, %s20
    %s23 = sphi 0, %s21
    %s24 = sphi 0, %s22
    %s25 = sphi 0, %s23
    %s37 = sphi 0, %s39
    %s40 = sphi 0, %s37
    %s41 = sphi 0, %s40
    %s57 = sphi 0, %s41
    %s61 = sphi 0, %s61
    %s63 = sphi 0, %s61
    %s64 = sphi 0, %s63
    %s78 = sphi 0, %s64
    %s82 = sphi 0, %s82
    %s84 = sphi 0, %s82
    %s85 = sphi 0, %s84
    %s99 = sphi 0, %s85
    %s105 = sphi 0, %s107
    %s108 = sphi 0, %s105
    %s109 = sphi 0, %s108
    %s125 = sphi 0, %s109
    %s131 = sphi 0, %s133
    %s134 = sphi 0, %s131
    %s135 = sphi 0, %s134
    %s151 = sphi 0, %s135
    %s155 = sphi 0, %s155
    %s157 = sphi 0, %s155
    %s158 = sphi 0, %s157
    %s172 = sphi 0, %s158
    %s176 = sphi 0, %s176
    %s178 = sphi 0, %s176
    %s179 = sphi 0, %s178
    %s193 = sphi 0, %s179
    %s201 = sphi 0, %s203
    %s204 = sphi 0, %s201
    %s205 = sphi 0, %s204
    %s221 = sphi 0, %s205
  $region4: #{gblock_forward.11} parent=0 // loop_header_branch
    %16 = sbr.rel (%p14) target = $region8
  $region5: #{gblock_forward.11} parent=0 // loop_body
    %s18 = ssub.s32 %s13, 1
    %s19 = ssub.s32 %s13, 2
    %s26 = sadd.s32 1, %s21
    %p27 = scmp.ge.s32.totalorder %s26, 1
    %s28 = scalar_select %p27, 0, %s26
    %s29 = sadd.s32 1, %s20
    %s30 = scalar_select %p27, %s29, %s20
    %p31 = scmp.ge.s32.totalorder %s30, 2
    %s32 = scalar_select %p31, 0, %s30
    %s33 = sadd.s32 %s20, %s21
    %s34 = sadd.s32 %s32, %s28
    %s35 = ssub.s32 %s33, %s34
    %p36 = scmp.eq.s32.totalorder %s35, 0
    %s38 = sadd.s32 %s37, 1
    %s39 = scalar_select %p36, %s37, %s38
    %p42 = pneg %p36
    %p43 = scmp.eq.s32.totalorder %s13, 1
    %p44 = por %p42, %p43
    %p45 = scmp.ne.s32.totalorder %s37, %s40
    %p46 = scmp.eq.s32.totalorder %s13, 0
    %p47 = por %p45, %p46
    %p48 = scmp.ne.s32.totalorder %s37, %s40
    %p49 = scmp.eq.s32.totalorder %s18, 1
    %p50 = por %p48, %p49
    %p51 = scmp.ne.s32.totalorder %s40, %s41
    %p52 = scmp.eq.s32.totalorder %s18, 0
    %p53 = por %p51, %p52
    %p54 = scmp.ne.s32.totalorder %s40, %s41
    %p55 = scmp.eq.s32.totalorder %s19, 1
    %p56 = por %p54, %p55
    %p58 = scmp.ne.s32.totalorder %s41, %s57
    %p59 = scmp.eq.s32.totalorder %s19, 0
    %p60 = por %p58, %p59
    %s62 = sadd.s32 %s61, 1
    %p65 = scmp.eq.s32.totalorder %s13, 1
    %p66 = scmp.ne.s32.totalorder %s61, %s63
    %p67 = scmp.eq.s32.totalorder %s13, 0
    %p68 = por %p66, %p67
    %p69 = scmp.ne.s32.totalorder %s61, %s63
    %p70 = scmp.eq.s32.totalorder %s18, 1
    %p71 = por %p69, %p70
    %p72 = scmp.ne.s32.totalorder %s63, %s64
    %p73 = scmp.eq.s32.totalorder %s18, 0
    %p74 = por %p72, %p73
    %p75 = scmp.ne.s32.totalorder %s63, %s64
    %p76 = scmp.eq.s32.totalorder %s19, 1
    %p77 = por %p75, %p76
    %p79 = scmp.ne.s32.totalorder %s64, %s78
    %p80 = scmp.eq.s32.totalorder %s19, 0
    %p81 = por %p79, %p80
    %s83 = sadd.s32 %s82, 1
    %p86 = scmp.eq.s32.totalorder %s13, 1
    %p87 = scmp.ne.s32.totalorder %s82, %s84
    %p88 = scmp.eq.s32.totalorder %s13, 0
    %p89 = por %p87, %p88
    %p90 = scmp.ne.s32.totalorder %s82, %s84
    %p91 = scmp.eq.s32.totalorder %s18, 1
    %p92 = por %p90, %p91
    %p93 = scmp.ne.s32.totalorder %s84, %s85
    %p94 = scmp.eq.s32.totalorder %s18, 0
    %p95 = por %p93, %p94
    %p96 = scmp.ne.s32.totalorder %s84, %s85
    %p97 = scmp.eq.s32.totalorder %s19, 1
    %p98 = por %p96, %p97
    %p100 = scmp.ne.s32.totalorder %s85, %s99
    %p101 = scmp.eq.s32.totalorder %s19, 0
    %p102 = por %p100, %p101
    %s103 = ssub.s32 %s20, %s32
    %p104 = scmp.eq.s32.totalorder %s103, 0
    %s106 = sadd.s32 %s105, 1
    %s107 = scalar_select %p104, %s105, %s106
    %p110 = pneg %p104
    %p111 = scmp.eq.s32.totalorder %s13, 1
    %p112 = por %p110, %p111
    %p113 = scmp.ne.s32.totalorder %s105, %s108
    %p114 = scmp.eq.s32.totalorder %s13, 0
    %p115 = por %p113, %p114
    %p116 = scmp.ne.s32.totalorder %s105, %s108
    %p117 = scmp.eq.s32.totalorder %s18, 1
    %p118 = por %p116, %p117
    %p119 = scmp.ne.s32.totalorder %s108, %s109
    %p120 = scmp.eq.s32.totalorder %s18, 0
    %p121 = por %p119, %p120
    %p122 = scmp.ne.s32.totalorder %s108, %s109
    %p123 = scmp.eq.s32.totalorder %s19, 1
    %p124 = por %p122, %p123
    %p126 = scmp.ne.s32.totalorder %s109, %s125
    %p127 = scmp.eq.s32.totalorder %s19, 0
    %p128 = por %p126, %p127
    %s129 = ssub.s32 %s20, %s32
    %p130 = scmp.eq.s32.totalorder %s129, 0
    %s132 = sadd.s32 %s131, 1
    %s133 = scalar_select %p130, %s131, %s132
    %p136 = pneg %p130
    %p137 = scmp.eq.s32.totalorder %s13, 1
    %p138 = por %p136, %p137
    %p139 = scmp.ne.s32.totalorder %s131, %s134
    %p140 = scmp.eq.s32.totalorder %s13, 0
    %p141 = por %p139, %p140
    %p142 = scmp.ne.s32.totalorder %s131, %s134
    %p143 = scmp.eq.s32.totalorder %s18, 1
    %p144 = por %p142, %p143
    %p145 = scmp.ne.s32.totalorder %s134, %s135
    %p146 = scmp.eq.s32.totalorder %s18, 0
    %p147 = por %p145, %p146
    %p148 = scmp.ne.s32.totalorder %s134, %s135
    %p149 = scmp.eq.s32.totalorder %s19, 1
    %p150 = por %p148, %p149
    %p152 = scmp.ne.s32.totalorder %s135, %s151
    %p153 = scmp.eq.s32.totalorder %s19, 0
    %p154 = por %p152, %p153
    %s156 = sadd.s32 %s155, 1
    %p159 = scmp.eq.s32.totalorder %s13, 1
    %p160 = scmp.ne.s32.totalorder %s155, %s157
    %p161 = scmp.eq.s32.totalorder %s13, 0
    %p162 = por %p160, %p161
    %p163 = scmp.ne.s32.totalorder %s155, %s157
    %p164 = scmp.eq.s32.totalorder %s18, 1
    %p165 = por %p163, %p164
    %p166 = scmp.ne.s32.totalorder %s157, %s158
    %p167 = scmp.eq.s32.totalorder %s18, 0
    %p168 = por %p166, %p167
    %p169 = scmp.ne.s32.totalorder %s157, %s158
    %p170 = scmp.eq.s32.totalorder %s19, 1
    %p171 = por %p169, %p170
    %p173 = scmp.ne.s32.totalorder %s158, %s172
    %p174 = scmp.eq.s32.totalorder %s19, 0
    %p175 = por %p173, %p174
    %s177 = sadd.s32 %s176, 1
    %p180 = scmp.eq.s32.totalorder %s13, 1
    %p181 = scmp.ne.s32.totalorder %s176, %s178
    %p182 = scmp.eq.s32.totalorder %s13, 0
    %p183 = por %p181, %p182
    %p184 = scmp.ne.s32.totalorder %s176, %s178
    %p185 = scmp.eq.s32.totalorder %s18, 1
    %p186 = por %p184, %p185
    %p187 = scmp.ne.s32.totalorder %s178, %s179
    %p188 = scmp.eq.s32.totalorder %s18, 0
    %p189 = por %p187, %p188
    %p190 = scmp.ne.s32.totalorder %s178, %s179
    %p191 = scmp.eq.s32.totalorder %s19, 1
    %p192 = por %p190, %p191
    %p194 = scmp.ne.s32.totalorder %s179, %s193
    %p195 = scmp.eq.s32.totalorder %s19, 0
    %p196 = por %p194, %p195
    %s197 = sadd.s32 %s20, %s21
    %s198 = sadd.s32 %s32, %s28
    %s199 = ssub.s32 %s197, %s198
    %p200 = scmp.eq.s32.totalorder %s199, 0
    %s202 = sadd.s32 %s201, 1
    %s203 = scalar_select %p200, %s201, %s202
    %p206 = pneg %p200
    %p207 = scmp.eq.s32.totalorder %s13, 1
    %p208 = por %p206, %p207
    %p209 = scmp.ne.s32.totalorder %s201, %s204
    %p210 = scmp.eq.s32.totalorder %s13, 0
    %p211 = por %p209, %p210
    %p212 = scmp.ne.s32.totalorder %s201, %s204
    %p213 = scmp.eq.s32.totalorder %s18, 1
    %p214 = por %p212, %p213
    %p215 = scmp.ne.s32.totalorder %s204, %s205
    %p216 = scmp.eq.s32.totalorder %s18, 0
    %p217 = por %p215, %p216
    %p218 = scmp.ne.s32.totalorder %s204, %s205
    %p219 = scmp.eq.s32.totalorder %s19, 1
    %p220 = por %p218, %p219
    %p222 = scmp.ne.s32.totalorder %s205, %s221
    %p223 = scmp.eq.s32.totalorder %s19, 0
    %p224 = por %p222, %p223
    %p225 = scmp.le.s32.totalorder 1, %s13
    %p226 = scmp.lt.s32.totalorder %s13, 3
    %p227 = pnand %p225, %p226
    %p228 = pneg %p227
    // Predicated region
    $region9: #{gblock_forward.11} parent=5 // pred_check
      _
    $region10: #{gblock_forward.11} parent=5 // pred_check_branch
      %230 = sbr.rel (%p227) target = $region12
    $region11: #{gblock_forward.11} parent=5 // pred_region
      %s231 = ssub.s32 %s13, 1
      // Predicated region
      $region13: #{gblock_forward.11} parent=11 // pred_check
        %p232 = pneg %p74
      $region14: #{gblock_forward.11} parent=11 // pred_check_branch
        %234 = sbr.rel (%p232) target = $region16
      $region15: #{gblock_forward.11} parent=11 // pred_region
        _
      $region16: #{gblock_forward.11} parent=11 // pred_fallthru
        _
      // Predicated region
      $region17: #{gblock_forward.11} parent=11 // pred_check
        %p235 = pneg %p95
      $region18: #{gblock_forward.11} parent=11 // pred_check_branch
        %237 = sbr.rel (%p235) target = $region20
      $region19: #{gblock_forward.11} parent=11 // pred_region
        _
      $region20: #{gblock_forward.11} parent=11 // pred_fallthru
        _
      // Predicated region
      $region21: #{gblock_forward.11} parent=11 // pred_check
        %p238 = pneg %p168
      $region22: #{gblock_forward.11} parent=11 // pred_check_branch
        %240 = sbr.rel (%p238) target = $region24
      $region23: #{gblock_forward.11} parent=11 // pred_region
        _
      $region24: #{gblock_forward.11} parent=11 // pred_fallthru
        _
      // Predicated region
      $region25: #{gblock_forward.11} parent=11 // pred_check
        %p241 = pneg %p189
      $region26: #{gblock_forward.11} parent=11 // pred_check_branch
        %243 = sbr.rel (%p241) target = $region28
      $region27: #{gblock_forward.11} parent=11 // pred_region
        _
      $region28: #{gblock_forward.11} parent=11 // pred_fallthru
        _
    $region12: #{gblock_forward.11} parent=5 // pred_fallthru
      _
    %p244 = scmp.lt.s32.totalorder %s13, 2
    // Predicated region
    $region29: #{gblock_forward.11} parent=5 // pred_check
      %p245 = pneg %p244
    $region30: #{gblock_forward.11} parent=5 // pred_check_branch
      %247 = sbr.rel (%p245) target = $region32
    $region31: #{gblock_forward.11} parent=5 // pred_region
      // Predicated region
      $region33: #{gblock_forward.11} parent=31 // pred_check
        %p248 = pneg %p47
      $region34: #{gblock_forward.11} parent=31 // pred_check_branch
        %250 = sbr.rel (%p248) target = $region36
      $region35: #{gblock_forward.11} parent=31 // pred_region
        %s251 = sadd.s32 %s20, %s21
        %s252 = smul.u32 8, %s251
        %p253 = scmp.lt.s32.totalorder %s252, 15
        %s254 = scalar_select %p253, %s252, 15
        %s255 = smul.addr %s254, 8
        %s256 = scalar_lea.vmem %s0, %s255
        %s257 = sadd.s32 %s20, %s21
        %s258 = smul.u32 8, %s257
      $region36: #{gblock_forward.11} parent=31 // pred_fallthru
        _
      // Predicated region
      $region37: #{gblock_forward.11} parent=31 // pred_check
        %p259 = pneg %p115
      $region38: #{gblock_forward.11} parent=31 // pred_check_branch
        %261 = sbr.rel (%p259) target = $region40
      $region39: #{gblock_forward.11} parent=31 // pred_region
        %p262 = scmp.lt.s32.totalorder %s20, 1
        %s263 = scalar_select %p262, %s20, 1
        %s264 = scalar_lea.vmem %s3, %s263
      $region40: #{gblock_forward.11} parent=31 // pred_fallthru
        _
      // Predicated region
      $region41: #{gblock_forward.11} parent=31 // pred_check
        %p265 = pneg %p141
      $region42: #{gblock_forward.11} parent=31 // pred_check_branch
        %267 = sbr.rel (%p265) target = $region44
      $region43: #{gblock_forward.11} parent=31 // pred_region
        %p268 = scmp.lt.s32.totalorder %s20, 1
        %s269 = scalar_select %p268, %s20, 1
        %s270 = scalar_lea.vmem %s4, %s269
      $region44: #{gblock_forward.11} parent=31 // pred_fallthru
        _
    $region32: #{gblock_forward.11} parent=5 // pred_fallthru
      _
    %p271 = scmp.le.s32.totalorder 1, %s13
    %p272 = scmp.lt.s32.totalorder %s13, 3
    %p273 = pnand %p271, %p272
    %p274 = pneg %p273
    // Predicated region
    $region45: #{gblock_forward.11} parent=5 // pred_check
      _
    $region46: #{gblock_forward.11} parent=5 // pred_check_branch
      %276 = sbr.rel (%p273) target = $region48
    $region47: #{gblock_forward.11} parent=5 // pred_region
      %s277 = ssub.s32 %s13, 1
      %s278 = sadd.s32 %s22, %s23
      %s279 = smul.u32 8, %s278
      %p280 = scmp.lt.s32.totalorder %s279, 15
      %s281 = scalar_select %p280, %s279, 15
      %s282 = smul.addr %s281, 8
      %s283 = scalar_lea.vmem %s0, %s282
      %p284 = pneg %p53
      %p285 = pneg %p50
      %p286 = pneg %p74
      %p287 = pneg %p71
      %p288 = pneg %p95
      %p289 = pneg %p92
      %p290 = scmp.lt.s32.totalorder %s22, 1
      %s291 = scalar_select %p290, %s22, 1
      %s292 = scalar_lea.vmem %s3, %s291
      %p293 = pneg %p121
      %p294 = pneg %p118
      %p295 = scmp.lt.s32.totalorder %s22, 1
      %s296 = scalar_select %p295, %s22, 1
      %s297 = scalar_lea.vmem %s4, %s296
      %p298 = pneg %p147
      %p299 = pneg %p144
      %p300 = pneg %p168
      %p301 = pneg %p165
      %p302 = pneg %p189
      %p303 = pneg %p186
      %p304 = pneg %p217
      %p305 = pneg %p214
      %s306 = sadd.s32 %s22, %s23
      %s307 = smul.u32 8, %s306
      %p308 = scmp.lt.s32.totalorder %s307, 15
      %s309 = scalar_select %p308, %s307, 15
      %s310 = smul.addr %s309, 8
      %s311 = scalar_lea.vmem %s7, %s310
      %s312 = sadd.s32 %s22, %s23
      %s313 = smul.u32 8, %s312
      %p314 = scmp.lt.s32.totalorder %s313, 15
      %s315 = scalar_select %p314, %s313, 15
      %s316 = smul.addr %s315, 8
      %s317 = scalar_lea.vmem %s0, %s316
      %s318 = sadd.s32 %s22, %s23
      %s319 = smul.u32 8, %s318
      %p320 = scmp.lt.s32.totalorder %s22, 1
      %s321 = scalar_select %p320, %s22, 1
      %s322 = scalar_lea.vmem %s3, %s321
      %p323 = scmp.lt.s32.totalorder %s22, 1
      %s324 = scalar_select %p323, %s22, 1
      %s325 = scalar_lea.vmem %s4, %s324
      %s326 = sadd.s32 %s22, %s23
      %s327 = smul.u32 8, %s326
      %p328 = scmp.lt.s32.totalorder %s327, 15
      %s329 = scalar_select %p328, %s327, 15
      %s330 = smul.addr %s329, 8
      %s331 = scalar_lea.vmem %s7, %s330
      %s332 = sadd.s32 %s22, %s23
      %s333 = smul.u32 8, %s332
      %v335 = vld [vmem:[%s317] sm:$0xff]
      %v336 = vld [vmem:[%s317 + $0x8] sm:$0xff]
      %v337 = vld [vmem:[%s317 + $0x10] sm:$0xff]
      %v338 = vld [vmem:[%s317 + $0x18] sm:$0xff]
      %v339 = vld [vmem:[%s317 + $0x20] sm:$0xff]
      %v340 = vld [vmem:[%s317 + $0x28] sm:$0xff]
      %v341 = vld [vmem:[%s317 + $0x30] sm:$0xff]
      %v342 = vld [vmem:[%s317 + $0x38] sm:$0xff]
      %v343 = vld [vmem:[%s1] sm:$0x1]
      %v345 = vlaneseq
      %v346 = vshrl.u32 %v345, 7
      %v347 = vsub.s32 0, %v346
      %v348 = vrot.slane %v343, %v347
      %v350 = vsub.f32 %v335, %v348
      %v351 = vsub.f32 %v336, %v348
      %v352 = vsub.f32 %v337, %v348
      %v353 = vsub.f32 %v338, %v348
      %v354 = vsub.f32 %v339, %v348
      %v355 = vsub.f32 %v340, %v348
      %v356 = vsub.f32 %v341, %v348
      %v357 = vsub.f32 %v342, %v348
      %v358 = vld [vmem:[%s2] sm:$0x1]
      %v360 = vlaneseq
      %v361 = vshrl.u32 %v360, 7
      %v362 = vsub.s32 0, %v361
      %v363 = vrot.slane %v358, %v362
      %v365 = vmul.f32 %v350, %v363
      %v366 = vmul.f32 %v351, %v363
      %v367 = vmul.f32 %v352, %v363
      %v368 = vmul.f32 %v353, %v363
      %v369 = vmul.f32 %v354, %v363
      %v370 = vmul.f32 %v355, %v363
      %v371 = vmul.f32 %v356, %v363
      %v372 = vmul.f32 %v357, %v363
      %v373 = vld [vmem:[%s322] sm:$0x1]
      %v375 = vlaneseq
      %v376 = vshrl.u32 %v375, 7
      %v377 = vsub.s32 0, %v376
      %v378 = vrot.slane %v373, %v377
      %v380 = vmul.f32 %v365, %v378
      %v381 = vmul.f32 %v366, %v378
      %v382 = vmul.f32 %v367, %v378
      %v383 = vmul.f32 %v368, %v378
      %v384 = vmul.f32 %v369, %v378
      %v385 = vmul.f32 %v370, %v378
      %v386 = vmul.f32 %v371, %v378
      %v387 = vmul.f32 %v372, %v378
      %v388 = vld [vmem:[%s325] sm:$0x1]
      %v390 = vlaneseq
      %v391 = vshrl.u32 %v390, 7
      %v392 = vsub.s32 0, %v391
      %v393 = vrot.slane %v388, %v392
      %v395 = vadd.f32 %v380, %v393
      %v396 = vadd.f32 %v381, %v393
      %v397 = vadd.f32 %v382, %v393
      %v398 = vadd.f32 %v383, %v393
      %v399 = vadd.f32 %v384, %v393
      %v400 = vadd.f32 %v385, %v393
      %v401 = vadd.f32 %v386, %v393
      %v402 = vadd.f32 %v387, %v393
      %v403 = vmax.f32 %v395, 0.0
      %v404 = vmax.f32 %v396, 0.0
      %v405 = vmax.f32 %v397, 0.0
      %v406 = vmax.f32 %v398, 0.0
      %v407 = vmax.f32 %v399, 0.0
      %v408 = vmax.f32 %v400, 0.0
      %v409 = vmax.f32 %v401, 0.0
      %v410 = vmax.f32 %v402, 0.0
      %v411 = vpack.c.bf16 %v404, %v403
      %v412 = vpack.c.bf16 %v406, %v405
      %v413 = vpack.c.bf16 %v408, %v407
      %v414 = vpack.c.bf16 %v410, %v409
      %v415 = vld [vmem:[%s5] sm:$0xf]
      %v416 = vld [vmem:[%s5 + $0x4] sm:$0xf]
      %v417 = vld [vmem:[%s5 + $0x8] sm:$0xf]
      %v418 = vld [vmem:[%s5 + $0xc] sm:$0xf]
      %v419 = vld [vmem:[%s5 + $0x10] sm:$0xf]
      %v420 = vld [vmem:[%s5 + $0x14] sm:$0xf]
      %v421 = vld [vmem:[%s5 + $0x18] sm:$0xf]
      %v422 = vld [vmem:[%s5 + $0x1c] sm:$0xf]
      %v423 = vld [vmem:[%s5 + $0x20] sm:$0xf]
      %v424 = vld [vmem:[%s5 + $0x24] sm:$0xf]
      %v425 = vld [vmem:[%s5 + $0x28] sm:$0xf]
      %v426 = vld [vmem:[%s5 + $0x2c] sm:$0xf]
      %v427 = vld [vmem:[%s5 + $0x30] sm:$0xf]
      %v428 = vld [vmem:[%s5 + $0x34] sm:$0xf]
      %v429 = vld [vmem:[%s5 + $0x38] sm:$0xf]
      %v430 = vld [vmem:[%s5 + $0x3c] sm:$0xf]
      %v431 = vld [vmem:[%s6] sm:$0x1]
      %v433 = vlaneseq
      %v434 = vshrl.u32 %v433, 7
      %v435 = vsub.s32 0, %v434
      %v436 = vrot.slane %v431, %v435
      %v454 = vunpack.c.l.b16 %v415
      %v455 = vunpack.c.l.b16 %v416
      %v456 = vunpack.c.l.b16 %v417
      %v457 = vunpack.c.l.b16 %v418
      %v458 = vunpack.c.l.b16 %v419
      %v459 = vunpack.c.l.b16 %v420
      %v460 = vunpack.c.l.b16 %v421
      %v461 = vunpack.c.l.b16 %v422
      %v462 = vunpack.c.l.b16 %v423
      %v463 = vunpack.c.l.b16 %v424
      %v464 = vunpack.c.l.b16 %v425
      %v465 = vunpack.c.l.b16 %v426
      %v466 = vunpack.c.l.b16 %v427
      %v467 = vunpack.c.l.b16 %v428
      %v468 = vunpack.c.l.b16 %v429
      %v469 = vunpack.c.l.b16 %v430
      %v470 = vpack.c.b16 %v455, %v454
      %v471 = vpack.c.b16 %v457, %v456
      %v472 = vpack.c.b16 %v459, %v458
      %v473 = vpack.c.b16 %v461, %v460
      %v474 = vpack.c.b16 %v463, %v462
      %v475 = vpack.c.b16 %v465, %v464
      %v476 = vpack.c.b16 %v467, %v466
      %v477 = vpack.c.b16 %v469, %v468
      %486 = vmatprep.subr.bf16.mxu0 0
      %487 = vmatpush1.bf16.msra.mxu0 %v470
      %488 = vmatprep.subr.bf16.mxu0 0
      %489 = vmatpush1.bf16.msra.mxu0 %v471
      %490 = vmatprep.subr.bf16.mxu0 0
      %491 = vmatpush1.bf16.msra.mxu0 %v472
      %492 = vmatprep.subr.bf16.mxu0 0
      %493 = vmatpush1.bf16.msra.mxu0 %v473
      %494 = vmatprep.subr.bf16.mxu0 0
      %495 = vmatpush1.bf16.msra.mxu0 %v474
      %496 = vmatprep.subr.bf16.mxu0 0
      %497 = vmatpush1.bf16.msra.mxu0 %v475
      %498 = vmatprep.subr.bf16.mxu0 0
      %499 = vmatpush1.bf16.msra.mxu0 %v476
      %500 = vmatprep.subr.bf16.mxu0 0
      %501 = vmatpush1.bf16.msra.mxu0 %v477
      %502 = vmatprep.subr.bf16.mxu0 0
      %503 = vmatpush1.bf16.msra.mxu0 0
      %504 = vmatprep.subr.bf16.mxu0 0
      %505 = vmatpush1.bf16.msra.mxu0 0
      %506 = vmatprep.subr.bf16.mxu0 0
      %507 = vmatpush1.bf16.msra.mxu0 0
      %508 = vmatprep.subr.bf16.mxu0 0
      %509 = vmatpush1.bf16.msra.mxu0 0
      %510 = vmatprep.subr.bf16.mxu0 0
      %511 = vmatpush1.bf16.msra.mxu0 0
      %512 = vmatprep.subr.bf16.mxu0 0
      %513 = vmatpush1.bf16.msra.mxu0 0
      %514 = vmatprep.subr.bf16.mxu0 0
      %515 = vmatpush1.bf16.msra.mxu0 0
      %516 = vmatprep.subr.bf16.mxu0 0
      %517 = vmatpush1.bf16.msra.mxu0 0
      %518 = vmatprep.mubr.bf16.mxu0 0
      %519 = vmatmul.mubr.bf16.gmra.mrb[0].mxu0 %v411
      %v520 = vpop.f32.mrb[0].mxu0
      %v521 = vadd.f32 %v436, %v520
      %v522 = vpop.f32.mrb[0].mxu0
      %v523 = vpop.f32.mrb[0].mxu0
      %v524 = vadd.f32 %v436, %v523
      %v525 = vpop.f32.mrb[0].mxu0
      %526 = vmatprep.mubr.bf16.mxu0 0
      %527 = vmatmul.mubr.bf16.gmra.mrb[0].mxu0 %v412
      %v528 = vpop.f32.mrb[0].mxu0
      %v529 = vadd.f32 %v436, %v528
      %v530 = vpop.f32.mrb[0].mxu0
      %v531 = vpop.f32.mrb[0].mxu0
      %v532 = vadd.f32 %v436, %v531
      %v533 = vpop.f32.mrb[0].mxu0
      %534 = vmatprep.mubr.bf16.mxu0 0
      %535 = vmatmul.mubr.bf16.gmra.mrb[0].mxu0 %v413
      %v536 = vpop.f32.mrb[0].mxu0
      %v537 = vadd.f32 %v436, %v536
      %v538 = vpop.f32.mrb[0].mxu0
      %v539 = vpop.f32.mrb[0].mxu0
      %v540 = vadd.f32 %v436, %v539
      %v541 = vpop.f32.mrb[0].mxu0
      %542 = vmatprep.mubr.bf16.mxu0 0
      %543 = vmatmul.mubr.bf16.gmra.mrb[0].mxu0 %v414
      %v544 = vpop.f32.mrb[0].mxu0
      %v545 = vadd.f32 %v436, %v544
      %v546 = vpop.f32.mrb[0].mxu0
      %v547 = vpop.f32.mrb[0].mxu0
      %v548 = vadd.f32 %v436, %v547
      %v549 = vpop.f32.mrb[0].mxu0
      %550 = vdwg.mxu0
      %551 = vst [vmem:[%s331] sm:$0xff] %v521
      %552 = vst [vmem:[%s331 + $0x8] sm:$0xff] %v524
      %553 = vst [vmem:[%s331 + $0x10] sm:$0xff] %v529
      %554 = vst [vmem:[%s331 + $0x18] sm:$0xff] %v532
      %555 = vst [vmem:[%s331 + $0x20] sm:$0xff] %v537
      %556 = vst [vmem:[%s331 + $0x28] sm:$0xff] %v540
      %557 = vst [vmem:[%s331 + $0x30] sm:$0xff] %v545
      %558 = vst [vmem:[%s331 + $0x38] sm:$0xff] %v548
      %s559 = sadd.s32 %s22, %s23
      %s560 = smul.u32 8, %s559
      %p561 = scmp.lt.s32.totalorder %s560, 15
      %s562 = scalar_select %p561, %s560, 15
      %s563 = smul.addr %s562, 8
      %s564 = scalar_lea.vmem %s7, %s563
      // Predicated region
      $region49: #{gblock_forward.11} parent=47 // pred_check
        %p565 = pneg %p214
      $region50: #{gblock_forward.11} parent=47 // pred_check_branch
        %567 = sbr.rel (%p565) target = $region52
      $region51: #{gblock_forward.11} parent=47 // pred_region
        %s568 = sadd.s32 %s22, %s23
        %s569 = smul.u32 8, %s568
      $region52: #{gblock_forward.11} parent=47 // pred_fallthru
        _
    $region48: #{gblock_forward.11} parent=5 // pred_fallthru
      _
    %p570 = scmp.le.s32.totalorder 2, %s13
    // Predicated region
    $region53: #{gblock_forward.11} parent=5 // pred_check
      %p571 = pneg %p570
    $region54: #{gblock_forward.11} parent=5 // pred_check_branch
      %573 = sbr.rel (%p571) target = $region56
    $region55: #{gblock_forward.11} parent=5 // pred_region
      %s574 = ssub.s32 %s13, 2
      // Predicated region
      $region57: #{gblock_forward.11} parent=55 // pred_check
        %p575 = pneg %p220
      $region58: #{gblock_forward.11} parent=55 // pred_check_branch
        %577 = sbr.rel (%p575) target = $region60
      $region59: #{gblock_forward.11} parent=55 // pred_region
        %s578 = sadd.s32 %s24, %s25
        %s579 = smul.u32 8, %s578
        %p580 = scmp.lt.s32.totalorder %s579, 15
        %s581 = scalar_select %p580, %s579, 15
        %s582 = smul.addr %s581, 8
        %s583 = scalar_lea.vmem %s7, %s582
      $region60: #{gblock_forward.11} parent=55 // pred_fallthru
        _
    $region56: #{gblock_forward.11} parent=5 // pred_fallthru
      _
  $region6: #{gblock_forward.11} parent=0 // loop_footer
    %s17 = sadd.s32 1, %s13
  $region7: #{gblock_forward.11} parent=0 // loop_footer_branch
    %12 = sbr.rel target = $region3
  $region8: #{gblock_forward.11} parent=0 // loop_exit
    _

// kernel: gblock_forward.16
$region0: #{gblock_forward.16}
  #allocation0 [shape = 'u32[]', space=smem, size = 0x4, offset = 0x4, fixed_abs, tag = 'smem constant byte address 0x4 - core index']
  #allocation1 [shape = 'u32[144,128]{1,0:T(1,128)}', space=vmem, size = 0x12000, scoped, tag = 'internal scratch']
  %s0 = inlined_call_operand.vmem [shape: f32[512,128], index: 0, kind: input, shape index: {}]
  %s1 = inlined_call_operand.vmem [shape: f32[1,128], index: 1, kind: input, shape index: {}]
  %s2 = inlined_call_operand.vmem [shape: f32[1,128], index: 2, kind: input, shape index: {}]
  %s3 = inlined_call_operand.vmem [shape: f32[2,1,128], index: 3, kind: input, shape index: {}]
  %s4 = inlined_call_operand.vmem [shape: f32[2,1,128], index: 4, kind: input, shape index: {}]
  %s5 = inlined_call_operand.vmem [shape: f32[512,128], index: 5, kind: output, shape index: {}]
  %s6 = sld [smem:[#allocation0]]
  $region53: #{gblock_forward.16} parent=0
    _
  %s8 = ssub.s32 1, %s6
  %s9 = scalar_select 0, %s8, %s6
  loop: start=0, step=1, limit=4
  $region2: #{gblock_forward.16} parent=0 // loop_pre_header
    _
  $region3: #{gblock_forward.16} parent=0 // loop_header
    %s11 = sphi 0, %s15
    %p12 = scmp.ge.s32.totalorder %s11, 4
    %s18 = sphi 0, %s30
    %s19 = sphi 0, %s26
    %s20 = sphi 0, %s18
    %s21 = sphi 0, %s19
    %s22 = sphi 0, %s20
    %s23 = sphi 0, %s21
    %s35 = sphi 0, %s37
    %s38 = sphi 0, %s35
    %s39 = sphi 0, %s38
    %s55 = sphi 0, %s39
    %s59 = sphi 0, %s59
    %s61 = sphi 0, %s59
    %s62 = sphi 0, %s61
    %s76 = sphi 0, %s62
    %s80 = sphi 0, %s80
    %s82 = sphi 0, %s80
    %s83 = sphi 0, %s82
    %s97 = sphi 0, %s83
    %s103 = sphi 0, %s105
    %s106 = sphi 0, %s103
    %s107 = sphi 0, %s106
    %s123 = sphi 0, %s107
    %s129 = sphi 0, %s131
    %s132 = sphi 0, %s129
    %s133 = sphi 0, %s132
    %s149 = sphi 0, %s133
    %s157 = sphi 0, %s159
    %s160 = sphi 0, %s157
    %s161 = sphi 0, %s160
    %s177 = sphi 0, %s161
  $region4: #{gblock_forward.16} parent=0 // loop_header_branch
    %14 = sbr.rel (%p12) target = $region8
  $region5: #{gblock_forward.16} parent=0 // loop_body
    %s16 = ssub.s32 %s11, 1
    %s17 = ssub.s32 %s11, 2
    %s24 = sadd.s32 1, %s19
    %p25 = scmp.ge.s32.totalorder %s24, 1
    %s26 = scalar_select %p25, 0, %s24
    %s27 = sadd.s32 1, %s18
    %s28 = scalar_select %p25, %s27, %s18
    %p29 = scmp.ge.s32.totalorder %s28, 2
    %s30 = scalar_select %p29, 0, %s28
    %s31 = sadd.s32 %s18, %s19
    %s32 = sadd.s32 %s30, %s26
    %s33 = ssub.s32 %s31, %s32
    %p34 = scmp.eq.s32.totalorder %s33, 0
    %s36 = sadd.s32 %s35, 1
    %s37 = scalar_select %p34, %s35, %s36
    %p40 = pneg %p34
    %p41 = scmp.eq.s32.totalorder %s11, 1
    %p42 = por %p40, %p41
    %p43 = scmp.ne.s32.totalorder %s35, %s38
    %p44 = scmp.eq.s32.totalorder %s11, 0
    %p45 = por %p43, %p44
    %p46 = scmp.ne.s32.totalorder %s35, %s38
    %p47 = scmp.eq.s32.totalorder %s16, 1
    %p48 = por %p46, %p47
    %p49 = scmp.ne.s32.totalorder %s38, %s39
    %p50 = scmp.eq.s32.totalorder %s16, 0
    %p51 = por %p49, %p50
    %p52 = scmp.ne.s32.totalorder %s38, %s39
    %p53 = scmp.eq.s32.totalorder %s17, 1
    %p54 = por %p52, %p53
    %p56 = scmp.ne.s32.totalorder %s39, %s55
    %p57 = scmp.eq.s32.totalorder %s17, 0
    %p58 = por %p56, %p57
    %s60 = sadd.s32 %s59, 1
    %p63 = scmp.eq.s32.totalorder %s11, 1
    %p64 = scmp.ne.s32.totalorder %s59, %s61
    %p65 = scmp.eq.s32.totalorder %s11, 0
    %p66 = por %p64, %p65
    %p67 = scmp.ne.s32.totalorder %s59, %s61
    %p68 = scmp.eq.s32.totalorder %s16, 1
    %p69 = por %p67, %p68
    %p70 = scmp.ne.s32.totalorder %s61, %s62
    %p71 = scmp.eq.s32.totalorder %s16, 0
    %p72 = por %p70, %p71
    %p73 = scmp.ne.s32.totalorder %s61, %s62
    %p74 = scmp.eq.s32.totalorder %s17, 1
    %p75 = por %p73, %p74
    %p77 = scmp.ne.s32.totalorder %s62, %s76
    %p78 = scmp.eq.s32.totalorder %s17, 0
    %p79 = por %p77, %p78
    %s81 = sadd.s32 %s80, 1
    %p84 = scmp.eq.s32.totalorder %s11, 1
    %p85 = scmp.ne.s32.totalorder %s80, %s82
    %p86 = scmp.eq.s32.totalorder %s11, 0
    %p87 = por %p85, %p86
    %p88 = scmp.ne.s32.totalorder %s80, %s82
    %p89 = scmp.eq.s32.totalorder %s16, 1
    %p90 = por %p88, %p89
    %p91 = scmp.ne.s32.totalorder %s82, %s83
    %p92 = scmp.eq.s32.totalorder %s16, 0
    %p93 = por %p91, %p92
    %p94 = scmp.ne.s32.totalorder %s82, %s83
    %p95 = scmp.eq.s32.totalorder %s17, 1
    %p96 = por %p94, %p95
    %p98 = scmp.ne.s32.totalorder %s83, %s97
    %p99 = scmp.eq.s32.totalorder %s17, 0
    %p100 = por %p98, %p99
    %s101 = ssub.s32 %s18, %s30
    %p102 = scmp.eq.s32.totalorder %s101, 0
    %s104 = sadd.s32 %s103, 1
    %s105 = scalar_select %p102, %s103, %s104
    %p108 = pneg %p102
    %p109 = scmp.eq.s32.totalorder %s11, 1
    %p110 = por %p108, %p109
    %p111 = scmp.ne.s32.totalorder %s103, %s106
    %p112 = scmp.eq.s32.totalorder %s11, 0
    %p113 = por %p111, %p112
    %p114 = scmp.ne.s32.totalorder %s103, %s106
    %p115 = scmp.eq.s32.totalorder %s16, 1
    %p116 = por %p114, %p115
    %p117 = scmp.ne.s32.totalorder %s106, %s107
    %p118 = scmp.eq.s32.totalorder %s16, 0
    %p119 = por %p117, %p118
    %p120 = scmp.ne.s32.totalorder %s106, %s107
    %p121 = scmp.eq.s32.totalorder %s17, 1
    %p122 = por %p120, %p121
    %p124 = scmp.ne.s32.totalorder %s107, %s123
    %p125 = scmp.eq.s32.totalorder %s17, 0
    %p126 = por %p124, %p125
    %s127 = ssub.s32 %s18, %s30
    %p128 = scmp.eq.s32.totalorder %s127, 0
    %s130 = sadd.s32 %s129, 1
    %s131 = scalar_select %p128, %s129, %s130
    %p134 = pneg %p128
    %p135 = scmp.eq.s32.totalorder %s11, 1
    %p136 = por %p134, %p135
    %p137 = scmp.ne.s32.totalorder %s129, %s132
    %p138 = scmp.eq.s32.totalorder %s11, 0
    %p139 = por %p137, %p138
    %p140 = scmp.ne.s32.totalorder %s129, %s132
    %p141 = scmp.eq.s32.totalorder %s16, 1
    %p142 = por %p140, %p141
    %p143 = scmp.ne.s32.totalorder %s132, %s133
    %p144 = scmp.eq.s32.totalorder %s16, 0
    %p145 = por %p143, %p144
    %p146 = scmp.ne.s32.totalorder %s132, %s133
    %p147 = scmp.eq.s32.totalorder %s17, 1
    %p148 = por %p146, %p147
    %p150 = scmp.ne.s32.totalorder %s133, %s149
    %p151 = scmp.eq.s32.totalorder %s17, 0
    %p152 = por %p150, %p151
    %s153 = sadd.s32 %s18, %s19
    %s154 = sadd.s32 %s30, %s26
    %s155 = ssub.s32 %s153, %s154
    %p156 = scmp.eq.s32.totalorder %s155, 0
    %s158 = sadd.s32 %s157, 1
    %s159 = scalar_select %p156, %s157, %s158
    %p162 = pneg %p156
    %p163 = scmp.eq.s32.totalorder %s11, 1
    %p164 = por %p162, %p163
    %p165 = scmp.ne.s32.totalorder %s157, %s160
    %p166 = scmp.eq.s32.totalorder %s11, 0
    %p167 = por %p165, %p166
    %p168 = scmp.ne.s32.totalorder %s157, %s160
    %p169 = scmp.eq.s32.totalorder %s16, 1
    %p170 = por %p168, %p169
    %p171 = scmp.ne.s32.totalorder %s160, %s161
    %p172 = scmp.eq.s32.totalorder %s16, 0
    %p173 = por %p171, %p172
    %p174 = scmp.ne.s32.totalorder %s160, %s161
    %p175 = scmp.eq.s32.totalorder %s17, 1
    %p176 = por %p174, %p175
    %p178 = scmp.ne.s32.totalorder %s161, %s177
    %p179 = scmp.eq.s32.totalorder %s17, 0
    %p180 = por %p178, %p179
    %p181 = scmp.le.s32.totalorder 1, %s11
    %p182 = scmp.lt.s32.totalorder %s11, 3
    %p183 = pnand %p181, %p182
    %p184 = pneg %p183
    // Predicated region
    $region9: #{gblock_forward.16} parent=5 // pred_check
      _
    $region10: #{gblock_forward.16} parent=5 // pred_check_branch
      %186 = sbr.rel (%p183) target = $region12
    $region11: #{gblock_forward.16} parent=5 // pred_region
      %s187 = ssub.s32 %s11, 1
      // Predicated region
      $region13: #{gblock_forward.16} parent=11 // pred_check
        %p188 = pneg %p72
      $region14: #{gblock_forward.16} parent=11 // pred_check_branch
        %190 = sbr.rel (%p188) target = $region16
      $region15: #{gblock_forward.16} parent=11 // pred_region
        _
      $region16: #{gblock_forward.16} parent=11 // pred_fallthru
        _
      // Predicated region
      $region17: #{gblock_forward.16} parent=11 // pred_check
        %p191 = pneg %p93
      $region18: #{gblock_forward.16} parent=11 // pred_check_branch
        %193 = sbr.rel (%p191) target = $region20
      $region19: #{gblock_forward.16} parent=11 // pred_region
        _
      $region20: #{gblock_forward.16} parent=11 // pred_fallthru
        _
    $region12: #{gblock_forward.16} parent=5 // pred_fallthru
      _
    %p194 = scmp.lt.s32.totalorder %s11, 2
    // Predicated region
    $region21: #{gblock_forward.16} parent=5 // pred_check
      %p195 = pneg %p194
    $region22: #{gblock_forward.16} parent=5 // pred_check_branch
      %197 = sbr.rel (%p195) target = $region24
    $region23: #{gblock_forward.16} parent=5 // pred_region
      // Predicated region
      $region25: #{gblock_forward.16} parent=23 // pred_check
        %p198 = pneg %p45
      $region26: #{gblock_forward.16} parent=23 // pred_check_branch
        %200 = sbr.rel (%p198) target = $region28
      $region27: #{gblock_forward.16} parent=23 // pred_region
        %s201 = sadd.s32 %s18, %s19
        %s202 = smul.u32 32, %s201
        %p203 = scmp.lt.s32.totalorder %s202, 63
        %s204 = scalar_select %p203, %s202, 63
        %s205 = smul.addr %s204, 8
        %s206 = scalar_lea.vmem %s0, %s205
        %s207 = sadd.s32 %s18, %s19
        %s208 = smul.u32 32, %s207
      $region28: #{gblock_forward.16} parent=23 // pred_fallthru
        _
      // Predicated region
      $region29: #{gblock_forward.16} parent=23 // pred_check
        %p209 = pneg %p113
      $region30: #{gblock_forward.16} parent=23 // pred_check_branch
        %211 = sbr.rel (%p209) target = $region32
      $region31: #{gblock_forward.16} parent=23 // pred_region
        %p212 = scmp.lt.s32.totalorder %s18, 1
        %s213 = scalar_select %p212, %s18, 1
        %s214 = scalar_lea.vmem %s3, %s213
      $region32: #{gblock_forward.16} parent=23 // pred_fallthru
        _
      // Predicated region
      $region33: #{gblock_forward.16} parent=23 // pred_check
        %p215 = pneg %p139
      $region34: #{gblock_forward.16} parent=23 // pred_check_branch
        %217 = sbr.rel (%p215) target = $region36
      $region35: #{gblock_forward.16} parent=23 // pred_region
        %p218 = scmp.lt.s32.totalorder %s18, 1
        %s219 = scalar_select %p218, %s18, 1
        %s220 = scalar_lea.vmem %s4, %s219
      $region36: #{gblock_forward.16} parent=23 // pred_fallthru
        _
    $region24: #{gblock_forward.16} parent=5 // pred_fallthru
      _
    %p221 = scmp.le.s32.totalorder 1, %s11
    %p222 = scmp.lt.s32.totalorder %s11, 3
    %p223 = pnand %p221, %p222
    %p224 = pneg %p223
    // Predicated region
    $region37: #{gblock_forward.16} parent=5 // pred_check
      _
    $region38: #{gblock_forward.16} parent=5 // pred_check_branch
      %226 = sbr.rel (%p223) target = $region40
    $region39: #{gblock_forward.16} parent=5 // pred_region
      %s227 = ssub.s32 %s11, 1
      %s228 = sadd.s32 %s20, %s21
      %s229 = smul.u32 32, %s228
      %p230 = scmp.lt.s32.totalorder %s229, 63
      %s231 = scalar_select %p230, %s229, 63
      %s232 = smul.addr %s231, 8
      %s233 = scalar_lea.vmem %s0, %s232
      %p234 = pneg %p51
      %p235 = pneg %p48
      %p236 = pneg %p72
      %p237 = pneg %p69
      %p238 = pneg %p93
      %p239 = pneg %p90
      %p240 = scmp.lt.s32.totalorder %s20, 1
      %s241 = scalar_select %p240, %s20, 1
      %s242 = scalar_lea.vmem %s3, %s241
      %p243 = pneg %p119
      %p244 = pneg %p116
      %p245 = scmp.lt.s32.totalorder %s20, 1
      %s246 = scalar_select %p245, %s20, 1
      %s247 = scalar_lea.vmem %s4, %s246
      %p248 = pneg %p145
      %p249 = pneg %p142
      %p250 = pneg %p173
      %p251 = pneg %p170
      %s252 = sadd.s32 %s20, %s21
      %s253 = smul.u32 32, %s252
      %p254 = scmp.lt.s32.totalorder %s253, 63
      %s255 = scalar_select %p254, %s253, 63
      %s256 = smul.addr %s255, 8
      %s257 = scalar_lea.vmem %s5, %s256
      %s258 = sadd.s32 %s20, %s21
      %s259 = smul.u32 32, %s258
      %p260 = scmp.lt.s32.totalorder %s259, 63
      %s261 = scalar_select %p260, %s259, 63
      %s262 = smul.addr %s261, 8
      %s263 = scalar_lea.vmem %s0, %s262
      %s264 = sadd.s32 %s20, %s21
      %s265 = smul.u32 32, %s264
      %p266 = scmp.lt.s32.totalorder %s20, 1
      %s267 = scalar_select %p266, %s20, 1
      %s268 = scalar_lea.vmem %s3, %s267
      %p269 = scmp.lt.s32.totalorder %s20, 1
      %s270 = scalar_select %p269, %s20, 1
      %s271 = scalar_lea.vmem %s4, %s270
      %s272 = sadd.s32 %s20, %s21
      %s273 = smul.u32 32, %s272
      %p274 = scmp.lt.s32.totalorder %s273, 63
      %s275 = scalar_select %p274, %s273, 63
      %s276 = smul.addr %s275, 8
      %s277 = scalar_lea.vmem %s5, %s276
      %s278 = sadd.s32 %s20, %s21
      %s279 = smul.u32 32, %s278
      %v280 = vld [vmem:[%s263] sm:$0xff]
      %v281 = vld [vmem:[%s263 + $0x8] sm:$0xff]
      %v282 = vld [vmem:[%s263 + $0x10] sm:$0xff]
      %v283 = vld [vmem:[%s263 + $0x18] sm:$0xff]
      %v284 = vld [vmem:[%s263 + $0x20] sm:$0xff]
      %v285 = vld [vmem:[%s263 + $0x28] sm:$0xff]
      %v286 = vld [vmem:[%s263 + $0x30] sm:$0xff]
      %v287 = vld [vmem:[%s263 + $0x38] sm:$0xff]
      %v288 = vld [vmem:[%s263 + $0x40] sm:$0xff]
      %v289 = vld [vmem:[%s263 + $0x48] sm:$0xff]
      %v290 = vld [vmem:[%s263 + $0x50] sm:$0xff]
      %v291 = vld [vmem:[%s263 + $0x58] sm:$0xff]
      %v292 = vld [vmem:[%s263 + $0x60] sm:$0xff]
      %v293 = vld [vmem:[%s263 + $0x68] sm:$0xff]
      %v294 = vld [vmem:[%s263 + $0x70] sm:$0xff]
      %v295 = vld [vmem:[%s263 + $0x78] sm:$0xff]
      %v296 = vld [vmem:[%s263 + $0x80] sm:$0xff]
      %v297 = vld [vmem:[%s263 + $0x88] sm:$0xff]
      %v298 = vld [vmem:[%s263 + $0x90] sm:$0xff]
      %v299 = vld [vmem:[%s263 + $0x98] sm:$0xff]
      %v300 = vld [vmem:[%s263 + $0xa0] sm:$0xff]
      %v301 = vld [vmem:[%s263 + $0xa8] sm:$0xff]
      %v302 = vld [vmem:[%s263 + $0xb0] sm:$0xff]
      %v303 = vld [vmem:[%s263 + $0xb8] sm:$0xff]
      %v304 = vld [vmem:[%s263 + $0xc0] sm:$0xff]
      %v305 = vld [vmem:[%s263 + $0xc8] sm:$0xff]
      %v306 = vld [vmem:[%s263 + $0xd0] sm:$0xff]
      %v307 = vld [vmem:[%s263 + $0xd8] sm:$0xff]
      %v308 = vld [vmem:[%s263 + $0xe0] sm:$0xff]
      %v309 = vld [vmem:[%s263 + $0xe8] sm:$0xff]
      %v310 = vld [vmem:[%s263 + $0xf0] sm:$0xff]
      %v311 = vld [vmem:[%s263 + $0xf8] sm:$0xff]
      %v312 = vld [vmem:[%s1] sm:$0x1]
      %v314 = vlaneseq
      %v315 = vshrl.u32 %v314, 7
      %v316 = vsub.s32 0, %v315
      %v317 = vrot.slane %v312, %v316
      %v319 = vsub.f32 %v280, %v317
      %v320 = vsub.f32 %v281, %v317
      %v321 = vsub.f32 %v282, %v317
      %v322 = vsub.f32 %v283, %v317
      %v323 = vsub.f32 %v284, %v317
      %v324 = vsub.f32 %v285, %v317
      %v325 = vsub.f32 %v286, %v317
      %v326 = vsub.f32 %v287, %v317
      %v327 = vsub.f32 %v288, %v317
      %v328 = vsub.f32 %v289, %v317
      %v329 = vsub.f32 %v290, %v317
      %v330 = vsub.f32 %v291, %v317
      %v331 = vsub.f32 %v292, %v317
      %v332 = vsub.f32 %v293, %v317
      %v333 = vsub.f32 %v294, %v317
      %v334 = vsub.f32 %v295, %v317
      %v335 = vsub.f32 %v296, %v317
      %v336 = vsub.f32 %v297, %v317
      %v337 = vsub.f32 %v298, %v317
      %v338 = vsub.f32 %v299, %v317
      %v339 = vsub.f32 %v300, %v317
      %v340 = vsub.f32 %v301, %v317
      %v341 = vsub.f32 %v302, %v317
      %v342 = vsub.f32 %v303, %v317
      %v343 = vsub.f32 %v304, %v317
      %v344 = vsub.f32 %v305, %v317
      %v345 = vsub.f32 %v306, %v317
      %v346 = vsub.f32 %v307, %v317
      %v347 = vsub.f32 %v308, %v317
      %v348 = vsub.f32 %v309, %v317
      %v349 = vsub.f32 %v310, %v317
      %v350 = vsub.f32 %v311, %v317
      %v351 = vld [vmem:[%s2] sm:$0x1]
      %v353 = vlaneseq
      %v354 = vshrl.u32 %v353, 7
      %v355 = vsub.s32 0, %v354
      %v356 = vrot.slane %v351, %v355
      %v358 = vmul.f32 %v319, %v356
      %v359 = vmul.f32 %v320, %v356
      %v360 = vmul.f32 %v321, %v356
      %v361 = vmul.f32 %v322, %v356
      %v362 = vmul.f32 %v323, %v356
      %v363 = vmul.f32 %v324, %v356
      %v364 = vmul.f32 %v325, %v356
      %v365 = vmul.f32 %v326, %v356
      %v366 = vmul.f32 %v327, %v356
      %v367 = vmul.f32 %v328, %v356
      %v368 = vmul.f32 %v329, %v356
      %v369 = vmul.f32 %v330, %v356
      %v370 = vmul.f32 %v331, %v356
      %v371 = vmul.f32 %v332, %v356
      %v372 = vmul.f32 %v333, %v356
      %v373 = vmul.f32 %v334, %v356
      %v374 = vmul.f32 %v335, %v356
      %v375 = vmul.f32 %v336, %v356
      %v376 = vmul.f32 %v337, %v356
      %v377 = vmul.f32 %v338, %v356
      %v378 = vmul.f32 %v339, %v356
      %v379 = vmul.f32 %v340, %v356
      %v380 = vmul.f32 %v341, %v356
      %v381 = vmul.f32 %v342, %v356
      %v382 = vmul.f32 %v343, %v356
      %v383 = vmul.f32 %v344, %v356
      %v384 = vmul.f32 %v345, %v356
      %v385 = vmul.f32 %v346, %v356
      %v386 = vmul.f32 %v347, %v356
      %v387 = vmul.f32 %v348, %v356
      %v388 = vmul.f32 %v349, %v356
      %v389 = vmul.f32 %v350, %v356
      %v390 = vld [vmem:[%s268] sm:$0x1]
      %v392 = vlaneseq
      %v393 = vshrl.u32 %v392, 7
      %v394 = vsub.s32 0, %v393
      %v395 = vrot.slane %v390, %v394
      %v397 = vmul.f32 %v358, %v395
      %v398 = vmul.f32 %v359, %v395
      %v399 = vmul.f32 %v360, %v395
      %v400 = vmul.f32 %v361, %v395
      %v401 = vmul.f32 %v362, %v395
      %v402 = vmul.f32 %v363, %v395
      %v403 = vmul.f32 %v364, %v395
      %v404 = vmul.f32 %v365, %v395
      %v405 = vmul.f32 %v366, %v395
      %v406 = vmul.f32 %v367, %v395
      %v407 = vmul.f32 %v368, %v395
      %v408 = vmul.f32 %v369, %v395
      %v409 = vmul.f32 %v370, %v395
      %v410 = vmul.f32 %v371, %v395
      %v411 = vmul.f32 %v372, %v395
      %v412 = vmul.f32 %v373, %v395
      %v413 = vmul.f32 %v374, %v395
      %v414 = vmul.f32 %v375, %v395
      %v415 = vmul.f32 %v376, %v395
      %v416 = vmul.f32 %v377, %v395
      %v417 = vmul.f32 %v378, %v395
      %v418 = vmul.f32 %v379, %v395
      %v419 = vmul.f32 %v380, %v395
      %v420 = vmul.f32 %v381, %v395
      %v421 = vmul.f32 %v382, %v395
      %v422 = vmul.f32 %v383, %v395
      %v423 = vmul.f32 %v384, %v395
      %v424 = vmul.f32 %v385, %v395
      %v425 = vmul.f32 %v386, %v395
      %v426 = vmul.f32 %v387, %v395
      %v427 = vmul.f32 %v388, %v395
      %v428 = vmul.f32 %v389, %v395
      %v429 = vld [vmem:[%s271] sm:$0x1]
      %v431 = vlaneseq
      %v432 = vshrl.u32 %v431, 7
      %v433 = vsub.s32 0, %v432
      %v434 = vrot.slane %v429, %v433
      %v436 = vadd.f32 %v397, %v434
      %v437 = vadd.f32 %v398, %v434
      %v438 = vadd.f32 %v399, %v434
      %v439 = vadd.f32 %v400, %v434
      %v440 = vadd.f32 %v401, %v434
      %v441 = vadd.f32 %v402, %v434
      %v442 = vadd.f32 %v403, %v434
      %v443 = vadd.f32 %v404, %v434
      %v444 = vadd.f32 %v405, %v434
      %v445 = vadd.f32 %v406, %v434
      %v446 = vadd.f32 %v407, %v434
      %v447 = vadd.f32 %v408, %v434
      %v448 = vadd.f32 %v409, %v434
      %v449 = vadd.f32 %v410, %v434
      %v450 = vadd.f32 %v411, %v434
      %v451 = vadd.f32 %v412, %v434
      %v452 = vadd.f32 %v413, %v434
      %v453 = vadd.f32 %v414, %v434
      %v454 = vadd.f32 %v415, %v434
      %v455 = vadd.f32 %v416, %v434
      %v456 = vadd.f32 %v417, %v434
      %v457 = vadd.f32 %v418, %v434
      %v458 = vadd.f32 %v419, %v434
      %v459 = vadd.f32 %v420, %v434
      %v460 = vadd.f32 %v421, %v434
      %v461 = vadd.f32 %v422, %v434
      %v462 = vadd.f32 %v423, %v434
      %v463 = vadd.f32 %v424, %v434
      %v464 = vadd.f32 %v425, %v434
      %v465 = vadd.f32 %v426, %v434
      %v466 = vadd.f32 %v427, %v434
      %v467 = vadd.f32 %v428, %v434
      %v468 = vmax.f32 %v436, 0.0
      %v469 = vmax.f32 %v437, 0.0
      %v470 = vmax.f32 %v438, 0.0
      %v471 = vmax.f32 %v439, 0.0
      %v472 = vmax.f32 %v440, 0.0
      %v473 = vmax.f32 %v441, 0.0
      %v474 = vmax.f32 %v442, 0.0
      %v475 = vmax.f32 %v443, 0.0
      %v476 = vmax.f32 %v444, 0.0
      %v477 = vmax.f32 %v445, 0.0
      %v478 = vmax.f32 %v446, 0.0
      %v479 = vmax.f32 %v447, 0.0
      %v480 = vmax.f32 %v448, 0.0
      %v481 = vmax.f32 %v449, 0.0
      %v482 = vmax.f32 %v450, 0.0
      %v483 = vmax.f32 %v451, 0.0
      %v484 = vmax.f32 %v452, 0.0
      %v485 = vmax.f32 %v453, 0.0
      %v486 = vmax.f32 %v454, 0.0
      %v487 = vmax.f32 %v455, 0.0
      %v488 = vmax.f32 %v456, 0.0
      %v489 = vmax.f32 %v457, 0.0
      %v490 = vmax.f32 %v458, 0.0
      %v491 = vmax.f32 %v459, 0.0
      %v492 = vmax.f32 %v460, 0.0
      %v493 = vmax.f32 %v461, 0.0
      %v494 = vmax.f32 %v462, 0.0
      %v495 = vmax.f32 %v463, 0.0
      %v496 = vmax.f32 %v464, 0.0
      %v497 = vmax.f32 %v465, 0.0
      %v498 = vmax.f32 %v466, 0.0
      %v499 = vmax.f32 %v467, 0.0
      %500 = vst [vmem:[%s277] sm:$0xff] %v468
      %501 = vst [vmem:[%s277 + $0x8] sm:$0xff] %v469
      %502 = vst [vmem:[%s277 + $0x10] sm:$0xff] %v470
      %503 = vst [vmem:[%s277 + $0x18] sm:$0xff] %v471
      %504 = vst [vmem:[%s277 + $0x20] sm:$0xff] %v472
      %505 = vst [vmem:[%s277 + $0x28] sm:$0xff] %v473
      %506 = vst [vmem:[%s277 + $0x30] sm:$0xff] %v474
      %507 = vst [vmem:[%s277 + $0x38] sm:$0xff] %v475
      %508 = vst [vmem:[%s277 + $0x40] sm:$0xff] %v476
      %509 = vst [vmem:[%s277 + $0x48] sm:$0xff] %v477
      %510 = vst [vmem:[%s277 + $0x50] sm:$0xff] %v478
      %511 = vst [vmem:[%s277 + $0x58] sm:$0xff] %v479
      %512 = vst [vmem:[%s277 + $0x60] sm:$0xff] %v480
      %513 = vst [vmem:[%s277 + $0x68] sm:$0xff] %v481
      %514 = vst [vmem:[%s277 + $0x70] sm:$0xff] %v482
      %515 = vst [vmem:[%s277 + $0x78] sm:$0xff] %v483
      %516 = vst [vmem:[%s277 + $0x80] sm:$0xff] %v484
      %517 = vst [vmem:[%s277 + $0x88] sm:$0xff] %v485
      %518 = vst [vmem:[%s277 + $0x90] sm:$0xff] %v486
      %519 = vst [vmem:[%s277 + $0x98] sm:$0xff] %v487
      %520 = vst [vmem:[%s277 + $0xa0] sm:$0xff] %v488
      %521 = vst [vmem:[%s277 + $0xa8] sm:$0xff] %v489
      %522 = vst [vmem:[%s277 + $0xb0] sm:$0xff] %v490
      %523 = vst [vmem:[%s277 + $0xb8] sm:$0xff] %v491
      %524 = vst [vmem:[%s277 + $0xc0] sm:$0xff] %v492
      %525 = vst [vmem:[%s277 + $0xc8] sm:$0xff] %v493
      %526 = vst [vmem:[%s277 + $0xd0] sm:$0xff] %v494
      %527 = vst [vmem:[%s277 + $0xd8] sm:$0xff] %v495
      %528 = vst [vmem:[%s277 + $0xe0] sm:$0xff] %v496
      %529 = vst [vmem:[%s277 + $0xe8] sm:$0xff] %v497
      %530 = vst [vmem:[%s277 + $0xf0] sm:$0xff] %v498
      %531 = vst [vmem:[%s277 + $0xf8] sm:$0xff] %v499
      %s532 = sadd.s32 %s20, %s21
      %s533 = smul.u32 32, %s532
      %p534 = scmp.lt.s32.totalorder %s533, 63
      %s535 = scalar_select %p534, %s533, 63
      %s536 = smul.addr %s535, 8
      %s537 = scalar_lea.vmem %s5, %s536
      // Predicated region
      $region41: #{gblock_forward.16} parent=39 // pred_check
        %p538 = pneg %p170
      $region42: #{gblock_forward.16} parent=39 // pred_check_branch
        %540 = sbr.rel (%p538) target = $region44
      $region43: #{gblock_forward.16} parent=39 // pred_region
        %s541 = sadd.s32 %s20, %s21
        %s542 = smul.u32 32, %s541
      $region44: #{gblock_forward.16} parent=39 // pred_fallthru
        _
    $region40: #{gblock_forward.16} parent=5 // pred_fallthru
      _
    %p543 = scmp.le.s32.totalorder 2, %s11
    // Predicated region
    $region45: #{gblock_forward.16} parent=5 // pred_check
      %p544 = pneg %p543
    $region46: #{gblock_forward.16} parent=5 // pred_check_branch
      %546 = sbr.rel (%p544) target = $region48
    $region47: #{gblock_forward.16} parent=5 // pred_region
      %s547 = ssub.s32 %s11, 2
      // Predicated region
      $region49: #{gblock_forward.16} parent=47 // pred_check
        %p548 = pneg %p176
      $region50: #{gblock_forward.16} parent=47 // pred_check_branch
        %550 = sbr.rel (%p548) target = $region52
      $region51: #{gblock_forward.16} parent=47 // pred_region
        %s551 = sadd.s32 %s22, %s23
        %s552 = smul.u32 32, %s551
        %p553 = scmp.lt.s32.totalorder %s552, 63
        %s554 = scalar_select %p553, %s552, 63
        %s555 = smul.addr %s554, 8
        %s556 = scalar_lea.vmem %s5, %s555
      $region52: #{gblock_forward.16} parent=47 // pred_fallthru
        _
    $region48: #{gblock_forward.16} parent=5 // pred_fallthru
      _
  $region6: #{gblock_forward.16} parent=0 // loop_footer
    %s15 = sadd.s32 1, %s11
  $region7: #{gblock_forward.16} parent=0 // loop_footer_branch
    %10 = sbr.rel target = $region3
  $region8: #{gblock_forward.16} parent=0 // loop_exit
    _

// kernel: gblock_forward.15
$region0: #{gblock_forward.15}
  #allocation0 [shape = 'u32[]', space=smem, size = 0x4, offset = 0x4, fixed_abs, tag = 'smem constant byte address 0x4 - core index']
  #allocation1 [shape = 'u32[144,128]{1,0:T(1,128)}', space=vmem, size = 0x12000, scoped, tag = 'internal scratch']
  %s0 = inlined_call_operand.vmem [shape: f32[512,128], index: 0, kind: input, shape index: {}]
  %s1 = inlined_call_operand.vmem [shape: f32[1,128], index: 1, kind: output, shape index: {0}]
  %s2 = inlined_call_operand.vmem [shape: f32[1,128], index: 2, kind: output, shape index: {1}]
  %3 = xla_tuple %s1, %s2
  %s4 = sld [smem:[#allocation0]]
  $region30: #{gblock_forward.15} parent=0
    _
  %s6 = ssub.s32 1, %s4
  %s7 = scalar_select 0, %s6, %s4
  // Predicated region
  $region2: #{gblock_forward.15} parent=0 // pred_check
    _
  $region3: #{gblock_forward.15} parent=0 // pred_check_branch
    %9 = sbr.rel (0) target = $region5
  $region4: #{gblock_forward.15} parent=0 // pred_region
    _
  $region5: #{gblock_forward.15} parent=0 // pred_fallthru
    _
  %p10 = scmp.eq.s32.totalorder 0, 0
  // Predicated region
  $region6: #{gblock_forward.15} parent=0 // pred_check
    %p11 = pneg %p10
  $region7: #{gblock_forward.15} parent=0 // pred_check_branch
    %13 = sbr.rel (%p11) target = $region9
  $region8: #{gblock_forward.15} parent=0 // pred_region
    %14 = vst [vmem:[%s1] sm:$0x1] 0.0
    %15 = vst [vmem:[%s2] sm:$0x1] 0.0
  $region9: #{gblock_forward.15} parent=0 // pred_fallthru
    _
  %v16 = vld [vmem:[%s0] sm:$0xff]
  %v17 = vld [vmem:[%s0 + $0x8] sm:$0xff]
  %v18 = vld [vmem:[%s0 + $0x10] sm:$0xff]
  %v19 = vld [vmem:[%s0 + $0x18] sm:$0xff]
  %v20 = vld [vmem:[%s0 + $0x20] sm:$0xff]
  %v21 = vld [vmem:[%s0 + $0x28] sm:$0xff]
  %v22 = vld [vmem:[%s0 + $0x30] sm:$0xff]
  %v23 = vld [vmem:[%s0 + $0x38] sm:$0xff]
  %v24 = vld [vmem:[%s0 + $0x40] sm:$0xff]
  %v25 = vld [vmem:[%s0 + $0x48] sm:$0xff]
  %v26 = vld [vmem:[%s0 + $0x50] sm:$0xff]
  %v27 = vld [vmem:[%s0 + $0x58] sm:$0xff]
  %v28 = vld [vmem:[%s0 + $0x60] sm:$0xff]
  %v29 = vld [vmem:[%s0 + $0x68] sm:$0xff]
  %v30 = vld [vmem:[%s0 + $0x70] sm:$0xff]
  %v31 = vld [vmem:[%s0 + $0x78] sm:$0xff]
  %v32 = vld [vmem:[%s0 + $0x80] sm:$0xff]
  %v33 = vld [vmem:[%s0 + $0x88] sm:$0xff]
  %v34 = vld [vmem:[%s0 + $0x90] sm:$0xff]
  %v35 = vld [vmem:[%s0 + $0x98] sm:$0xff]
  %v36 = vld [vmem:[%s0 + $0xa0] sm:$0xff]
  %v37 = vld [vmem:[%s0 + $0xa8] sm:$0xff]
  %v38 = vld [vmem:[%s0 + $0xb0] sm:$0xff]
  %v39 = vld [vmem:[%s0 + $0xb8] sm:$0xff]
  %v40 = vld [vmem:[%s0 + $0xc0] sm:$0xff]
  %v41 = vld [vmem:[%s0 + $0xc8] sm:$0xff]
  %v42 = vld [vmem:[%s0 + $0xd0] sm:$0xff]
  %v43 = vld [vmem:[%s0 + $0xd8] sm:$0xff]
  %v44 = vld [vmem:[%s0 + $0xe0] sm:$0xff]
  %v45 = vld [vmem:[%s0 + $0xe8] sm:$0xff]
  %v46 = vld [vmem:[%s0 + $0xf0] sm:$0xff]
  %v47 = vld [vmem:[%s0 + $0xf8] sm:$0xff]
  %v48 = vld [vmem:[%s0 + $0x100] sm:$0xff]
  %v49 = vld [vmem:[%s0 + $0x108] sm:$0xff]
  %v50 = vld [vmem:[%s0 + $0x110] sm:$0xff]
  %v51 = vld [vmem:[%s0 + $0x118] sm:$0xff]
  %v52 = vld [vmem:[%s0 + $0x120] sm:$0xff]
  %v53 = vld [vmem:[%s0 + $0x128] sm:$0xff]
  %v54 = vld [vmem:[%s0 + $0x130] sm:$0xff]
  %v55 = vld [vmem:[%s0 + $0x138] sm:$0xff]
  %v56 = vld [vmem:[%s0 + $0x140] sm:$0xff]
  %v57 = vld [vmem:[%s0 + $0x148] sm:$0xff]
  %v58 = vld [vmem:[%s0 + $0x150] sm:$0xff]
  %v59 = vld [vmem:[%s0 + $0x158] sm:$0xff]
  %v60 = vld [vmem:[%s0 + $0x160] sm:$0xff]
  %v61 = vld [vmem:[%s0 + $0x168] sm:$0xff]
  %v62 = vld [vmem:[%s0 + $0x170] sm:$0xff]
  %v63 = vld [vmem:[%s0 + $0x178] sm:$0xff]
  %v64 = vld [vmem:[%s0 + $0x180] sm:$0xff]
  %v65 = vld [vmem:[%s0 + $0x188] sm:$0xff]
  %v66 = vld [vmem:[%s0 + $0x190] sm:$0xff]
  %v67 = vld [vmem:[%s0 + $0x198] sm:$0xff]
  %v68 = vld [vmem:[%s0 + $0x1a0] sm:$0xff]
  %v69 = vld [vmem:[%s0 + $0x1a8] sm:$0xff]
  %v70 = vld [vmem:[%s0 + $0x1b0] sm:$0xff]
  %v71 = vld [vmem:[%s0 + $0x1b8] sm:$0xff]
  %v72 = vld [vmem:[%s0 + $0x1c0] sm:$0xff]
  %v73 = vld [vmem:[%s0 + $0x1c8] sm:$0xff]
  %v74 = vld [vmem:[%s0 + $0x1d0] sm:$0xff]
  %v75 = vld [vmem:[%s0 + $0x1d8] sm:$0xff]
  %v76 = vld [vmem:[%s0 + $0x1e0] sm:$0xff]
  %v77 = vld [vmem:[%s0 + $0x1e8] sm:$0xff]
  %v78 = vld [vmem:[%s0 + $0x1f0] sm:$0xff]
  %v79 = vld [vmem:[%s0 + $0x1f8] sm:$0xff]
  %v80 = vld [vmem:[%s1] sm:$0x1]
  %v81 = vadd.f32 %v16, %v17
  %v82 = vadd.f32 %v81, %v18
  %v83 = vadd.f32 %v82, %v19
  %v84 = vadd.f32 %v83, %v20
  %v85 = vadd.f32 %v84, %v21
  %v86 = vadd.f32 %v85, %v22
  %v87 = vadd.f32 %v86, %v23
  %v88 = vadd.f32 %v87, %v24
  %v89 = vadd.f32 %v88, %v25
  %v90 = vadd.f32 %v89, %v26
  %v91 = vadd.f32 %v90, %v27
  %v92 = vadd.f32 %v91, %v28
  %v93 = vadd.f32 %v92, %v29
  %v94 = vadd.f32 %v93, %v30
  %v95 = vadd.f32 %v94, %v31
  %v96 = vadd.f32 %v95, %v32
  %v97 = vadd.f32 %v96, %v33
  %v98 = vadd.f32 %v97, %v34
  %v99 = vadd.f32 %v98, %v35
  %v100 = vadd.f32 %v99, %v36
  %v101 = vadd.f32 %v100, %v37
  %v102 = vadd.f32 %v101, %v38
  %v103 = vadd.f32 %v102, %v39
  %v104 = vadd.f32 %v103, %v40
  %v105 = vadd.f32 %v104, %v41
  %v106 = vadd.f32 %v105, %v42
  %v107 = vadd.f32 %v106, %v43
  %v108 = vadd.f32 %v107, %v44
  %v109 = vadd.f32 %v108, %v45
  %v110 = vadd.f32 %v109, %v46
  %v111 = vadd.f32 %v110, %v47
  %v112 = vadd.f32 %v111, %v48
  %v113 = vadd.f32 %v112, %v49
  %v114 = vadd.f32 %v113, %v50
  %v115 = vadd.f32 %v114, %v51
  %v116 = vadd.f32 %v115, %v52
  %v117 = vadd.f32 %v116, %v53
  %v118 = vadd.f32 %v117, %v54
  %v119 = vadd.f32 %v118, %v55
  %v120 = vadd.f32 %v119, %v56
  %v121 = vadd.f32 %v120, %v57
  %v122 = vadd.f32 %v121, %v58
  %v123 = vadd.f32 %v122, %v59
  %v124 = vadd.f32 %v123, %v60
  %v125 = vadd.f32 %v124, %v61
  %v126 = vadd.f32 %v125, %v62
  %v127 = vadd.f32 %v126, %v63
  %v128 = vadd.f32 %v127, %v64
  %v129 = vadd.f32 %v128, %v65
  %v130 = vadd.f32 %v129, %v66
  %v131 = vadd.f32 %v130, %v67
  %v132 = vadd.f32 %v131, %v68
  %v133 = vadd.f32 %v132, %v69
  %v134 = vadd.f32 %v133, %v70
  %v135 = vadd.f32 %v134, %v71
  %v136 = vadd.f32 %v135, %v72
  %v137 = vadd.f32 %v136, %v73
  %v138 = vadd.f32 %v137, %v74
  %v139 = vadd.f32 %v138, %v75
  %v140 = vadd.f32 %v139, %v76
  %v141 = vadd.f32 %v140, %v77
  %v142 = vadd.f32 %v141, %v78
  %v143 = vadd.f32 %v142, %v79
  %v144 = vrot.slane %v143, 4
  %v145 = vadd.f32 %v143, %v144
  %v146 = vrot.slane %v145, 2
  %v147 = vadd.f32 %v145, %v146
  %v148 = vrot.slane %v147, 1
  %v149 = vadd.f32 %v147, %v148
  %v150 = vadd.f32 %v80, %v149
  %151 = vst [vmem:[%s1] sm:$0x1] %v150
  %v152 = vld [vmem:[%s2] sm:$0x1]
  %v153 = vmul.f32 %v16, %v16
  %v154 = vmul.f32 %v17, %v17
  %v155 = vmul.f32 %v18, %v18
  %v156 = vmul.f32 %v19, %v19
  %v157 = vmul.f32 %v20, %v20
  %v158 = vmul.f32 %v21, %v21
  %v159 = vmul.f32 %v22, %v22
  %v160 = vmul.f32 %v23, %v23
  %v161 = vmul.f32 %v24, %v24
  %v162 = vmul.f32 %v25, %v25
  %v163 = vmul.f32 %v26, %v26
  %v164 = vmul.f32 %v27, %v27
  %v165 = vmul.f32 %v28, %v28
  %v166 = vmul.f32 %v29, %v29
  %v167 = vmul.f32 %v30, %v30
  %v168 = vmul.f32 %v31, %v31
  %v169 = vmul.f32 %v32, %v32
  %v170 = vmul.f32 %v33, %v33
  %v171 = vmul.f32 %v34, %v34
  %v172 = vmul.f32 %v35, %v35
  %v173 = vmul.f32 %v36, %v36
  %v174 = vmul.f32 %v37, %v37
  %v175 = vmul.f32 %v38, %v38
  %v176 = vmul.f32 %v39, %v39
  %v177 = vmul.f32 %v40, %v40
  %v178 = vmul.f32 %v41, %v41
  %v179 = vmul.f32 %v42, %v42
  %v180 = vmul.f32 %v43, %v43
  %v181 = vmul.f32 %v44, %v44
  %v182 = vmul.f32 %v45, %v45
  %v183 = vmul.f32 %v46, %v46
  %v184 = vmul.f32 %v47, %v47
  %v185 = vmul.f32 %v48, %v48
  %v186 = vmul.f32 %v49, %v49
  %v187 = vmul.f32 %v50, %v50
  %v188 = vmul.f32 %v51, %v51
  %v189 = vmul.f32 %v52, %v52
  %v190 = vmul.f32 %v53, %v53
  %v191 = vmul.f32 %v54, %v54
  %v192 = vmul.f32 %v55, %v55
  %v193 = vmul.f32 %v56, %v56
  %v194 = vmul.f32 %v57, %v57
  %v195 = vmul.f32 %v58, %v58
  %v196 = vmul.f32 %v59, %v59
  %v197 = vmul.f32 %v60, %v60
  %v198 = vmul.f32 %v61, %v61
  %v199 = vmul.f32 %v62, %v62
  %v200 = vmul.f32 %v63, %v63
  %v201 = vmul.f32 %v64, %v64
  %v202 = vmul.f32 %v65, %v65
  %v203 = vmul.f32 %v66, %v66
  %v204 = vmul.f32 %v67, %v67
  %v205 = vmul.f32 %v68, %v68
  %v206 = vmul.f32 %v69, %v69
  %v207 = vmul.f32 %v70, %v70
  %v208 = vmul.f32 %v71, %v71
  %v209 = vmul.f32 %v72, %v72
  %v210 = vmul.f32 %v73, %v73
  %v211 = vmul.f32 %v74, %v74
  %v212 = vmul.f32 %v75, %v75
  %v213 = vmul.f32 %v76, %v76
  %v214 = vmul.f32 %v77, %v77
  %v215 = vmul.f32 %v78, %v78
  %v216 = vmul.f32 %v79, %v79
  %v217 = vadd.f32 %v153, %v154
  %v218 = vadd.f32 %v217, %v155
  %v219 = vadd.f32 %v218, %v156
  %v220 = vadd.f32 %v219, %v157
  %v221 = vadd.f32 %v220, %v158
  %v222 = vadd.f32 %v221, %v159
  %v223 = vadd.f32 %v222, %v160
  %v224 = vadd.f32 %v223, %v161
  %v225 = vadd.f32 %v224, %v162
  %v226 = vadd.f32 %v225, %v163
  %v227 = vadd.f32 %v226, %v164
  %v228 = vadd.f32 %v227, %v165
  %v229 = vadd.f32 %v228, %v166
  %v230 = vadd.f32 %v229, %v167
  %v231 = vadd.f32 %v230, %v168
  %v232 = vadd.f32 %v231, %v169
  %v233 = vadd.f32 %v232, %v170
  %v234 = vadd.f32 %v233, %v171
  %v235 = vadd.f32 %v234, %v172
  %v236 = vadd.f32 %v235, %v173
  %v237 = vadd.f32 %v236, %v174
  %v238 = vadd.f32 %v237, %v175
  %v239 = vadd.f32 %v238, %v176
  %v240 = vadd.f32 %v239, %v177
  %v241 = vadd.f32 %v240, %v178
  %v242 = vadd.f32 %v241, %v179
  %v243 = vadd.f32 %v242, %v180
  %v244 = vadd.f32 %v243, %v181
  %v245 = vadd.f32 %v244, %v182
  %v246 = vadd.f32 %v245, %v183
  %v247 = vadd.f32 %v246, %v184
  %v248 = vadd.f32 %v247, %v185
  %v249 = vadd.f32 %v248, %v186
  %v250 = vadd.f32 %v249, %v187
  %v251 = vadd.f32 %v250, %v188
  %v252 = vadd.f32 %v251, %v189
  %v253 = vadd.f32 %v252, %v190
  %v254 = vadd.f32 %v253, %v191
  %v255 = vadd.f32 %v254, %v192
  %v256 = vadd.f32 %v255, %v193
  %v257 = vadd.f32 %v256, %v194
  %v258 = vadd.f32 %v257, %v195
  %v259 = vadd.f32 %v258, %v196
  %v260 = vadd.f32 %v259, %v197
  %v261 = vadd.f32 %v260, %v198
  %v262 = vadd.f32 %v261, %v199
  %v263 = vadd.f32 %v262, %v200
  %v264 = vadd.f32 %v263, %v201
  %v265 = vadd.f32 %v264, %v202
  %v266 = vadd.f32 %v265, %v203
  %v267 = vadd.f32 %v266, %v204
  %v268 = vadd.f32 %v267, %v205
  %v269 = vadd.f32 %v268, %v206
  %v270 = vadd.f32 %v269, %v207
  %v271 = vadd.f32 %v270, %v208
  %v272 = vadd.f32 %v271, %v209
  %v273 = vadd.f32 %v272, %v210
  %v274 = vadd.f32 %v273, %v211
  %v275 = vadd.f32 %v274, %v212
  %v276 = vadd.f32 %v275, %v213
  %v277 = vadd.f32 %v276, %v214
  %v278 = vadd.f32 %v277, %v215
  %v279 = vadd.f32 %v278, %v216
  %v280 = vrot.slane %v279, 4
  %v281 = vadd.f32 %v279, %v280
  %v282 = vrot.slane %v281, 2
  %v283 = vadd.f32 %v281, %v282
  %v284 = vrot.slane %v283, 1
  %v285 = vadd.f32 %v283, %v284
  %v286 = vadd.f32 %v152, %v285
  %287 = vst [vmem:[%s2] sm:$0x1] %v286
  // Predicated region
  $region10: #{gblock_forward.15} parent=0 // pred_check
    %p288 = pneg %p10
  $region11: #{gblock_forward.15} parent=0 // pred_check_branch
    %290 = sbr.rel (%p288) target = $region13
  $region12: #{gblock_forward.15} parent=0 // pred_region
    %v291 = vld [vmem:[%s1] sm:$0x1]
    %v292 = vmul.f32 %v291, 0.001953125
    %v293 = vld [vmem:[%s2] sm:$0x1]
    %v294 = vmul.f32 %v293, 0.001953125
    %v295 = vmul.f32 %v292, %v292
    %v296 = vsub.f32 %v294, %v295
    %v297 = vmax.f32 %v296, 0.0
    %298 = vst [vmem:[%s1] sm:$0x1] %v292
    %v299 = vadd.f32 %v297, 1e-05
    %v300 = vrsqrt.pop %v299
    %301 = vst [vmem:[%s2] sm:$0x1] %v300
  $region13: #{gblock_forward.15} parent=0 // pred_fallthru
    _
  // Predicated region
  $region14: #{gblock_forward.15} parent=0 // pred_check
    _
  $region15: #{gblock_forward.15} parent=0 // pred_check_branch
    %303 = sbr.rel (0) target = $region17
  $region16: #{gblock_forward.15} parent=0 // pred_region
    _
  $region17: #{gblock_forward.15} parent=0 // pred_fallthru
    _
  // Predicated region
  $region18: #{gblock_forward.15} parent=0 // pred_check
    _
  $region19: #{gblock_forward.15} parent=0 // pred_check_branch
    %305 = sbr.rel (0) target = $region21
  $region20: #{gblock_forward.15} parent=0 // pred_region
    _
  $region21: #{gblock_forward.15} parent=0 // pred_fallthru
    _
  // Predicated region
  $region22: #{gblock_forward.15} parent=0 // pred_check
    _
  $region23: #{gblock_forward.15} parent=0 // pred_check_branch
    %307 = sbr.rel (0) target = $region25
  $region24: #{gblock_forward.15} parent=0 // pred_region
    _
  $region25: #{gblock_forward.15} parent=0 // pred_fallthru
    _
  // Predicated region
  $region26: #{gblock_forward.15} parent=0 // pred_check
    _
  $region27: #{gblock_forward.15} parent=0 // pred_check_branch
    %309 = sbr.rel (0) target = $region29
  $region28: #{gblock_forward.15} parent=0 // pred_region
    _
  $region29: #{gblock_forward.15} parent=0 // pred_fallthru
    _

// kernel: gblock_forward.19
$region0: #{gblock_forward.19}
  #allocation0 [shape = 'u32[]', space=smem, size = 0x4, offset = 0x4, fixed_abs, tag = 'smem constant byte address 0x4 - core index']
  #allocation1 [shape = 'u32[144,128]{1,0:T(1,128)}', space=vmem, size = 0x12000, scoped, tag = 'internal scratch']
  %s0 = inlined_call_operand.vmem [shape: f32[512,128], index: 0, kind: input, shape index: {}]
  %s1 = inlined_call_operand.vmem [shape: f32[1,128], index: 1, kind: input, shape index: {}]
  %s2 = inlined_call_operand.vmem [shape: f32[1,128], index: 2, kind: input, shape index: {}]
  %s3 = inlined_call_operand.vmem [shape: f32[2,1,128], index: 3, kind: input, shape index: {}]
  %s4 = inlined_call_operand.vmem [shape: f32[2,1,128], index: 4, kind: input, shape index: {}]
  %s5 = inlined_call_operand.vmem [shape: bf16[128,128], index: 5, kind: input, shape index: {}]
  %s6 = inlined_call_operand.vmem [shape: f32[1,128], index: 6, kind: input, shape index: {}]
  %s7 = inlined_call_operand.vmem [shape: f32[512,128], index: 7, kind: input, shape index: {}, may-alias: {7,8}]
  %s8 = inlined_call_operand.vmem [shape: f32[512,128], index: 8, kind: output, shape index: {}, may-alias: {7,8}]
  %s9 = sld [smem:[#allocation0]]
  $region65: #{gblock_forward.19} parent=0
    _
  %s11 = ssub.s32 1, %s9
  %s12 = scalar_select 0, %s11, %s9
  loop: start=0, step=1, limit=4
  $region2: #{gblock_forward.19} parent=0 // loop_pre_header
    _
  $region3: #{gblock_forward.19} parent=0 // loop_header
    %s14 = sphi 0, %s18
    %p15 = scmp.ge.s32.totalorder %s14, 4
    %s21 = sphi 0, %s33
    %s22 = sphi 0, %s29
    %s23 = sphi 0, %s21
    %s24 = sphi 0, %s22
    %s25 = sphi 0, %s23
    %s26 = sphi 0, %s24
    %s38 = sphi 0, %s40
    %s41 = sphi 0, %s38
    %s42 = sphi 0, %s41
    %s58 = sphi 0, %s42
    %s62 = sphi 0, %s62
    %s64 = sphi 0, %s62
    %s65 = sphi 0, %s64
    %s79 = sphi 0, %s65
    %s83 = sphi 0, %s83
    %s85 = sphi 0, %s83
    %s86 = sphi 0, %s85
    %s100 = sphi 0, %s86
    %s106 = sphi 0, %s108
    %s109 = sphi 0, %s106
    %s110 = sphi 0, %s109
    %s126 = sphi 0, %s110
    %s132 = sphi 0, %s134
    %s135 = sphi 0, %s132
    %s136 = sphi 0, %s135
    %s152 = sphi 0, %s136
    %s156 = sphi 0, %s156
    %s158 = sphi 0, %s156
    %s159 = sphi 0, %s158
    %s173 = sphi 0, %s159
    %s177 = sphi 0, %s177
    %s179 = sphi 0, %s177
    %s180 = sphi 0, %s179
    %s194 = sphi 0, %s180
    %s202 = sphi 0, %s204
    %s205 = sphi 0, %s202
    %s206 = sphi 0, %s205
    %s222 = sphi 0, %s206
    %s230 = sphi 0, %s232
    %s233 = sphi 0, %s230
    %s234 = sphi 0, %s233
    %s250 = sphi 0, %s234
  $region4: #{gblock_forward.19} parent=0 // loop_header_branch
    %17 = sbr.rel (%p15) target = $region8
  $region5: #{gblock_forward.19} parent=0 // loop_body
    %s19 = ssub.s32 %s14, 1
    %s20 = ssub.s32 %s14, 2
    %s27 = sadd.s32 1, %s22
    %p28 = scmp.ge.s32.totalorder %s27, 1
    %s29 = scalar_select %p28, 0, %s27
    %s30 = sadd.s32 1, %s21
    %s31 = scalar_select %p28, %s30, %s21
    %p32 = scmp.ge.s32.totalorder %s31, 2
    %s33 = scalar_select %p32, 0, %s31
    %s34 = sadd.s32 %s21, %s22
    %s35 = sadd.s32 %s33, %s29
    %s36 = ssub.s32 %s34, %s35
    %p37 = scmp.eq.s32.totalorder %s36, 0
    %s39 = sadd.s32 %s38, 1
    %s40 = scalar_select %p37, %s38, %s39
    %p43 = pneg %p37
    %p44 = scmp.eq.s32.totalorder %s14, 1
    %p45 = por %p43, %p44
    %p46 = scmp.ne.s32.totalorder %s38, %s41
    %p47 = scmp.eq.s32.totalorder %s14, 0
    %p48 = por %p46, %p47
    %p49 = scmp.ne.s32.totalorder %s38, %s41
    %p50 = scmp.eq.s32.totalorder %s19, 1
    %p51 = por %p49, %p50
    %p52 = scmp.ne.s32.totalorder %s41, %s42
    %p53 = scmp.eq.s32.totalorder %s19, 0
    %p54 = por %p52, %p53
    %p55 = scmp.ne.s32.totalorder %s41, %s42
    %p56 = scmp.eq.s32.totalorder %s20, 1
    %p57 = por %p55, %p56
    %p59 = scmp.ne.s32.totalorder %s42, %s58
    %p60 = scmp.eq.s32.totalorder %s20, 0
    %p61 = por %p59, %p60
    %s63 = sadd.s32 %s62, 1
    %p66 = scmp.eq.s32.totalorder %s14, 1
    %p67 = scmp.ne.s32.totalorder %s62, %s64
    %p68 = scmp.eq.s32.totalorder %s14, 0
    %p69 = por %p67, %p68
    %p70 = scmp.ne.s32.totalorder %s62, %s64
    %p71 = scmp.eq.s32.totalorder %s19, 1
    %p72 = por %p70, %p71
    %p73 = scmp.ne.s32.totalorder %s64, %s65
    %p74 = scmp.eq.s32.totalorder %s19, 0
    %p75 = por %p73, %p74
    %p76 = scmp.ne.s32.totalorder %s64, %s65
    %p77 = scmp.eq.s32.totalorder %s20, 1
    %p78 = por %p76, %p77
    %p80 = scmp.ne.s32.totalorder %s65, %s79
    %p81 = scmp.eq.s32.totalorder %s20, 0
    %p82 = por %p80, %p81
    %s84 = sadd.s32 %s83, 1
    %p87 = scmp.eq.s32.totalorder %s14, 1
    %p88 = scmp.ne.s32.totalorder %s83, %s85
    %p89 = scmp.eq.s32.totalorder %s14, 0
    %p90 = por %p88, %p89
    %p91 = scmp.ne.s32.totalorder %s83, %s85
    %p92 = scmp.eq.s32.totalorder %s19, 1
    %p93 = por %p91, %p92
    %p94 = scmp.ne.s32.totalorder %s85, %s86
    %p95 = scmp.eq.s32.totalorder %s19, 0
    %p96 = por %p94, %p95
    %p97 = scmp.ne.s32.totalorder %s85, %s86
    %p98 = scmp.eq.s32.totalorder %s20, 1
    %p99 = por %p97, %p98
    %p101 = scmp.ne.s32.totalorder %s86, %s100
    %p102 = scmp.eq.s32.totalorder %s20, 0
    %p103 = por %p101, %p102
    %s104 = ssub.s32 %s21, %s33
    %p105 = scmp.eq.s32.totalorder %s104, 0
    %s107 = sadd.s32 %s106, 1
    %s108 = scalar_select %p105, %s106, %s107
    %p111 = pneg %p105
    %p112 = scmp.eq.s32.totalorder %s14, 1
    %p113 = por %p111, %p112
    %p114 = scmp.ne.s32.totalorder %s106, %s109
    %p115 = scmp.eq.s32.totalorder %s14, 0
    %p116 = por %p114, %p115
    %p117 = scmp.ne.s32.totalorder %s106, %s109
    %p118 = scmp.eq.s32.totalorder %s19, 1
    %p119 = por %p117, %p118
    %p120 = scmp.ne.s32.totalorder %s109, %s110
    %p121 = scmp.eq.s32.totalorder %s19, 0
    %p122 = por %p120, %p121
    %p123 = scmp.ne.s32.totalorder %s109, %s110
    %p124 = scmp.eq.s32.totalorder %s20, 1
    %p125 = por %p123, %p124
    %p127 = scmp.ne.s32.totalorder %s110, %s126
    %p128 = scmp.eq.s32.totalorder %s20, 0
    %p129 = por %p127, %p128
    %s130 = ssub.s32 %s21, %s33
    %p131 = scmp.eq.s32.totalorder %s130, 0
    %s133 = sadd.s32 %s132, 1
    %s134 = scalar_select %p131, %s132, %s133
    %p137 = pneg %p131
    %p138 = scmp.eq.s32.totalorder %s14, 1
    %p139 = por %p137, %p138
    %p140 = scmp.ne.s32.totalorder %s132, %s135
    %p141 = scmp.eq.s32.totalorder %s14, 0
    %p142 = por %p140, %p141
    %p143 = scmp.ne.s32.totalorder %s132, %s135
    %p144 = scmp.eq.s32.totalorder %s19, 1
    %p145 = por %p143, %p144
    %p146 = scmp.ne.s32.totalorder %s135, %s136
    %p147 = scmp.eq.s32.totalorder %s19, 0
    %p148 = por %p146, %p147
    %p149 = scmp.ne.s32.totalorder %s135, %s136
    %p150 = scmp.eq.s32.totalorder %s20, 1
    %p151 = por %p149, %p150
    %p153 = scmp.ne.s32.totalorder %s136, %s152
    %p154 = scmp.eq.s32.totalorder %s20, 0
    %p155 = por %p153, %p154
    %s157 = sadd.s32 %s156, 1
    %p160 = scmp.eq.s32.totalorder %s14, 1
    %p161 = scmp.ne.s32.totalorder %s156, %s158
    %p162 = scmp.eq.s32.totalorder %s14, 0
    %p163 = por %p161, %p162
    %p164 = scmp.ne.s32.totalorder %s156, %s158
    %p165 = scmp.eq.s32.totalorder %s19, 1
    %p166 = por %p164, %p165
    %p167 = scmp.ne.s32.totalorder %s158, %s159
    %p168 = scmp.eq.s32.totalorder %s19, 0
    %p169 = por %p167, %p168
    %p170 = scmp.ne.s32.totalorder %s158, %s159
    %p171 = scmp.eq.s32.totalorder %s20, 1
    %p172 = por %p170, %p171
    %p174 = scmp.ne.s32.totalorder %s159, %s173
    %p175 = scmp.eq.s32.totalorder %s20, 0
    %p176 = por %p174, %p175
    %s178 = sadd.s32 %s177, 1
    %p181 = scmp.eq.s32.totalorder %s14, 1
    %p182 = scmp.ne.s32.totalorder %s177, %s179
    %p183 = scmp.eq.s32.totalorder %s14, 0
    %p184 = por %p182, %p183
    %p185 = scmp.ne.s32.totalorder %s177, %s179
    %p186 = scmp.eq.s32.totalorder %s19, 1
    %p187 = por %p185, %p186
    %p188 = scmp.ne.s32.totalorder %s179, %s180
    %p189 = scmp.eq.s32.totalorder %s19, 0
    %p190 = por %p188, %p189
    %p191 = scmp.ne.s32.totalorder %s179, %s180
    %p192 = scmp.eq.s32.totalorder %s20, 1
    %p193 = por %p191, %p192
    %p195 = scmp.ne.s32.totalorder %s180, %s194
    %p196 = scmp.eq.s32.totalorder %s20, 0
    %p197 = por %p195, %p196
    %s198 = sadd.s32 %s21, %s22
    %s199 = sadd.s32 %s33, %s29
    %s200 = ssub.s32 %s198, %s199
    %p201 = scmp.eq.s32.totalorder %s200, 0
    %s203 = sadd.s32 %s202, 1
    %s204 = scalar_select %p201, %s202, %s203
    %p207 = pneg %p201
    %p208 = scmp.eq.s32.totalorder %s14, 1
    %p209 = por %p207, %p208
    %p210 = scmp.ne.s32.totalorder %s202, %s205
    %p211 = scmp.eq.s32.totalorder %s14, 0
    %p212 = por %p210, %p211
    %p213 = scmp.ne.s32.totalorder %s202, %s205
    %p214 = scmp.eq.s32.totalorder %s19, 1
    %p215 = por %p213, %p214
    %p216 = scmp.ne.s32.totalorder %s205, %s206
    %p217 = scmp.eq.s32.totalorder %s19, 0
    %p218 = por %p216, %p217
    %p219 = scmp.ne.s32.totalorder %s205, %s206
    %p220 = scmp.eq.s32.totalorder %s20, 1
    %p221 = por %p219, %p220
    %p223 = scmp.ne.s32.totalorder %s206, %s222
    %p224 = scmp.eq.s32.totalorder %s20, 0
    %p225 = por %p223, %p224
    %s226 = sadd.s32 %s21, %s22
    %s227 = sadd.s32 %s33, %s29
    %s228 = ssub.s32 %s226, %s227
    %p229 = scmp.eq.s32.totalorder %s228, 0
    %s231 = sadd.s32 %s230, 1
    %s232 = scalar_select %p229, %s230, %s231
    %p235 = pneg %p229
    %p236 = scmp.eq.s32.totalorder %s14, 1
    %p237 = por %p235, %p236
    %p238 = scmp.ne.s32.totalorder %s230, %s233
    %p239 = scmp.eq.s32.totalorder %s14, 0
    %p240 = por %p238, %p239
    %p241 = scmp.ne.s32.totalorder %s230, %s233
    %p242 = scmp.eq.s32.totalorder %s19, 1
    %p243 = por %p241, %p242
    %p244 = scmp.ne.s32.totalorder %s233, %s234
    %p245 = scmp.eq.s32.totalorder %s19, 0
    %p246 = por %p244, %p245
    %p247 = scmp.ne.s32.totalorder %s233, %s234
    %p248 = scmp.eq.s32.totalorder %s20, 1
    %p249 = por %p247, %p248
    %p251 = scmp.ne.s32.totalorder %s234, %s250
    %p252 = scmp.eq.s32.totalorder %s20, 0
    %p253 = por %p251, %p252
    %p254 = scmp.le.s32.totalorder 1, %s14
    %p255 = scmp.lt.s32.totalorder %s14, 3
    %p256 = pnand %p254, %p255
    %p257 = pneg %p256
    // Predicated region
    $region9: #{gblock_forward.19} parent=5 // pred_check
      _
    $region10: #{gblock_forward.19} parent=5 // pred_check_branch
      %259 = sbr.rel (%p256) target = $region12
    $region11: #{gblock_forward.19} parent=5 // pred_region
      %s260 = ssub.s32 %s14, 1
      // Predicated region
      $region13: #{gblock_forward.19} parent=11 // pred_check
        %p261 = pneg %p75
      $region14: #{gblock_forward.19} parent=11 // pred_check_branch
        %263 = sbr.rel (%p261) target = $region16
      $region15: #{gblock_forward.19} parent=11 // pred_region
        _
      $region16: #{gblock_forward.19} parent=11 // pred_fallthru
        _
      // Predicated region
      $region17: #{gblock_forward.19} parent=11 // pred_check
        %p264 = pneg %p96
      $region18: #{gblock_forward.19} parent=11 // pred_check_branch
        %266 = sbr.rel (%p264) target = $region20
      $region19: #{gblock_forward.19} parent=11 // pred_region
        _
      $region20: #{gblock_forward.19} parent=11 // pred_fallthru
        _
      // Predicated region
      $region21: #{gblock_forward.19} parent=11 // pred_check
        %p267 = pneg %p169
      $region22: #{gblock_forward.19} parent=11 // pred_check_branch
        %269 = sbr.rel (%p267) target = $region24
      $region23: #{gblock_forward.19} parent=11 // pred_region
        _
      $region24: #{gblock_forward.19} parent=11 // pred_fallthru
        _
      // Predicated region
      $region25: #{gblock_forward.19} parent=11 // pred_check
        %p270 = pneg %p190
      $region26: #{gblock_forward.19} parent=11 // pred_check_branch
        %272 = sbr.rel (%p270) target = $region28
      $region27: #{gblock_forward.19} parent=11 // pred_region
        _
      $region28: #{gblock_forward.19} parent=11 // pred_fallthru
        _
    $region12: #{gblock_forward.19} parent=5 // pred_fallthru
      _
    %p273 = scmp.lt.s32.totalorder %s14, 2
    // Predicated region
    $region29: #{gblock_forward.19} parent=5 // pred_check
      %p274 = pneg %p273
    $region30: #{gblock_forward.19} parent=5 // pred_check_branch
      %276 = sbr.rel (%p274) target = $region32
    $region31: #{gblock_forward.19} parent=5 // pred_region
      // Predicated region
      $region33: #{gblock_forward.19} parent=31 // pred_check
        %p277 = pneg %p48
      $region34: #{gblock_forward.19} parent=31 // pred_check_branch
        %279 = sbr.rel (%p277) target = $region36
      $region35: #{gblock_forward.19} parent=31 // pred_region
        %s280 = sadd.s32 %s21, %s22
        %s281 = smul.u32 32, %s280
        %p282 = scmp.lt.s32.totalorder %s281, 63
        %s283 = scalar_select %p282, %s281, 63
        %s284 = smul.addr %s283, 8
        %s285 = scalar_lea.vmem %s0, %s284
        %s286 = sadd.s32 %s21, %s22
        %s287 = smul.u32 32, %s286
      $region36: #{gblock_forward.19} parent=31 // pred_fallthru
        _
      // Predicated region
      $region37: #{gblock_forward.19} parent=31 // pred_check
        %p288 = pneg %p116
      $region38: #{gblock_forward.19} parent=31 // pred_check_branch
        %290 = sbr.rel (%p288) target = $region40
      $region39: #{gblock_forward.19} parent=31 // pred_region
        %p291 = scmp.lt.s32.totalorder %s21, 1
        %s292 = scalar_select %p291, %s21, 1
        %s293 = scalar_lea.vmem %s3, %s292
      $region40: #{gblock_forward.19} parent=31 // pred_fallthru
        _
      // Predicated region
      $region41: #{gblock_forward.19} parent=31 // pred_check
        %p294 = pneg %p142
      $region42: #{gblock_forward.19} parent=31 // pred_check_branch
        %296 = sbr.rel (%p294) target = $region44
      $region43: #{gblock_forward.19} parent=31 // pred_region
        %p297 = scmp.lt.s32.totalorder %s21, 1
        %s298 = scalar_select %p297, %s21, 1
        %s299 = scalar_lea.vmem %s4, %s298
      $region44: #{gblock_forward.19} parent=31 // pred_fallthru
        _
      // Predicated region
      $region45: #{gblock_forward.19} parent=31 // pred_check
        %p300 = pneg %p212
      $region46: #{gblock_forward.19} parent=31 // pred_check_branch
        %302 = sbr.rel (%p300) target = $region48
      $region47: #{gblock_forward.19} parent=31 // pred_region
        %s303 = sadd.s32 %s21, %s22
        %s304 = smul.u32 32, %s303
        %p305 = scmp.lt.s32.totalorder %s304, 63
        %s306 = scalar_select %p305, %s304, 63
        %s307 = smul.addr %s306, 8
        %s308 = scalar_lea.vmem %s7, %s307
        %s309 = sadd.s32 %s21, %s22
        %s310 = smul.u32 32, %s309
      $region48: #{gblock_forward.19} parent=31 // pred_fallthru
        _
    $region32: #{gblock_forward.19} parent=5 // pred_fallthru
      _
    %p311 = scmp.le.s32.totalorder 1, %s14
    %p312 = scmp.lt.s32.totalorder %s14, 3
    %p313 = pnand %p311, %p312
    %p314 = pneg %p313
    // Predicated region
    $region49: #{gblock_forward.19} parent=5 // pred_check
      _
    $region50: #{gblock_forward.19} parent=5 // pred_check_branch
      %316 = sbr.rel (%p313) target = $region52
    $region51: #{gblock_forward.19} parent=5 // pred_region
      %s317 = ssub.s32 %s14, 1
      %s318 = sadd.s32 %s23, %s24
      %s319 = smul.u32 32, %s318
      %p320 = scmp.lt.s32.totalorder %s319, 63
      %s321 = scalar_select %p320, %s319, 63
      %s322 = smul.addr %s321, 8
      %s323 = scalar_lea.vmem %s0, %s322
      %p324 = pneg %p54
      %p325 = pneg %p51
      %p326 = pneg %p75
      %p327 = pneg %p72
      %p328 = pneg %p96
      %p329 = pneg %p93
      %p330 = scmp.lt.s32.totalorder %s23, 1
      %s331 = scalar_select %p330, %s23, 1
      %s332 = scalar_lea.vmem %s3, %s331
      %p333 = pneg %p122
      %p334 = pneg %p119
      %p335 = scmp.lt.s32.totalorder %s23, 1
      %s336 = scalar_select %p335, %s23, 1
      %s337 = scalar_lea.vmem %s4, %s336
      %p338 = pneg %p148
      %p339 = pneg %p145
      %p340 = pneg %p169
      %p341 = pneg %p166
      %p342 = pneg %p190
      %p343 = pneg %p187
      %s344 = sadd.s32 %s23, %s24
      %s345 = smul.u32 32, %s344
      %p346 = scmp.lt.s32.totalorder %s345, 63
      %s347 = scalar_select %p346, %s345, 63
      %s348 = smul.addr %s347, 8
      %s349 = scalar_lea.vmem %s7, %s348
      %p350 = pneg %p218
      %p351 = pneg %p215
      %p352 = pneg %p246
      %p353 = pneg %p243
      %s354 = sadd.s32 %s23, %s24
      %s355 = smul.u32 32, %s354
      %p356 = scmp.lt.s32.totalorder %s355, 63
      %s357 = scalar_select %p356, %s355, 63
      %s358 = smul.addr %s357, 8
      %s359 = scalar_lea.vmem %s8, %s358
      %s360 = sadd.s32 %s23, %s24
      %s361 = smul.u32 32, %s360
      %p362 = scmp.lt.s32.totalorder %s361, 63
      %s363 = scalar_select %p362, %s361, 63
      %s364 = smul.addr %s363, 8
      %s365 = scalar_lea.vmem %s0, %s364
      %s366 = sadd.s32 %s23, %s24
      %s367 = smul.u32 32, %s366
      %p368 = scmp.lt.s32.totalorder %s23, 1
      %s369 = scalar_select %p368, %s23, 1
      %s370 = scalar_lea.vmem %s3, %s369
      %p371 = scmp.lt.s32.totalorder %s23, 1
      %s372 = scalar_select %p371, %s23, 1
      %s373 = scalar_lea.vmem %s4, %s372
      %s374 = sadd.s32 %s23, %s24
      %s375 = smul.u32 32, %s374
      %p376 = scmp.lt.s32.totalorder %s375, 63
      %s377 = scalar_select %p376, %s375, 63
      %s378 = smul.addr %s377, 8
      %s379 = scalar_lea.vmem %s7, %s378
      %s380 = sadd.s32 %s23, %s24
      %s381 = smul.u32 32, %s380
      %s382 = sadd.s32 %s23, %s24
      %s383 = smul.u32 32, %s382
      %p384 = scmp.lt.s32.totalorder %s383, 63
      %s385 = scalar_select %p384, %s383, 63
      %s386 = smul.addr %s385, 8
      %s387 = scalar_lea.vmem %s8, %s386
      %s388 = sadd.s32 %s23, %s24
      %s389 = smul.u32 32, %s388
      %v391 = vld [vmem:[%s365] sm:$0xff]
      %v392 = vld [vmem:[%s365 + $0x8] sm:$0xff]
      %v393 = vld [vmem:[%s365 + $0x10] sm:$0xff]
      %v394 = vld [vmem:[%s365 + $0x18] sm:$0xff]
      %v395 = vld [vmem:[%s365 + $0x20] sm:$0xff]
      %v396 = vld [vmem:[%s365 + $0x28] sm:$0xff]
      %v397 = vld [vmem:[%s365 + $0x30] sm:$0xff]
      %v398 = vld [vmem:[%s365 + $0x38] sm:$0xff]
      %v399 = vld [vmem:[%s365 + $0x40] sm:$0xff]
      %v400 = vld [vmem:[%s365 + $0x48] sm:$0xff]
      %v401 = vld [vmem:[%s365 + $0x50] sm:$0xff]
      %v402 = vld [vmem:[%s365 + $0x58] sm:$0xff]
      %v403 = vld [vmem:[%s365 + $0x60] sm:$0xff]
      %v404 = vld [vmem:[%s365 + $0x68] sm:$0xff]
      %v405 = vld [vmem:[%s365 + $0x70] sm:$0xff]
      %v406 = vld [vmem:[%s365 + $0x78] sm:$0xff]
      %v407 = vld [vmem:[%s365 + $0x80] sm:$0xff]
      %v408 = vld [vmem:[%s365 + $0x88] sm:$0xff]
      %v409 = vld [vmem:[%s365 + $0x90] sm:$0xff]
      %v410 = vld [vmem:[%s365 + $0x98] sm:$0xff]
      %v411 = vld [vmem:[%s365 + $0xa0] sm:$0xff]
      %v412 = vld [vmem:[%s365 + $0xa8] sm:$0xff]
      %v413 = vld [vmem:[%s365 + $0xb0] sm:$0xff]
      %v414 = vld [vmem:[%s365 + $0xb8] sm:$0xff]
      %v415 = vld [vmem:[%s365 + $0xc0] sm:$0xff]
      %v416 = vld [vmem:[%s365 + $0xc8] sm:$0xff]
      %v417 = vld [vmem:[%s365 + $0xd0] sm:$0xff]
      %v418 = vld [vmem:[%s365 + $0xd8] sm:$0xff]
      %v419 = vld [vmem:[%s365 + $0xe0] sm:$0xff]
      %v420 = vld [vmem:[%s365 + $0xe8] sm:$0xff]
      %v421 = vld [vmem:[%s365 + $0xf0] sm:$0xff]
      %v422 = vld [vmem:[%s365 + $0xf8] sm:$0xff]
      %v423 = vld [vmem:[%s1] sm:$0x1]
      %v425 = vlaneseq
      %v426 = vshrl.u32 %v425, 7
      %v427 = vsub.s32 0, %v426
      %v428 = vrot.slane %v423, %v427
      %v430 = vsub.f32 %v391, %v428
      %v431 = vsub.f32 %v392, %v428
      %v432 = vsub.f32 %v393, %v428
      %v433 = vsub.f32 %v394, %v428
      %v434 = vsub.f32 %v395, %v428
      %v435 = vsub.f32 %v396, %v428
      %v436 = vsub.f32 %v397, %v428
      %v437 = vsub.f32 %v398, %v428
      %v438 = vsub.f32 %v399, %v428
      %v439 = vsub.f32 %v400, %v428
      %v440 = vsub.f32 %v401, %v428
      %v441 = vsub.f32 %v402, %v428
      %v442 = vsub.f32 %v403, %v428
      %v443 = vsub.f32 %v404, %v428
      %v444 = vsub.f32 %v405, %v428
      %v445 = vsub.f32 %v406, %v428
      %v446 = vsub.f32 %v407, %v428
      %v447 = vsub.f32 %v408, %v428
      %v448 = vsub.f32 %v409, %v428
      %v449 = vsub.f32 %v410, %v428
      %v450 = vsub.f32 %v411, %v428
      %v451 = vsub.f32 %v412, %v428
      %v452 = vsub.f32 %v413, %v428
      %v453 = vsub.f32 %v414, %v428
      %v454 = vsub.f32 %v415, %v428
      %v455 = vsub.f32 %v416, %v428
      %v456 = vsub.f32 %v417, %v428
      %v457 = vsub.f32 %v418, %v428
      %v458 = vsub.f32 %v419, %v428
      %v459 = vsub.f32 %v420, %v428
      %v460 = vsub.f32 %v421, %v428
      %v461 = vsub.f32 %v422, %v428
      %v462 = vld [vmem:[%s2] sm:$0x1]
      %v464 = vlaneseq
      %v465 = vshrl.u32 %v464, 7
      %v466 = vsub.s32 0, %v465
      %v467 = vrot.slane %v462, %v466
      %v469 = vmul.f32 %v430, %v467
      %v470 = vmul.f32 %v431, %v467
      %v471 = vmul.f32 %v432, %v467
      %v472 = vmul.f32 %v433, %v467
      %v473 = vmul.f32 %v434, %v467
      %v474 = vmul.f32 %v435, %v467
      %v475 = vmul.f32 %v436, %v467
      %v476 = vmul.f32 %v437, %v467
      %v477 = vmul.f32 %v438, %v467
      %v478 = vmul.f32 %v439, %v467
      %v479 = vmul.f32 %v440, %v467
      %v480 = vmul.f32 %v441, %v467
      %v481 = vmul.f32 %v442, %v467
      %v482 = vmul.f32 %v443, %v467
      %v483 = vmul.f32 %v444, %v467
      %v484 = vmul.f32 %v445, %v467
      %v485 = vmul.f32 %v446, %v467
      %v486 = vmul.f32 %v447, %v467
      %v487 = vmul.f32 %v448, %v467
      %v488 = vmul.f32 %v449, %v467
      %v489 = vmul.f32 %v450, %v467
      %v490 = vmul.f32 %v451, %v467
      %v491 = vmul.f32 %v452, %v467
      %v492 = vmul.f32 %v453, %v467
      %v493 = vmul.f32 %v454, %v467
      %v494 = vmul.f32 %v455, %v467
      %v495 = vmul.f32 %v456, %v467
      %v496 = vmul.f32 %v457, %v467
      %v497 = vmul.f32 %v458, %v467
      %v498 = vmul.f32 %v459, %v467
      %v499 = vmul.f32 %v460, %v467
      %v500 = vmul.f32 %v461, %v467
      %v501 = vld [vmem:[%s370] sm:$0x1]
      %v503 = vlaneseq
      %v504 = vshrl.u32 %v503, 7
      %v505 = vsub.s32 0, %v504
      %v506 = vrot.slane %v501, %v505
      %v508 = vmul.f32 %v469, %v506
      %v509 = vmul.f32 %v470, %v506
      %v510 = vmul.f32 %v471, %v506
      %v511 = vmul.f32 %v472, %v506
      %v512 = vmul.f32 %v473, %v506
      %v513 = vmul.f32 %v474, %v506
      %v514 = vmul.f32 %v475, %v506
      %v515 = vmul.f32 %v476, %v506
      %v516 = vmul.f32 %v477, %v506
      %v517 = vmul.f32 %v478, %v506
      %v518 = vmul.f32 %v479, %v506
      %v519 = vmul.f32 %v480, %v506
      %v520 = vmul.f32 %v481, %v506
      %v521 = vmul.f32 %v482, %v506
      %v522 = vmul.f32 %v483, %v506
      %v523 = vmul.f32 %v484, %v506
      %v524 = vmul.f32 %v485, %v506
      %v525 = vmul.f32 %v486, %v506
      %v526 = vmul.f32 %v487, %v506
      %v527 = vmul.f32 %v488, %v506
      %v528 = vmul.f32 %v489, %v506
      %v529 = vmul.f32 %v490, %v506
      %v530 = vmul.f32 %v491, %v506
      %v531 = vmul.f32 %v492, %v506
      %v532 = vmul.f32 %v493, %v506
      %v533 = vmul.f32 %v494, %v506
      %v534 = vmul.f32 %v495, %v506
      %v535 = vmul.f32 %v496, %v506
      %v536 = vmul.f32 %v497, %v506
      %v537 = vmul.f32 %v498, %v506
      %v538 = vmul.f32 %v499, %v506
      %v539 = vmul.f32 %v500, %v506
      %v540 = vld [vmem:[%s373] sm:$0x1]
      %v542 = vlaneseq
      %v543 = vshrl.u32 %v542, 7
      %v544 = vsub.s32 0, %v543
      %v545 = vrot.slane %v540, %v544
      %v547 = vadd.f32 %v508, %v545
      %v548 = vadd.f32 %v509, %v545
      %v549 = vadd.f32 %v510, %v545
      %v550 = vadd.f32 %v511, %v545
      %v551 = vadd.f32 %v512, %v545
      %v552 = vadd.f32 %v513, %v545
      %v553 = vadd.f32 %v514, %v545
      %v554 = vadd.f32 %v515, %v545
      %v555 = vadd.f32 %v516, %v545
      %v556 = vadd.f32 %v517, %v545
      %v557 = vadd.f32 %v518, %v545
      %v558 = vadd.f32 %v519, %v545
      %v559 = vadd.f32 %v520, %v545
      %v560 = vadd.f32 %v521, %v545
      %v561 = vadd.f32 %v522, %v545
      %v562 = vadd.f32 %v523, %v545
      %v563 = vadd.f32 %v524, %v545
      %v564 = vadd.f32 %v525, %v545
      %v565 = vadd.f32 %v526, %v545
      %v566 = vadd.f32 %v527, %v545
      %v567 = vadd.f32 %v528, %v545
      %v568 = vadd.f32 %v529, %v545
      %v569 = vadd.f32 %v530, %v545
      %v570 = vadd.f32 %v531, %v545
      %v571 = vadd.f32 %v532, %v545
      %v572 = vadd.f32 %v533, %v545
      %v573 = vadd.f32 %v534, %v545
      %v574 = vadd.f32 %v535, %v545
      %v575 = vadd.f32 %v536, %v545
      %v576 = vadd.f32 %v537, %v545
      %v577 = vadd.f32 %v538, %v545
      %v578 = vadd.f32 %v539, %v545
      %v579 = vmax.f32 %v547, 0.0
      %v580 = vmax.f32 %v548, 0.0
      %v581 = vmax.f32 %v549, 0.0
      %v582 = vmax.f32 %v550, 0.0
      %v583 = vmax.f32 %v551, 0.0
      %v584 = vmax.f32 %v552, 0.0
      %v585 = vmax.f32 %v553, 0.0
      %v586 = vmax.f32 %v554, 0.0
      %v587 = vmax.f32 %v555, 0.0
      %v588 = vmax.f32 %v556, 0.0
      %v589 = vmax.f32 %v557, 0.0
      %v590 = vmax.f32 %v558, 0.0
      %v591 = vmax.f32 %v559, 0.0
      %v592 = vmax.f32 %v560, 0.0
      %v593 = vmax.f32 %v561, 0.0
      %v594 = vmax.f32 %v562, 0.0
      %v595 = vmax.f32 %v563, 0.0
      %v596 = vmax.f32 %v564, 0.0
      %v597 = vmax.f32 %v565, 0.0
      %v598 = vmax.f32 %v566, 0.0
      %v599 = vmax.f32 %v567, 0.0
      %v600 = vmax.f32 %v568, 0.0
      %v601 = vmax.f32 %v569, 0.0
      %v602 = vmax.f32 %v570, 0.0
      %v603 = vmax.f32 %v571, 0.0
      %v604 = vmax.f32 %v572, 0.0
      %v605 = vmax.f32 %v573, 0.0
      %v606 = vmax.f32 %v574, 0.0
      %v607 = vmax.f32 %v575, 0.0
      %v608 = vmax.f32 %v576, 0.0
      %v609 = vmax.f32 %v577, 0.0
      %v610 = vmax.f32 %v578, 0.0
      %v611 = vpack.c.bf16 %v580, %v579
      %v612 = vpack.c.bf16 %v582, %v581
      %v613 = vpack.c.bf16 %v584, %v583
      %v614 = vpack.c.bf16 %v586, %v585
      %v615 = vpack.c.bf16 %v588, %v587
      %v616 = vpack.c.bf16 %v590, %v589
      %v617 = vpack.c.bf16 %v592, %v591
      %v618 = vpack.c.bf16 %v594, %v593
      %v619 = vpack.c.bf16 %v596, %v595
      %v620 = vpack.c.bf16 %v598, %v597
      %v621 = vpack.c.bf16 %v600, %v599
      %v622 = vpack.c.bf16 %v602, %v601
      %v623 = vpack.c.bf16 %v604, %v603
      %v624 = vpack.c.bf16 %v606, %v605
      %v625 = vpack.c.bf16 %v608, %v607
      %v626 = vpack.c.bf16 %v610, %v609
      %v627 = vld [vmem:[%s5] sm:$0xf]
      %v628 = vld [vmem:[%s5 + $0x4] sm:$0xf]
      %v629 = vld [vmem:[%s5 + $0x8] sm:$0xf]
      %v630 = vld [vmem:[%s5 + $0xc] sm:$0xf]
      %v631 = vld [vmem:[%s5 + $0x10] sm:$0xf]
      %v632 = vld [vmem:[%s5 + $0x14] sm:$0xf]
      %v633 = vld [vmem:[%s5 + $0x18] sm:$0xf]
      %v634 = vld [vmem:[%s5 + $0x1c] sm:$0xf]
      %v635 = vld [vmem:[%s5 + $0x20] sm:$0xf]
      %v636 = vld [vmem:[%s5 + $0x24] sm:$0xf]
      %v637 = vld [vmem:[%s5 + $0x28] sm:$0xf]
      %v638 = vld [vmem:[%s5 + $0x2c] sm:$0xf]
      %v639 = vld [vmem:[%s5 + $0x30] sm:$0xf]
      %v640 = vld [vmem:[%s5 + $0x34] sm:$0xf]
      %v641 = vld [vmem:[%s5 + $0x38] sm:$0xf]
      %v642 = vld [vmem:[%s5 + $0x3c] sm:$0xf]
      %v643 = vld [vmem:[%s6] sm:$0x1]
      %v645 = vlaneseq
      %v646 = vshrl.u32 %v645, 7
      %v647 = vsub.s32 0, %v646
      %v648 = vrot.slane %v643, %v647
      %v666 = vunpack.c.l.b16 %v627
      %v667 = vunpack.c.l.b16 %v628
      %v668 = vunpack.c.l.b16 %v629
      %v669 = vunpack.c.l.b16 %v630
      %v670 = vunpack.c.l.b16 %v631
      %v671 = vunpack.c.l.b16 %v632
      %v672 = vunpack.c.l.b16 %v633
      %v673 = vunpack.c.l.b16 %v634
      %v674 = vunpack.c.l.b16 %v635
      %v675 = vunpack.c.l.b16 %v636
      %v676 = vunpack.c.l.b16 %v637
      %v677 = vunpack.c.l.b16 %v638
      %v678 = vunpack.c.l.b16 %v639
      %v679 = vunpack.c.l.b16 %v640
      %v680 = vunpack.c.l.b16 %v641
      %v681 = vunpack.c.l.b16 %v642
      %v682 = vpack.c.b16 %v667, %v666
      %v683 = vpack.c.b16 %v669, %v668
      %v684 = vpack.c.b16 %v671, %v670
      %v685 = vpack.c.b16 %v673, %v672
      %v686 = vpack.c.b16 %v675, %v674
      %v687 = vpack.c.b16 %v677, %v676
      %v688 = vpack.c.b16 %v679, %v678
      %v689 = vpack.c.b16 %v681, %v680
      %698 = vmatprep.subr.bf16.mxu0 0
      %699 = vmatpush1.bf16.msra.mxu0 %v682
      %700 = vmatprep.subr.bf16.mxu0 0
      %701 = vmatpush1.bf16.msra.mxu0 %v683
      %702 = vmatprep.subr.bf16.mxu0 0
      %703 = vmatpush1.bf16.msra.mxu0 %v684
      %704 = vmatprep.subr.bf16.mxu0 0
      %705 = vmatpush1.bf16.msra.mxu0 %v685
      %706 = vmatprep.subr.bf16.mxu0 0
      %707 = vmatpush1.bf16.msra.mxu0 %v686
      %708 = vmatprep.subr.bf16.mxu0 0
      %709 = vmatpush1.bf16.msra.mxu0 %v687
      %710 = vmatprep.subr.bf16.mxu0 0
      %711 = vmatpush1.bf16.msra.mxu0 %v688
      %712 = vmatprep.subr.bf16.mxu0 0
      %713 = vmatpush1.bf16.msra.mxu0 %v689
      %714 = vmatprep.subr.bf16.mxu0 0
      %715 = vmatpush1.bf16.msra.mxu0 0
      %716 = vmatprep.subr.bf16.mxu0 0
      %717 = vmatpush1.bf16.msra.mxu0 0
      %718 = vmatprep.subr.bf16.mxu0 0
      %719 = vmatpush1.bf16.msra.mxu0 0
      %720 = vmatprep.subr.bf16.mxu0 0
      %721 = vmatpush1.bf16.msra.mxu0 0
      %722 = vmatprep.subr.bf16.mxu0 0
      %723 = vmatpush1.bf16.msra.mxu0 0
      %724 = vmatprep.subr.bf16.mxu0 0
      %725 = vmatpush1.bf16.msra.mxu0 0
      %726 = vmatprep.subr.bf16.mxu0 0
      %727 = vmatpush1.bf16.msra.mxu0 0
      %728 = vmatprep.subr.bf16.mxu0 0
      %729 = vmatpush1.bf16.msra.mxu0 0
      %730 = vmatprep.mubr.bf16.mxu0 0
      %731 = vmatmul.mubr.bf16.gmra.mrb[0].mxu0 %v611
      %v732 = vpop.f32.mrb[0].mxu0
      %v733 = vadd.f32 %v648, %v732
      %v734 = vpop.f32.mrb[0].mxu0
      %v735 = vpop.f32.mrb[0].mxu0
      %v736 = vadd.f32 %v648, %v735
      %v737 = vpop.f32.mrb[0].mxu0
      %738 = vmatprep.mubr.bf16.mxu0 0
      %739 = vmatmul.mubr.bf16.gmra.mrb[0].mxu0 %v612
      %v740 = vpop.f32.mrb[0].mxu0
      %v741 = vadd.f32 %v648, %v740
      %v742 = vpop.f32.mrb[0].mxu0
      %v743 = vpop.f32.mrb[0].mxu0
      %v744 = vadd.f32 %v648, %v743
      %v745 = vpop.f32.mrb[0].mxu0
      %746 = vmatprep.mubr.bf16.mxu0 0
      %747 = vmatmul.mubr.bf16.gmra.mrb[0].mxu0 %v613
      %v748 = vpop.f32.mrb[0].mxu0
      %v749 = vadd.f32 %v648, %v748
      %v750 = vpop.f32.mrb[0].mxu0
      %v751 = vpop.f32.mrb[0].mxu0
      %v752 = vadd.f32 %v648, %v751
      %v753 = vpop.f32.mrb[0].mxu0
      %754 = vmatprep.mubr.bf16.mxu0 0
      %755 = vmatmul.mubr.bf16.gmra.mrb[0].mxu0 %v614
      %v756 = vpop.f32.mrb[0].mxu0
      %v757 = vadd.f32 %v648, %v756
      %v758 = vpop.f32.mrb[0].mxu0
      %v759 = vpop.f32.mrb[0].mxu0
      %v760 = vadd.f32 %v648, %v759
      %v761 = vpop.f32.mrb[0].mxu0
      %762 = vmatprep.mubr.bf16.mxu0 0
      %763 = vmatmul.mubr.bf16.gmra.mrb[0].mxu0 %v615
      %v764 = vpop.f32.mrb[0].mxu0
      %v765 = vadd.f32 %v648, %v764
      %v766 = vpop.f32.mrb[0].mxu0
      %v767 = vpop.f32.mrb[0].mxu0
      %v768 = vadd.f32 %v648, %v767
      %v769 = vpop.f32.mrb[0].mxu0
      %770 = vmatprep.mubr.bf16.mxu0 0
      %771 = vmatmul.mubr.bf16.gmra.mrb[0].mxu0 %v616
      %v772 = vpop.f32.mrb[0].mxu0
      %v773 = vadd.f32 %v648, %v772
      %v774 = vpop.f32.mrb[0].mxu0
      %v775 = vpop.f32.mrb[0].mxu0
      %v776 = vadd.f32 %v648, %v775
      %v777 = vpop.f32.mrb[0].mxu0
      %778 = vmatprep.mubr.bf16.mxu0 0
      %779 = vmatmul.mubr.bf16.gmra.mrb[0].mxu0 %v617
      %v780 = vpop.f32.mrb[0].mxu0
      %v781 = vadd.f32 %v648, %v780
      %v782 = vpop.f32.mrb[0].mxu0
      %v783 = vpop.f32.mrb[0].mxu0
      %v784 = vadd.f32 %v648, %v783
      %v785 = vpop.f32.mrb[0].mxu0
      %786 = vmatprep.mubr.bf16.mxu0 0
      %787 = vmatmul.mubr.bf16.gmra.mrb[0].mxu0 %v618
      %v788 = vpop.f32.mrb[0].mxu0
      %v789 = vadd.f32 %v648, %v788
      %v790 = vpop.f32.mrb[0].mxu0
      %v791 = vpop.f32.mrb[0].mxu0
      %v792 = vadd.f32 %v648, %v791
      %v793 = vpop.f32.mrb[0].mxu0
      %794 = vmatprep.mubr.bf16.mxu0 0
      %795 = vmatmul.mubr.bf16.gmra.mrb[0].mxu0 %v619
      %v796 = vpop.f32.mrb[0].mxu0
      %v797 = vadd.f32 %v648, %v796
      %v798 = vpop.f32.mrb[0].mxu0
      %v799 = vpop.f32.mrb[0].mxu0
      %v800 = vadd.f32 %v648, %v799
      %v801 = vpop.f32.mrb[0].mxu0
      %802 = vmatprep.mubr.bf16.mxu0 0
      %803 = vmatmul.mubr.bf16.gmra.mrb[0].mxu0 %v620
      %v804 = vpop.f32.mrb[0].mxu0
      %v805 = vadd.f32 %v648, %v804
      %v806 = vpop.f32.mrb[0].mxu0
      %v807 = vpop.f32.mrb[0].mxu0
      %v808 = vadd.f32 %v648, %v807
      %v809 = vpop.f32.mrb[0].mxu0
      %810 = vmatprep.mubr.bf16.mxu0 0
      %811 = vmatmul.mubr.bf16.gmra.mrb[0].mxu0 %v621
      %v812 = vpop.f32.mrb[0].mxu0
      %v813 = vadd.f32 %v648, %v812
      %v814 = vpop.f32.mrb[0].mxu0
      %v815 = vpop.f32.mrb[0].mxu0
      %v816 = vadd.f32 %v648, %v815
      %v817 = vpop.f32.mrb[0].mxu0
      %818 = vmatprep.mubr.bf16.mxu0 0
      %819 = vmatmul.mubr.bf16.gmra.mrb[0].mxu0 %v622
      %v820 = vpop.f32.mrb[0].mxu0
      %v821 = vadd.f32 %v648, %v820
      %v822 = vpop.f32.mrb[0].mxu0
      %v823 = vpop.f32.mrb[0].mxu0
      %v824 = vadd.f32 %v648, %v823
      %v825 = vpop.f32.mrb[0].mxu0
      %826 = vmatprep.mubr.bf16.mxu0 0
      %827 = vmatmul.mubr.bf16.gmra.mrb[0].mxu0 %v623
      %v828 = vpop.f32.mrb[0].mxu0
      %v829 = vadd.f32 %v648, %v828
      %v830 = vpop.f32.mrb[0].mxu0
      %v831 = vpop.f32.mrb[0].mxu0
      %v832 = vadd.f32 %v648, %v831
      %v833 = vpop.f32.mrb[0].mxu0
      %834 = vmatprep.mubr.bf16.mxu0 0
      %835 = vmatmul.mubr.bf16.gmra.mrb[0].mxu0 %v624
      %v836 = vpop.f32.mrb[0].mxu0
      %v837 = vadd.f32 %v648, %v836
      %v838 = vpop.f32.mrb[0].mxu0
      %v839 = vpop.f32.mrb[0].mxu0
      %v840 = vadd.f32 %v648, %v839
      %v841 = vpop.f32.mrb[0].mxu0
      %842 = vmatprep.mubr.bf16.mxu0 0
      %843 = vmatmul.mubr.bf16.gmra.mrb[0].mxu0 %v625
      %v844 = vpop.f32.mrb[0].mxu0
      %v845 = vadd.f32 %v648, %v844
      %v846 = vpop.f32.mrb[0].mxu0
      %v847 = vpop.f32.mrb[0].mxu0
      %v848 = vadd.f32 %v648, %v847
      %v849 = vpop.f32.mrb[0].mxu0
      %850 = vmatprep.mubr.bf16.mxu0 0
      %851 = vmatmul.mubr.bf16.gmra.mrb[0].mxu0 %v626
      %v852 = vpop.f32.mrb[0].mxu0
      %v853 = vadd.f32 %v648, %v852
      %v854 = vpop.f32.mrb[0].mxu0
      %v855 = vpop.f32.mrb[0].mxu0
      %v856 = vadd.f32 %v648, %v855
      %v857 = vpop.f32.mrb[0].mxu0
      %858 = vdwg.mxu0
      %v859 = vld [vmem:[%s379] sm:$0xff]
      %v860 = vld [vmem:[%s379 + $0x8] sm:$0xff]
      %v861 = vld [vmem:[%s379 + $0x10] sm:$0xff]
      %v862 = vld [vmem:[%s379 + $0x18] sm:$0xff]
      %v863 = vld [vmem:[%s379 + $0x20] sm:$0xff]
      %v864 = vld [vmem:[%s379 + $0x28] sm:$0xff]
      %v865 = vld [vmem:[%s379 + $0x30] sm:$0xff]
      %v866 = vld [vmem:[%s379 + $0x38] sm:$0xff]
      %v867 = vld [vmem:[%s379 + $0x40] sm:$0xff]
      %v868 = vld [vmem:[%s379 + $0x48] sm:$0xff]
      %v869 = vld [vmem:[%s379 + $0x50] sm:$0xff]
      %v870 = vld [vmem:[%s379 + $0x58] sm:$0xff]
      %v871 = vld [vmem:[%s379 + $0x60] sm:$0xff]
      %v872 = vld [vmem:[%s379 + $0x68] sm:$0xff]
      %v873 = vld [vmem:[%s379 + $0x70] sm:$0xff]
      %v874 = vld [vmem:[%s379 + $0x78] sm:$0xff]
      %v875 = vld [vmem:[%s379 + $0x80] sm:$0xff]
      %v876 = vld [vmem:[%s379 + $0x88] sm:$0xff]
      %v877 = vld [vmem:[%s379 + $0x90] sm:$0xff]
      %v878 = vld [vmem:[%s379 + $0x98] sm:$0xff]
      %v879 = vld [vmem:[%s379 + $0xa0] sm:$0xff]
      %v880 = vld [vmem:[%s379 + $0xa8] sm:$0xff]
      %v881 = vld [vmem:[%s379 + $0xb0] sm:$0xff]
      %v882 = vld [vmem:[%s379 + $0xb8] sm:$0xff]
      %v883 = vld [vmem:[%s379 + $0xc0] sm:$0xff]
      %v884 = vld [vmem:[%s379 + $0xc8] sm:$0xff]
      %v885 = vld [vmem:[%s379 + $0xd0] sm:$0xff]
      %v886 = vld [vmem:[%s379 + $0xd8] sm:$0xff]
      %v887 = vld [vmem:[%s379 + $0xe0] sm:$0xff]
      %v888 = vld [vmem:[%s379 + $0xe8] sm:$0xff]
      %v889 = vld [vmem:[%s379 + $0xf0] sm:$0xff]
      %v890 = vld [vmem:[%s379 + $0xf8] sm:$0xff]
      %v891 = vadd.f32 %v733, %v859
      %v892 = vadd.f32 %v736, %v860
      %v893 = vadd.f32 %v741, %v861
      %v894 = vadd.f32 %v744, %v862
      %v895 = vadd.f32 %v749, %v863
      %v896 = vadd.f32 %v752, %v864
      %v897 = vadd.f32 %v757, %v865
      %v898 = vadd.f32 %v760, %v866
      %v899 = vadd.f32 %v765, %v867
      %v900 = vadd.f32 %v768, %v868
      %v901 = vadd.f32 %v773, %v869
      %v902 = vadd.f32 %v776, %v870
      %v903 = vadd.f32 %v781, %v871
      %v904 = vadd.f32 %v784, %v872
      %v905 = vadd.f32 %v789, %v873
      %v906 = vadd.f32 %v792, %v874
      %v907 = vadd.f32 %v797, %v875
      %v908 = vadd.f32 %v800, %v876
      %v909 = vadd.f32 %v805, %v877
      %v910 = vadd.f32 %v808, %v878
      %v911 = vadd.f32 %v813, %v879
      %v912 = vadd.f32 %v816, %v880
      %v913 = vadd.f32 %v821, %v881
      %v914 = vadd.f32 %v824, %v882
      %v915 = vadd.f32 %v829, %v883
      %v916 = vadd.f32 %v832, %v884
      %v917 = vadd.f32 %v837, %v885
      %v918 = vadd.f32 %v840, %v886
      %v919 = vadd.f32 %v845, %v887
      %v920 = vadd.f32 %v848, %v888
      %v921 = vadd.f32 %v853, %v889
      %v922 = vadd.f32 %v856, %v890
      %923 = vst [vmem:[%s387] sm:$0xff] %v891
      %924 = vst [vmem:[%s387 + $0x8] sm:$0xff] %v892
      %925 = vst [vmem:[%s387 + $0x10] sm:$0xff] %v893
      %926 = vst [vmem:[%s387 + $0x18] sm:$0xff] %v894
      %927 = vst [vmem:[%s387 + $0x20] sm:$0xff] %v895
      %928 = vst [vmem:[%s387 + $0x28] sm:$0xff] %v896
      %929 = vst [vmem:[%s387 + $0x30] sm:$0xff] %v897
      %930 = vst [vmem:[%s387 + $0x38] sm:$0xff] %v898
      %931 = vst [vmem:[%s387 + $0x40] sm:$0xff] %v899
      %932 = vst [vmem:[%s387 + $0x48] sm:$0xff] %v900
      %933 = vst [vmem:[%s387 + $0x50] sm:$0xff] %v901
      %934 = vst [vmem:[%s387 + $0x58] sm:$0xff] %v902
      %935 = vst [vmem:[%s387 + $0x60] sm:$0xff] %v903
      %936 = vst [vmem:[%s387 + $0x68] sm:$0xff] %v904
      %937 = vst [vmem:[%s387 + $0x70] sm:$0xff] %v905
      %938 = vst [vmem:[%s387 + $0x78] sm:$0xff] %v906
      %939 = vst [vmem:[%s387 + $0x80] sm:$0xff] %v907
      %940 = vst [vmem:[%s387 + $0x88] sm:$0xff] %v908
      %941 = vst [vmem:[%s387 + $0x90] sm:$0xff] %v909
      %942 = vst [vmem:[%s387 + $0x98] sm:$0xff] %v910
      %943 = vst [vmem:[%s387 + $0xa0] sm:$0xff] %v911
      %944 = vst [vmem:[%s387 + $0xa8] sm:$0xff] %v912
      %945 = vst [vmem:[%s387 + $0xb0] sm:$0xff] %v913
      %946 = vst [vmem:[%s387 + $0xb8] sm:$0xff] %v914
      %947 = vst [vmem:[%s387 + $0xc0] sm:$0xff] %v915
      %948 = vst [vmem:[%s387 + $0xc8] sm:$0xff] %v916
      %949 = vst [vmem:[%s387 + $0xd0] sm:$0xff] %v917
      %950 = vst [vmem:[%s387 + $0xd8] sm:$0xff] %v918
      %951 = vst [vmem:[%s387 + $0xe0] sm:$0xff] %v919
      %952 = vst [vmem:[%s387 + $0xe8] sm:$0xff] %v920
      %953 = vst [vmem:[%s387 + $0xf0] sm:$0xff] %v921
      %954 = vst [vmem:[%s387 + $0xf8] sm:$0xff] %v922
      %s955 = sadd.s32 %s23, %s24
      %s956 = smul.u32 32, %s955
      %p957 = scmp.lt.s32.totalorder %s956, 63
      %s958 = scalar_select %p957, %s956, 63
      %s959 = smul.addr %s958, 8
      %s960 = scalar_lea.vmem %s8, %s959
      // Predicated region
      $region53: #{gblock_forward.19} parent=51 // pred_check
        %p961 = pneg %p243
      $region54: #{gblock_forward.19} parent=51 // pred_check_branch
        %963 = sbr.rel (%p961) target = $region56
      $region55: #{gblock_forward.19} parent=51 // pred_region
        %s964 = sadd.s32 %s23, %s24
        %s965 = smul.u32 32, %s964
      $region56: #{gblock_forward.19} parent=51 // pred_fallthru
        _
    $region52: #{gblock_forward.19} parent=5 // pred_fallthru
      _
    %p966 = scmp.le.s32.totalorder 2, %s14
    // Predicated region
    $region57: #{gblock_forward.19} parent=5 // pred_check
      %p967 = pneg %p966
    $region58: #{gblock_forward.19} parent=5 // pred_check_branch
      %969 = sbr.rel (%p967) target = $region60
    $region59: #{gblock_forward.19} parent=5 // pred_region
      %s970 = ssub.s32 %s14, 2
      // Predicated region
      $region61: #{gblock_forward.19} parent=59 // pred_check
        %p971 = pneg %p249
      $region62: #{gblock_forward.19} parent=59 // pred_check_branch
        %973 = sbr.rel (%p971) target = $region64
      $region63: #{gblock_forward.19} parent=59 // pred_region
        %s974 = sadd.s32 %s25, %s26
        %s975 = smul.u32 32, %s974
        %p976 = scmp.lt.s32.totalorder %s975, 63
        %s977 = scalar_select %p976, %s975, 63
        %s978 = smul.addr %s977, 8
        %s979 = scalar_lea.vmem %s8, %s978
      $region64: #{gblock_forward.19} parent=59 // pred_fallthru
        _
    $region60: #{gblock_forward.19} parent=5 // pred_fallthru
      _
  $region6: #{gblock_forward.19} parent=0 // loop_footer
    %s18 = sadd.s32 1, %s14
  $region7: #{gblock_forward.19} parent=0 // loop_footer_branch
    %13 = sbr.rel target = $region3
  $region8: #{gblock_forward.19} parent=0 // loop_exit
    _

// kernel: gblock_forward.14
$region0: #{gblock_forward.14}
  #allocation0 [shape = 'u32[]', space=smem, size = 0x4, offset = 0x4, fixed_abs, tag = 'smem constant byte address 0x4 - core index']
  #allocation1 [shape = 'u32[144,128]{1,0:T(1,128)}', space=vmem, size = 0x12000, scoped, tag = 'internal scratch']
  %s0 = inlined_call_operand.vmem [shape: f32[2,18,18,128], index: 0, kind: input, shape index: {}]
  %s1 = inlined_call_operand.vmem [shape: bf16[9,128,128], index: 1, kind: input, shape index: {}]
  %s2 = inlined_call_operand.vmem [shape: f32[1,128], index: 2, kind: input, shape index: {}]
  %s3 = inlined_call_operand.vmem [shape: f32[512,128], index: 3, kind: output, shape index: {}]
  %s4 = sld [smem:[#allocation0]]
  $region45: #{gblock_forward.14} parent=0
    _
  %s6 = ssub.s32 1, %s4
  %s7 = scalar_select 0, %s6, %s4
  loop: start=0, step=1, limit=4
  $region2: #{gblock_forward.14} parent=0 // loop_pre_header
    _
  $region3: #{gblock_forward.14} parent=0 // loop_header
    %s9 = sphi 0, %s13
    %p10 = scmp.ge.s32.totalorder %s9, 4
    %s19 = sphi 0, %s21
    %s22 = sphi 0, %s19
    %s23 = sphi 0, %s22
    %s39 = sphi 0, %s23
    %s43 = sphi 0, %s43
    %s45 = sphi 0, %s43
    %s46 = sphi 0, %s45
    %s60 = sphi 0, %s46
    %s64 = sphi 0, %s64
    %s66 = sphi 0, %s64
    %s67 = sphi 0, %s66
    %s81 = sphi 0, %s67
    %s87 = sphi 0, %s89
    %s90 = sphi 0, %s87
    %s91 = sphi 0, %s90
    %s107 = sphi 0, %s91
  $region4: #{gblock_forward.14} parent=0 // loop_header_branch
    %12 = sbr.rel (%p10) target = $region8
  $region5: #{gblock_forward.14} parent=0 // loop_body
    %s14 = ssub.s32 %s9, 1
    %s15 = ssub.s32 %s9, 2
    %s16 = sadd.s32 %s9, 1
    %s17 = ssub.s32 %s9, %s16
    %p18 = scmp.eq.s32.totalorder %s17, 0
    %s20 = sadd.s32 %s19, 1
    %s21 = scalar_select %p18, %s19, %s20
    %p24 = pneg %p18
    %p25 = scmp.eq.s32.totalorder %s9, 1
    %p26 = por %p24, %p25
    %p27 = scmp.ne.s32.totalorder %s19, %s22
    %p28 = scmp.eq.s32.totalorder %s9, 0
    %p29 = por %p27, %p28
    %p30 = scmp.ne.s32.totalorder %s19, %s22
    %p31 = scmp.eq.s32.totalorder %s14, 1
    %p32 = por %p30, %p31
    %p33 = scmp.ne.s32.totalorder %s22, %s23
    %p34 = scmp.eq.s32.totalorder %s14, 0
    %p35 = por %p33, %p34
    %p36 = scmp.ne.s32.totalorder %s22, %s23
    %p37 = scmp.eq.s32.totalorder %s15, 1
    %p38 = por %p36, %p37
    %p40 = scmp.ne.s32.totalorder %s23, %s39
    %p41 = scmp.eq.s32.totalorder %s15, 0
    %p42 = por %p40, %p41
    %s44 = sadd.s32 %s43, 1
    %p47 = scmp.eq.s32.totalorder %s9, 1
    %p48 = scmp.ne.s32.totalorder %s43, %s45
    %p49 = scmp.eq.s32.totalorder %s9, 0
    %p50 = por %p48, %p49
    %p51 = scmp.ne.s32.totalorder %s43, %s45
    %p52 = scmp.eq.s32.totalorder %s14, 1
    %p53 = por %p51, %p52
    %p54 = scmp.ne.s32.totalorder %s45, %s46
    %p55 = scmp.eq.s32.totalorder %s14, 0
    %p56 = por %p54, %p55
    %p57 = scmp.ne.s32.totalorder %s45, %s46
    %p58 = scmp.eq.s32.totalorder %s15, 1
    %p59 = por %p57, %p58
    %p61 = scmp.ne.s32.totalorder %s46, %s60
    %p62 = scmp.eq.s32.totalorder %s15, 0
    %p63 = por %p61, %p62
    %s65 = sadd.s32 %s64, 1
    %p68 = scmp.eq.s32.totalorder %s9, 1
    %p69 = scmp.ne.s32.totalorder %s64, %s66
    %p70 = scmp.eq.s32.totalorder %s9, 0
    %p71 = por %p69, %p70
    %p72 = scmp.ne.s32.totalorder %s64, %s66
    %p73 = scmp.eq.s32.totalorder %s14, 1
    %p74 = por %p72, %p73
    %p75 = scmp.ne.s32.totalorder %s66, %s67
    %p76 = scmp.eq.s32.totalorder %s14, 0
    %p77 = por %p75, %p76
    %p78 = scmp.ne.s32.totalorder %s66, %s67
    %p79 = scmp.eq.s32.totalorder %s15, 1
    %p80 = por %p78, %p79
    %p82 = scmp.ne.s32.totalorder %s67, %s81
    %p83 = scmp.eq.s32.totalorder %s15, 0
    %p84 = por %p82, %p83
    %s85 = ssub.s32 %s9, %s16
    %p86 = scmp.eq.s32.totalorder %s85, 0
    %s88 = sadd.s32 %s87, 1
    %s89 = scalar_select %p86, %s87, %s88
    %p92 = pneg %p86
    %p93 = scmp.eq.s32.totalorder %s9, 1
    %p94 = por %p92, %p93
    %p95 = scmp.ne.s32.totalorder %s87, %s90
    %p96 = scmp.eq.s32.totalorder %s9, 0
    %p97 = por %p95, %p96
    %p98 = scmp.ne.s32.totalorder %s87, %s90
    %p99 = scmp.eq.s32.totalorder %s14, 1
    %p100 = por %p98, %p99
    %p101 = scmp.ne.s32.totalorder %s90, %s91
    %p102 = scmp.eq.s32.totalorder %s14, 0
    %p103 = por %p101, %p102
    %p104 = scmp.ne.s32.totalorder %s90, %s91
    %p105 = scmp.eq.s32.totalorder %s15, 1
    %p106 = por %p104, %p105
    %p108 = scmp.ne.s32.totalorder %s91, %s107
    %p109 = scmp.eq.s32.totalorder %s15, 0
    %p110 = por %p108, %p109
    %p111 = scmp.le.s32.totalorder 1, %s9
    %p112 = scmp.lt.s32.totalorder %s9, 3
    %p113 = pnand %p111, %p112
    %p114 = pneg %p113
    // Predicated region
    $region9: #{gblock_forward.14} parent=5 // pred_check
      _
    $region10: #{gblock_forward.14} parent=5 // pred_check_branch
      %116 = sbr.rel (%p113) target = $region12
    $region11: #{gblock_forward.14} parent=5 // pred_region
      %s117 = ssub.s32 %s9, 1
      // Predicated region
      $region13: #{gblock_forward.14} parent=11 // pred_check
        %p118 = pneg %p56
      $region14: #{gblock_forward.14} parent=11 // pred_check_branch
        %120 = sbr.rel (%p118) target = $region16
      $region15: #{gblock_forward.14} parent=11 // pred_region
        _
      $region16: #{gblock_forward.14} parent=11 // pred_fallthru
        _
      // Predicated region
      $region17: #{gblock_forward.14} parent=11 // pred_check
        %p121 = pneg %p77
      $region18: #{gblock_forward.14} parent=11 // pred_check_branch
        %123 = sbr.rel (%p121) target = $region20
      $region19: #{gblock_forward.14} parent=11 // pred_region
        _
      $region20: #{gblock_forward.14} parent=11 // pred_fallthru
        _
    $region12: #{gblock_forward.14} parent=5 // pred_fallthru
      _
    %p124 = scmp.lt.s32.totalorder %s9, 2
    // Predicated region
    $region21: #{gblock_forward.14} parent=5 // pred_check
      %p125 = pneg %p124
    $region22: #{gblock_forward.14} parent=5 // pred_check_branch
      %127 = sbr.rel (%p125) target = $region24
    $region23: #{gblock_forward.14} parent=5 // pred_region
      // Predicated region
      $region25: #{gblock_forward.14} parent=23 // pred_check
        %p128 = pneg %p29
      $region26: #{gblock_forward.14} parent=23 // pred_check_branch
        %130 = sbr.rel (%p128) target = $region28
      $region27: #{gblock_forward.14} parent=23 // pred_region
        %p131 = scmp.lt.s32.totalorder %s9, 1
        %s132 = scalar_select %p131, %s9, 1
        %s133 = smul.addr %s132, 54
        %s134 = smul.addr %s133, 8
        %s135 = scalar_lea.vmem %s0, %s134
      $region28: #{gblock_forward.14} parent=23 // pred_fallthru
        _
    $region24: #{gblock_forward.14} parent=5 // pred_fallthru
      _
    %p136 = scmp.le.s32.totalorder 1, %s9
    %p137 = scmp.lt.s32.totalorder %s9, 3
    %p138 = pnand %p136, %p137
    %p139 = pneg %p138
    // Predicated region
    $region29: #{gblock_forward.14} parent=5 // pred_check
      _
    $region30: #{gblock_forward.14} parent=5 // pred_check_branch
      %141 = sbr.rel (%p138) target = $region32
    $region31: #{gblock_forward.14} parent=5 // pred_region
      %s142 = ssub.s32 %s9, 1
      %p143 = scmp.lt.s32.totalorder %s14, 1
      %s144 = scalar_select %p143, %s14, 1
      %s145 = smul.addr %s144, 54
      %s146 = smul.addr %s145, 8
      %s147 = scalar_lea.vmem %s0, %s146
      %p148 = pneg %p35
      %p149 = pneg %p32
      %p150 = pneg %p56
      %p151 = pneg %p53
      %p152 = pneg %p77
      %p153 = pneg %p74
      %p154 = pneg %p103
      %p155 = pneg %p100
      %s156 = smul.u32 32, %s14
      %p157 = scmp.lt.s32.totalorder %s156, 63
      %s158 = scalar_select %p157, %s156, 63
      %s159 = smul.addr %s158, 8
      %s160 = scalar_lea.vmem %s3, %s159
      %p161 = scmp.lt.s32.totalorder %s14, 1
      %s162 = scalar_select %p161, %s14, 1
      %s163 = smul.addr %s162, 54
      %s164 = smul.addr %s163, 8
      %s165 = scalar_lea.vmem %s0, %s164
      %s166 = smul.u32 32, %s14
      %p167 = scmp.lt.s32.totalorder %s166, 63
      %s168 = scalar_select %p167, %s166, 63
      %s169 = smul.addr %s168, 8
      %s170 = scalar_lea.vmem %s3, %s169
      %s171 = smul.u32 32, %s14
      %v173 = vld [vmem:[%s165] sm:$0xff]
      %v174 = vld [vmem:[%s165 + $0x8] sm:$0xff]
      %v175 = vld [vmem:[%s165 + $0x10] sm:$0x3]
      %v176 = vld [vmem:[%s165 + $0x18] sm:$0xff]
      %v177 = vld [vmem:[%s165 + $0x20] sm:$0xff]
      %v178 = vld [vmem:[%s165 + $0x28] sm:$0x3]
      %v179 = vld [vmem:[%s165 + $0x30] sm:$0xff]
      %v180 = vld [vmem:[%s165 + $0x38] sm:$0xff]
      %v181 = vld [vmem:[%s165 + $0x40] sm:$0x3]
      %v182 = vld [vmem:[%s165 + $0x48] sm:$0xff]
      %v183 = vld [vmem:[%s165 + $0x50] sm:$0xff]
      %v184 = vld [vmem:[%s165 + $0x58] sm:$0x3]
      %v185 = vld [vmem:[%s165 + $0x60] sm:$0xff]
      %v186 = vld [vmem:[%s165 + $0x68] sm:$0xff]
      %v187 = vld [vmem:[%s165 + $0x70] sm:$0x3]
      %v188 = vld [vmem:[%s165 + $0x78] sm:$0xff]
      %v189 = vld [vmem:[%s165 + $0x80] sm:$0xff]
      %v190 = vld [vmem:[%s165 + $0x88] sm:$0x3]
      %v191 = vld [vmem:[%s165 + $0x90] sm:$0xff]
      %v192 = vld [vmem:[%s165 + $0x98] sm:$0xff]
      %v193 = vld [vmem:[%s165 + $0xa0] sm:$0x3]
      %v194 = vld [vmem:[%s165 + $0xa8] sm:$0xff]
      %v195 = vld [vmem:[%s165 + $0xb0] sm:$0xff]
      %v196 = vld [vmem:[%s165 + $0xb8] sm:$0x3]
      %v197 = vld [vmem:[%s165 + $0xc0] sm:$0xff]
      %v198 = vld [vmem:[%s165 + $0xc8] sm:$0xff]
      %v199 = vld [vmem:[%s165 + $0xd0] sm:$0x3]
      %v200 = vld [vmem:[%s165 + $0xd8] sm:$0xff]
      %v201 = vld [vmem:[%s165 + $0xe0] sm:$0xff]
      %v202 = vld [vmem:[%s165 + $0xe8] sm:$0x3]
      %v203 = vld [vmem:[%s165 + $0xf0] sm:$0xff]
      %v204 = vld [vmem:[%s165 + $0xf8] sm:$0xff]
      %v205 = vld [vmem:[%s165 + $0x100] sm:$0x3]
      %v206 = vld [vmem:[%s165 + $0x108] sm:$0xff]
      %v207 = vld [vmem:[%s165 + $0x110] sm:$0xff]
      %v208 = vld [vmem:[%s165 + $0x118] sm:$0x3]
      %v209 = vld [vmem:[%s165 + $0x120] sm:$0xff]
      %v210 = vld [vmem:[%s165 + $0x128] sm:$0xff]
      %v211 = vld [vmem:[%s165 + $0x130] sm:$0x3]
      %v212 = vld [vmem:[%s165 + $0x138] sm:$0xff]
      %v213 = vld [vmem:[%s165 + $0x140] sm:$0xff]
      %v214 = vld [vmem:[%s165 + $0x148] sm:$0x3]
      %v215 = vld [vmem:[%s165 + $0x150] sm:$0xff]
      %v216 = vld [vmem:[%s165 + $0x158] sm:$0xff]
      %v217 = vld [vmem:[%s165 + $0x160] sm:$0x3]
      %v218 = vld [vmem:[%s165 + $0x168] sm:$0xff]
      %v219 = vld [vmem:[%s165 + $0x170] sm:$0xff]
      %v220 = vld [vmem:[%s165 + $0x178] sm:$0x3]
      %v221 = vld [vmem:[%s165 + $0x180] sm:$0xff]
      %v222 = vld [vmem:[%s165 + $0x188] sm:$0xff]
      %v223 = vld [vmem:[%s165 + $0x190] sm:$0x3]
      %v224 = vld [vmem:[%s165 + $0x198] sm:$0xff]
      %v225 = vld [vmem:[%s165 + $0x1a0] sm:$0xff]
      %v226 = vld [vmem:[%s165 + $0x1a8] sm:$0x3]
      %v227 = vpack.c.bf16 %v174, %v173
      %v228 = vpack.c.bf16 %v177, %v176
      %v229 = vpack.c.bf16 %v180, %v179
      %v230 = vpack.c.bf16 %v183, %v182
      %v231 = vpack.c.bf16 %v186, %v185
      %v232 = vpack.c.bf16 %v189, %v188
      %v233 = vpack.c.bf16 %v192, %v191
      %v234 = vpack.c.bf16 %v195, %v194
      %v235 = vpack.c.bf16 %v198, %v197
      %v236 = vpack.c.bf16 %v201, %v200
      %v237 = vpack.c.bf16 %v204, %v203
      %v238 = vpack.c.bf16 %v207, %v206
      %v239 = vpack.c.bf16 %v210, %v209
      %v240 = vpack.c.bf16 %v213, %v212
      %v241 = vpack.c.bf16 %v216, %v215
      %v242 = vpack.c.bf16 %v219, %v218
      %v243 = vld [vmem:[%s1] sm:$0xf]
      %v244 = vld [vmem:[%s1 + $0x4] sm:$0xf]
      %v245 = vld [vmem:[%s1 + $0x8] sm:$0xf]
      %v246 = vld [vmem:[%s1 + $0xc] sm:$0xf]
      %v247 = vld [vmem:[%s1 + $0x10] sm:$0xf]
      %v248 = vld [vmem:[%s1 + $0x14] sm:$0xf]
      %v249 = vld [vmem:[%s1 + $0x18] sm:$0xf]
      %v250 = vld [vmem:[%s1 + $0x1c] sm:$0xf]
      %v251 = vld [vmem:[%s1 + $0x20] sm:$0xf]
      %v252 = vld [vmem:[%s1 + $0x24] sm:$0xf]
      %v253 = vld [vmem:[%s1 + $0x28] sm:$0xf]
      %v254 = vld [vmem:[%s1 + $0x2c] sm:$0xf]
      %v255 = vld [vmem:[%s1 + $0x30] sm:$0xf]
      %v256 = vld [vmem:[%s1 + $0x34] sm:$0xf]
      %v257 = vld [vmem:[%s1 + $0x38] sm:$0xf]
      %v258 = vld [vmem:[%s1 + $0x3c] sm:$0xf]
      %vm307 = vcmask 1046528
      %v308 = vrot.slane %v173, 1
      %v309 = vrot.slane %v174, 1
      %v310 = vsel %vm307, %v308, %v309
      %v311 = vrot.slane %v175, 1
      %v312 = vsel %vm307, %v309, %v311
      %v313 = vrot.slane %v176, 1
      %v314 = vrot.slane %v177, 1
      %v315 = vsel %vm307, %v313, %v314
      %v316 = vrot.slane %v178, 1
      %v317 = vsel %vm307, %v314, %v316
      %v318 = vrot.slane %v179, 1
      %v319 = vrot.slane %v180, 1
      %v320 = vsel %vm307, %v318, %v319
      %v321 = vrot.slane %v181, 1
      %v322 = vsel %vm307, %v319, %v321
      %v323 = vrot.slane %v182, 1
      %v324 = vrot.slane %v183, 1
      %v325 = vsel %vm307, %v323, %v324
      %v326 = vrot.slane %v184, 1
      %v327 = vsel %vm307, %v324, %v326
      %v328 = vrot.slane %v185, 1
      %v329 = vrot.slane %v186, 1
      %v330 = vsel %vm307, %v328, %v329
      %v331 = vrot.slane %v187, 1
      %v332 = vsel %vm307, %v329, %v331
      %v333 = vrot.slane %v188, 1
      %v334 = vrot.slane %v189, 1
      %v335 = vsel %vm307, %v333, %v334
      %v336 = vrot.slane %v190, 1
      %v337 = vsel %vm307, %v334, %v336
      %v338 = vrot.slane %v191, 1
      %v339 = vrot.slane %v192, 1
      %v340 = vsel %vm307, %v338, %v339
      %v341 = vrot.slane %v193, 1
      %v342 = vsel %vm307, %v339, %v341
      %v343 = vrot.slane %v194, 1
      %v344 = vrot.slane %v195, 1
      %v345 = vsel %vm307, %v343, %v344
      %v346 = vrot.slane %v196, 1
      %v347 = vsel %vm307, %v344, %v346
      %v348 = vrot.slane %v197, 1
      %v349 = vrot.slane %v198, 1
      %v350 = vsel %vm307, %v348, %v349
      %v351 = vrot.slane %v199, 1
      %v352 = vsel %vm307, %v349, %v351
      %v353 = vrot.slane %v200, 1
      %v354 = vrot.slane %v201, 1
      %v355 = vsel %vm307, %v353, %v354
      %v356 = vrot.slane %v202, 1
      %v357 = vsel %vm307, %v354, %v356
      %v358 = vrot.slane %v203, 1
      %v359 = vrot.slane %v204, 1
      %v360 = vsel %vm307, %v358, %v359
      %v361 = vrot.slane %v205, 1
      %v362 = vsel %vm307, %v359, %v361
      %v363 = vrot.slane %v206, 1
      %v364 = vrot.slane %v207, 1
      %v365 = vsel %vm307, %v363, %v364
      %v366 = vrot.slane %v208, 1
      %v367 = vsel %vm307, %v364, %v366
      %v368 = vrot.slane %v209, 1
      %v369 = vrot.slane %v210, 1
      %v370 = vsel %vm307, %v368, %v369
      %v371 = vrot.slane %v211, 1
      %v372 = vsel %vm307, %v369, %v371
      %v373 = vrot.slane %v212, 1
      %v374 = vrot.slane %v213, 1
      %v375 = vsel %vm307, %v373, %v374
      %v376 = vrot.slane %v214, 1
      %v377 = vsel %vm307, %v374, %v376
      %v378 = vrot.slane %v215, 1
      %v379 = vrot.slane %v216, 1
      %v380 = vsel %vm307, %v378, %v379
      %v381 = vrot.slane %v217, 1
      %v382 = vsel %vm307, %v379, %v381
      %v383 = vrot.slane %v218, 1
      %v384 = vrot.slane %v219, 1
      %v385 = vsel %vm307, %v383, %v384
      %v386 = vrot.slane %v220, 1
      %v387 = vsel %vm307, %v384, %v386
      %v420 = vpack.c.bf16 %v312, %v310
      %v421 = vpack.c.bf16 %v317, %v315
      %v422 = vpack.c.bf16 %v322, %v320
      %v423 = vpack.c.bf16 %v327, %v325
      %v424 = vpack.c.bf16 %v332, %v330
      %v425 = vpack.c.bf16 %v337, %v335
      %v426 = vpack.c.bf16 %v342, %v340
      %v427 = vpack.c.bf16 %v347, %v345
      %v428 = vpack.c.bf16 %v352, %v350
      %v429 = vpack.c.bf16 %v357, %v355
      %v430 = vpack.c.bf16 %v362, %v360
      %v431 = vpack.c.bf16 %v367, %v365
      %v432 = vpack.c.bf16 %v372, %v370
      %v433 = vpack.c.bf16 %v377, %v375
      %v434 = vpack.c.bf16 %v382, %v380
      %v435 = vpack.c.bf16 %v387, %v385
      %s436 = scalar_lea.vmem %s1, 64
      %v437 = vld [vmem:[%s436] sm:$0xf]
      %v438 = vld [vmem:[%s436 + $0x4] sm:$0xf]
      %v439 = vld [vmem:[%s436 + $0x8] sm:$0xf]
      %v440 = vld [vmem:[%s436 + $0xc] sm:$0xf]
      %v441 = vld [vmem:[%s436 + $0x10] sm:$0xf]
      %v442 = vld [vmem:[%s436 + $0x14] sm:$0xf]
      %v443 = vld [vmem:[%s436 + $0x18] sm:$0xf]
      %v444 = vld [vmem:[%s436 + $0x1c] sm:$0xf]
      %v445 = vld [vmem:[%s436 + $0x20] sm:$0xf]
      %v446 = vld [vmem:[%s436 + $0x24] sm:$0xf]
      %v447 = vld [vmem:[%s436 + $0x28] sm:$0xf]
      %v448 = vld [vmem:[%s436 + $0x2c] sm:$0xf]
      %v449 = vld [vmem:[%s436 + $0x30] sm:$0xf]
      %v450 = vld [vmem:[%s436 + $0x34] sm:$0xf]
      %v451 = vld [vmem:[%s436 + $0x38] sm:$0xf]
      %v452 = vld [vmem:[%s436 + $0x3c] sm:$0xf]
      %v469 = vunpack.c.l.b16 %v437
      %v470 = vunpack.c.l.b16 %v438
      %v471 = vunpack.c.l.b16 %v439
      %v472 = vunpack.c.l.b16 %v440
      %v473 = vunpack.c.l.b16 %v441
      %v474 = vunpack.c.l.b16 %v442
      %v475 = vunpack.c.l.b16 %v443
      %v476 = vunpack.c.l.b16 %v444
      %v477 = vunpack.c.l.b16 %v445
      %v478 = vunpack.c.l.b16 %v446
      %v479 = vunpack.c.l.b16 %v447
      %v480 = vunpack.c.l.b16 %v448
      %v481 = vunpack.c.l.b16 %v449
      %v482 = vunpack.c.l.b16 %v450
      %v483 = vunpack.c.l.b16 %v451
      %v484 = vunpack.c.l.b16 %v452
      %v485 = vpack.c.b16 %v470, %v469
      %v486 = vpack.c.b16 %v472, %v471
      %v487 = vpack.c.b16 %v474, %v473
      %v488 = vpack.c.b16 %v476, %v475
      %v489 = vpack.c.b16 %v478, %v477
      %v490 = vpack.c.b16 %v480, %v479
      %v491 = vpack.c.b16 %v482, %v481
      %v492 = vpack.c.b16 %v484, %v483
      %501 = vmatprep.subr.bf16.mxu0 0
      %502 = vmatpush1.bf16.msra.mxu0 %v485
      %503 = vmatprep.subr.bf16.mxu0 0
      %504 = vmatpush1.bf16.msra.mxu0 %v486
      %505 = vmatprep.subr.bf16.mxu0 0
      %506 = vmatpush1.bf16.msra.mxu0 %v487
      %507 = vmatprep.subr.bf16.mxu0 0
      %508 = vmatpush1.bf16.msra.mxu0 %v488
      %509 = vmatprep.subr.bf16.mxu0 0
      %510 = vmatpush1.bf16.msra.mxu0 %v489
      %511 = vmatprep.subr.bf16.mxu0 0
      %512 = vmatpush1.bf16.msra.mxu0 %v490
      %513 = vmatprep.subr.bf16.mxu0 0
      %514 = vmatpush1.bf16.msra.mxu0 %v491
      %515 = vmatprep.subr.bf16.mxu0 0
      %516 = vmatpush1.bf16.msra.mxu0 %v492
      %517 = vmatprep.subr.bf16.mxu0 0
      %518 = vmatpush1.bf16.msra.mxu0 0
      %519 = vmatprep.subr.bf16.mxu0 0
      %520 = vmatpush1.bf16.msra.mxu0 0
      %521 = vmatprep.subr.bf16.mxu0 0
      %522 = vmatpush1.bf16.msra.mxu0 0
      %523 = vmatprep.subr.bf16.mxu0 0
      %524 = vmatpush1.bf16.msra.mxu0 0
      %525 = vmatprep.subr.bf16.mxu0 0
      %526 = vmatpush1.bf16.msra.mxu0 0
      %527 = vmatprep.subr.bf16.mxu0 0
      %528 = vmatpush1.bf16.msra.mxu0 0
      %529 = vmatprep.subr.bf16.mxu0 0
      %530 = vmatpush1.bf16.msra.mxu0 0
      %531 = vmatprep.subr.bf16.mxu0 0
      %532 = vmatpush1.bf16.msra.mxu0 0
      %533 = vmatprep.mubr.bf16.mxu0 0
      %534 = vmatmul.mubr.bf16.gmra.mrb[0].mxu0 %v420
      %v535 = vpop.f32.mrb[0].mxu0
      %v536 = vadd.f32 0.0, %v535
      %v537 = vpop.f32.mrb[0].mxu0
      %v538 = vpop.f32.mrb[0].mxu0
      %v539 = vadd.f32 0.0, %v538
      %v540 = vpop.f32.mrb[0].mxu0
      %541 = vmatprep.mubr.bf16.mxu0 0
      %542 = vmatmul.mubr.bf16.gmra.mrb[0].mxu0 %v421
      %v543 = vpop.f32.mrb[0].mxu0
      %v544 = vadd.f32 0.0, %v543
      %v545 = vpop.f32.mrb[0].mxu0
      %v546 = vpop.f32.mrb[0].mxu0
      %v547 = vadd.f32 0.0, %v546
      %v548 = vpop.f32.mrb[0].mxu0
      %549 = vmatprep.mubr.bf16.mxu0 0
      %550 = vmatmul.mubr.bf16.gmra.mrb[0].mxu0 %v422
      %v551 = vpop.f32.mrb[0].mxu0
      %v552 = vadd.f32 0.0, %v551
      %v553 = vpop.f32.mrb[0].mxu0
      %v554 = vpop.f32.mrb[0].mxu0
      %v555 = vadd.f32 0.0, %v554
      %v556 = vpop.f32.mrb[0].mxu0
      %557 = vmatprep.mubr.bf16.mxu0 0
      %558 = vmatmul.mubr.bf16.gmra.mrb[0].mxu0 %v423
      %v559 = vpop.f32.mrb[0].mxu0
      %v560 = vadd.f32 0.0, %v559
      %v561 = vpop.f32.mrb[0].mxu0
      %v562 = vpop.f32.mrb[0].mxu0
      %v563 = vadd.f32 0.0, %v562
      %v564 = vpop.f32.mrb[0].mxu0
      %565 = vmatprep.mubr.bf16.mxu0 0
      %566 = vmatmul.mubr.bf16.gmra.mrb[0].mxu0 %v424
      %v567 = vpop.f32.mrb[0].mxu0
      %v568 = vadd.f32 0.0, %v567
      %v569 = vpop.f32.mrb[0].mxu0
      %v570 = vpop.f32.mrb[0].mxu0
      %v571 = vadd.f32 0.0, %v570
      %v572 = vpop.f32.mrb[0].mxu0
      %573 = vmatprep.mubr.bf16.mxu0 0
      %574 = vmatmul.mubr.bf16.gmra.mrb[0].mxu0 %v425
      %v575 = vpop.f32.mrb[0].mxu0
      %v576 = vadd.f32 0.0, %v575
      %v577 = vpop.f32.mrb[0].mxu0
      %v578 = vpop.f32.mrb[0].mxu0
      %v579 = vadd.f32 0.0, %v578
      %v580 = vpop.f32.mrb[0].mxu0
      %581 = vmatprep.mubr.bf16.mxu0 0
      %582 = vmatmul.mubr.bf16.gmra.mrb[0].mxu0 %v426
      %v583 = vpop.f32.mrb[0].mxu0
      %v584 = vadd.f32 0.0, %v583
      %v585 = vpop.f32.mrb[0].mxu0
      %v586 = vpop.f32.mrb[0].mxu0
      %v587 = vadd.f32 0.0, %v586
      %v588 = vpop.f32.mrb[0].mxu0
      %589 = vmatprep.mubr.bf16.mxu0 0
      %590 = vmatmul.mubr.bf16.gmra.mrb[0].mxu0 %v427
      %v591 = vpop.f32.mrb[0].mxu0
      %v592 = vadd.f32 0.0, %v591
      %v593 = vpop.f32.mrb[0].mxu0
      %v594 = vpop.f32.mrb[0].mxu0
      %v595 = vadd.f32 0.0, %v594
      %v596 = vpop.f32.mrb[0].mxu0
      %597 = vmatprep.mubr.bf16.mxu0 0
      %598 = vmatmul.mubr.bf16.gmra.mrb[0].mxu0 %v428
      %v599 = vpop.f32.mrb[0].mxu0
      %v600 = vadd.f32 0.0, %v599
      %v601 = vpop.f32.mrb[0].mxu0
      %v602 = vpop.f32.mrb[0].mxu0
      %v603 = vadd.f32 0.0, %v602
      %v604 = vpop.f32.mrb[0].mxu0
      %605 = vmatprep.mubr.bf16.mxu0 0
      %606 = vmatmul.mubr.bf16.gmra.mrb[0].mxu0 %v429
      %v607 = vpop.f32.mrb[0].mxu0
      %v608 = vadd.f32 0.0, %v607
      %v609 = vpop.f32.mrb[0].mxu0
      %v610 = vpop.f32.mrb[0].mxu0
      %v611 = vadd.f32 0.0, %v610
      %v612 = vpop.f32.mrb[0].mxu0
      %613 = vmatprep.mubr.bf16.mxu0 0
      %614 = vmatmul.mubr.bf16.gmra.mrb[0].mxu0 %v430
      %v615 = vpop.f32.mrb[0].mxu0
      %v616 = vadd.f32 0.0, %v615
      %v617 = vpop.f32.mrb[0].mxu0
      %v618 = vpop.f32.mrb[0].mxu0
      %v619 = vadd.f32 0.0, %v618
      %v620 = vpop.f32.mrb[0].mxu0
      %621 = vmatprep.mubr.bf16.mxu0 0
      %622 = vmatmul.mubr.bf16.gmra.mrb[0].mxu0 %v431
      %v623 = vpop.f32.mrb[0].mxu0
      %v624 = vadd.f32 0.0, %v623
      %v625 = vpop.f32.mrb[0].mxu0
      %v626 = vpop.f32.mrb[0].mxu0
      %v627 = vadd.f32 0.0, %v626
      %v628 = vpop.f32.mrb[0].mxu0
      %629 = vmatprep.mubr.bf16.mxu0 0
      %630 = vmatmul.mubr.bf16.gmra.mrb[0].mxu0 %v432
      %v631 = vpop.f32.mrb[0].mxu0
      %v632 = vadd.f32 0.0, %v631
      %v633 = vpop.f32.mrb[0].mxu0
      %v634 = vpop.f32.mrb[0].mxu0
      %v635 = vadd.f32 0.0, %v634
      %v636 = vpop.f32.mrb[0].mxu0
      %637 = vmatprep.mubr.bf16.mxu0 0
      %638 = vmatmul.mubr.bf16.gmra.mrb[0].mxu0 %v433
      %v639 = vpop.f32.mrb[0].mxu0
      %v640 = vadd.f32 0.0, %v639
      %v641 = vpop.f32.mrb[0].mxu0
      %v642 = vpop.f32.mrb[0].mxu0
      %v643 = vadd.f32 0.0, %v642
      %v644 = vpop.f32.mrb[0].mxu0
      %645 = vmatprep.mubr.bf16.mxu0 0
      %646 = vmatmul.mubr.bf16.gmra.mrb[0].mxu0 %v434
      %v647 = vpop.f32.mrb[0].mxu0
      %v648 = vadd.f32 0.0, %v647
      %v649 = vpop.f32.mrb[0].mxu0
      %v650 = vpop.f32.mrb[0].mxu0
      %v651 = vadd.f32 0.0, %v650
      %v652 = vpop.f32.mrb[0].mxu0
      %653 = vmatprep.mubr.bf16.mxu0 0
      %654 = vmatmul.mubr.bf16.gmra.mrb[0].mxu0 %v435
      %v655 = vpop.f32.mrb[0].mxu0
      %v656 = vadd.f32 0.0, %v655
      %v657 = vpop.f32.mrb[0].mxu0
      %v658 = vpop.f32.mrb[0].mxu0
      %v659 = vadd.f32 0.0, %v658
      %v660 = vpop.f32.mrb[0].mxu0
      %661 = vdwg.mxu0
      %v678 = vunpack.c.l.b16 %v243
      %v679 = vunpack.c.l.b16 %v244
      %v680 = vunpack.c.l.b16 %v245
      %v681 = vunpack.c.l.b16 %v246
      %v682 = vunpack.c.l.b16 %v247
      %v683 = vunpack.c.l.b16 %v248
      %v684 = vunpack.c.l.b16 %v249
      %v685 = vunpack.c.l.b16 %v250
      %v686 = vunpack.c.l.b16 %v251
      %v687 = vunpack.c.l.b16 %v252
      %v688 = vunpack.c.l.b16 %v253
      %v689 = vunpack.c.l.b16 %v254
      %v690 = vunpack.c.l.b16 %v255
      %v691 = vunpack.c.l.b16 %v256
      %v692 = vunpack.c.l.b16 %v257
      %v693 = vunpack.c.l.b16 %v258
      %v694 = vpack.c.b16 %v679, %v678
      %v695 = vpack.c.b16 %v681, %v680
      %v696 = vpack.c.b16 %v683, %v682
      %v697 = vpack.c.b16 %v685, %v684
      %v698 = vpack.c.b16 %v687, %v686
      %v699 = vpack.c.b16 %v689, %v688
      %v700 = vpack.c.b16 %v691, %v690
      %v701 = vpack.c.b16 %v693, %v692
      %710 = vmatprep.subr.bf16.mxu0 0
      %711 = vmatpush1.bf16.msra.mxu0 %v694
      %712 = vmatprep.subr.bf16.mxu0 0
      %713 = vmatpush1.bf16.msra.mxu0 %v695
      %714 = vmatprep.subr.bf16.mxu0 0
      %715 = vmatpush1.bf16.msra.mxu0 %v696
      %716 = vmatprep.subr.bf16.mxu0 0
      %717 = vmatpush1.bf16.msra.mxu0 %v697
      %718 = vmatprep.subr.bf16.mxu0 0
      %719 = vmatpush1.bf16.msra.mxu0 %v698
      %720 = vmatprep.subr.bf16.mxu0 0
      %721 = vmatpush1.bf16.msra.mxu0 %v699
      %722 = vmatprep.subr.bf16.mxu0 0
      %723 = vmatpush1.bf16.msra.mxu0 %v700
      %724 = vmatprep.subr.bf16.mxu0 0
      %725 = vmatpush1.bf16.msra.mxu0 %v701
      %726 = vmatprep.subr.bf16.mxu0 0
      %727 = vmatpush1.bf16.msra.mxu0 0
      %728 = vmatprep.subr.bf16.mxu0 0
      %729 = vmatpush1.bf16.msra.mxu0 0
      %730 = vmatprep.subr.bf16.mxu0 0
      %731 = vmatpush1.bf16.msra.mxu0 0
      %732 = vmatprep.subr.bf16.mxu0 0
      %733 = vmatpush1.bf16.msra.mxu0 0
      %734 = vmatprep.subr.bf16.mxu0 0
      %735 = vmatpush1.bf16.msra.mxu0 0
      %736 = vmatprep.subr.bf16.mxu0 0
      %737 = vmatpush1.bf16.msra.mxu0 0
      %738 = vmatprep.subr.bf16.mxu0 0
      %739 = vmatpush1.bf16.msra.mxu0 0
      %740 = vmatprep.subr.bf16.mxu0 0
      %741 = vmatpush1.bf16.msra.mxu0 0
      %742 = vmatprep.mubr.bf16.mxu0 0
      %743 = vmatmul.mubr.bf16.gmra.mrb[0].mxu0 %v227
      %v744 = vpop.f32.mrb[0].mxu0
      %v745 = vadd.f32 %v536, %v744
      %v746 = vpop.f32.mrb[0].mxu0
      %v747 = vpop.f32.mrb[0].mxu0
      %v748 = vadd.f32 %v539, %v747
      %v749 = vpop.f32.mrb[0].mxu0
      %750 = vmatprep.mubr.bf16.mxu0 0
      %751 = vmatmul.mubr.bf16.gmra.mrb[0].mxu0 %v228
      %v752 = vpop.f32.mrb[0].mxu0
      %v753 = vadd.f32 %v544, %v752
      %v754 = vpop.f32.mrb[0].mxu0
      %v755 = vpop.f32.mrb[0].mxu0
      %v756 = vadd.f32 %v547, %v755
      %v757 = vpop.f32.mrb[0].mxu0
      %758 = vmatprep.mubr.bf16.mxu0 0
      %759 = vmatmul.mubr.bf16.gmra.mrb[0].mxu0 %v229
      %v760 = vpop.f32.mrb[0].mxu0
      %v761 = vadd.f32 %v552, %v760
      %v762 = vpop.f32.mrb[0].mxu0
      %v763 = vpop.f32.mrb[0].mxu0
      %v764 = vadd.f32 %v555, %v763
      %v765 = vpop.f32.mrb[0].mxu0
      %766 = vmatprep.mubr.bf16.mxu0 0
      %767 = vmatmul.mubr.bf16.gmra.mrb[0].mxu0 %v230
      %v768 = vpop.f32.mrb[0].mxu0
      %v769 = vadd.f32 %v560, %v768
      %v770 = vpop.f32.mrb[0].mxu0
      %v771 = vpop.f32.mrb[0].mxu0
      %v772 = vadd.f32 %v563, %v771
      %v773 = vpop.f32.mrb[0].mxu0
      %774 = vmatprep.mubr.bf16.mxu0 0
      %775 = vmatmul.mubr.bf16.gmra.mrb[0].mxu0 %v231
      %v776 = vpop.f32.mrb[0].mxu0
      %v777 = vadd.f32 %v568, %v776
      %v778 = vpop.f32.mrb[0].mxu0
      %v779 = vpop.f32.mrb[0].mxu0
      %v780 = vadd.f32 %v571, %v779
      %v781 = vpop.f32.mrb[0].mxu0
      %782 = vmatprep.mubr.bf16.mxu0 0
      %783 = vmatmul.mubr.bf16.gmra.mrb[0].mxu0 %v232
      %v784 = vpop.f32.mrb[0].mxu0
      %v785 = vadd.f32 %v576, %v784
      %v786 = vpop.f32.mrb[0].mxu0
      %v787 = vpop.f32.mrb[0].mxu0
      %v788 = vadd.f32 %v579, %v787
      %v789 = vpop.f32.mrb[0].mxu0
      %790 = vmatprep.mubr.bf16.mxu0 0
      %791 = vmatmul.mubr.bf16.gmra.mrb[0].mxu0 %v233
      %v792 = vpop.f32.mrb[0].mxu0
      %v793 = vadd.f32 %v584, %v792
      %v794 = vpop.f32.mrb[0].mxu0
      %v795 = vpop.f32.mrb[0].mxu0
      %v796 = vadd.f32 %v587, %v795
      %v797 = vpop.f32.mrb[0].mxu0
      %798 = vmatprep.mubr.bf16.mxu0 0
      %799 = vmatmul.mubr.bf16.gmra.mrb[0].mxu0 %v234
      %v800 = vpop.f32.mrb[0].mxu0
      %v801 = vadd.f32 %v592, %v800
      %v802 = vpop.f32.mrb[0].mxu0
      %v803 = vpop.f32.mrb[0].mxu0
      %v804 = vadd.f32 %v595, %v803
      %v805 = vpop.f32.mrb[0].mxu0
      %806 = vmatprep.mubr.bf16.mxu0 0
      %807 = vmatmul.mubr.bf16.gmra.mrb[0].mxu0 %v235
      %v808 = vpop.f32.mrb[0].mxu0
      %v809 = vadd.f32 %v600, %v808
      %v810 = vpop.f32.mrb[0].mxu0
      %v811 = vpop.f32.mrb[0].mxu0
      %v812 = vadd.f32 %v603, %v811
      %v813 = vpop.f32.mrb[0].mxu0
      %814 = vmatprep.mubr.bf16.mxu0 0
      %815 = vmatmul.mubr.bf16.gmra.mrb[0].mxu0 %v236
      %v816 = vpop.f32.mrb[0].mxu0
      %v817 = vadd.f32 %v608, %v816
      %v818 = vpop.f32.mrb[0].mxu0
      %v819 = vpop.f32.mrb[0].mxu0
      %v820 = vadd.f32 %v611, %v819
      %v821 = vpop.f32.mrb[0].mxu0
      %822 = vmatprep.mubr.bf16.mxu0 0
      %823 = vmatmul.mubr.bf16.gmra.mrb[0].mxu0 %v237
      %v824 = vpop.f32.mrb[0].mxu0
      %v825 = vadd.f32 %v616, %v824
      %v826 = vpop.f32.mrb[0].mxu0
      %v827 = vpop.f32.mrb[0].mxu0
      %v828 = vadd.f32 %v619, %v827
      %v829 = vpop.f32.mrb[0].mxu0
      %830 = vmatprep.mubr.bf16.mxu0 0
      %831 = vmatmul.mubr.bf16.gmra.mrb[0].mxu0 %v238
      %v832 = vpop.f32.mrb[0].mxu0
      %v833 = vadd.f32 %v624, %v832
      %v834 = vpop.f32.mrb[0].mxu0
      %v835 = vpop.f32.mrb[0].mxu0
      %v836 = vadd.f32 %v627, %v835
      %v837 = vpop.f32.mrb[0].mxu0
      %838 = vmatprep.mubr.bf16.mxu0 0
      %839 = vmatmul.mubr.bf16.gmra.mrb[0].mxu0 %v239
      %v840 = vpop.f32.mrb[0].mxu0
      %v841 = vadd.f32 %v632, %v840
      %v842 = vpop.f32.mrb[0].mxu0
      %v843 = vpop.f32.mrb[0].mxu0
      %v844 = vadd.f32 %v635, %v843
      %v845 = vpop.f32.mrb[0].mxu0
      %846 = vmatprep.mubr.bf16.mxu0 0
      %847 = vmatmul.mubr.bf16.gmra.mrb[0].mxu0 %v240
      %v848 = vpop.f32.mrb[0].mxu0
      %v849 = vadd.f32 %v640, %v848
      %v850 = vpop.f32.mrb[0].mxu0
      %v851 = vpop.f32.mrb[0].mxu0
      %v852 = vadd.f32 %v643, %v851
      %v853 = vpop.f32.mrb[0].mxu0
      %854 = vmatprep.mubr.bf16.mxu0 0
      %855 = vmatmul.mubr.bf16.gmra.mrb[0].mxu0 %v241
      %v856 = vpop.f32.mrb[0].mxu0
      %v857 = vadd.f32 %v648, %v856
      %v858 = vpop.f32.mrb[0].mxu0
      %v859 = vpop.f32.mrb[0].mxu0
      %v860 = vadd.f32 %v651, %v859
      %v861 = vpop.f32.mrb[0].mxu0
      %862 = vmatprep.mubr.bf16.mxu0 0
      %863 = vmatmul.mubr.bf16.gmra.mrb[0].mxu0 %v242
      %v864 = vpop.f32.mrb[0].mxu0
      %v865 = vadd.f32 %v656, %v864
      %v866 = vpop.f32.mrb[0].mxu0
      %v867 = vpop.f32.mrb[0].mxu0
      %v868 = vadd.f32 %v659, %v867
      %v869 = vpop.f32.mrb[0].mxu0
      %870 = vdwg.mxu0
      %vm871 = vcmask 1045504
      %v872 = vrot.slane %v173, 2
      %v873 = vrot.slane %v174, 2
      %v874 = vsel %vm871, %v872, %v873
      %v875 = vrot.slane %v175, 2
      %v876 = vsel %vm871, %v873, %v875
      %v877 = vrot.slane %v176, 2
      %v878 = vrot.slane %v177, 2
      %v879 = vsel %vm871, %v877, %v878
      %v880 = vrot.slane %v178, 2
      %v881 = vsel %vm871, %v878, %v880
      %v882 = vrot.slane %v179, 2
      %v883 = vrot.slane %v180, 2
      %v884 = vsel %vm871, %v882, %v883
      %v885 = vrot.slane %v181, 2
      %v886 = vsel %vm871, %v883, %v885
      %v887 = vrot.slane %v182, 2
      %v888 = vrot.slane %v183, 2
      %v889 = vsel %vm871, %v887, %v888
      %v890 = vrot.slane %v184, 2
      %v891 = vsel %vm871, %v888, %v890
      %v892 = vrot.slane %v185, 2
      %v893 = vrot.slane %v186, 2
      %v894 = vsel %vm871, %v892, %v893
      %v895 = vrot.slane %v187, 2
      %v896 = vsel %vm871, %v893, %v895
      %v897 = vrot.slane %v188, 2
      %v898 = vrot.slane %v189, 2
      %v899 = vsel %vm871, %v897, %v898
      %v900 = vrot.slane %v190, 2
      %v901 = vsel %vm871, %v898, %v900
      %v902 = vrot.slane %v191, 2
      %v903 = vrot.slane %v192, 2
      %v904 = vsel %vm871, %v902, %v903
      %v905 = vrot.slane %v193, 2
      %v906 = vsel %vm871, %v903, %v905
      %v907 = vrot.slane %v194, 2
      %v908 = vrot.slane %v195, 2
      %v909 = vsel %vm871, %v907, %v908
      %v910 = vrot.slane %v196, 2
      %v911 = vsel %vm871, %v908, %v910
      %v912 = vrot.slane %v197, 2
      %v913 = vrot.slane %v198, 2
      %v914 = vsel %vm871, %v912, %v913
      %v915 = vrot.slane %v199, 2
      %v916 = vsel %vm871, %v913, %v915
      %v917 = vrot.slane %v200, 2
      %v918 = vrot.slane %v201, 2
      %v919 = vsel %vm871, %v917, %v918
      %v920 = vrot.slane %v202, 2
      %v921 = vsel %vm871, %v918, %v920
      %v922 = vrot.slane %v203, 2
      %v923 = vrot.slane %v204, 2
      %v924 = vsel %vm871, %v922, %v923
      %v925 = vrot.slane %v205, 2
      %v926 = vsel %vm871, %v923, %v925
      %v927 = vrot.slane %v206, 2
      %v928 = vrot.slane %v207, 2
      %v929 = vsel %vm871, %v927, %v928
      %v930 = vrot.slane %v208, 2
      %v931 = vsel %vm871, %v928, %v930
      %v932 = vrot.slane %v209, 2
      %v933 = vrot.slane %v210, 2
      %v934 = vsel %vm871, %v932, %v933
      %v935 = vrot.slane %v211, 2
      %v936 = vsel %vm871, %v933, %v935
      %v937 = vrot.slane %v212, 2
      %v938 = vrot.slane %v213, 2
      %v939 = vsel %vm871, %v937, %v938
      %v940 = vrot.slane %v214, 2
      %v941 = vsel %vm871, %v938, %v940
      %v942 = vrot.slane %v215, 2
      %v943 = vrot.slane %v216, 2
      %v944 = vsel %vm871, %v942, %v943
      %v945 = vrot.slane %v217, 2
      %v946 = vsel %vm871, %v943, %v945
      %v947 = vrot.slane %v218, 2
      %v948 = vrot.slane %v219, 2
      %v949 = vsel %vm871, %v947, %v948
      %v950 = vrot.slane %v220, 2
      %v951 = vsel %vm871, %v948, %v950
      %v984 = vpack.c.bf16 %v876, %v874
      %v985 = vpack.c.bf16 %v881, %v879
      %v986 = vpack.c.bf16 %v886, %v884
      %v987 = vpack.c.bf16 %v891, %v889
      %v988 = vpack.c.bf16 %v896, %v894
      %v989 = vpack.c.bf16 %v901, %v899
      %v990 = vpack.c.bf16 %v906, %v904
      %v991 = vpack.c.bf16 %v911, %v909
      %v992 = vpack.c.bf16 %v916, %v914
      %v993 = vpack.c.bf16 %v921, %v919
      %v994 = vpack.c.bf16 %v926, %v924
      %v995 = vpack.c.bf16 %v931, %v929
      %v996 = vpack.c.bf16 %v936, %v934
      %v997 = vpack.c.bf16 %v941, %v939
      %v998 = vpack.c.bf16 %v946, %v944
      %v999 = vpack.c.bf16 %v951, %v949
      %s1000 = scalar_lea.vmem %s1, 128
      %v1001 = vld [vmem:[%s1000] sm:$0xf]
      %v1002 = vld [vmem:[%s1000 + $0x4] sm:$0xf]
      %v1003 = vld [vmem:[%s1000 + $0x8] sm:$0xf]
      %v1004 = vld [vmem:[%s1000 + $0xc] sm:$0xf]
      %v1005 = vld [vmem:[%s1000 + $0x10] sm:$0xf]
      %v1006 = vld [vmem:[%s1000 + $0x14] sm:$0xf]
      %v1007 = vld [vmem:[%s1000 + $0x18] sm:$0xf]
      %v1008 = vld [vmem:[%s1000 + $0x1c] sm:$0xf]
      %v1009 = vld [vmem:[%s1000 + $0x20] sm:$0xf]
      %v1010 = vld [vmem:[%s1000 + $0x24] sm:$0xf]
      %v1011 = vld [vmem:[%s1000 + $0x28] sm:$0xf]
      %v1012 = vld [vmem:[%s1000 + $0x2c] sm:$0xf]
      %v1013 = vld [vmem:[%s1000 + $0x30] sm:$0xf]
      %v1014 = vld [vmem:[%s1000 + $0x34] sm:$0xf]
      %v1015 = vld [vmem:[%s1000 + $0x38] sm:$0xf]
      %v1016 = vld [vmem:[%s1000 + $0x3c] sm:$0xf]
      %v1033 = vunpack.c.l.b16 %v1001
      %v1034 = vunpack.c.l.b16 %v1002
      %v1035 = vunpack.c.l.b16 %v1003
      %v1036 = vunpack.c.l.b16 %v1004
      %v1037 = vunpack.c.l.b16 %v1005
      %v1038 = vunpack.c.l.b16 %v1006
      %v1039 = vunpack.c.l.b16 %v1007
      %v1040 = vunpack.c.l.b16 %v1008
      %v1041 = vunpack.c.l.b16 %v1009
      %v1042 = vunpack.c.l.b16 %v1010
      %v1043 = vunpack.c.l.b16 %v1011
      %v1044 = vunpack.c.l.b16 %v1012
      %v1045 = vunpack.c.l.b16 %v1013
      %v1046 = vunpack.c.l.b16 %v1014
      %v1047 = vunpack.c.l.b16 %v1015
      %v1048 = vunpack.c.l.b16 %v1016
      %v1049 = vpack.c.b16 %v1034, %v1033
      %v1050 = vpack.c.b16 %v1036, %v1035
      %v1051 = vpack.c.b16 %v1038, %v1037
      %v1052 = vpack.c.b16 %v1040, %v1039
      %v1053 = vpack.c.b16 %v1042, %v1041
      %v1054 = vpack.c.b16 %v1044, %v1043
      %v1055 = vpack.c.b16 %v1046, %v1045
      %v1056 = vpack.c.b16 %v1048, %v1047
      %1065 = vmatprep.subr.bf16.mxu0 0
      %1066 = vmatpush1.bf16.msra.mxu0 %v1049
      %1067 = vmatprep.subr.bf16.mxu0 0
      %1068 = vmatpush1.bf16.msra.mxu0 %v1050
      %1069 = vmatprep.subr.bf16.mxu0 0
      %1070 = vmatpush1.bf16.msra.mxu0 %v1051
      %1071 = vmatprep.subr.bf16.mxu0 0
      %1072 = vmatpush1.bf16.msra.mxu0 %v1052
      %1073 = vmatprep.subr.bf16.mxu0 0
      %1074 = vmatpush1.bf16.msra.mxu0 %v1053
      %1075 = vmatprep.subr.bf16.mxu0 0
      %1076 = vmatpush1.bf16.msra.mxu0 %v1054
      %1077 = vmatprep.subr.bf16.mxu0 0
      %1078 = vmatpush1.bf16.msra.mxu0 %v1055
      %1079 = vmatprep.subr.bf16.mxu0 0
      %1080 = vmatpush1.bf16.msra.mxu0 %v1056
      %1081 = vmatprep.subr.bf16.mxu0 0
      %1082 = vmatpush1.bf16.msra.mxu0 0
      %1083 = vmatprep.subr.bf16.mxu0 0
      %1084 = vmatpush1.bf16.msra.mxu0 0
      %1085 = vmatprep.subr.bf16.mxu0 0
      %1086 = vmatpush1.bf16.msra.mxu0 0
      %1087 = vmatprep.subr.bf16.mxu0 0
      %1088 = vmatpush1.bf16.msra.mxu0 0
      %1089 = vmatprep.subr.bf16.mxu0 0
      %1090 = vmatpush1.bf16.msra.mxu0 0
      %1091 = vmatprep.subr.bf16.mxu0 0
      %1092 = vmatpush1.bf16.msra.mxu0 0
      %1093 = vmatprep.subr.bf16.mxu0 0
      %1094 = vmatpush1.bf16.msra.mxu0 0
      %1095 = vmatprep.subr.bf16.mxu0 0
      %1096 = vmatpush1.bf16.msra.mxu0 0
      %1097 = vmatprep.mubr.bf16.mxu0 0
      %1098 = vmatmul.mubr.bf16.gmra.mrb[0].mxu0 %v984
      %v1099 = vpop.f32.mrb[0].mxu0
      %v1100 = vadd.f32 0.0, %v1099
      %v1101 = vpop.f32.mrb[0].mxu0
      %v1102 = vpop.f32.mrb[0].mxu0
      %v1103 = vadd.f32 0.0, %v1102
      %v1104 = vpop.f32.mrb[0].mxu0
      %1105 = vmatprep.mubr.bf16.mxu0 0
      %1106 = vmatmul.mubr.bf16.gmra.mrb[0].mxu0 %v985
      %v1107 = vpop.f32.mrb[0].mxu0
      %v1108 = vadd.f32 0.0, %v1107
      %v1109 = vpop.f32.mrb[0].mxu0
      %v1110 = vpop.f32.mrb[0].mxu0
      %v1111 = vadd.f32 0.0, %v1110
      %v1112 = vpop.f32.mrb[0].mxu0
      %1113 = vmatprep.mubr.bf16.mxu0 0
      %1114 = vmatmul.mubr.bf16.gmra.mrb[0].mxu0 %v986
      %v1115 = vpop.f32.mrb[0].mxu0
      %v1116 = vadd.f32 0.0, %v1115
      %v1117 = vpop.f32.mrb[0].mxu0
      %v1118 = vpop.f32.mrb[0].mxu0
      %v1119 = vadd.f32 0.0, %v1118
      %v1120 = vpop.f32.mrb[0].mxu0
      %1121 = vmatprep.mubr.bf16.mxu0 0
      %1122 = vmatmul.mubr.bf16.gmra.mrb[0].mxu0 %v987
      %v1123 = vpop.f32.mrb[0].mxu0
      %v1124 = vadd.f32 0.0, %v1123
      %v1125 = vpop.f32.mrb[0].mxu0
      %v1126 = vpop.f32.mrb[0].mxu0
      %v1127 = vadd.f32 0.0, %v1126
      %v1128 = vpop.f32.mrb[0].mxu0
      %1129 = vmatprep.mubr.bf16.mxu0 0
      %1130 = vmatmul.mubr.bf16.gmra.mrb[0].mxu0 %v988
      %v1131 = vpop.f32.mrb[0].mxu0
      %v1132 = vadd.f32 0.0, %v1131
      %v1133 = vpop.f32.mrb[0].mxu0
      %v1134 = vpop.f32.mrb[0].mxu0
      %v1135 = vadd.f32 0.0, %v1134
      %v1136 = vpop.f32.mrb[0].mxu0
      %1137 = vmatprep.mubr.bf16.mxu0 0
      %1138 = vmatmul.mubr.bf16.gmra.mrb[0].mxu0 %v989
      %v1139 = vpop.f32.mrb[0].mxu0
      %v1140 = vadd.f32 0.0, %v1139
      %v1141 = vpop.f32.mrb[0].mxu0
      %v1142 = vpop.f32.mrb[0].mxu0
      %v1143 = vadd.f32 0.0, %v1142
      %v1144 = vpop.f32.mrb[0].mxu0
      %1145 = vmatprep.mubr.bf16.mxu0 0
      %1146 = vmatmul.mubr.bf16.gmra.mrb[0].mxu0 %v990
      %v1147 = vpop.f32.mrb[0].mxu0
      %v1148 = vadd.f32 0.0, %v1147
      %v1149 = vpop.f32.mrb[0].mxu0
      %v1150 = vpop.f32.mrb[0].mxu0
      %v1151 = vadd.f32 0.0, %v1150
      %v1152 = vpop.f32.mrb[0].mxu0
      %1153 = vmatprep.mubr.bf16.mxu0 0
      %1154 = vmatmul.mubr.bf16.gmra.mrb[0].mxu0 %v991
      %v1155 = vpop.f32.mrb[0].mxu0
      %v1156 = vadd.f32 0.0, %v1155
      %v1157 = vpop.f32.mrb[0].mxu0
      %v1158 = vpop.f32.mrb[0].mxu0
      %v1159 = vadd.f32 0.0, %v1158
      %v1160 = vpop.f32.mrb[0].mxu0
      %1161 = vmatprep.mubr.bf16.mxu0 0
      %1162 = vmatmul.mubr.bf16.gmra.mrb[0].mxu0 %v992
      %v1163 = vpop.f32.mrb[0].mxu0
      %v1164 = vadd.f32 0.0, %v1163
      %v1165 = vpop.f32.mrb[0].mxu0
      %v1166 = vpop.f32.mrb[0].mxu0
      %v1167 = vadd.f32 0.0, %v1166
      %v1168 = vpop.f32.mrb[0].mxu0
      %1169 = vmatprep.mubr.bf16.mxu0 0
      %1170 = vmatmul.mubr.bf16.gmra.mrb[0].mxu0 %v993
      %v1171 = vpop.f32.mrb[0].mxu0
      %v1172 = vadd.f32 0.0, %v1171
      %v1173 = vpop.f32.mrb[0].mxu0
      %v1174 = vpop.f32.mrb[0].mxu0
      %v1175 = vadd.f32 0.0, %v1174
      %v1176 = vpop.f32.mrb[0].mxu0
      %1177 = vmatprep.mubr.bf16.mxu0 0
      %1178 = vmatmul.mubr.bf16.gmra.mrb[0].mxu0 %v994
      %v1179 = vpop.f32.mrb[0].mxu0
      %v1180 = vadd.f32 0.0, %v1179
      %v1181 = vpop.f32.mrb[0].mxu0
      %v1182 = vpop.f32.mrb[0].mxu0
      %v1183 = vadd.f32 0.0, %v1182
      %v1184 = vpop.f32.mrb[0].mxu0
      %1185 = vmatprep.mubr.bf16.mxu0 0
      %1186 = vmatmul.mubr.bf16.gmra.mrb[0].mxu0 %v995
      %v1187 = vpop.f32.mrb[0].mxu0
      %v1188 = vadd.f32 0.0, %v1187
      %v1189 = vpop.f32.mrb[0].mxu0
      %v1190 = vpop.f32.mrb[0].mxu0
      %v1191 = vadd.f32 0.0, %v1190
      %v1192 = vpop.f32.mrb[0].mxu0
      %1193 = vmatprep.mubr.bf16.mxu0 0
      %1194 = vmatmul.mubr.bf16.gmra.mrb[0].mxu0 %v996
      %v1195 = vpop.f32.mrb[0].mxu0
      %v1196 = vadd.f32 0.0, %v1195
      %v1197 = vpop.f32.mrb[0].mxu0
      %v1198 = vpop.f32.mrb[0].mxu0
      %v1199 = vadd.f32 0.0, %v1198
      %v1200 = vpop.f32.mrb[0].mxu0
      %1201 = vmatprep.mubr.bf16.mxu0 0
      %1202 = vmatmul.mubr.bf16.gmra.mrb[0].mxu0 %v997
      %v1203 = vpop.f32.mrb[0].mxu0
      %v1204 = vadd.f32 0.0, %v1203
      %v1205 = vpop.f32.mrb[0].mxu0
      %v1206 = vpop.f32.mrb[0].mxu0
      %v1207 = vadd.f32 0.0, %v1206
      %v1208 = vpop.f32.mrb[0].mxu0
      %1209 = vmatprep.mubr.bf16.mxu0 0
      %1210 = vmatmul.mubr.bf16.gmra.mrb[0].mxu0 %v998
      %v1211 = vpop.f32.mrb[0].mxu0
      %v1212 = vadd.f32 0.0, %v1211
      %v1213 = vpop.f32.mrb[0].mxu0
      %v1214 = vpop.f32.mrb[0].mxu0
      %v1215 = vadd.f32 0.0, %v1214
      %v1216 = vpop.f32.mrb[0].mxu0
      %1217 = vmatprep.mubr.bf16.mxu0 0
      %1218 = vmatmul.mubr.bf16.gmra.mrb[0].mxu0 %v999
      %v1219 = vpop.f32.mrb[0].mxu0
      %v1220 = vadd.f32 0.0, %v1219
      %v1221 = vpop.f32.mrb[0].mxu0
      %v1222 = vpop.f32.mrb[0].mxu0
      %v1223 = vadd.f32 0.0, %v1222
      %v1224 = vpop.f32.mrb[0].mxu0
      %1225 = vdwg.mxu0
      %v1226 = vadd.f32 %v745, %v1100
      %v1227 = vadd.f32 %v748, %v1103
      %v1228 = vadd.f32 %v753, %v1108
      %v1229 = vadd.f32 %v756, %v1111
      %v1230 = vadd.f32 %v761, %v1116
      %v1231 = vadd.f32 %v764, %v1119
      %v1232 = vadd.f32 %v769, %v1124
      %v1233 = vadd.f32 %v772, %v1127
      %v1234 = vadd.f32 %v777, %v1132
      %v1235 = vadd.f32 %v780, %v1135
      %v1236 = vadd.f32 %v785, %v1140
      %v1237 = vadd.f32 %v788, %v1143
      %v1238 = vadd.f32 %v793, %v1148
      %v1239 = vadd.f32 %v796, %v1151
      %v1240 = vadd.f32 %v801, %v1156
      %v1241 = vadd.f32 %v804, %v1159
      %v1242 = vadd.f32 %v809, %v1164
      %v1243 = vadd.f32 %v812, %v1167
      %v1244 = vadd.f32 %v817, %v1172
      %v1245 = vadd.f32 %v820, %v1175
      %v1246 = vadd.f32 %v825, %v1180
      %v1247 = vadd.f32 %v828, %v1183
      %v1248 = vadd.f32 %v833, %v1188
      %v1249 = vadd.f32 %v836, %v1191
      %v1250 = vadd.f32 %v841, %v1196
      %v1251 = vadd.f32 %v844, %v1199
      %v1252 = vadd.f32 %v849, %v1204
      %v1253 = vadd.f32 %v852, %v1207
      %v1254 = vadd.f32 %v857, %v1212
      %v1255 = vadd.f32 %v860, %v1215
      %v1256 = vadd.f32 %v865, %v1220
      %v1257 = vadd.f32 %v868, %v1223
      %v1258 = vpack.c.bf16 %v222, %v221
      %s1259 = scalar_lea.vmem %s1, 192
      %v1260 = vld [vmem:[%s1259] sm:$0xf]
      %v1261 = vld [vmem:[%s1259 + $0x4] sm:$0xf]
      %v1262 = vld [vmem:[%s1259 + $0x8] sm:$0xf]
      %v1263 = vld [vmem:[%s1259 + $0xc] sm:$0xf]
      %v1264 = vld [vmem:[%s1259 + $0x10] sm:$0xf]
      %v1265 = vld [vmem:[%s1259 + $0x14] sm:$0xf]
      %v1266 = vld [vmem:[%s1259 + $0x18] sm:$0xf]
      %v1267 = vld [vmem:[%s1259 + $0x1c] sm:$0xf]
      %v1268 = vld [vmem:[%s1259 + $0x20] sm:$0xf]
      %v1269 = vld [vmem:[%s1259 + $0x24] sm:$0xf]
      %v1270 = vld [vmem:[%s1259 + $0x28] sm:$0xf]
      %v1271 = vld [vmem:[%s1259 + $0x2c] sm:$0xf]
      %v1272 = vld [vmem:[%s1259 + $0x30] sm:$0xf]
      %v1273 = vld [vmem:[%s1259 + $0x34] sm:$0xf]
      %v1274 = vld [vmem:[%s1259 + $0x38] sm:$0xf]
      %v1275 = vld [vmem:[%s1259 + $0x3c] sm:$0xf]
      %v1292 = vunpack.c.l.b16 %v1260
      %v1293 = vunpack.c.l.b16 %v1261
      %v1294 = vunpack.c.l.b16 %v1262
      %v1295 = vunpack.c.l.b16 %v1263
      %v1296 = vunpack.c.l.b16 %v1264
      %v1297 = vunpack.c.l.b16 %v1265
      %v1298 = vunpack.c.l.b16 %v1266
      %v1299 = vunpack.c.l.b16 %v1267
      %v1300 = vunpack.c.l.b16 %v1268
      %v1301 = vunpack.c.l.b16 %v1269
      %v1302 = vunpack.c.l.b16 %v1270
      %v1303 = vunpack.c.l.b16 %v1271
      %v1304 = vunpack.c.l.b16 %v1272
      %v1305 = vunpack.c.l.b16 %v1273
      %v1306 = vunpack.c.l.b16 %v1274
      %v1307 = vunpack.c.l.b16 %v1275
      %v1308 = vpack.c.b16 %v1293, %v1292
      %v1309 = vpack.c.b16 %v1295, %v1294
      %v1310 = vpack.c.b16 %v1297, %v1296
      %v1311 = vpack.c.b16 %v1299, %v1298
      %v1312 = vpack.c.b16 %v1301, %v1300
      %v1313 = vpack.c.b16 %v1303, %v1302
      %v1314 = vpack.c.b16 %v1305, %v1304
      %v1315 = vpack.c.b16 %v1307, %v1306
      %1324 = vmatprep.subr.bf16.mxu0 0
      %1325 = vmatpush1.bf16.msra.mxu0 %v1308
      %1326 = vmatprep.subr.bf16.mxu0 0
      %1327 = vmatpush1.bf16.msra.mxu0 %v1309
      %1328 = vmatprep.subr.bf16.mxu0 0
      %1329 = vmatpush1.bf16.msra.mxu0 %v1310
      %1330 = vmatprep.subr.bf16.mxu0 0
      %1331 = vmatpush1.bf16.msra.mxu0 %v1311
      %1332 = vmatprep.subr.bf16.mxu0 0
      %1333 = vmatpush1.bf16.msra.mxu0 %v1312
      %1334 = vmatprep.subr.bf16.mxu0 0
      %1335 = vmatpush1.bf16.msra.mxu0 %v1313
      %1336 = vmatprep.subr.bf16.mxu0 0
      %1337 = vmatpush1.bf16.msra.mxu0 %v1314
      %1338 = vmatprep.subr.bf16.mxu0 0
      %1339 = vmatpush1.bf16.msra.mxu0 %v1315
      %1340 = vmatprep.subr.bf16.mxu0 0
      %1341 = vmatpush1.bf16.msra.mxu0 0
      %1342 = vmatprep.subr.bf16.mxu0 0
      %1343 = vmatpush1.bf16.msra.mxu0 0
      %1344 = vmatprep.subr.bf16.mxu0 0
      %1345 = vmatpush1.bf16.msra.mxu0 0
      %1346 = vmatprep.subr.bf16.mxu0 0
      %1347 = vmatpush1.bf16.msra.mxu0 0
      %1348 = vmatprep.subr.bf16.mxu0 0
      %1349 = vmatpush1.bf16.msra.mxu0 0
      %1350 = vmatprep.subr.bf16.mxu0 0
      %1351 = vmatpush1.bf16.msra.mxu0 0
      %1352 = vmatprep.subr.bf16.mxu0 0
      %1353 = vmatpush1.bf16.msra.mxu0 0
      %1354 = vmatprep.subr.bf16.mxu0 0
      %1355 = vmatpush1.bf16.msra.mxu0 0
      %1356 = vmatprep.mubr.bf16.mxu0 0
      %1357 = vmatmul.mubr.bf16.gmra.mrb[0].mxu0 %v228
      %v1358 = vpop.f32.mrb[0].mxu0
      %v1359 = vadd.f32 0.0, %v1358
      %v1360 = vpop.f32.mrb[0].mxu0
      %v1361 = vpop.f32.mrb[0].mxu0
      %v1362 = vadd.f32 0.0, %v1361
      %v1363 = vpop.f32.mrb[0].mxu0
      %1364 = vmatprep.mubr.bf16.mxu0 0
      %1365 = vmatmul.mubr.bf16.gmra.mrb[0].mxu0 %v229
      %v1366 = vpop.f32.mrb[0].mxu0
      %v1367 = vadd.f32 0.0, %v1366
      %v1368 = vpop.f32.mrb[0].mxu0
      %v1369 = vpop.f32.mrb[0].mxu0
      %v1370 = vadd.f32 0.0, %v1369
      %v1371 = vpop.f32.mrb[0].mxu0
      %1372 = vmatprep.mubr.bf16.mxu0 0
      %1373 = vmatmul.mubr.bf16.gmra.mrb[0].mxu0 %v230
      %v1374 = vpop.f32.mrb[0].mxu0
      %v1375 = vadd.f32 0.0, %v1374
      %v1376 = vpop.f32.mrb[0].mxu0
      %v1377 = vpop.f32.mrb[0].mxu0
      %v1378 = vadd.f32 0.0, %v1377
      %v1379 = vpop.f32.mrb[0].mxu0
      %1380 = vmatprep.mubr.bf16.mxu0 0
      %1381 = vmatmul.mubr.bf16.gmra.mrb[0].mxu0 %v231
      %v1382 = vpop.f32.mrb[0].mxu0
      %v1383 = vadd.f32 0.0, %v1382
      %v1384 = vpop.f32.mrb[0].mxu0
      %v1385 = vpop.f32.mrb[0].mxu0
      %v1386 = vadd.f32 0.0, %v1385
      %v1387 = vpop.f32.mrb[0].mxu0
      %1388 = vmatprep.mubr.bf16.mxu0 0
      %1389 = vmatmul.mubr.bf16.gmra.mrb[0].mxu0 %v232
      %v1390 = vpop.f32.mrb[0].mxu0
      %v1391 = vadd.f32 0.0, %v1390
      %v1392 = vpop.f32.mrb[0].mxu0
      %v1393 = vpop.f32.mrb[0].mxu0
      %v1394 = vadd.f32 0.0, %v1393
      %v1395 = vpop.f32.mrb[0].mxu0
      %1396 = vmatprep.mubr.bf16.mxu0 0
      %1397 = vmatmul.mubr.bf16.gmra.mrb[0].mxu0 %v233
      %v1398 = vpop.f32.mrb[0].mxu0
      %v1399 = vadd.f32 0.0, %v1398
      %v1400 = vpop.f32.mrb[0].mxu0
      %v1401 = vpop.f32.mrb[0].mxu0
      %v1402 = vadd.f32 0.0, %v1401
      %v1403 = vpop.f32.mrb[0].mxu0
      %1404 = vmatprep.mubr.bf16.mxu0 0
      %1405 = vmatmul.mubr.bf16.gmra.mrb[0].mxu0 %v234
      %v1406 = vpop.f32.mrb[0].mxu0
      %v1407 = vadd.f32 0.0, %v1406
      %v1408 = vpop.f32.mrb[0].mxu0
      %v1409 = vpop.f32.mrb[0].mxu0
      %v1410 = vadd.f32 0.0, %v1409
      %v1411 = vpop.f32.mrb[0].mxu0
      %1412 = vmatprep.mubr.bf16.mxu0 0
      %1413 = vmatmul.mubr.bf16.gmra.mrb[0].mxu0 %v235
      %v1414 = vpop.f32.mrb[0].mxu0
      %v1415 = vadd.f32 0.0, %v1414
      %v1416 = vpop.f32.mrb[0].mxu0
      %v1417 = vpop.f32.mrb[0].mxu0
      %v1418 = vadd.f32 0.0, %v1417
      %v1419 = vpop.f32.mrb[0].mxu0
      %1420 = vmatprep.mubr.bf16.mxu0 0
      %1421 = vmatmul.mubr.bf16.gmra.mrb[0].mxu0 %v236
      %v1422 = vpop.f32.mrb[0].mxu0
      %v1423 = vadd.f32 0.0, %v1422
      %v1424 = vpop.f32.mrb[0].mxu0
      %v1425 = vpop.f32.mrb[0].mxu0
      %v1426 = vadd.f32 0.0, %v1425
      %v1427 = vpop.f32.mrb[0].mxu0
      %1428 = vmatprep.mubr.bf16.mxu0 0
      %1429 = vmatmul.mubr.bf16.gmra.mrb[0].mxu0 %v237
      %v1430 = vpop.f32.mrb[0].mxu0
      %v1431 = vadd.f32 0.0, %v1430
      %v1432 = vpop.f32.mrb[0].mxu0
      %v1433 = vpop.f32.mrb[0].mxu0
      %v1434 = vadd.f32 0.0, %v1433
      %v1435 = vpop.f32.mrb[0].mxu0
      %1436 = vmatprep.mubr.bf16.mxu0 0
      %1437 = vmatmul.mubr.bf16.gmra.mrb[0].mxu0 %v238
      %v1438 = vpop.f32.mrb[0].mxu0
      %v1439 = vadd.f32 0.0, %v1438
      %v1440 = vpop.f32.mrb[0].mxu0
      %v1441 = vpop.f32.mrb[0].mxu0
      %v1442 = vadd.f32 0.0, %v1441
      %v1443 = vpop.f32.mrb[0].mxu0
      %1444 = vmatprep.mubr.bf16.mxu0 0
      %1445 = vmatmul.mubr.bf16.gmra.mrb[0].mxu0 %v239
      %v1446 = vpop.f32.mrb[0].mxu0
      %v1447 = vadd.f32 0.0, %v1446
      %v1448 = vpop.f32.mrb[0].mxu0
      %v1449 = vpop.f32.mrb[0].mxu0
      %v1450 = vadd.f32 0.0, %v1449
      %v1451 = vpop.f32.mrb[0].mxu0
      %1452 = vmatprep.mubr.bf16.mxu0 0
      %1453 = vmatmul.mubr.bf16.gmra.mrb[0].mxu0 %v240
      %v1454 = vpop.f32.mrb[0].mxu0
      %v1455 = vadd.f32 0.0, %v1454
      %v1456 = vpop.f32.mrb[0].mxu0
      %v1457 = vpop.f32.mrb[0].mxu0
      %v1458 = vadd.f32 0.0, %v1457
      %v1459 = vpop.f32.mrb[0].mxu0
      %1460 = vmatprep.mubr.bf16.mxu0 0
      %1461 = vmatmul.mubr.bf16.gmra.mrb[0].mxu0 %v241
      %v1462 = vpop.f32.mrb[0].mxu0
      %v1463 = vadd.f32 0.0, %v1462
      %v1464 = vpop.f32.mrb[0].mxu0
      %v1465 = vpop.f32.mrb[0].mxu0
      %v1466 = vadd.f32 0.0, %v1465
      %v1467 = vpop.f32.mrb[0].mxu0
      %1468 = vmatprep.mubr.bf16.mxu0 0
      %1469 = vmatmul.mubr.bf16.gmra.mrb[0].mxu0 %v242
      %v1470 = vpop.f32.mrb[0].mxu0
      %v1471 = vadd.f32 0.0, %v1470
      %v1472 = vpop.f32.mrb[0].mxu0
      %v1473 = vpop.f32.mrb[0].mxu0
      %v1474 = vadd.f32 0.0, %v1473
      %v1475 = vpop.f32.mrb[0].mxu0
      %1476 = vmatprep.mubr.bf16.mxu0 0
      %1477 = vmatmul.mubr.bf16.gmra.mrb[0].mxu0 %v1258
      %v1478 = vpop.f32.mrb[0].mxu0
      %v1479 = vadd.f32 0.0, %v1478
      %v1480 = vpop.f32.mrb[0].mxu0
      %v1481 = vpop.f32.mrb[0].mxu0
      %v1482 = vadd.f32 0.0, %v1481
      %v1483 = vpop.f32.mrb[0].mxu0
      %1484 = vdwg.mxu0
      %v1485 = vadd.f32 %v1226, %v1359
      %v1486 = vadd.f32 %v1227, %v1362
      %v1487 = vadd.f32 %v1228, %v1367
      %v1488 = vadd.f32 %v1229, %v1370
      %v1489 = vadd.f32 %v1230, %v1375
      %v1490 = vadd.f32 %v1231, %v1378
      %v1491 = vadd.f32 %v1232, %v1383
      %v1492 = vadd.f32 %v1233, %v1386
      %v1493 = vadd.f32 %v1234, %v1391
      %v1494 = vadd.f32 %v1235, %v1394
      %v1495 = vadd.f32 %v1236, %v1399
      %v1496 = vadd.f32 %v1237, %v1402
      %v1497 = vadd.f32 %v1238, %v1407
      %v1498 = vadd.f32 %v1239, %v1410
      %v1499 = vadd.f32 %v1240, %v1415
      %v1500 = vadd.f32 %v1241, %v1418
      %v1501 = vadd.f32 %v1242, %v1423
      %v1502 = vadd.f32 %v1243, %v1426
      %v1503 = vadd.f32 %v1244, %v1431
      %v1504 = vadd.f32 %v1245, %v1434
      %v1505 = vadd.f32 %v1246, %v1439
      %v1506 = vadd.f32 %v1247, %v1442
      %v1507 = vadd.f32 %v1248, %v1447
      %v1508 = vadd.f32 %v1249, %v1450
      %v1509 = vadd.f32 %v1250, %v1455
      %v1510 = vadd.f32 %v1251, %v1458
      %v1511 = vadd.f32 %v1252, %v1463
      %v1512 = vadd.f32 %v1253, %v1466
      %v1513 = vadd.f32 %v1254, %v1471
      %v1514 = vadd.f32 %v1255, %v1474
      %v1515 = vadd.f32 %v1256, %v1479
      %v1516 = vadd.f32 %v1257, %v1482
      %v1520 = vrot.slane %v221, 1
      %v1521 = vrot.slane %v222, 1
      %v1522 = vsel %vm307, %v1520, %v1521
      %v1523 = vrot.slane %v223, 1
      %v1524 = vsel %vm307, %v1521, %v1523
      %v1527 = vpack.c.bf16 %v1524, %v1522
      %s1528 = scalar_lea.vmem %s1, 256
      %v1529 = vld [vmem:[%s1528] sm:$0xf]
      %v1530 = vld [vmem:[%s1528 + $0x4] sm:$0xf]
      %v1531 = vld [vmem:[%s1528 + $0x8] sm:$0xf]
      %v1532 = vld [vmem:[%s1528 + $0xc] sm:$0xf]
      %v1533 = vld [vmem:[%s1528 + $0x10] sm:$0xf]
      %v1534 = vld [vmem:[%s1528 + $0x14] sm:$0xf]
      %v1535 = vld [vmem:[%s1528 + $0x18] sm:$0xf]
      %v1536 = vld [vmem:[%s1528 + $0x1c] sm:$0xf]
      %v1537 = vld [vmem:[%s1528 + $0x20] sm:$0xf]
      %v1538 = vld [vmem:[%s1528 + $0x24] sm:$0xf]
      %v1539 = vld [vmem:[%s1528 + $0x28] sm:$0xf]
      %v1540 = vld [vmem:[%s1528 + $0x2c] sm:$0xf]
      %v1541 = vld [vmem:[%s1528 + $0x30] sm:$0xf]
      %v1542 = vld [vmem:[%s1528 + $0x34] sm:$0xf]
      %v1543 = vld [vmem:[%s1528 + $0x38] sm:$0xf]
      %v1544 = vld [vmem:[%s1528 + $0x3c] sm:$0xf]
      %v1561 = vunpack.c.l.b16 %v1529
      %v1562 = vunpack.c.l.b16 %v1530
      %v1563 = vunpack.c.l.b16 %v1531
      %v1564 = vunpack.c.l.b16 %v1532
      %v1565 = vunpack.c.l.b16 %v1533
      %v1566 = vunpack.c.l.b16 %v1534
      %v1567 = vunpack.c.l.b16 %v1535
      %v1568 = vunpack.c.l.b16 %v1536
      %v1569 = vunpack.c.l.b16 %v1537
      %v1570 = vunpack.c.l.b16 %v1538
      %v1571 = vunpack.c.l.b16 %v1539
      %v1572 = vunpack.c.l.b16 %v1540
      %v1573 = vunpack.c.l.b16 %v1541
      %v1574 = vunpack.c.l.b16 %v1542
      %v1575 = vunpack.c.l.b16 %v1543
      %v1576 = vunpack.c.l.b16 %v1544
      %v1577 = vpack.c.b16 %v1562, %v1561
      %v1578 = vpack.c.b16 %v1564, %v1563
      %v1579 = vpack.c.b16 %v1566, %v1565
      %v1580 = vpack.c.b16 %v1568, %v1567
      %v1581 = vpack.c.b16 %v1570, %v1569
      %v1582 = vpack.c.b16 %v1572, %v1571
      %v1583 = vpack.c.b16 %v1574, %v1573
      %v1584 = vpack.c.b16 %v1576, %v1575
      %1593 = vmatprep.subr.bf16.mxu0 0
      %1594 = vmatpush1.bf16.msra.mxu0 %v1577
      %1595 = vmatprep.subr.bf16.mxu0 0
      %1596 = vmatpush1.bf16.msra.mxu0 %v1578
      %1597 = vmatprep.subr.bf16.mxu0 0
      %1598 = vmatpush1.bf16.msra.mxu0 %v1579
      %1599 = vmatprep.subr.bf16.mxu0 0
      %1600 = vmatpush1.bf16.msra.mxu0 %v1580
      %1601 = vmatprep.subr.bf16.mxu0 0
      %1602 = vmatpush1.bf16.msra.mxu0 %v1581
      %1603 = vmatprep.subr.bf16.mxu0 0
      %1604 = vmatpush1.bf16.msra.mxu0 %v1582
      %1605 = vmatprep.subr.bf16.mxu0 0
      %1606 = vmatpush1.bf16.msra.mxu0 %v1583
      %1607 = vmatprep.subr.bf16.mxu0 0
      %1608 = vmatpush1.bf16.msra.mxu0 %v1584
      %1609 = vmatprep.subr.bf16.mxu0 0
      %1610 = vmatpush1.bf16.msra.mxu0 0
      %1611 = vmatprep.subr.bf16.mxu0 0
      %1612 = vmatpush1.bf16.msra.mxu0 0
      %1613 = vmatprep.subr.bf16.mxu0 0
      %1614 = vmatpush1.bf16.msra.mxu0 0
      %1615 = vmatprep.subr.bf16.mxu0 0
      %1616 = vmatpush1.bf16.msra.mxu0 0
      %1617 = vmatprep.subr.bf16.mxu0 0
      %1618 = vmatpush1.bf16.msra.mxu0 0
      %1619 = vmatprep.subr.bf16.mxu0 0
      %1620 = vmatpush1.bf16.msra.mxu0 0
      %1621 = vmatprep.subr.bf16.mxu0 0
      %1622 = vmatpush1.bf16.msra.mxu0 0
      %1623 = vmatprep.subr.bf16.mxu0 0
      %1624 = vmatpush1.bf16.msra.mxu0 0
      %1625 = vmatprep.mubr.bf16.mxu0 0
      %1626 = vmatmul.mubr.bf16.gmra.mrb[0].mxu0 %v421
      %v1627 = vpop.f32.mrb[0].mxu0
      %v1628 = vadd.f32 0.0, %v1627
      %v1629 = vpop.f32.mrb[0].mxu0
      %v1630 = vpop.f32.mrb[0].mxu0
      %v1631 = vadd.f32 0.0, %v1630
      %v1632 = vpop.f32.mrb[0].mxu0
      %1633 = vmatprep.mubr.bf16.mxu0 0
      %1634 = vmatmul.mubr.bf16.gmra.mrb[0].mxu0 %v422
      %v1635 = vpop.f32.mrb[0].mxu0
      %v1636 = vadd.f32 0.0, %v1635
      %v1637 = vpop.f32.mrb[0].mxu0
      %v1638 = vpop.f32.mrb[0].mxu0
      %v1639 = vadd.f32 0.0, %v1638
      %v1640 = vpop.f32.mrb[0].mxu0
      %1641 = vmatprep.mubr.bf16.mxu0 0
      %1642 = vmatmul.mubr.bf16.gmra.mrb[0].mxu0 %v423
      %v1643 = vpop.f32.mrb[0].mxu0
      %v1644 = vadd.f32 0.0, %v1643
      %v1645 = vpop.f32.mrb[0].mxu0
      %v1646 = vpop.f32.mrb[0].mxu0
      %v1647 = vadd.f32 0.0, %v1646
      %v1648 = vpop.f32.mrb[0].mxu0
      %1649 = vmatprep.mubr.bf16.mxu0 0
      %1650 = vmatmul.mubr.bf16.gmra.mrb[0].mxu0 %v424
      %v1651 = vpop.f32.mrb[0].mxu0
      %v1652 = vadd.f32 0.0, %v1651
      %v1653 = vpop.f32.mrb[0].mxu0
      %v1654 = vpop.f32.mrb[0].mxu0
      %v1655 = vadd.f32 0.0, %v1654
      %v1656 = vpop.f32.mrb[0].mxu0
      %1657 = vmatprep.mubr.bf16.mxu0 0
      %1658 = vmatmul.mubr.bf16.gmra.mrb[0].mxu0 %v425
      %v1659 = vpop.f32.mrb[0].mxu0
      %v1660 = vadd.f32 0.0, %v1659
      %v1661 = vpop.f32.mrb[0].mxu0
      %v1662 = vpop.f32.mrb[0].mxu0
      %v1663 = vadd.f32 0.0, %v1662
      %v1664 = vpop.f32.mrb[0].mxu0
      %1665 = vmatprep.mubr.bf16.mxu0 0
      %1666 = vmatmul.mubr.bf16.gmra.mrb[0].mxu0 %v426
      %v1667 = vpop.f32.mrb[0].mxu0
      %v1668 = vadd.f32 0.0, %v1667
      %v1669 = vpop.f32.mrb[0].mxu0
      %v1670 = vpop.f32.mrb[0].mxu0
      %v1671 = vadd.f32 0.0, %v1670
      %v1672 = vpop.f32.mrb[0].mxu0
      %1673 = vmatprep.mubr.bf16.mxu0 0
      %1674 = vmatmul.mubr.bf16.gmra.mrb[0].mxu0 %v427
      %v1675 = vpop.f32.mrb[0].mxu0
      %v1676 = vadd.f32 0.0, %v1675
      %v1677 = vpop.f32.mrb[0].mxu0
      %v1678 = vpop.f32.mrb[0].mxu0
      %v1679 = vadd.f32 0.0, %v1678
      %v1680 = vpop.f32.mrb[0].mxu0
      %1681 = vmatprep.mubr.bf16.mxu0 0
      %1682 = vmatmul.mubr.bf16.gmra.mrb[0].mxu0 %v428
      %v1683 = vpop.f32.mrb[0].mxu0
      %v1684 = vadd.f32 0.0, %v1683
      %v1685 = vpop.f32.mrb[0].mxu0
      %v1686 = vpop.f32.mrb[0].mxu0
      %v1687 = vadd.f32 0.0, %v1686
      %v1688 = vpop.f32.mrb[0].mxu0
      %1689 = vmatprep.mubr.bf16.mxu0 0
      %1690 = vmatmul.mubr.bf16.gmra.mrb[0].mxu0 %v429
      %v1691 = vpop.f32.mrb[0].mxu0
      %v1692 = vadd.f32 0.0, %v1691
      %v1693 = vpop.f32.mrb[0].mxu0
      %v1694 = vpop.f32.mrb[0].mxu0
      %v1695 = vadd.f32 0.0, %v1694
      %v1696 = vpop.f32.mrb[0].mxu0
      %1697 = vmatprep.mubr.bf16.mxu0 0
      %1698 = vmatmul.mubr.bf16.gmra.mrb[0].mxu0 %v430
      %v1699 = vpop.f32.mrb[0].mxu0
      %v1700 = vadd.f32 0.0, %v1699
      %v1701 = vpop.f32.mrb[0].mxu0
      %v1702 = vpop.f32.mrb[0].mxu0
      %v1703 = vadd.f32 0.0, %v1702
      %v1704 = vpop.f32.mrb[0].mxu0
      %1705 = vmatprep.mubr.bf16.mxu0 0
      %1706 = vmatmul.mubr.bf16.gmra.mrb[0].mxu0 %v431
      %v1707 = vpop.f32.mrb[0].mxu0
      %v1708 = vadd.f32 0.0, %v1707
      %v1709 = vpop.f32.mrb[0].mxu0
      %v1710 = vpop.f32.mrb[0].mxu0
      %v1711 = vadd.f32 0.0, %v1710
      %v1712 = vpop.f32.mrb[0].mxu0
      %1713 = vmatprep.mubr.bf16.mxu0 0
      %1714 = vmatmul.mubr.bf16.gmra.mrb[0].mxu0 %v432
      %v1715 = vpop.f32.mrb[0].mxu0
      %v1716 = vadd.f32 0.0, %v1715
      %v1717 = vpop.f32.mrb[0].mxu0
      %v1718 = vpop.f32.mrb[0].mxu0
      %v1719 = vadd.f32 0.0, %v1718
      %v1720 = vpop.f32.mrb[0].mxu0
      %1721 = vmatprep.mubr.bf16.mxu0 0
      %1722 = vmatmul.mubr.bf16.gmra.mrb[0].mxu0 %v433
      %v1723 = vpop.f32.mrb[0].mxu0
      %v1724 = vadd.f32 0.0, %v1723
      %v1725 = vpop.f32.mrb[0].mxu0
      %v1726 = vpop.f32.mrb[0].mxu0
      %v1727 = vadd.f32 0.0, %v1726
      %v1728 = vpop.f32.mrb[0].mxu0
      %1729 = vmatprep.mubr.bf16.mxu0 0
      %1730 = vmatmul.mubr.bf16.gmra.mrb[0].mxu0 %v434
      %v1731 = vpop.f32.mrb[0].mxu0
      %v1732 = vadd.f32 0.0, %v1731
      %v1733 = vpop.f32.mrb[0].mxu0
      %v1734 = vpop.f32.mrb[0].mxu0
      %v1735 = vadd.f32 0.0, %v1734
      %v1736 = vpop.f32.mrb[0].mxu0
      %1737 = vmatprep.mubr.bf16.mxu0 0
      %1738 = vmatmul.mubr.bf16.gmra.mrb[0].mxu0 %v435
      %v1739 = vpop.f32.mrb[0].mxu0
      %v1740 = vadd.f32 0.0, %v1739
      %v1741 = vpop.f32.mrb[0].mxu0
      %v1742 = vpop.f32.mrb[0].mxu0
      %v1743 = vadd.f32 0.0, %v1742
      %v1744 = vpop.f32.mrb[0].mxu0
      %1745 = vmatprep.mubr.bf16.mxu0 0
      %1746 = vmatmul.mubr.bf16.gmra.mrb[0].mxu0 %v1527
      %v1747 = vpop.f32.mrb[0].mxu0
      %v1748 = vadd.f32 0.0, %v1747
      %v1749 = vpop.f32.mrb[0].mxu0
      %v1750 = vpop.f32.mrb[0].mxu0
      %v1751 = vadd.f32 0.0, %v1750
      %v1752 = vpop.f32.mrb[0].mxu0
      %1753 = vdwg.mxu0
      %v1754 = vadd.f32 %v1485, %v1628
      %v1755 = vadd.f32 %v1486, %v1631
      %v1756 = vadd.f32 %v1487, %v1636
      %v1757 = vadd.f32 %v1488, %v1639
      %v1758 = vadd.f32 %v1489, %v1644
      %v1759 = vadd.f32 %v1490, %v1647
      %v1760 = vadd.f32 %v1491, %v1652
      %v1761 = vadd.f32 %v1492, %v1655
      %v1762 = vadd.f32 %v1493, %v1660
      %v1763 = vadd.f32 %v1494, %v1663
      %v1764 = vadd.f32 %v1495, %v1668
      %v1765 = vadd.f32 %v1496, %v1671
      %v1766 = vadd.f32 %v1497, %v1676
      %v1767 = vadd.f32 %v1498, %v1679
      %v1768 = vadd.f32 %v1499, %v1684
      %v1769 = vadd.f32 %v1500, %v1687
      %v1770 = vadd.f32 %v1501, %v1692
      %v1771 = vadd.f32 %v1502, %v1695
      %v1772 = vadd.f32 %v1503, %v1700
      %v1773 = vadd.f32 %v1504, %v1703
      %v1774 = vadd.f32 %v1505, %v1708
      %v1775 = vadd.f32 %v1506, %v1711
      %v1776 = vadd.f32 %v1507, %v1716
      %v1777 = vadd.f32 %v1508, %v1719
      %v1778 = vadd.f32 %v1509, %v1724
      %v1779 = vadd.f32 %v1510, %v1727
      %v1780 = vadd.f32 %v1511, %v1732
      %v1781 = vadd.f32 %v1512, %v1735
      %v1782 = vadd.f32 %v1513, %v1740
      %v1783 = vadd.f32 %v1514, %v1743
      %v1784 = vadd.f32 %v1515, %v1748
      %v1785 = vadd.f32 %v1516, %v1751
      %v1786 = vrot.slane %v221, 2
      %v1787 = vrot.slane %v222, 2
      %v1788 = vsel %vm871, %v1786, %v1787
      %v1789 = vrot.slane %v223, 2
      %v1790 = vsel %vm871, %v1787, %v1789
      %v1793 = vpack.c.bf16 %v1790, %v1788
      %s1794 = scalar_lea.vmem %s1, 320
      %v1795 = vld [vmem:[%s1794] sm:$0xf]
      %v1796 = vld [vmem:[%s1794 + $0x4] sm:$0xf]
      %v1797 = vld [vmem:[%s1794 + $0x8] sm:$0xf]
      %v1798 = vld [vmem:[%s1794 + $0xc] sm:$0xf]
      %v1799 = vld [vmem:[%s1794 + $0x10] sm:$0xf]
      %v1800 = vld [vmem:[%s1794 + $0x14] sm:$0xf]
      %v1801 = vld [vmem:[%s1794 + $0x18] sm:$0xf]
      %v1802 = vld [vmem:[%s1794 + $0x1c] sm:$0xf]
      %v1803 = vld [vmem:[%s1794 + $0x20] sm:$0xf]
      %v1804 = vld [vmem:[%s1794 + $0x24] sm:$0xf]
      %v1805 = vld [vmem:[%s1794 + $0x28] sm:$0xf]
      %v1806 = vld [vmem:[%s1794 + $0x2c] sm:$0xf]
      %v1807 = vld [vmem:[%s1794 + $0x30] sm:$0xf]
      %v1808 = vld [vmem:[%s1794 + $0x34] sm:$0xf]
      %v1809 = vld [vmem:[%s1794 + $0x38] sm:$0xf]
      %v1810 = vld [vmem:[%s1794 + $0x3c] sm:$0xf]
      %v1827 = vunpack.c.l.b16 %v1795
      %v1828 = vunpack.c.l.b16 %v1796
      %v1829 = vunpack.c.l.b16 %v1797
      %v1830 = vunpack.c.l.b16 %v1798
      %v1831 = vunpack.c.l.b16 %v1799
      %v1832 = vunpack.c.l.b16 %v1800
      %v1833 = vunpack.c.l.b16 %v1801
      %v1834 = vunpack.c.l.b16 %v1802
      %v1835 = vunpack.c.l.b16 %v1803
      %v1836 = vunpack.c.l.b16 %v1804
      %v1837 = vunpack.c.l.b16 %v1805
      %v1838 = vunpack.c.l.b16 %v1806
      %v1839 = vunpack.c.l.b16 %v1807
      %v1840 = vunpack.c.l.b16 %v1808
      %v1841 = vunpack.c.l.b16 %v1809
      %v1842 = vunpack.c.l.b16 %v1810
      %v1843 = vpack.c.b16 %v1828, %v1827
      %v1844 = vpack.c.b16 %v1830, %v1829
      %v1845 = vpack.c.b16 %v1832, %v1831
      %v1846 = vpack.c.b16 %v1834, %v1833
      %v1847 = vpack.c.b16 %v1836, %v1835
      %v1848 = vpack.c.b16 %v1838, %v1837
      %v1849 = vpack.c.b16 %v1840, %v1839
      %v1850 = vpack.c.b16 %v1842, %v1841
      %1859 = vmatprep.subr.bf16.mxu0 0
      %1860 = vmatpush1.bf16.msra.mxu0 %v1843
      %1861 = vmatprep.subr.bf16.mxu0 0
      %1862 = vmatpush1.bf16.msra.mxu0 %v1844
      %1863 = vmatprep.subr.bf16.mxu0 0
      %1864 = vmatpush1.bf16.msra.mxu0 %v1845
      %1865 = vmatprep.subr.bf16.mxu0 0
      %1866 = vmatpush1.bf16.msra.mxu0 %v1846
      %1867 = vmatprep.subr.bf16.mxu0 0
      %1868 = vmatpush1.bf16.msra.mxu0 %v1847
      %1869 = vmatprep.subr.bf16.mxu0 0
      %1870 = vmatpush1.bf16.msra.mxu0 %v1848
      %1871 = vmatprep.subr.bf16.mxu0 0
      %1872 = vmatpush1.bf16.msra.mxu0 %v1849
      %1873 = vmatprep.subr.bf16.mxu0 0
      %1874 = vmatpush1.bf16.msra.mxu0 %v1850
      %1875 = vmatprep.subr.bf16.mxu0 0
      %1876 = vmatpush1.bf16.msra.mxu0 0
      %1877 = vmatprep.subr.bf16.mxu0 0
      %1878 = vmatpush1.bf16.msra.mxu0 0
      %1879 = vmatprep.subr.bf16.mxu0 0
      %1880 = vmatpush1.bf16.msra.mxu0 0
      %1881 = vmatprep.subr.bf16.mxu0 0
      %1882 = vmatpush1.bf16.msra.mxu0 0
      %1883 = vmatprep.subr.bf16.mxu0 0
      %1884 = vmatpush1.bf16.msra.mxu0 0
      %1885 = vmatprep.subr.bf16.mxu0 0
      %1886 = vmatpush1.bf16.msra.mxu0 0
      %1887 = vmatprep.subr.bf16.mxu0 0
      %1888 = vmatpush1.bf16.msra.mxu0 0
      %1889 = vmatprep.subr.bf16.mxu0 0
      %1890 = vmatpush1.bf16.msra.mxu0 0
      %1891 = vmatprep.mubr.bf16.mxu0 0
      %1892 = vmatmul.mubr.bf16.gmra.mrb[0].mxu0 %v985
      %v1893 = vpop.f32.mrb[0].mxu0
      %v1894 = vadd.f32 0.0, %v1893
      %v1895 = vpop.f32.mrb[0].mxu0
      %v1896 = vpop.f32.mrb[0].mxu0
      %v1897 = vadd.f32 0.0, %v1896
      %v1898 = vpop.f32.mrb[0].mxu0
      %1899 = vmatprep.mubr.bf16.mxu0 0
      %1900 = vmatmul.mubr.bf16.gmra.mrb[0].mxu0 %v986
      %v1901 = vpop.f32.mrb[0].mxu0
      %v1902 = vadd.f32 0.0, %v1901
      %v1903 = vpop.f32.mrb[0].mxu0
      %v1904 = vpop.f32.mrb[0].mxu0
      %v1905 = vadd.f32 0.0, %v1904
      %v1906 = vpop.f32.mrb[0].mxu0
      %1907 = vmatprep.mubr.bf16.mxu0 0
      %1908 = vmatmul.mubr.bf16.gmra.mrb[0].mxu0 %v987
      %v1909 = vpop.f32.mrb[0].mxu0
      %v1910 = vadd.f32 0.0, %v1909
      %v1911 = vpop.f32.mrb[0].mxu0
      %v1912 = vpop.f32.mrb[0].mxu0
      %v1913 = vadd.f32 0.0, %v1912
      %v1914 = vpop.f32.mrb[0].mxu0
      %1915 = vmatprep.mubr.bf16.mxu0 0
      %1916 = vmatmul.mubr.bf16.gmra.mrb[0].mxu0 %v988
      %v1917 = vpop.f32.mrb[0].mxu0
      %v1918 = vadd.f32 0.0, %v1917
      %v1919 = vpop.f32.mrb[0].mxu0
      %v1920 = vpop.f32.mrb[0].mxu0
      %v1921 = vadd.f32 0.0, %v1920
      %v1922 = vpop.f32.mrb[0].mxu0
      %1923 = vmatprep.mubr.bf16.mxu0 0
      %1924 = vmatmul.mubr.bf16.gmra.mrb[0].mxu0 %v989
      %v1925 = vpop.f32.mrb[0].mxu0
      %v1926 = vadd.f32 0.0, %v1925
      %v1927 = vpop.f32.mrb[0].mxu0
      %v1928 = vpop.f32.mrb[0].mxu0
      %v1929 = vadd.f32 0.0, %v1928
      %v1930 = vpop.f32.mrb[0].mxu0
      %1931 = vmatprep.mubr.bf16.mxu0 0
      %1932 = vmatmul.mubr.bf16.gmra.mrb[0].mxu0 %v990
      %v1933 = vpop.f32.mrb[0].mxu0
      %v1934 = vadd.f32 0.0, %v1933
      %v1935 = vpop.f32.mrb[0].mxu0
      %v1936 = vpop.f32.mrb[0].mxu0
      %v1937 = vadd.f32 0.0, %v1936
      %v1938 = vpop.f32.mrb[0].mxu0
      %1939 = vmatprep.mubr.bf16.mxu0 0
      %1940 = vmatmul.mubr.bf16.gmra.mrb[0].mxu0 %v991
      %v1941 = vpop.f32.mrb[0].mxu0
      %v1942 = vadd.f32 0.0, %v1941
      %v1943 = vpop.f32.mrb[0].mxu0
      %v1944 = vpop.f32.mrb[0].mxu0
      %v1945 = vadd.f32 0.0, %v1944
      %v1946 = vpop.f32.mrb[0].mxu0
      %1947 = vmatprep.mubr.bf16.mxu0 0
      %1948 = vmatmul.mubr.bf16.gmra.mrb[0].mxu0 %v992
      %v1949 = vpop.f32.mrb[0].mxu0
      %v1950 = vadd.f32 0.0, %v1949
      %v1951 = vpop.f32.mrb[0].mxu0
      %v1952 = vpop.f32.mrb[0].mxu0
      %v1953 = vadd.f32 0.0, %v1952
      %v1954 = vpop.f32.mrb[0].mxu0
      %1955 = vmatprep.mubr.bf16.mxu0 0
      %1956 = vmatmul.mubr.bf16.gmra.mrb[0].mxu0 %v993
      %v1957 = vpop.f32.mrb[0].mxu0
      %v1958 = vadd.f32 0.0, %v1957
      %v1959 = vpop.f32.mrb[0].mxu0
      %v1960 = vpop.f32.mrb[0].mxu0
      %v1961 = vadd.f32 0.0, %v1960
      %v1962 = vpop.f32.mrb[0].mxu0
      %1963 = vmatprep.mubr.bf16.mxu0 0
      %1964 = vmatmul.mubr.bf16.gmra.mrb[0].mxu0 %v994
      %v1965 = vpop.f32.mrb[0].mxu0
      %v1966 = vadd.f32 0.0, %v1965
      %v1967 = vpop.f32.mrb[0].mxu0
      %v1968 = vpop.f32.mrb[0].mxu0
      %v1969 = vadd.f32 0.0, %v1968
      %v1970 = vpop.f32.mrb[0].mxu0
      %1971 = vmatprep.mubr.bf16.mxu0 0
      %1972 = vmatmul.mubr.bf16.gmra.mrb[0].mxu0 %v995
      %v1973 = vpop.f32.mrb[0].mxu0
      %v1974 = vadd.f32 0.0, %v1973
      %v1975 = vpop.f32.mrb[0].mxu0
      %v1976 = vpop.f32.mrb[0].mxu0
      %v1977 = vadd.f32 0.0, %v1976
      %v1978 = vpop.f32.mrb[0].mxu0
      %1979 = vmatprep.mubr.bf16.mxu0 0
      %1980 = vmatmul.mubr.bf16.gmra.mrb[0].mxu0 %v996
      %v1981 = vpop.f32.mrb[0].mxu0
      %v1982 = vadd.f32 0.0, %v1981
      %v1983 = vpop.f32.mrb[0].mxu0
      %v1984 = vpop.f32.mrb[0].mxu0
      %v1985 = vadd.f32 0.0, %v1984
      %v1986 = vpop.f32.mrb[0].mxu0
      %1987 = vmatprep.mubr.bf16.mxu0 0
      %1988 = vmatmul.mubr.bf16.gmra.mrb[0].mxu0 %v997
      %v1989 = vpop.f32.mrb[0].mxu0
      %v1990 = vadd.f32 0.0, %v1989
      %v1991 = vpop.f32.mrb[0].mxu0
      %v1992 = vpop.f32.mrb[0].mxu0
      %v1993 = vadd.f32 0.0, %v1992
      %v1994 = vpop.f32.mrb[0].mxu0
      %1995 = vmatprep.mubr.bf16.mxu0 0
      %1996 = vmatmul.mubr.bf16.gmra.mrb[0].mxu0 %v998
      %v1997 = vpop.f32.mrb[0].mxu0
      %v1998 = vadd.f32 0.0, %v1997
      %v1999 = vpop.f32.mrb[0].mxu0
      %v2000 = vpop.f32.mrb[0].mxu0
      %v2001 = vadd.f32 0.0, %v2000
      %v2002 = vpop.f32.mrb[0].mxu0
      %2003 = vmatprep.mubr.bf16.mxu0 0
      %2004 = vmatmul.mubr.bf16.gmra.mrb[0].mxu0 %v999
      %v2005 = vpop.f32.mrb[0].mxu0
      %v2006 = vadd.f32 0.0, %v2005
      %v2007 = vpop.f32.mrb[0].mxu0
      %v2008 = vpop.f32.mrb[0].mxu0
      %v2009 = vadd.f32 0.0, %v2008
      %v2010 = vpop.f32.mrb[0].mxu0
      %2011 = vmatprep.mubr.bf16.mxu0 0
      %2012 = vmatmul.mubr.bf16.gmra.mrb[0].mxu0 %v1793
      %v2013 = vpop.f32.mrb[0].mxu0
      %v2014 = vadd.f32 0.0, %v2013
      %v2015 = vpop.f32.mrb[0].mxu0
      %v2016 = vpop.f32.mrb[0].mxu0
      %v2017 = vadd.f32 0.0, %v2016
      %v2018 = vpop.f32.mrb[0].mxu0
      %2019 = vdwg.mxu0
      %v2020 = vadd.f32 %v1754, %v1894
      %v2021 = vadd.f32 %v1755, %v1897
      %v2022 = vadd.f32 %v1756, %v1902
      %v2023 = vadd.f32 %v1757, %v1905
      %v2024 = vadd.f32 %v1758, %v1910
      %v2025 = vadd.f32 %v1759, %v1913
      %v2026 = vadd.f32 %v1760, %v1918
      %v2027 = vadd.f32 %v1761, %v1921
      %v2028 = vadd.f32 %v1762, %v1926
      %v2029 = vadd.f32 %v1763, %v1929
      %v2030 = vadd.f32 %v1764, %v1934
      %v2031 = vadd.f32 %v1765, %v1937
      %v2032 = vadd.f32 %v1766, %v1942
      %v2033 = vadd.f32 %v1767, %v1945
      %v2034 = vadd.f32 %v1768, %v1950
      %v2035 = vadd.f32 %v1769, %v1953
      %v2036 = vadd.f32 %v1770, %v1958
      %v2037 = vadd.f32 %v1771, %v1961
      %v2038 = vadd.f32 %v1772, %v1966
      %v2039 = vadd.f32 %v1773, %v1969
      %v2040 = vadd.f32 %v1774, %v1974
      %v2041 = vadd.f32 %v1775, %v1977
      %v2042 = vadd.f32 %v1776, %v1982
      %v2043 = vadd.f32 %v1777, %v1985
      %v2044 = vadd.f32 %v1778, %v1990
      %v2045 = vadd.f32 %v1779, %v1993
      %v2046 = vadd.f32 %v1780, %v1998
      %v2047 = vadd.f32 %v1781, %v2001
      %v2048 = vadd.f32 %v1782, %v2006
      %v2049 = vadd.f32 %v1783, %v2009
      %v2050 = vadd.f32 %v1784, %v2014
      %v2051 = vadd.f32 %v1785, %v2017
      %v2052 = vpack.c.bf16 %v225, %v224
      %s2053 = scalar_lea.vmem %s1, 384
      %v2054 = vld [vmem:[%s2053] sm:$0xf]
      %v2055 = vld [vmem:[%s2053 + $0x4] sm:$0xf]
      %v2056 = vld [vmem:[%s2053 + $0x8] sm:$0xf]
      %v2057 = vld [vmem:[%s2053 + $0xc] sm:$0xf]
      %v2058 = vld [vmem:[%s2053 + $0x10] sm:$0xf]
      %v2059 = vld [vmem:[%s2053 + $0x14] sm:$0xf]
      %v2060 = vld [vmem:[%s2053 + $0x18] sm:$0xf]
      %v2061 = vld [vmem:[%s2053 + $0x1c] sm:$0xf]
      %v2062 = vld [vmem:[%s2053 + $0x20] sm:$0xf]
      %v2063 = vld [vmem:[%s2053 + $0x24] sm:$0xf]
      %v2064 = vld [vmem:[%s2053 + $0x28] sm:$0xf]
      %v2065 = vld [vmem:[%s2053 + $0x2c] sm:$0xf]
      %v2066 = vld [vmem:[%s2053 + $0x30] sm:$0xf]
      %v2067 = vld [vmem:[%s2053 + $0x34] sm:$0xf]
      %v2068 = vld [vmem:[%s2053 + $0x38] sm:$0xf]
      %v2069 = vld [vmem:[%s2053 + $0x3c] sm:$0xf]
      %v2086 = vunpack.c.l.b16 %v2054
      %v2087 = vunpack.c.l.b16 %v2055
      %v2088 = vunpack.c.l.b16 %v2056
      %v2089 = vunpack.c.l.b16 %v2057
      %v2090 = vunpack.c.l.b16 %v2058
      %v2091 = vunpack.c.l.b16 %v2059
      %v2092 = vunpack.c.l.b16 %v2060
      %v2093 = vunpack.c.l.b16 %v2061
      %v2094 = vunpack.c.l.b16 %v2062
      %v2095 = vunpack.c.l.b16 %v2063
      %v2096 = vunpack.c.l.b16 %v2064
      %v2097 = vunpack.c.l.b16 %v2065
      %v2098 = vunpack.c.l.b16 %v2066
      %v2099 = vunpack.c.l.b16 %v2067
      %v2100 = vunpack.c.l.b16 %v2068
      %v2101 = vunpack.c.l.b16 %v2069
      %v2102 = vpack.c.b16 %v2087, %v2086
      %v2103 = vpack.c.b16 %v2089, %v2088
      %v2104 = vpack.c.b16 %v2091, %v2090
      %v2105 = vpack.c.b16 %v2093, %v2092
      %v2106 = vpack.c.b16 %v2095, %v2094
      %v2107 = vpack.c.b16 %v2097, %v2096
      %v2108 = vpack.c.b16 %v2099, %v2098
      %v2109 = vpack.c.b16 %v2101, %v2100
      %2118 = vmatprep.subr.bf16.mxu0 0
      %2119 = vmatpush1.bf16.msra.mxu0 %v2102
      %2120 = vmatprep.subr.bf16.mxu0 0
      %2121 = vmatpush1.bf16.msra.mxu0 %v2103
      %2122 = vmatprep.subr.bf16.mxu0 0
      %2123 = vmatpush1.bf16.msra.mxu0 %v2104
      %2124 = vmatprep.subr.bf16.mxu0 0
      %2125 = vmatpush1.bf16.msra.mxu0 %v2105
      %2126 = vmatprep.subr.bf16.mxu0 0
      %2127 = vmatpush1.bf16.msra.mxu0 %v2106
      %2128 = vmatprep.subr.bf16.mxu0 0
      %2129 = vmatpush1.bf16.msra.mxu0 %v2107
      %2130 = vmatprep.subr.bf16.mxu0 0
      %2131 = vmatpush1.bf16.msra.mxu0 %v2108
      %2132 = vmatprep.subr.bf16.mxu0 0
      %2133 = vmatpush1.bf16.msra.mxu0 %v2109
      %2134 = vmatprep.subr.bf16.mxu0 0
      %2135 = vmatpush1.bf16.msra.mxu0 0
      %2136 = vmatprep.subr.bf16.mxu0 0
      %2137 = vmatpush1.bf16.msra.mxu0 0
      %2138 = vmatprep.subr.bf16.mxu0 0
      %2139 = vmatpush1.bf16.msra.mxu0 0
      %2140 = vmatprep.subr.bf16.mxu0 0
      %2141 = vmatpush1.bf16.msra.mxu0 0
      %2142 = vmatprep.subr.bf16.mxu0 0
      %2143 = vmatpush1.bf16.msra.mxu0 0
      %2144 = vmatprep.subr.bf16.mxu0 0
      %2145 = vmatpush1.bf16.msra.mxu0 0
      %2146 = vmatprep.subr.bf16.mxu0 0
      %2147 = vmatpush1.bf16.msra.mxu0 0
      %2148 = vmatprep.subr.bf16.mxu0 0
      %2149 = vmatpush1.bf16.msra.mxu0 0
      %2150 = vmatprep.mubr.bf16.mxu0 0
      %2151 = vmatmul.mubr.bf16.gmra.mrb[0].mxu0 %v229
      %v2152 = vpop.f32.mrb[0].mxu0
      %v2153 = vadd.f32 0.0, %v2152
      %v2154 = vpop.f32.mrb[0].mxu0
      %v2155 = vpop.f32.mrb[0].mxu0
      %v2156 = vadd.f32 0.0, %v2155
      %v2157 = vpop.f32.mrb[0].mxu0
      %2158 = vmatprep.mubr.bf16.mxu0 0
      %2159 = vmatmul.mubr.bf16.gmra.mrb[0].mxu0 %v230
      %v2160 = vpop.f32.mrb[0].mxu0
      %v2161 = vadd.f32 0.0, %v2160
      %v2162 = vpop.f32.mrb[0].mxu0
      %v2163 = vpop.f32.mrb[0].mxu0
      %v2164 = vadd.f32 0.0, %v2163
      %v2165 = vpop.f32.mrb[0].mxu0
      %2166 = vmatprep.mubr.bf16.mxu0 0
      %2167 = vmatmul.mubr.bf16.gmra.mrb[0].mxu0 %v231
      %v2168 = vpop.f32.mrb[0].mxu0
      %v2169 = vadd.f32 0.0, %v2168
      %v2170 = vpop.f32.mrb[0].mxu0
      %v2171 = vpop.f32.mrb[0].mxu0
      %v2172 = vadd.f32 0.0, %v2171
      %v2173 = vpop.f32.mrb[0].mxu0
      %2174 = vmatprep.mubr.bf16.mxu0 0
      %2175 = vmatmul.mubr.bf16.gmra.mrb[0].mxu0 %v232
      %v2176 = vpop.f32.mrb[0].mxu0
      %v2177 = vadd.f32 0.0, %v2176
      %v2178 = vpop.f32.mrb[0].mxu0
      %v2179 = vpop.f32.mrb[0].mxu0
      %v2180 = vadd.f32 0.0, %v2179
      %v2181 = vpop.f32.mrb[0].mxu0
      %2182 = vmatprep.mubr.bf16.mxu0 0
      %2183 = vmatmul.mubr.bf16.gmra.mrb[0].mxu0 %v233
      %v2184 = vpop.f32.mrb[0].mxu0
      %v2185 = vadd.f32 0.0, %v2184
      %v2186 = vpop.f32.mrb[0].mxu0
      %v2187 = vpop.f32.mrb[0].mxu0
      %v2188 = vadd.f32 0.0, %v2187
      %v2189 = vpop.f32.mrb[0].mxu0
      %2190 = vmatprep.mubr.bf16.mxu0 0
      %2191 = vmatmul.mubr.bf16.gmra.mrb[0].mxu0 %v234
      %v2192 = vpop.f32.mrb[0].mxu0
      %v2193 = vadd.f32 0.0, %v2192
      %v2194 = vpop.f32.mrb[0].mxu0
      %v2195 = vpop.f32.mrb[0].mxu0
      %v2196 = vadd.f32 0.0, %v2195
      %v2197 = vpop.f32.mrb[0].mxu0
      %2198 = vmatprep.mubr.bf16.mxu0 0
      %2199 = vmatmul.mubr.bf16.gmra.mrb[0].mxu0 %v235
      %v2200 = vpop.f32.mrb[0].mxu0
      %v2201 = vadd.f32 0.0, %v2200
      %v2202 = vpop.f32.mrb[0].mxu0
      %v2203 = vpop.f32.mrb[0].mxu0
      %v2204 = vadd.f32 0.0, %v2203
      %v2205 = vpop.f32.mrb[0].mxu0
      %2206 = vmatprep.mubr.bf16.mxu0 0
      %2207 = vmatmul.mubr.bf16.gmra.mrb[0].mxu0 %v236
      %v2208 = vpop.f32.mrb[0].mxu0
      %v2209 = vadd.f32 0.0, %v2208
      %v2210 = vpop.f32.mrb[0].mxu0
      %v2211 = vpop.f32.mrb[0].mxu0
      %v2212 = vadd.f32 0.0, %v2211
      %v2213 = vpop.f32.mrb[0].mxu0
      %2214 = vmatprep.mubr.bf16.mxu0 0
      %2215 = vmatmul.mubr.bf16.gmra.mrb[0].mxu0 %v237
      %v2216 = vpop.f32.mrb[0].mxu0
      %v2217 = vadd.f32 0.0, %v2216
      %v2218 = vpop.f32.mrb[0].mxu0
      %v2219 = vpop.f32.mrb[0].mxu0
      %v2220 = vadd.f32 0.0, %v2219
      %v2221 = vpop.f32.mrb[0].mxu0
      %2222 = vmatprep.mubr.bf16.mxu0 0
      %2223 = vmatmul.mubr.bf16.gmra.mrb[0].mxu0 %v238
      %v2224 = vpop.f32.mrb[0].mxu0
      %v2225 = vadd.f32 0.0, %v2224
      %v2226 = vpop.f32.mrb[0].mxu0
      %v2227 = vpop.f32.mrb[0].mxu0
      %v2228 = vadd.f32 0.0, %v2227
      %v2229 = vpop.f32.mrb[0].mxu0
      %2230 = vmatprep.mubr.bf16.mxu0 0
      %2231 = vmatmul.mubr.bf16.gmra.mrb[0].mxu0 %v239
      %v2232 = vpop.f32.mrb[0].mxu0
      %v2233 = vadd.f32 0.0, %v2232
      %v2234 = vpop.f32.mrb[0].mxu0
      %v2235 = vpop.f32.mrb[0].mxu0
      %v2236 = vadd.f32 0.0, %v2235
      %v2237 = vpop.f32.mrb[0].mxu0
      %2238 = vmatprep.mubr.bf16.mxu0 0
      %2239 = vmatmul.mubr.bf16.gmra.mrb[0].mxu0 %v240
      %v2240 = vpop.f32.mrb[0].mxu0
      %v2241 = vadd.f32 0.0, %v2240
      %v2242 = vpop.f32.mrb[0].mxu0
      %v2243 = vpop.f32.mrb[0].mxu0
      %v2244 = vadd.f32 0.0, %v2243
      %v2245 = vpop.f32.mrb[0].mxu0
      %2246 = vmatprep.mubr.bf16.mxu0 0
      %2247 = vmatmul.mubr.bf16.gmra.mrb[0].mxu0 %v241
      %v2248 = vpop.f32.mrb[0].mxu0
      %v2249 = vadd.f32 0.0, %v2248
      %v2250 = vpop.f32.mrb[0].mxu0
      %v2251 = vpop.f32.mrb[0].mxu0
      %v2252 = vadd.f32 0.0, %v2251
      %v2253 = vpop.f32.mrb[0].mxu0
      %2254 = vmatprep.mubr.bf16.mxu0 0
      %2255 = vmatmul.mubr.bf16.gmra.mrb[0].mxu0 %v242
      %v2256 = vpop.f32.mrb[0].mxu0
      %v2257 = vadd.f32 0.0, %v2256
      %v2258 = vpop.f32.mrb[0].mxu0
      %v2259 = vpop.f32.mrb[0].mxu0
      %v2260 = vadd.f32 0.0, %v2259
      %v2261 = vpop.f32.mrb[0].mxu0
      %2262 = vmatprep.mubr.bf16.mxu0 0
      %2263 = vmatmul.mubr.bf16.gmra.mrb[0].mxu0 %v1258
      %v2264 = vpop.f32.mrb[0].mxu0
      %v2265 = vadd.f32 0.0, %v2264
      %v2266 = vpop.f32.mrb[0].mxu0
      %v2267 = vpop.f32.mrb[0].mxu0
      %v2268 = vadd.f32 0.0, %v2267
      %v2269 = vpop.f32.mrb[0].mxu0
      %2270 = vmatprep.mubr.bf16.mxu0 0
      %2271 = vmatmul.mubr.bf16.gmra.mrb[0].mxu0 %v2052
      %v2272 = vpop.f32.mrb[0].mxu0
      %v2273 = vadd.f32 0.0, %v2272
      %v2274 = vpop.f32.mrb[0].mxu0
      %v2275 = vpop.f32.mrb[0].mxu0
      %v2276 = vadd.f32 0.0, %v2275
      %v2277 = vpop.f32.mrb[0].mxu0
      %2278 = vdwg.mxu0
      %v2279 = vadd.f32 %v2020, %v2153
      %v2280 = vadd.f32 %v2021, %v2156
      %v2281 = vadd.f32 %v2022, %v2161
      %v2282 = vadd.f32 %v2023, %v2164
      %v2283 = vadd.f32 %v2024, %v2169
      %v2284 = vadd.f32 %v2025, %v2172
      %v2285 = vadd.f32 %v2026, %v2177
      %v2286 = vadd.f32 %v2027, %v2180
      %v2287 = vadd.f32 %v2028, %v2185
      %v2288 = vadd.f32 %v2029, %v2188
      %v2289 = vadd.f32 %v2030, %v2193
      %v2290 = vadd.f32 %v2031, %v2196
      %v2291 = vadd.f32 %v2032, %v2201
      %v2292 = vadd.f32 %v2033, %v2204
      %v2293 = vadd.f32 %v2034, %v2209
      %v2294 = vadd.f32 %v2035, %v2212
      %v2295 = vadd.f32 %v2036, %v2217
      %v2296 = vadd.f32 %v2037, %v2220
      %v2297 = vadd.f32 %v2038, %v2225
      %v2298 = vadd.f32 %v2039, %v2228
      %v2299 = vadd.f32 %v2040, %v2233
      %v2300 = vadd.f32 %v2041, %v2236
      %v2301 = vadd.f32 %v2042, %v2241
      %v2302 = vadd.f32 %v2043, %v2244
      %v2303 = vadd.f32 %v2044, %v2249
      %v2304 = vadd.f32 %v2045, %v2252
      %v2305 = vadd.f32 %v2046, %v2257
      %v2306 = vadd.f32 %v2047, %v2260
      %v2307 = vadd.f32 %v2048, %v2265
      %v2308 = vadd.f32 %v2049, %v2268
      %v2309 = vadd.f32 %v2050, %v2273
      %v2310 = vadd.f32 %v2051, %v2276
      %v2314 = vrot.slane %v224, 1
      %v2315 = vrot.slane %v225, 1
      %v2316 = vsel %vm307, %v2314, %v2315
      %v2317 = vrot.slane %v226, 1
      %v2318 = vsel %vm307, %v2315, %v2317
      %v2321 = vpack.c.bf16 %v2318, %v2316
      %s2322 = scalar_lea.vmem %s1, 448
      %v2323 = vld [vmem:[%s2322] sm:$0xf]
      %v2324 = vld [vmem:[%s2322 + $0x4] sm:$0xf]
      %v2325 = vld [vmem:[%s2322 + $0x8] sm:$0xf]
      %v2326 = vld [vmem:[%s2322 + $0xc] sm:$0xf]
      %v2327 = vld [vmem:[%s2322 + $0x10] sm:$0xf]
      %v2328 = vld [vmem:[%s2322 + $0x14] sm:$0xf]
      %v2329 = vld [vmem:[%s2322 + $0x18] sm:$0xf]
      %v2330 = vld [vmem:[%s2322 + $0x1c] sm:$0xf]
      %v2331 = vld [vmem:[%s2322 + $0x20] sm:$0xf]
      %v2332 = vld [vmem:[%s2322 + $0x24] sm:$0xf]
      %v2333 = vld [vmem:[%s2322 + $0x28] sm:$0xf]
      %v2334 = vld [vmem:[%s2322 + $0x2c] sm:$0xf]
      %v2335 = vld [vmem:[%s2322 + $0x30] sm:$0xf]
      %v2336 = vld [vmem:[%s2322 + $0x34] sm:$0xf]
      %v2337 = vld [vmem:[%s2322 + $0x38] sm:$0xf]
      %v2338 = vld [vmem:[%s2322 + $0x3c] sm:$0xf]
      %v2355 = vunpack.c.l.b16 %v2323
      %v2356 = vunpack.c.l.b16 %v2324
      %v2357 = vunpack.c.l.b16 %v2325
      %v2358 = vunpack.c.l.b16 %v2326
      %v2359 = vunpack.c.l.b16 %v2327
      %v2360 = vunpack.c.l.b16 %v2328
      %v2361 = vunpack.c.l.b16 %v2329
      %v2362 = vunpack.c.l.b16 %v2330
      %v2363 = vunpack.c.l.b16 %v2331
      %v2364 = vunpack.c.l.b16 %v2332
      %v2365 = vunpack.c.l.b16 %v2333
      %v2366 = vunpack.c.l.b16 %v2334
      %v2367 = vunpack.c.l.b16 %v2335
      %v2368 = vunpack.c.l.b16 %v2336
      %v2369 = vunpack.c.l.b16 %v2337
      %v2370 = vunpack.c.l.b16 %v2338
      %v2371 = vpack.c.b16 %v2356, %v2355
      %v2372 = vpack.c.b16 %v2358, %v2357
      %v2373 = vpack.c.b16 %v2360, %v2359
      %v2374 = vpack.c.b16 %v2362, %v2361
      %v2375 = vpack.c.b16 %v2364, %v2363
      %v2376 = vpack.c.b16 %v2366, %v2365
      %v2377 = vpack.c.b16 %v2368, %v2367
      %v2378 = vpack.c.b16 %v2370, %v2369
      %2387 = vmatprep.subr.bf16.mxu0 0
      %2388 = vmatpush1.bf16.msra.mxu0 %v2371
      %2389 = vmatprep.subr.bf16.mxu0 0
      %2390 = vmatpush1.bf16.msra.mxu0 %v2372
      %2391 = vmatprep.subr.bf16.mxu0 0
      %2392 = vmatpush1.bf16.msra.mxu0 %v2373
      %2393 = vmatprep.subr.bf16.mxu0 0
      %2394 = vmatpush1.bf16.msra.mxu0 %v2374
      %2395 = vmatprep.subr.bf16.mxu0 0
      %2396 = vmatpush1.bf16.msra.mxu0 %v2375
      %2397 = vmatprep.subr.bf16.mxu0 0
      %2398 = vmatpush1.bf16.msra.mxu0 %v2376
      %2399 = vmatprep.subr.bf16.mxu0 0
      %2400 = vmatpush1.bf16.msra.mxu0 %v2377
      %2401 = vmatprep.subr.bf16.mxu0 0
      %2402 = vmatpush1.bf16.msra.mxu0 %v2378
      %2403 = vmatprep.subr.bf16.mxu0 0
      %2404 = vmatpush1.bf16.msra.mxu0 0
      %2405 = vmatprep.subr.bf16.mxu0 0
      %2406 = vmatpush1.bf16.msra.mxu0 0
      %2407 = vmatprep.subr.bf16.mxu0 0
      %2408 = vmatpush1.bf16.msra.mxu0 0
      %2409 = vmatprep.subr.bf16.mxu0 0
      %2410 = vmatpush1.bf16.msra.mxu0 0
      %2411 = vmatprep.subr.bf16.mxu0 0
      %2412 = vmatpush1.bf16.msra.mxu0 0
      %2413 = vmatprep.subr.bf16.mxu0 0
      %2414 = vmatpush1.bf16.msra.mxu0 0
      %2415 = vmatprep.subr.bf16.mxu0 0
      %2416 = vmatpush1.bf16.msra.mxu0 0
      %2417 = vmatprep.subr.bf16.mxu0 0
      %2418 = vmatpush1.bf16.msra.mxu0 0
      %2419 = vmatprep.mubr.bf16.mxu0 0
      %2420 = vmatmul.mubr.bf16.gmra.mrb[0].mxu0 %v422
      %v2421 = vpop.f32.mrb[0].mxu0
      %v2422 = vadd.f32 0.0, %v2421
      %v2423 = vpop.f32.mrb[0].mxu0
      %v2424 = vpop.f32.mrb[0].mxu0
      %v2425 = vadd.f32 0.0, %v2424
      %v2426 = vpop.f32.mrb[0].mxu0
      %2427 = vmatprep.mubr.bf16.mxu0 0
      %2428 = vmatmul.mubr.bf16.gmra.mrb[0].mxu0 %v423
      %v2429 = vpop.f32.mrb[0].mxu0
      %v2430 = vadd.f32 0.0, %v2429
      %v2431 = vpop.f32.mrb[0].mxu0
      %v2432 = vpop.f32.mrb[0].mxu0
      %v2433 = vadd.f32 0.0, %v2432
      %v2434 = vpop.f32.mrb[0].mxu0
      %2435 = vmatprep.mubr.bf16.mxu0 0
      %2436 = vmatmul.mubr.bf16.gmra.mrb[0].mxu0 %v424
      %v2437 = vpop.f32.mrb[0].mxu0
      %v2438 = vadd.f32 0.0, %v2437
      %v2439 = vpop.f32.mrb[0].mxu0
      %v2440 = vpop.f32.mrb[0].mxu0
      %v2441 = vadd.f32 0.0, %v2440
      %v2442 = vpop.f32.mrb[0].mxu0
      %2443 = vmatprep.mubr.bf16.mxu0 0
      %2444 = vmatmul.mubr.bf16.gmra.mrb[0].mxu0 %v425
      %v2445 = vpop.f32.mrb[0].mxu0
      %v2446 = vadd.f32 0.0, %v2445
      %v2447 = vpop.f32.mrb[0].mxu0
      %v2448 = vpop.f32.mrb[0].mxu0
      %v2449 = vadd.f32 0.0, %v2448
      %v2450 = vpop.f32.mrb[0].mxu0
      %2451 = vmatprep.mubr.bf16.mxu0 0
      %2452 = vmatmul.mubr.bf16.gmra.mrb[0].mxu0 %v426
      %v2453 = vpop.f32.mrb[0].mxu0
      %v2454 = vadd.f32 0.0, %v2453
      %v2455 = vpop.f32.mrb[0].mxu0
      %v2456 = vpop.f32.mrb[0].mxu0
      %v2457 = vadd.f32 0.0, %v2456
      %v2458 = vpop.f32.mrb[0].mxu0
      %2459 = vmatprep.mubr.bf16.mxu0 0
      %2460 = vmatmul.mubr.bf16.gmra.mrb[0].mxu0 %v427
      %v2461 = vpop.f32.mrb[0].mxu0
      %v2462 = vadd.f32 0.0, %v2461
      %v2463 = vpop.f32.mrb[0].mxu0
      %v2464 = vpop.f32.mrb[0].mxu0
      %v2465 = vadd.f32 0.0, %v2464
      %v2466 = vpop.f32.mrb[0].mxu0
      %2467 = vmatprep.mubr.bf16.mxu0 0
      %2468 = vmatmul.mubr.bf16.gmra.mrb[0].mxu0 %v428
      %v2469 = vpop.f32.mrb[0].mxu0
      %v2470 = vadd.f32 0.0, %v2469
      %v2471 = vpop.f32.mrb[0].mxu0
      %v2472 = vpop.f32.mrb[0].mxu0
      %v2473 = vadd.f32 0.0, %v2472
      %v2474 = vpop.f32.mrb[0].mxu0
      %2475 = vmatprep.mubr.bf16.mxu0 0
      %2476 = vmatmul.mubr.bf16.gmra.mrb[0].mxu0 %v429
      %v2477 = vpop.f32.mrb[0].mxu0
      %v2478 = vadd.f32 0.0, %v2477
      %v2479 = vpop.f32.mrb[0].mxu0
      %v2480 = vpop.f32.mrb[0].mxu0
      %v2481 = vadd.f32 0.0, %v2480
      %v2482 = vpop.f32.mrb[0].mxu0
      %2483 = vmatprep.mubr.bf16.mxu0 0
      %2484 = vmatmul.mubr.bf16.gmra.mrb[0].mxu0 %v430
      %v2485 = vpop.f32.mrb[0].mxu0
      %v2486 = vadd.f32 0.0, %v2485
      %v2487 = vpop.f32.mrb[0].mxu0
      %v2488 = vpop.f32.mrb[0].mxu0
      %v2489 = vadd.f32 0.0, %v2488
      %v2490 = vpop.f32.mrb[0].mxu0
      %2491 = vmatprep.mubr.bf16.mxu0 0
      %2492 = vmatmul.mubr.bf16.gmra.mrb[0].mxu0 %v431
      %v2493 = vpop.f32.mrb[0].mxu0
      %v2494 = vadd.f32 0.0, %v2493
      %v2495 = vpop.f32.mrb[0].mxu0
      %v2496 = vpop.f32.mrb[0].mxu0
      %v2497 = vadd.f32 0.0, %v2496
      %v2498 = vpop.f32.mrb[0].mxu0
      %2499 = vmatprep.mubr.bf16.mxu0 0
      %2500 = vmatmul.mubr.bf16.gmra.mrb[0].mxu0 %v432
      %v2501 = vpop.f32.mrb[0].mxu0
      %v2502 = vadd.f32 0.0, %v2501
      %v2503 = vpop.f32.mrb[0].mxu0
      %v2504 = vpop.f32.mrb[0].mxu0
      %v2505 = vadd.f32 0.0, %v2504
      %v2506 = vpop.f32.mrb[0].mxu0
      %2507 = vmatprep.mubr.bf16.mxu0 0
      %2508 = vmatmul.mubr.bf16.gmra.mrb[0].mxu0 %v433
      %v2509 = vpop.f32.mrb[0].mxu0
      %v2510 = vadd.f32 0.0, %v2509
      %v2511 = vpop.f32.mrb[0].mxu0
      %v2512 = vpop.f32.mrb[0].mxu0
      %v2513 = vadd.f32 0.0, %v2512
      %v2514 = vpop.f32.mrb[0].mxu0
      %2515 = vmatprep.mubr.bf16.mxu0 0
      %2516 = vmatmul.mubr.bf16.gmra.mrb[0].mxu0 %v434
      %v2517 = vpop.f32.mrb[0].mxu0
      %v2518 = vadd.f32 0.0, %v2517
      %v2519 = vpop.f32.mrb[0].mxu0
      %v2520 = vpop.f32.mrb[0].mxu0
      %v2521 = vadd.f32 0.0, %v2520
      %v2522 = vpop.f32.mrb[0].mxu0
      %2523 = vmatprep.mubr.bf16.mxu0 0
      %2524 = vmatmul.mubr.bf16.gmra.mrb[0].mxu0 %v435
      %v2525 = vpop.f32.mrb[0].mxu0
      %v2526 = vadd.f32 0.0, %v2525
      %v2527 = vpop.f32.mrb[0].mxu0
      %v2528 = vpop.f32.mrb[0].mxu0
      %v2529 = vadd.f32 0.0, %v2528
      %v2530 = vpop.f32.mrb[0].mxu0
      %2531 = vmatprep.mubr.bf16.mxu0 0
      %2532 = vmatmul.mubr.bf16.gmra.mrb[0].mxu0 %v1527
      %v2533 = vpop.f32.mrb[0].mxu0
      %v2534 = vadd.f32 0.0, %v2533
      %v2535 = vpop.f32.mrb[0].mxu0
      %v2536 = vpop.f32.mrb[0].mxu0
      %v2537 = vadd.f32 0.0, %v2536
      %v2538 = vpop.f32.mrb[0].mxu0
      %2539 = vmatprep.mubr.bf16.mxu0 0
      %2540 = vmatmul.mubr.bf16.gmra.mrb[0].mxu0 %v2321
      %v2541 = vpop.f32.mrb[0].mxu0
      %v2542 = vadd.f32 0.0, %v2541
      %v2543 = vpop.f32.mrb[0].mxu0
      %v2544 = vpop.f32.mrb[0].mxu0
      %v2545 = vadd.f32 0.0, %v2544
      %v2546 = vpop.f32.mrb[0].mxu0
      %2547 = vdwg.mxu0
      %v2548 = vadd.f32 %v2279, %v2422
      %v2549 = vadd.f32 %v2280, %v2425
      %v2550 = vadd.f32 %v2281, %v2430
      %v2551 = vadd.f32 %v2282, %v2433
      %v2552 = vadd.f32 %v2283, %v2438
      %v2553 = vadd.f32 %v2284, %v2441
      %v2554 = vadd.f32 %v2285, %v2446
      %v2555 = vadd.f32 %v2286, %v2449
      %v2556 = vadd.f32 %v2287, %v2454
      %v2557 = vadd.f32 %v2288, %v2457
      %v2558 = vadd.f32 %v2289, %v2462
      %v2559 = vadd.f32 %v2290, %v2465
      %v2560 = vadd.f32 %v2291, %v2470
      %v2561 = vadd.f32 %v2292, %v2473
      %v2562 = vadd.f32 %v2293, %v2478
      %v2563 = vadd.f32 %v2294, %v2481
      %v2564 = vadd.f32 %v2295, %v2486
      %v2565 = vadd.f32 %v2296, %v2489
      %v2566 = vadd.f32 %v2297, %v2494
      %v2567 = vadd.f32 %v2298, %v2497
      %v2568 = vadd.f32 %v2299, %v2502
      %v2569 = vadd.f32 %v2300, %v2505
      %v2570 = vadd.f32 %v2301, %v2510
      %v2571 = vadd.f32 %v2302, %v2513
      %v2572 = vadd.f32 %v2303, %v2518
      %v2573 = vadd.f32 %v2304, %v2521
      %v2574 = vadd.f32 %v2305, %v2526
      %v2575 = vadd.f32 %v2306, %v2529
      %v2576 = vadd.f32 %v2307, %v2534
      %v2577 = vadd.f32 %v2308, %v2537
      %v2578 = vadd.f32 %v2309, %v2542
      %v2579 = vadd.f32 %v2310, %v2545
      %v2580 = vrot.slane %v224, 2
      %v2581 = vrot.slane %v225, 2
      %v2582 = vsel %vm871, %v2580, %v2581
      %v2583 = vrot.slane %v226, 2
      %v2584 = vsel %vm871, %v2581, %v2583
      %v2587 = vpack.c.bf16 %v2584, %v2582
      %s2588 = scalar_lea.vmem %s1, 512
      %v2589 = vld [vmem:[%s2588] sm:$0xf]
      %v2590 = vld [vmem:[%s2588 + $0x4] sm:$0xf]
      %v2591 = vld [vmem:[%s2588 + $0x8] sm:$0xf]
      %v2592 = vld [vmem:[%s2588 + $0xc] sm:$0xf]
      %v2593 = vld [vmem:[%s2588 + $0x10] sm:$0xf]
      %v2594 = vld [vmem:[%s2588 + $0x14] sm:$0xf]
      %v2595 = vld [vmem:[%s2588 + $0x18] sm:$0xf]
      %v2596 = vld [vmem:[%s2588 + $0x1c] sm:$0xf]
      %v2597 = vld [vmem:[%s2588 + $0x20] sm:$0xf]
      %v2598 = vld [vmem:[%s2588 + $0x24] sm:$0xf]
      %v2599 = vld [vmem:[%s2588 + $0x28] sm:$0xf]
      %v2600 = vld [vmem:[%s2588 + $0x2c] sm:$0xf]
      %v2601 = vld [vmem:[%s2588 + $0x30] sm:$0xf]
      %v2602 = vld [vmem:[%s2588 + $0x34] sm:$0xf]
      %v2603 = vld [vmem:[%s2588 + $0x38] sm:$0xf]
      %v2604 = vld [vmem:[%s2588 + $0x3c] sm:$0xf]
      %v2621 = vunpack.c.l.b16 %v2589
      %v2622 = vunpack.c.l.b16 %v2590
      %v2623 = vunpack.c.l.b16 %v2591
      %v2624 = vunpack.c.l.b16 %v2592
      %v2625 = vunpack.c.l.b16 %v2593
      %v2626 = vunpack.c.l.b16 %v2594
      %v2627 = vunpack.c.l.b16 %v2595
      %v2628 = vunpack.c.l.b16 %v2596
      %v2629 = vunpack.c.l.b16 %v2597
      %v2630 = vunpack.c.l.b16 %v2598
      %v2631 = vunpack.c.l.b16 %v2599
      %v2632 = vunpack.c.l.b16 %v2600
      %v2633 = vunpack.c.l.b16 %v2601
      %v2634 = vunpack.c.l.b16 %v2602
      %v2635 = vunpack.c.l.b16 %v2603
      %v2636 = vunpack.c.l.b16 %v2604
      %v2637 = vpack.c.b16 %v2622, %v2621
      %v2638 = vpack.c.b16 %v2624, %v2623
      %v2639 = vpack.c.b16 %v2626, %v2625
      %v2640 = vpack.c.b16 %v2628, %v2627
      %v2641 = vpack.c.b16 %v2630, %v2629
      %v2642 = vpack.c.b16 %v2632, %v2631
      %v2643 = vpack.c.b16 %v2634, %v2633
      %v2644 = vpack.c.b16 %v2636, %v2635
      %2653 = vmatprep.subr.bf16.mxu0 0
      %2654 = vmatpush1.bf16.msra.mxu0 %v2637
      %2655 = vmatprep.subr.bf16.mxu0 0
      %2656 = vmatpush1.bf16.msra.mxu0 %v2638
      %2657 = vmatprep.subr.bf16.mxu0 0
      %2658 = vmatpush1.bf16.msra.mxu0 %v2639
      %2659 = vmatprep.subr.bf16.mxu0 0
      %2660 = vmatpush1.bf16.msra.mxu0 %v2640
      %2661 = vmatprep.subr.bf16.mxu0 0
      %2662 = vmatpush1.bf16.msra.mxu0 %v2641
      %2663 = vmatprep.subr.bf16.mxu0 0
      %2664 = vmatpush1.bf16.msra.mxu0 %v2642
      %2665 = vmatprep.subr.bf16.mxu0 0
      %2666 = vmatpush1.bf16.msra.mxu0 %v2643
      %2667 = vmatprep.subr.bf16.mxu0 0
      %2668 = vmatpush1.bf16.msra.mxu0 %v2644
      %2669 = vmatprep.subr.bf16.mxu0 0
      %2670 = vmatpush1.bf16.msra.mxu0 0
      %2671 = vmatprep.subr.bf16.mxu0 0
      %2672 = vmatpush1.bf16.msra.mxu0 0
      %2673 = vmatprep.subr.bf16.mxu0 0
      %2674 = vmatpush1.bf16.msra.mxu0 0
      %2675 = vmatprep.subr.bf16.mxu0 0
      %2676 = vmatpush1.bf16.msra.mxu0 0
      %2677 = vmatprep.subr.bf16.mxu0 0
      %2678 = vmatpush1.bf16.msra.mxu0 0
      %2679 = vmatprep.subr.bf16.mxu0 0
      %2680 = vmatpush1.bf16.msra.mxu0 0
      %2681 = vmatprep.subr.bf16.mxu0 0
      %2682 = vmatpush1.bf16.msra.mxu0 0
      %2683 = vmatprep.subr.bf16.mxu0 0
      %2684 = vmatpush1.bf16.msra.mxu0 0
      %2685 = vmatprep.mubr.bf16.mxu0 0
      %2686 = vmatmul.mubr.bf16.gmra.mrb[0].mxu0 %v986
      %v2687 = vpop.f32.mrb[0].mxu0
      %v2688 = vadd.f32 0.0, %v2687
      %v2689 = vpop.f32.mrb[0].mxu0
      %v2690 = vpop.f32.mrb[0].mxu0
      %v2691 = vadd.f32 0.0, %v2690
      %v2692 = vpop.f32.mrb[0].mxu0
      %2693 = vmatprep.mubr.bf16.mxu0 0
      %2694 = vmatmul.mubr.bf16.gmra.mrb[0].mxu0 %v987
      %v2695 = vpop.f32.mrb[0].mxu0
      %v2696 = vadd.f32 0.0, %v2695
      %v2697 = vpop.f32.mrb[0].mxu0
      %v2698 = vpop.f32.mrb[0].mxu0
      %v2699 = vadd.f32 0.0, %v2698
      %v2700 = vpop.f32.mrb[0].mxu0
      %2701 = vmatprep.mubr.bf16.mxu0 0
      %2702 = vmatmul.mubr.bf16.gmra.mrb[0].mxu0 %v988
      %v2703 = vpop.f32.mrb[0].mxu0
      %v2704 = vadd.f32 0.0, %v2703
      %v2705 = vpop.f32.mrb[0].mxu0
      %v2706 = vpop.f32.mrb[0].mxu0
      %v2707 = vadd.f32 0.0, %v2706
      %v2708 = vpop.f32.mrb[0].mxu0
      %2709 = vmatprep.mubr.bf16.mxu0 0
      %2710 = vmatmul.mubr.bf16.gmra.mrb[0].mxu0 %v989
      %v2711 = vpop.f32.mrb[0].mxu0
      %v2712 = vadd.f32 0.0, %v2711
      %v2713 = vpop.f32.mrb[0].mxu0
      %v2714 = vpop.f32.mrb[0].mxu0
      %v2715 = vadd.f32 0.0, %v2714
      %v2716 = vpop.f32.mrb[0].mxu0
      %2717 = vmatprep.mubr.bf16.mxu0 0
      %2718 = vmatmul.mubr.bf16.gmra.mrb[0].mxu0 %v990
      %v2719 = vpop.f32.mrb[0].mxu0
      %v2720 = vadd.f32 0.0, %v2719
      %v2721 = vpop.f32.mrb[0].mxu0
      %v2722 = vpop.f32.mrb[0].mxu0
      %v2723 = vadd.f32 0.0, %v2722
      %v2724 = vpop.f32.mrb[0].mxu0
      %2725 = vmatprep.mubr.bf16.mxu0 0
      %2726 = vmatmul.mubr.bf16.gmra.mrb[0].mxu0 %v991
      %v2727 = vpop.f32.mrb[0].mxu0
      %v2728 = vadd.f32 0.0, %v2727
      %v2729 = vpop.f32.mrb[0].mxu0
      %v2730 = vpop.f32.mrb[0].mxu0
      %v2731 = vadd.f32 0.0, %v2730
      %v2732 = vpop.f32.mrb[0].mxu0
      %2733 = vmatprep.mubr.bf16.mxu0 0
      %2734 = vmatmul.mubr.bf16.gmra.mrb[0].mxu0 %v992
      %v2735 = vpop.f32.mrb[0].mxu0
      %v2736 = vadd.f32 0.0, %v2735
      %v2737 = vpop.f32.mrb[0].mxu0
      %v2738 = vpop.f32.mrb[0].mxu0
      %v2739 = vadd.f32 0.0, %v2738
      %v2740 = vpop.f32.mrb[0].mxu0
      %2741 = vmatprep.mubr.bf16.mxu0 0
      %2742 = vmatmul.mubr.bf16.gmra.mrb[0].mxu0 %v993
      %v2743 = vpop.f32.mrb[0].mxu0
      %v2744 = vadd.f32 0.0, %v2743
      %v2745 = vpop.f32.mrb[0].mxu0
      %v2746 = vpop.f32.mrb[0].mxu0
      %v2747 = vadd.f32 0.0, %v2746
      %v2748 = vpop.f32.mrb[0].mxu0
      %2749 = vmatprep.mubr.bf16.mxu0 0
      %2750 = vmatmul.mubr.bf16.gmra.mrb[0].mxu0 %v994
      %v2751 = vpop.f32.mrb[0].mxu0
      %v2752 = vadd.f32 0.0, %v2751
      %v2753 = vpop.f32.mrb[0].mxu0
      %v2754 = vpop.f32.mrb[0].mxu0
      %v2755 = vadd.f32 0.0, %v2754
      %v2756 = vpop.f32.mrb[0].mxu0
      %2757 = vmatprep.mubr.bf16.mxu0 0
      %2758 = vmatmul.mubr.bf16.gmra.mrb[0].mxu0 %v995
      %v2759 = vpop.f32.mrb[0].mxu0
      %v2760 = vadd.f32 0.0, %v2759
      %v2761 = vpop.f32.mrb[0].mxu0
      %v2762 = vpop.f32.mrb[0].mxu0
      %v2763 = vadd.f32 0.0, %v2762
      %v2764 = vpop.f32.mrb[0].mxu0
      %2765 = vmatprep.mubr.bf16.mxu0 0
      %2766 = vmatmul.mubr.bf16.gmra.mrb[0].mxu0 %v996
      %v2767 = vpop.f32.mrb[0].mxu0
      %v2768 = vadd.f32 0.0, %v2767
      %v2769 = vpop.f32.mrb[0].mxu0
      %v2770 = vpop.f32.mrb[0].mxu0
      %v2771 = vadd.f32 0.0, %v2770
      %v2772 = vpop.f32.mrb[0].mxu0
      %2773 = vmatprep.mubr.bf16.mxu0 0
      %2774 = vmatmul.mubr.bf16.gmra.mrb[0].mxu0 %v997
      %v2775 = vpop.f32.mrb[0].mxu0
      %v2776 = vadd.f32 0.0, %v2775
      %v2777 = vpop.f32.mrb[0].mxu0
      %v2778 = vpop.f32.mrb[0].mxu0
      %v2779 = vadd.f32 0.0, %v2778
      %v2780 = vpop.f32.mrb[0].mxu0
      %2781 = vmatprep.mubr.bf16.mxu0 0
      %2782 = vmatmul.mubr.bf16.gmra.mrb[0].mxu0 %v998
      %v2783 = vpop.f32.mrb[0].mxu0
      %v2784 = vadd.f32 0.0, %v2783
      %v2785 = vpop.f32.mrb[0].mxu0
      %v2786 = vpop.f32.mrb[0].mxu0
      %v2787 = vadd.f32 0.0, %v2786
      %v2788 = vpop.f32.mrb[0].mxu0
      %2789 = vmatprep.mubr.bf16.mxu0 0
      %2790 = vmatmul.mubr.bf16.gmra.mrb[0].mxu0 %v999
      %v2791 = vpop.f32.mrb[0].mxu0
      %v2792 = vadd.f32 0.0, %v2791
      %v2793 = vpop.f32.mrb[0].mxu0
      %v2794 = vpop.f32.mrb[0].mxu0
      %v2795 = vadd.f32 0.0, %v2794
      %v2796 = vpop.f32.mrb[0].mxu0
      %2797 = vmatprep.mubr.bf16.mxu0 0
      %2798 = vmatmul.mubr.bf16.gmra.mrb[0].mxu0 %v1793
      %v2799 = vpop.f32.mrb[0].mxu0
      %v2800 = vadd.f32 0.0, %v2799
      %v2801 = vpop.f32.mrb[0].mxu0
      %v2802 = vpop.f32.mrb[0].mxu0
      %v2803 = vadd.f32 0.0, %v2802
      %v2804 = vpop.f32.mrb[0].mxu0
      %2805 = vmatprep.mubr.bf16.mxu0 0
      %2806 = vmatmul.mubr.bf16.gmra.mrb[0].mxu0 %v2587
      %v2807 = vpop.f32.mrb[0].mxu0
      %v2808 = vadd.f32 0.0, %v2807
      %v2809 = vpop.f32.mrb[0].mxu0
      %v2810 = vpop.f32.mrb[0].mxu0
      %v2811 = vadd.f32 0.0, %v2810
      %v2812 = vpop.f32.mrb[0].mxu0
      %2813 = vdwg.mxu0
      %v2814 = vadd.f32 %v2548, %v2688
      %v2815 = vadd.f32 %v2549, %v2691
      %v2816 = vadd.f32 %v2550, %v2696
      %v2817 = vadd.f32 %v2551, %v2699
      %v2818 = vadd.f32 %v2552, %v2704
      %v2819 = vadd.f32 %v2553, %v2707
      %v2820 = vadd.f32 %v2554, %v2712
      %v2821 = vadd.f32 %v2555, %v2715
      %v2822 = vadd.f32 %v2556, %v2720
      %v2823 = vadd.f32 %v2557, %v2723
      %v2824 = vadd.f32 %v2558, %v2728
      %v2825 = vadd.f32 %v2559, %v2731
      %v2826 = vadd.f32 %v2560, %v2736
      %v2827 = vadd.f32 %v2561, %v2739
      %v2828 = vadd.f32 %v2562, %v2744
      %v2829 = vadd.f32 %v2563, %v2747
      %v2830 = vadd.f32 %v2564, %v2752
      %v2831 = vadd.f32 %v2565, %v2755
      %v2832 = vadd.f32 %v2566, %v2760
      %v2833 = vadd.f32 %v2567, %v2763
      %v2834 = vadd.f32 %v2568, %v2768
      %v2835 = vadd.f32 %v2569, %v2771
      %v2836 = vadd.f32 %v2570, %v2776
      %v2837 = vadd.f32 %v2571, %v2779
      %v2838 = vadd.f32 %v2572, %v2784
      %v2839 = vadd.f32 %v2573, %v2787
      %v2840 = vadd.f32 %v2574, %v2792
      %v2841 = vadd.f32 %v2575, %v2795
      %v2842 = vadd.f32 %v2576, %v2800
      %v2843 = vadd.f32 %v2577, %v2803
      %v2844 = vadd.f32 %v2578, %v2808
      %v2845 = vadd.f32 %v2579, %v2811
      %v2846 = vld [vmem:[%s2] sm:$0x1]
      %v2848 = vlaneseq
      %v2849 = vshrl.u32 %v2848, 7
      %v2850 = vsub.s32 0, %v2849
      %v2851 = vrot.slane %v2846, %v2850
      %v2853 = vadd.f32 %v2814, %v2851
      %v2854 = vadd.f32 %v2815, %v2851
      %v2855 = vadd.f32 %v2816, %v2851
      %v2856 = vadd.f32 %v2817, %v2851
      %v2857 = vadd.f32 %v2818, %v2851
      %v2858 = vadd.f32 %v2819, %v2851
      %v2859 = vadd.f32 %v2820, %v2851
      %v2860 = vadd.f32 %v2821, %v2851
      %v2861 = vadd.f32 %v2822, %v2851
      %v2862 = vadd.f32 %v2823, %v2851
      %v2863 = vadd.f32 %v2824, %v2851
      %v2864 = vadd.f32 %v2825, %v2851
      %v2865 = vadd.f32 %v2826, %v2851
      %v2866 = vadd.f32 %v2827, %v2851
      %v2867 = vadd.f32 %v2828, %v2851
      %v2868 = vadd.f32 %v2829, %v2851
      %v2869 = vadd.f32 %v2830, %v2851
      %v2870 = vadd.f32 %v2831, %v2851
      %v2871 = vadd.f32 %v2832, %v2851
      %v2872 = vadd.f32 %v2833, %v2851
      %v2873 = vadd.f32 %v2834, %v2851
      %v2874 = vadd.f32 %v2835, %v2851
      %v2875 = vadd.f32 %v2836, %v2851
      %v2876 = vadd.f32 %v2837, %v2851
      %v2877 = vadd.f32 %v2838, %v2851
      %v2878 = vadd.f32 %v2839, %v2851
      %v2879 = vadd.f32 %v2840, %v2851
      %v2880 = vadd.f32 %v2841, %v2851
      %v2881 = vadd.f32 %v2842, %v2851
      %v2882 = vadd.f32 %v2843, %v2851
      %v2883 = vadd.f32 %v2844, %v2851
      %v2884 = vadd.f32 %v2845, %v2851
      %2885 = vst [vmem:[%s170] sm:$0xff] %v2853
      %2886 = vst [vmem:[%s170 + $0x8] sm:$0xff] %v2854
      %2887 = vst [vmem:[%s170 + $0x10] sm:$0xff] %v2855
      %2888 = vst [vmem:[%s170 + $0x18] sm:$0xff] %v2856
      %2889 = vst [vmem:[%s170 + $0x20] sm:$0xff] %v2857
      %2890 = vst [vmem:[%s170 + $0x28] sm:$0xff] %v2858
      %2891 = vst [vmem:[%s170 + $0x30] sm:$0xff] %v2859
      %2892 = vst [vmem:[%s170 + $0x38] sm:$0xff] %v2860
      %2893 = vst [vmem:[%s170 + $0x40] sm:$0xff] %v2861
      %2894 = vst [vmem:[%s170 + $0x48] sm:$0xff] %v2862
      %2895 = vst [vmem:[%s170 + $0x50] sm:$0xff] %v2863
      %2896 = vst [vmem:[%s170 + $0x58] sm:$0xff] %v2864
      %2897 = vst [vmem:[%s170 + $0x60] sm:$0xff] %v2865
      %2898 = vst [vmem:[%s170 + $0x68] sm:$0xff] %v2866
      %2899 = vst [vmem:[%s170 + $0x70] sm:$0xff] %v2867
      %2900 = vst [vmem:[%s170 + $0x78] sm:$0xff] %v2868
      %2901 = vst [vmem:[%s170 + $0x80] sm:$0xff] %v2869
      %2902 = vst [vmem:[%s170 + $0x88] sm:$0xff] %v2870
      %2903 = vst [vmem:[%s170 + $0x90] sm:$0xff] %v2871
      %2904 = vst [vmem:[%s170 + $0x98] sm:$0xff] %v2872
      %2905 = vst [vmem:[%s170 + $0xa0] sm:$0xff] %v2873
      %2906 = vst [vmem:[%s170 + $0xa8] sm:$0xff] %v2874
      %2907 = vst [vmem:[%s170 + $0xb0] sm:$0xff] %v2875
      %2908 = vst [vmem:[%s170 + $0xb8] sm:$0xff] %v2876
      %2909 = vst [vmem:[%s170 + $0xc0] sm:$0xff] %v2877
      %2910 = vst [vmem:[%s170 + $0xc8] sm:$0xff] %v2878
      %2911 = vst [vmem:[%s170 + $0xd0] sm:$0xff] %v2879
      %2912 = vst [vmem:[%s170 + $0xd8] sm:$0xff] %v2880
      %2913 = vst [vmem:[%s170 + $0xe0] sm:$0xff] %v2881
      %2914 = vst [vmem:[%s170 + $0xe8] sm:$0xff] %v2882
      %2915 = vst [vmem:[%s170 + $0xf0] sm:$0xff] %v2883
      %2916 = vst [vmem:[%s170 + $0xf8] sm:$0xff] %v2884
      %s2917 = smul.u32 32, %s14
      %p2918 = scmp.lt.s32.totalorder %s2917, 63
      %s2919 = scalar_select %p2918, %s2917, 63
      %s2920 = smul.addr %s2919, 8
      %s2921 = scalar_lea.vmem %s3, %s2920
      // Predicated region
      $region33: #{gblock_forward.14} parent=31 // pred_check
        %p2922 = pneg %p100
      $region34: #{gblock_forward.14} parent=31 // pred_check_branch
        %2924 = sbr.rel (%p2922) target = $region36
      $region35: #{gblock_forward.14} parent=31 // pred_region
        %s2925 = smul.u32 32, %s14
      $region36: #{gblock_forward.14} parent=31 // pred_fallthru
        _
    $region32: #{gblock_forward.14} parent=5 // pred_fallthru
      _
    %p2926 = scmp.le.s32.totalorder 2, %s9
    // Predicated region
    $region37: #{gblock_forward.14} parent=5 // pred_check
      %p2927 = pneg %p2926
    $region38: #{gblock_forward.14} parent=5 // pred_check_branch
      %2929 = sbr.rel (%p2927) target = $region40
    $region39: #{gblock_forward.14} parent=5 // pred_region
      %s2930 = ssub.s32 %s9, 2
      // Predicated region
      $region41: #{gblock_forward.14} parent=39 // pred_check
        %p2931 = pneg %p106
      $region42: #{gblock_forward.14} parent=39 // pred_check_branch
        %2933 = sbr.rel (%p2931) target = $region44
      $region43: #{gblock_forward.14} parent=39 // pred_region
        %s2934 = smul.u32 32, %s15
        %p2935 = scmp.lt.s32.totalorder %s2934, 63
        %s2936 = scalar_select %p2935, %s2934, 63
        %s2937 = smul.addr %s2936, 8
        %s2938 = scalar_lea.vmem %s3, %s2937
      $region44: #{gblock_forward.14} parent=39 // pred_fallthru
        _
    $region40: #{gblock_forward.14} parent=5 // pred_fallthru
      _
  $region6: #{gblock_forward.14} parent=0 // loop_footer
    %s13 = sadd.s32 1, %s9
  $region7: #{gblock_forward.14} parent=0 // loop_footer_branch
    %8 = sbr.rel target = $region3
  $region8: #{gblock_forward.14} parent=0 // loop_exit
    _

</llo_original>
